<compile_context>
chip_gen: v7x
topology: tpu7x:2x2x1
jax: 0.10.0
libtpu: 0.0.40
codegen_flags: <defaults>
</compile_context>

<pallas_src>
import functools

import jax
import jax.numpy as jnp
from jax.experimental import pallas as pl
from jax.experimental.pallas import tpu as pltpu

LANE = 128
VMEM_LIMIT = 32 * 1024 * 1024  # safe on v5e/v6e (128 MiB phys) and v7x (64 MiB)


# ---------------------------------------------------------------------------
# small helpers
# ---------------------------------------------------------------------------
def _round_up(n, m):
    return ((n + m - 1) // m) * m


def _pick_m_tile(m):
    """Largest M tile (prefer 512) that divides m; fall back to m itself."""
    for c in (512, 256, 128, 64, 32, 16, 8):
        if m % c == 0:
            return c
    return m  # tiny / odd M only; guarded by the small shapes used here


def _pick_row_tile(h, w, max_rows=128):
    """Row tile TH such that TH divides H and TH*W is a multiple of 8
    (clean sublane stores), preferring TH*W close to max_rows.  Falls back to
    the full image (TH == H, always a legal full-dim block)."""
    best = h
    for th in range(1, h + 1):
        if h % th == 0 and (th * w) % 8 == 0 and th * w <= max_rows:
            best = th
    return best


def _pad_axis(x, target, axis):
    pad = target - x.shape[axis]
    if pad <= 0:
        return x
    widths = [(0, 0)] * x.ndim
    widths[axis] = (0, pad)
    return jnp.pad(x, widths)


# ---------------------------------------------------------------------------
# Pallas kernels
# ---------------------------------------------------------------------------
def _fused_1x1_kernel(x_ref, w_ref, b_ref, o1_ref, o2_ref, o3_ref,
                      *, c1, wb1, wb2):
    """relu(x @ w_fused + b): one M tile, full K, three lane-block outputs."""
    acc = jnp.dot(x_ref[...], w_ref[...], preferred_element_type=jnp.float32)
    act = jnp.maximum(acc + b_ref[...], 0.0)
    o1_ref[...] = act[:, :c1].astype(o1_ref.dtype)                 # p1 (exact)
    o2_ref[...] = act[:, wb1:wb1 + wb2].astype(o2_ref.dtype)       # p2_1 (padded)
    o3_ref[...] = act[:, wb1 + wb2:].astype(o3_ref.dtype)          # p3_1 (padded)


def _conv_kxk_im2col_kernel(x_ref, w_ref, b_ref, o_ref, xpad_ref, col_ref,
                            *, k, th):
    """k x k conv (stride 1, pad (k-1)//2) + bias + ReLU for one row tile.

    The zero-padded image lives in a VMEM scratch built once per image
    (row-tile grid axis is 'arbitrary' so this is safe).  Per row tile an
    im2col slab (th*W, k*k*C) is assembled with lane-aligned column stores and
    contracted against the im2col-layout weight with a single long-K dot.
    """
    _, H, W, C = x_ref.shape
    pad = (k - 1) // 2

    @pl.when(pl.program_id(1) == 0)
    def _build_padded_image():
        xpad_ref[...] = jnp.zeros_like(xpad_ref)
        xpad_ref[pad:pad + H, pad:pad + W, :] = x_ref[0]

    row0 = pl.program_id(1) * th
    for kh in range(k):
        rows = xpad_ref[pl.ds(row0 + kh, th), :, :]        # (th, W + k - 1, C)
        for kw in range(k):
            tap = kh * k + kw
            col_ref[:, :, tap * C:(tap + 1) * C] = rows[:, kw:kw + W, :]

    patches = col_ref[...].reshape(th * W, k * k * C)
    acc = jnp.dot(patches, w_ref[...], preferred_element_type=jnp.float32)
    o_ref[0] = jnp.maximum(acc + b_ref[...], 0.0).astype(o_ref.dtype)


def _maxpool3x3_conv1x1_kernel(x_ref, w_ref, b_ref, o_ref, xpad_ref, *, th):
    """Fused 3x3/stride-1 max-pool + 1x1 conv + bias + ReLU for one row tile.

    -inf padded image built once per image in VMEM; the pool is separable
    (3 maxima over W shifts, then 3 maxima over H shifts).
    """
    _, H, W, C = x_ref.shape

    @pl.when(pl.program_id(1) == 0)
    def _build_padded_image():
        xpad_ref[...] = jnp.full(xpad_ref.shape, -jnp.inf, xpad_ref.dtype)
        xpad_ref[1:1 + H, 1:1 + W, :] = x_ref[0]

    row0 = pl.program_id(1) * th
    rows = xpad_ref[pl.ds(row0, th + 2), :, :]                     # (th+2, W+2, C)
    wmax = jnp.maximum(jnp.maximum(rows[:, 0:W, :], rows[:, 1:W + 1, :]),
                       rows[:, 2:W + 2, :])                        # (th+2, W, C)
    pooled = jnp.maximum(jnp.maximum(wmax[0:th], wmax[1:th + 1]),
                         wmax[2:th + 2])                           # (th, W, C)
    acc = jnp.dot(pooled.reshape(th * W, C), w_ref[...],
                  preferred_element_type=jnp.float32)
    o_ref[0] = jnp.maximum(acc + b_ref[...], 0.0).astype(o_ref.dtype)


# ---------------------------------------------------------------------------
# pallas_call wrappers
# ---------------------------------------------------------------------------
def fused_1x1_matmul(x2d, w, b, c1, wb1, wb2, wb3):
    """x2d (M, Cin) bf16, w (Cin, wb1+wb2+wb3) bf16, b (1, total) f32
    -> (p1 (M,c1), y (M,wb2), z (M,wb3)) bf16."""
    M, K = x2d.shape
    total = w.shape[1]
    TM = _pick_m_tile(M)
    flops = 2 * M * K * total
    bytes_accessed = M * K * 2 + K * total * 2 + total * 4 + M * (c1 + wb2 + wb3) * 2
    kernel = functools.partial(_fused_1x1_kernel, c1=c1, wb1=wb1, wb2=wb2)
    return pl.pallas_call(
        kernel,
        out_shape=(jax.ShapeDtypeStruct((M, c1), jnp.bfloat16),
                   jax.ShapeDtypeStruct((M, wb2), jnp.bfloat16),
                   jax.ShapeDtypeStruct((M, wb3), jnp.bfloat16)),
        grid=(M // TM,),
        in_specs=[
            pl.BlockSpec((TM, K), lambda i: (i, 0)),
            pl.BlockSpec((K, total), lambda i: (0, 0)),   # resident weight
            pl.BlockSpec((1, total), lambda i: (0, 0)),   # resident bias
        ],
        out_specs=(
            pl.BlockSpec((TM, c1), lambda i: (i, 0)),
            pl.BlockSpec((TM, wb2), lambda i: (i, 0)),
            pl.BlockSpec((TM, wb3), lambda i: (i, 0)),
        ),
        compiler_params=pltpu.CompilerParams(
            dimension_semantics=("parallel",),
            vmem_limit_bytes=VMEM_LIMIT),
        cost_estimate=pl.CostEstimate(flops=flops, transcendentals=0,
                                      bytes_accessed=bytes_accessed),
    )(x2d, w, b)


def conv_kxk_bias_relu(x, w_col, b, k):
    """k x k conv on NHWC x (padding folded in-kernel); w_col (k*k*C, Cout)."""
    N, H, W, C = x.shape
    Cout = w_col.shape[1]
    TH = _pick_row_tile(H, W)
    R = H // TH
    flops = 2 * N * H * W * k * k * C * Cout
    bytes_accessed = x.size * 2 + w_col.size * 2 + Cout * 4 + N * H * W * Cout * 2
    kernel = functools.partial(_conv_kxk_im2col_kernel, k=k, th=TH)
    return pl.pallas_call(
        kernel,
        out_shape=jax.ShapeDtypeStruct((N, H * W, Cout), jnp.bfloat16),
        grid=(N, R),
        in_specs=[
            pl.BlockSpec((1, H, W, C), lambda n, r: (n, 0, 0, 0)),
            pl.BlockSpec((k * k * C, Cout), lambda n, r: (0, 0)),
            pl.BlockSpec((1, Cout), lambda n, r: (0, 0)),
        ],
        out_specs=pl.BlockSpec((1, TH * W, Cout), lambda n, r: (n, r, 0)),
        scratch_shapes=[
            pltpu.VMEM((H + k - 1, W + k - 1, C), jnp.bfloat16),  # padded image
            pltpu.VMEM((TH, W, k * k * C), jnp.bfloat16),         # im2col slab
        ],
        compiler_params=pltpu.CompilerParams(
            # row-tile axis reuses the per-image padded scratch -> arbitrary
            dimension_semantics=("parallel", "arbitrary"),
            vmem_limit_bytes=VMEM_LIMIT),
        cost_estimate=pl.CostEstimate(flops=flops, transcendentals=0,
                                      bytes_accessed=bytes_accessed),
    )(x, w_col, b)


def maxpool3x3_conv1x1_relu(x, w, b):
    """Fused 3x3/stride-1 max-pool (pad 1, -inf) + 1x1 conv + ReLU on NHWC x."""
    N, H, W, C = x.shape
    Cout = w.shape[1]
    TH = _pick_row_tile(H, W)
    R = H // TH
    flops = 2 * N * H * W * C * Cout
    bytes_accessed = x.size * 2 + w.size * 2 + Cout * 4 + N * H * W * Cout * 2
    kernel = functools.partial(_maxpool3x3_conv1x1_kernel, th=TH)
    return pl.pallas_call(
        kernel,
        out_shape=jax.ShapeDtypeStruct((N, H * W, Cout), jnp.bfloat16),
        grid=(N, R),
        in_specs=[
            pl.BlockSpec((1, H, W, C), lambda n, r: (n, 0, 0, 0)),
            pl.BlockSpec((C, Cout), lambda n, r: (0, 0)),
            pl.BlockSpec((1, Cout), lambda n, r: (0, 0)),
        ],
        out_specs=pl.BlockSpec((1, TH * W, Cout), lambda n, r: (n, r, 0)),
        scratch_shapes=[
            pltpu.VMEM((H + 2, W + 2, C), jnp.bfloat16),
        ],
        compiler_params=pltpu.CompilerParams(
            dimension_semantics=("parallel", "arbitrary"),
            vmem_limit_bytes=VMEM_LIMIT),
        cost_estimate=pl.CostEstimate(flops=flops, transcendentals=0,
                                      bytes_accessed=bytes_accessed),
    )(x, w, b)


# ---------------------------------------------------------------------------
# Inception forward (Pallas)
# ---------------------------------------------------------------------------
def inception_forward(x_nchw, params, cfg):
    in_channels, c1, (c2_0, c2_1), (c3_0, c3_1), c4 = cfg
    N, Cin, H, W = x_nchw.shape
    M = N * H * W

    # TODO(synk): NCHW<->NHWC transposes and the channel concat stay in XLA.
    x = jnp.transpose(x_nchw, (0, 2, 3, 1)).astype(jnp.bfloat16)   # NHWC bf16

    wb1 = _round_up(c1, LANE)
    wb2 = _round_up(c2_0, LANE)
    wb3 = _round_up(c3_0, LANE)

    # fused 1x1 convs (p1_1 | p2_1 | p3_1): one matmul, three lane-block outs.
    p1, y_flat, z_flat = fused_1x1_matmul(
        x.reshape(M, Cin), params["w_fused"], params["b_fused"],
        c1, wb1, wb2, wb3)

    y = y_flat.reshape(N, H, W, wb2)   # free (contiguous) reshapes
    z = z_flat.reshape(N, H, W, wb3)

    # p2: 3x3 conv (pad 1); p3: 5x5 conv (pad 2).  Padding + im2col in-kernel.
    p2 = conv_kxk_bias_relu(y, params["w2_2"], params["b2_2"], 3)   # (N,H*W,c2_1)
    p3 = conv_kxk_bias_relu(z, params["w3_2"], params["b3_2"], 5)   # (N,H*W,c3_1)

    # p4: fused 3x3 max-pool (stride 1, pad 1, -inf) + 1x1 conv + ReLU.
    p4 = maxpool3x3_conv1x1_relu(x, params["w4"], params["b4"])     # (N,H*W,c4)

    # bf16 concat; single NHWC->NCHW transpose + f32 cast pass at the end.
    out = jnp.concatenate([p1.reshape(N, H * W, c1), p2, p3, p4], axis=-1)
    out = out.reshape(N, H, W, c1 + c2_1 + c3_1 + c4)
    return jnp.transpose(out, (0, 3, 1, 2)).astype(jnp.float32)


# ---------------------------------------------------------------------------
# Parameter init (PyTorch conv shapes) and conversion to kernel layout
# ---------------------------------------------------------------------------
def init_torch_params(key, in_channels, c1, c2, c3, c4):
    keys = jax.random.split(key, 12)

    def conv_wb(kw_, kb_, cout, cin, ksz):
        scale = 1.0 / jnp.sqrt(jnp.float32(cin * ksz * ksz))
        w = jax.random.uniform(kw_, (cout, cin, ksz, ksz), jnp.float32, -scale, scale)
        b = jax.random.uniform(kb_, (cout,), jnp.float32, -scale, scale)
        return w, b

    tw = {}
    tw["w1"], tw["b1"] = conv_wb(keys[0], keys[1], c1, in_channels, 1)
    tw["w2_1"], tw["b2_1"] = conv_wb(keys[2], keys[3], c2[0], in_channels, 1)
    tw["w2_2"], tw["b2_2"] = conv_wb(keys[4], keys[5], c2[1], c2[0], 3)
    tw["w3_1"], tw["b3_1"] = conv_wb(keys[6], keys[7], c3[0], in_channels, 1)
    tw["w3_2"], tw["b3_2"] = conv_wb(keys[8], keys[9], c3[1], c3[0], 5)
    tw["w4"], tw["b4"] = conv_wb(keys[10], keys[11], c4, in_channels, 1)
    return tw


def prepare_inception_params(tw):
    """Torch OIHW weights -> bf16 Pallas layouts.

    Invariant: padded channels of the fused 1x1 output carry zero weight AND
    zero bias, so relu(0) = 0 and the (zero) padded rows of the k x k im2col
    weights contribute nothing.
    """
    def w1x1(w):                                  # (Cout, Cin, 1, 1) -> (Cin, Cout)
        return jnp.transpose(w[:, :, 0, 0], (1, 0))

    def w_im2col(w, cin_pad):                     # (Cout,Cin,k,k) -> (k*k*cin_p, Cout)
        cout, cin, k, _ = w.shape
        wt = jnp.transpose(w, (2, 3, 1, 0))       # (k, k, cin, cout)
        wt = _pad_axis(wt, cin_pad, 2)
        return wt.reshape(k * k * cin_pad, cout).astype(jnp.bfloat16)

    cin = tw["w1"].shape[1]
    c1 = tw["w1"].shape[0]
    c2_0 = tw["w2_1"].shape[0]
    c3_0 = tw["w3_1"].shape[0]

    wb1, wb2, wb3 = _round_up(c1, LANE), _round_up(c2_0, LANE), _round_up(c3_0, LANE)
    off2, off3 = wb1, wb1 + wb2
    total = wb1 + wb2 + wb3

    wf = jnp.zeros((cin, total), jnp.float32)
    bf = jnp.zeros((1, total), jnp.float32)
    wf = wf.at[:, :c1].set(w1x1(tw["w1"]))
    bf = bf.at[0, :c1].set(tw["b1"])
    wf = wf.at[:, off2:off2 + c2_0].set(w1x1(tw["w2_1"]))
    bf = bf.at[0, off2:off2 + c2_0].set(tw["b2_1"])
    wf = wf.at[:, off3:off3 + c3_0].set(w1x1(tw["w3_1"]))
    bf = bf.at[0, off3:off3 + c3_0].set(tw["b3_1"])

    return {
        "w_fused": wf.astype(jnp.bfloat16),
        "b_fused": bf,
        "w2_2": w_im2col(tw["w2_2"], wb2),
        "b2_2": tw["b2_2"][None, :],
        "w3_2": w_im2col(tw["w3_2"], wb3),
        "b3_2": tw["b3_2"][None, :],
        "w4": w1x1(tw["w4"]).astype(jnp.bfloat16),
        "b4": tw["b4"][None, :],
    }


# ---------------------------------------------------------------------------
# Pure-JAX reference (NCHW, matches the PyTorch module; bf16-quantized inputs)
# ---------------------------------------------------------------------------
def inception_reference(x, tw):
    q = lambda a: a.astype(jnp.bfloat16).astype(jnp.float32)

    def conv(xx, w, b, pad):
        y = jax.lax.conv_general_dilated(
            xx, q(w), (1, 1), [(pad, pad), (pad, pad)],
            dimension_numbers=("NCHW", "OIHW", "NCHW"))
        return y + b[None, :, None, None]

    relu = jax.nn.relu
    xq = q(x)
    p1 = relu(conv(xq, tw["w1"], tw["b1"], 0))
    y = q(relu(conv(xq, tw["w2_1"], tw["b2_1"], 0)))
    p2 = relu(conv(y, tw["w2_2"], tw["b2_2"], 1))
    z = q(relu(conv(xq, tw["w3_1"], tw["b3_1"], 0)))
    p3 = relu(conv(z, tw["w3_2"], tw["b3_2"], 2))
    pooled = jax.lax.reduce_window(xq, -jnp.inf, jax.lax.max,
                                   (1, 1, 3, 3), (1, 1, 1, 1),
                                   [(0, 0), (0, 0), (1, 1), (1, 1)])
    p4 = relu(conv(pooled, tw["w4"], tw["b4"], 0))
    return jnp.concatenate([p1, p2, p3, p4], axis=1)


# ---------------------------------------------------------------------------
if __name__ == "__main__":
    key = jax.random.PRNGKey(0)
    k_x, k_p = jax.random.split(key)

    # Small shapes consistent with the module's forward.
    N, Cin, H, W = 2, 4, 16, 16
    c1, c2, c3, c4 = 8, (8, 16), (4, 8), 8
    cfg = (Cin, c1, c2, c3, c4)

    x = jax.random.normal(k_x, (N, Cin, H, W), dtype=jnp.float32)
    tw = init_torch_params(k_p, Cin, c1, c2, c3, c4)
    params = prepare_inception_params(tw)

    fwd = jax.jit(functools.partial(inception_forward, cfg=cfg))
    out = jax.block_until_ready(fwd(x, params))

    expected_channels = c1 + c2[1] + c3[1] + c4
    assert out.shape == (N, expected_channels, H, W), out.shape

    ref = inception_reference(x, tw)
    max_err = float(jnp.max(jnp.abs(out - ref)))
    assert jnp.allclose(out, ref, atol=2e-2, rtol=2e-2), max_err

    print("KERNEL_OK")
</pallas_src>

<mosaic_0001>
module attributes {stable_mosaic.version = 11 : i64} {
  func.func @_maxpool3x3_conv1x1_kernel(%arg0: i32, %arg1: i32, %arg2: memref<1x16x16x4xbf16, #tpu.memory_space<vmem>>, %arg3: memref<4x8xbf16, #tpu.memory_space<vmem>>, %arg4: memref<1x8xf32, #tpu.memory_space<vmem>>, %arg5: memref<1x128x8xbf16, #tpu.memory_space<vmem>>, %arg6: memref<18x18x4xbf16, #tpu.memory_space<vmem>>) attributes {dimension_semantics = [#tpu.dimension_semantics<parallel>, #tpu.dimension_semantics<arbitrary>], iteration_bounds = array<i64: 2, 2>, scalar_prefetch = 0 : i64, scratch_operands = 1 : i64, tpu.core_type = #tpu.core_type<tc>, window_params = [{transform_indices = @transform_0, window_bounds = array<i64: 1, 16, 16, 4>}, {pipeline_mode = #tpu.pipeline_mode<synchronous>, transform_indices = @transform_1, window_bounds = array<i64: 4, 8>}, {pipeline_mode = #tpu.pipeline_mode<synchronous>, transform_indices = @transform_2, window_bounds = array<i64: 1, 8>}, {transform_indices = @transform_3, window_bounds = array<i64: 1, 128, 8>}]} {
    %c0_i32 = arith.constant 0 : i32
    %0 = arith.cmpi eq, %arg1, %c0_i32 : i32
    %1 = arith.extui %0 : i1 to i32
    %c0_i32_0 = arith.constant 0 : i32
    %2 = arith.cmpi ne, %1, %c0_i32_0 : i32
    scf.if %2 {
      %cst_10 = arith.constant 0xFF80 : bf16
      %28 = vector.broadcast %cst_10 : bf16 to vector<18x18x4xbf16>
      %c0_11 = arith.constant 0 : index
      %c0_12 = arith.constant 0 : index
      %c0_13 = arith.constant 0 : index
      %29 = vector.load %arg6[%c0_11, %c0_12, %c0_13] : memref<18x18x4xbf16, #tpu.memory_space<vmem>>, vector<18x18x4xbf16>
      tpu.vector_store %arg6[%c0_11, %c0_12, %c0_13], %28 {strides = array<i32>} : memref<18x18x4xbf16, #tpu.memory_space<vmem>>, vector<18x18x4xbf16>,
      %c0_14 = arith.constant 0 : index
      %c0_15 = arith.constant 0 : index
      %c0_16 = arith.constant 0 : index
      %c0_17 = arith.constant 0 : index
      %30 = vector.load %arg2[%c0_14, %c0_15, %c0_16, %c0_17] : memref<1x16x16x4xbf16, #tpu.memory_space<vmem>>, vector<1x16x16x4xbf16>
      %31 = vector.shape_cast %30 : vector<1x16x16x4xbf16> to vector<16x16x4xbf16>
      %c1 = arith.constant 1 : index
      %c1_18 = arith.constant 1 : index
      %c0_19 = arith.constant 0 : index
      %32 = vector.load %arg6[%c1, %c1_18, %c0_19] : memref<18x18x4xbf16, #tpu.memory_space<vmem>>, vector<16x16x4xbf16>
      tpu.vector_store %arg6[%c1, %c1_18, %c0_19], %31 {strides = array<i32>} : memref<18x18x4xbf16, #tpu.memory_space<vmem>>, vector<16x16x4xbf16>,
    } else {
    }
    %c8_i32 = arith.constant 8 : i32
    %3 = arith.muli %arg1, %c8_i32 : i32
    %4 = arith.index_cast %3 : i32 to index
    %c0 = arith.constant 0 : index
    %c0_1 = arith.constant 0 : index
    %5 = vector.load %arg6[%4, %c0, %c0_1] : memref<18x18x4xbf16, #tpu.memory_space<vmem>>, vector<10x18x4xbf16>
    %6 = vector.extract_strided_slice %5 {offsets = [0, 0, 0], sizes = [10, 16, 4], strides = [1, 1, 1]} : vector<10x18x4xbf16> to vector<10x16x4xbf16>
    %7 = vector.extract_strided_slice %5 {offsets = [0, 1, 0], sizes = [10, 16, 4], strides = [1, 1, 1]} : vector<10x18x4xbf16> to vector<10x16x4xbf16>
    %8 = arith.maximumf %6, %7 : vector<10x16x4xbf16>
    %9 = vector.extract_strided_slice %5 {offsets = [0, 2, 0], sizes = [10, 16, 4], strides = [1, 1, 1]} : vector<10x18x4xbf16> to vector<10x16x4xbf16>
    %10 = arith.maximumf %8, %9 : vector<10x16x4xbf16>
    %11 = vector.extract_strided_slice %10 {offsets = [0, 0, 0], sizes = [8, 16, 4], strides = [1, 1, 1]} : vector<10x16x4xbf16> to vector<8x16x4xbf16>
    %12 = vector.extract_strided_slice %10 {offsets = [1, 0, 0], sizes = [8, 16, 4], strides = [1, 1, 1]} : vector<10x16x4xbf16> to vector<8x16x4xbf16>
    %13 = arith.maximumf %11, %12 : vector<8x16x4xbf16>
    %14 = vector.extract_strided_slice %10 {offsets = [2, 0, 0], sizes = [8, 16, 4], strides = [1, 1, 1]} : vector<10x16x4xbf16> to vector<8x16x4xbf16>
    %15 = arith.maximumf %13, %14 : vector<8x16x4xbf16>
    %16 = vector.shape_cast %15 : vector<8x16x4xbf16> to vector<128x4xbf16>
    %c0_2 = arith.constant 0 : index
    %c0_3 = arith.constant 0 : index
    %17 = vector.load %arg3[%c0_2, %c0_3] : memref<4x8xbf16, #tpu.memory_space<vmem>>, vector<4x8xbf16>
    %cst = arith.constant dense<0.000000e+00> : vector<128x8xf32>
    %18 = tpu.matmul %16, %17, %cst {dimension_numbers = #tpu.dot_dimension_numbers<[1], [0], [0], [1], [0, 0, 1, 1], [], []>} : vector<128x4xbf16>, vector<4x8xbf16>, vector<128x8xf32> -> vector<128x8xf32>
    %c0_4 = arith.constant 0 : index
    %c0_5 = arith.constant 0 : index
    %19 = vector.load %arg4[%c0_4, %c0_5] : memref<1x8xf32, #tpu.memory_space<vmem>>, vector<1x8xf32>
    %20 = vector.broadcast %19 : vector<1x8xf32> to vector<128x8xf32>
    %21 = arith.addf %18, %20 : vector<128x8xf32>
    %cst_6 = arith.constant 0.000000e+00 : f32
    %22 = vector.broadcast %cst_6 : f32 to vector<128x8xf32>
    %23 = arith.maximumf %21, %22 : vector<128x8xf32>
    %24 = arith.truncf %23 : vector<128x8xf32> to vector<128x8xbf16>
    %c0_7 = arith.constant 0 : index
    %c0_8 = arith.constant 0 : index
    %c0_9 = arith.constant 0 : index
    %25 = vector.load %arg5[%c0_7, %c0_8, %c0_9] : memref<1x128x8xbf16, #tpu.memory_space<vmem>>, vector<1x128x8xbf16>
    %26 = vector.shape_cast %25 : vector<1x128x8xbf16> to vector<128x8xbf16>
    %27 = vector.shape_cast %24 : vector<128x8xbf16> to vector<1x128x8xbf16>
    tpu.vector_store %arg5[%c0_7, %c0_8, %c0_9], %27 {strides = array<i32>} : memref<1x128x8xbf16, #tpu.memory_space<vmem>>, vector<1x128x8xbf16>,
    return
  }
  func.func @transform_0(%arg0: i32, %arg1: i32) -> (i32, i32, i32, i32) {
    %c0_i32 = arith.constant 0 : i32
    %c0_i32_0 = arith.constant 0 : i32
    %c0_i32_1 = arith.constant 0 : i32
    %c0_i32_2 = arith.constant 0 : i32
    return %arg0, %c0_i32, %c0_i32_0, %c0_i32_1 : i32, i32, i32, i32
  }
  func.func @transform_1(%arg0: i32, %arg1: i32) -> (i32, i32) {
    %c0_i32 = arith.constant 0 : i32
    %c0_i32_0 = arith.constant 0 : i32
    %c0_i32_1 = arith.constant 0 : i32
    return %c0_i32, %c0_i32_0 : i32, i32
  }
  func.func @transform_2(%arg0: i32, %arg1: i32) -> (i32, i32) {
    %c0_i32 = arith.constant 0 : i32
    %c0_i32_0 = arith.constant 0 : i32
    %c0_i32_1 = arith.constant 0 : i32
    return %c0_i32, %c0_i32_0 : i32, i32
  }
  func.func @transform_3(%arg0: i32, %arg1: i32) -> (i32, i32, i32) {
    %c0_i32 = arith.constant 0 : i32
    %c0_i32_0 = arith.constant 0 : i32
    return %arg0, %arg1, %c0_i32 : i32, i32, i32
  }
}

module attributes {stable_mosaic.version = 11 : i64} {
  func.func @_conv_kxk_im2col_kernel(%arg0: i32, %arg1: i32, %arg2: memref<1x16x16x128xbf16, #tpu.memory_space<vmem>>, %arg3: memref<1152x16xbf16, #tpu.memory_space<vmem>>, %arg4: memref<1x16xf32, #tpu.memory_space<vmem>>, %arg5: memref<1x128x16xbf16, #tpu.memory_space<vmem>>, %arg6: memref<18x18x128xbf16, #tpu.memory_space<vmem>>, %arg7: memref<8x16x1152xbf16, #tpu.memory_space<vmem>>) attributes {dimension_semantics = [#tpu.dimension_semantics<parallel>, #tpu.dimension_semantics<arbitrary>], iteration_bounds = array<i64: 2, 2>, scalar_prefetch = 0 : i64, scratch_operands = 2 : i64, tpu.core_type = #tpu.core_type<tc>, window_params = [{transform_indices = @transform_0, window_bounds = array<i64: 1, 16, 16, 128>}, {pipeline_mode = #tpu.pipeline_mode<synchronous>, transform_indices = @transform_1, window_bounds = array<i64: 1152, 16>}, {pipeline_mode = #tpu.pipeline_mode<synchronous>, transform_indices = @transform_2, window_bounds = array<i64: 1, 16>}, {transform_indices = @transform_3, window_bounds = array<i64: 1, 128, 16>}]} {
    %c0_i32 = arith.constant 0 : i32
    %0 = arith.cmpi eq, %arg1, %c0_i32 : i32
    %1 = arith.extui %0 : i1 to i32
    %c0_i32_0 = arith.constant 0 : i32
    %2 = arith.cmpi ne, %1, %c0_i32_0 : i32
    scf.if %2 {
      %cst_37 = arith.constant 0.000000e+00 : bf16
      %44 = vector.broadcast %cst_37 : bf16 to vector<18x18x128xbf16>
      %c0_38 = arith.constant 0 : index
      %c0_39 = arith.constant 0 : index
      %c0_40 = arith.constant 0 : index
      %45 = vector.load %arg6[%c0_38, %c0_39, %c0_40] : memref<18x18x128xbf16, #tpu.memory_space<vmem>>, vector<18x18x128xbf16>
      tpu.vector_store %arg6[%c0_38, %c0_39, %c0_40], %44 {strides = array<i32>} : memref<18x18x128xbf16, #tpu.memory_space<vmem>>, vector<18x18x128xbf16>,
      %c0_41 = arith.constant 0 : index
      %c0_42 = arith.constant 0 : index
      %c0_43 = arith.constant 0 : index
      %c0_44 = arith.constant 0 : index
      %46 = vector.load %arg2[%c0_41, %c0_42, %c0_43, %c0_44] : memref<1x16x16x128xbf16, #tpu.memory_space<vmem>>, vector<1x16x16x128xbf16>
      %47 = vector.shape_cast %46 : vector<1x16x16x128xbf16> to vector<16x16x128xbf16>
      %c1 = arith.constant 1 : index
      %c1_45 = arith.constant 1 : index
      %c0_46 = arith.constant 0 : index
      %48 = vector.load %arg6[%c1, %c1_45, %c0_46] : memref<18x18x128xbf16, #tpu.memory_space<vmem>>, vector<16x16x128xbf16>
      tpu.vector_store %arg6[%c1, %c1_45, %c0_46], %47 {strides = array<i32>} : memref<18x18x128xbf16, #tpu.memory_space<vmem>>, vector<16x16x128xbf16>,
    } else {
    }
    %c8_i32 = arith.constant 8 : i32
    %3 = arith.muli %arg1, %c8_i32 : i32
    %c0_i32_1 = arith.constant 0 : i32
    %4 = arith.addi %3, %c0_i32_1 : i32
    %5 = arith.index_cast %4 : i32 to index
    %c0 = arith.constant 0 : index
    %c0_2 = arith.constant 0 : index
    %6 = vector.load %arg6[%5, %c0, %c0_2] : memref<18x18x128xbf16, #tpu.memory_space<vmem>>, vector<8x18x128xbf16>
    %7 = vector.extract_strided_slice %6 {offsets = [0, 0, 0], sizes = [8, 16, 128], strides = [1, 1, 1]} : vector<8x18x128xbf16> to vector<8x16x128xbf16>
    %c0_3 = arith.constant 0 : index
    %c0_4 = arith.constant 0 : index
    %c0_5 = arith.constant 0 : index
    %8 = vector.load %arg7[%c0_3, %c0_4, %c0_5] : memref<8x16x1152xbf16, #tpu.memory_space<vmem>>, vector<8x16x128xbf16>
    tpu.vector_store %arg7[%c0_3, %c0_4, %c0_5], %7 {strides = array<i32>} : memref<8x16x1152xbf16, #tpu.memory_space<vmem>>, vector<8x16x128xbf16>,
    %9 = vector.extract_strided_slice %6 {offsets = [0, 1, 0], sizes = [8, 16, 128], strides = [1, 1, 1]} : vector<8x18x128xbf16> to vector<8x16x128xbf16>
    %c0_6 = arith.constant 0 : index
    %c0_7 = arith.constant 0 : index
    %c128 = arith.constant 128 : index
    %10 = vector.load %arg7[%c0_6, %c0_7, %c128] : memref<8x16x1152xbf16, #tpu.memory_space<vmem>>, vector<8x16x128xbf16>
    tpu.vector_store %arg7[%c0_6, %c0_7, %c128], %9 {strides = array<i32>} : memref<8x16x1152xbf16, #tpu.memory_space<vmem>>, vector<8x16x128xbf16>,
    %11 = vector.extract_strided_slice %6 {offsets = [0, 2, 0], sizes = [8, 16, 128], strides = [1, 1, 1]} : vector<8x18x128xbf16> to vector<8x16x128xbf16>
    %c0_8 = arith.constant 0 : index
    %c0_9 = arith.constant 0 : index
    %c256 = arith.constant 256 : index
    %12 = vector.load %arg7[%c0_8, %c0_9, %c256] : memref<8x16x1152xbf16, #tpu.memory_space<vmem>>, vector<8x16x128xbf16>
    tpu.vector_store %arg7[%c0_8, %c0_9, %c256], %11 {strides = array<i32>} : memref<8x16x1152xbf16, #tpu.memory_space<vmem>>, vector<8x16x128xbf16>,
    %c1_i32 = arith.constant 1 : i32
    %13 = arith.addi %3, %c1_i32 : i32
    %14 = arith.index_cast %13 : i32 to index
    %c0_10 = arith.constant 0 : index
    %c0_11 = arith.constant 0 : index
    %15 = vector.load %arg6[%14, %c0_10, %c0_11] : memref<18x18x128xbf16, #tpu.memory_space<vmem>>, vector<8x18x128xbf16>
    %16 = vector.extract_strided_slice %15 {offsets = [0, 0, 0], sizes = [8, 16, 128], strides = [1, 1, 1]} : vector<8x18x128xbf16> to vector<8x16x128xbf16>
    %c0_12 = arith.constant 0 : index
    %c0_13 = arith.constant 0 : index
    %c384 = arith.constant 384 : index
    %17 = vector.load %arg7[%c0_12, %c0_13, %c384] : memref<8x16x1152xbf16, #tpu.memory_space<vmem>>, vector<8x16x128xbf16>
    tpu.vector_store %arg7[%c0_12, %c0_13, %c384], %16 {strides = array<i32>} : memref<8x16x1152xbf16, #tpu.memory_space<vmem>>, vector<8x16x128xbf16>,
    %18 = vector.extract_strided_slice %15 {offsets = [0, 1, 0], sizes = [8, 16, 128], strides = [1, 1, 1]} : vector<8x18x128xbf16> to vector<8x16x128xbf16>
    %c0_14 = arith.constant 0 : index
    %c0_15 = arith.constant 0 : index
    %c512 = arith.constant 512 : index
    %19 = vector.load %arg7[%c0_14, %c0_15, %c512] : memref<8x16x1152xbf16, #tpu.memory_space<vmem>>, vector<8x16x128xbf16>
    tpu.vector_store %arg7[%c0_14, %c0_15, %c512], %18 {strides = array<i32>} : memref<8x16x1152xbf16, #tpu.memory_space<vmem>>, vector<8x16x128xbf16>,
    %20 = vector.extract_strided_slice %15 {offsets = [0, 2, 0], sizes = [8, 16, 128], strides = [1, 1, 1]} : vector<8x18x128xbf16> to vector<8x16x128xbf16>
    %c0_16 = arith.constant 0 : index
    %c0_17 = arith.constant 0 : index
    %c640 = arith.constant 640 : index
    %21 = vector.load %arg7[%c0_16, %c0_17, %c640] : memref<8x16x1152xbf16, #tpu.memory_space<vmem>>, vector<8x16x128xbf16>
    tpu.vector_store %arg7[%c0_16, %c0_17, %c640], %20 {strides = array<i32>} : memref<8x16x1152xbf16, #tpu.memory_space<vmem>>, vector<8x16x128xbf16>,
    %c2_i32 = arith.constant 2 : i32
    %22 = arith.addi %3, %c2_i32 : i32
    %23 = arith.index_cast %22 : i32 to index
    %c0_18 = arith.constant 0 : index
    %c0_19 = arith.constant 0 : index
    %24 = vector.load %arg6[%23, %c0_18, %c0_19] : memref<18x18x128xbf16, #tpu.memory_space<vmem>>, vector<8x18x128xbf16>
    %25 = vector.extract_strided_slice %24 {offsets = [0, 0, 0], sizes = [8, 16, 128], strides = [1, 1, 1]} : vector<8x18x128xbf16> to vector<8x16x128xbf16>
    %c0_20 = arith.constant 0 : index
    %c0_21 = arith.constant 0 : index
    %c768 = arith.constant 768 : index
    %26 = vector.load %arg7[%c0_20, %c0_21, %c768] : memref<8x16x1152xbf16, #tpu.memory_space<vmem>>, vector<8x16x128xbf16>
    tpu.vector_store %arg7[%c0_20, %c0_21, %c768], %25 {strides = array<i32>} : memref<8x16x1152xbf16, #tpu.memory_space<vmem>>, vector<8x16x128xbf16>,
    %27 = vector.extract_strided_slice %24 {offsets = [0, 1, 0], sizes = [8, 16, 128], strides = [1, 1, 1]} : vector<8x18x128xbf16> to vector<8x16x128xbf16>
    %c0_22 = arith.constant 0 : index
    %c0_23 = arith.constant 0 : index
    %c896 = arith.constant 896 : index
    %28 = vector.load %arg7[%c0_22, %c0_23, %c896] : memref<8x16x1152xbf16, #tpu.memory_space<vmem>>, vector<8x16x128xbf16>
    tpu.vector_store %arg7[%c0_22, %c0_23, %c896], %27 {strides = array<i32>} : memref<8x16x1152xbf16, #tpu.memory_space<vmem>>, vector<8x16x128xbf16>,
    %29 = vector.extract_strided_slice %24 {offsets = [0, 2, 0], sizes = [8, 16, 128], strides = [1, 1, 1]} : vector<8x18x128xbf16> to vector<8x16x128xbf16>
    %c0_24 = arith.constant 0 : index
    %c0_25 = arith.constant 0 : index
    %c1024 = arith.constant 1024 : index
    %30 = vector.load %arg7[%c0_24, %c0_25, %c1024] : memref<8x16x1152xbf16, #tpu.memory_space<vmem>>, vector<8x16x128xbf16>
    tpu.vector_store %arg7[%c0_24, %c0_25, %c1024], %29 {strides = array<i32>} : memref<8x16x1152xbf16, #tpu.memory_space<vmem>>, vector<8x16x128xbf16>,
    %c0_26 = arith.constant 0 : index
    %c0_27 = arith.constant 0 : index
    %c0_28 = arith.constant 0 : index
    %31 = vector.load %arg7[%c0_26, %c0_27, %c0_28] : memref<8x16x1152xbf16, #tpu.memory_space<vmem>>, vector<8x16x1152xbf16>
    %32 = vector.shape_cast %31 : vector<8x16x1152xbf16> to vector<128x1152xbf16>
    %c0_29 = arith.constant 0 : index
    %c0_30 = arith.constant 0 : index
    %33 = vector.load %arg3[%c0_29, %c0_30] : memref<1152x16xbf16, #tpu.memory_space<vmem>>, vector<1152x16xbf16>
    %cst = arith.constant dense<0.000000e+00> : vector<128x16xf32>
    %34 = tpu.matmul %32, %33, %cst {dimension_numbers = #tpu.dot_dimension_numbers<[1], [0], [0], [1], [0, 0, 1, 1], [], []>} : vector<128x1152xbf16>, vector<1152x16xbf16>, vector<128x16xf32> -> vector<128x16xf32>
    %c0_31 = arith.constant 0 : index
    %c0_32 = arith.constant 0 : index
    %35 = vector.load %arg4[%c0_31, %c0_32] : memref<1x16xf32, #tpu.memory_space<vmem>>, vector<1x16xf32>
    %36 = vector.broadcast %35 : vector<1x16xf32> to vector<128x16xf32>
    %37 = arith.addf %34, %36 : vector<128x16xf32>
    %cst_33 = arith.constant 0.000000e+00 : f32
    %38 = vector.broadcast %cst_33 : f32 to vector<128x16xf32>
    %39 = arith.maximumf %37, %38 : vector<128x16xf32>
    %40 = arith.truncf %39 : vector<128x16xf32> to vector<128x16xbf16>
    %c0_34 = arith.constant 0 : index
    %c0_35 = arith.constant 0 : index
    %c0_36 = arith.constant 0 : index
    %41 = vector.load %arg5[%c0_34, %c0_35, %c0_36] : memref<1x128x16xbf16, #tpu.memory_space<vmem>>, vector<1x128x16xbf16>
    %42 = vector.shape_cast %41 : vector<1x128x16xbf16> to vector<128x16xbf16>
    %43 = vector.shape_cast %40 : vector<128x16xbf16> to vector<1x128x16xbf16>
    tpu.vector_store %arg5[%c0_34, %c0_35, %c0_36], %43 {strides = array<i32>} : memref<1x128x16xbf16, #tpu.memory_space<vmem>>, vector<1x128x16xbf16>,
    return
  }
  func.func @transform_0(%arg0: i32, %arg1: i32) -> (i32, i32, i32, i32) {
    %c0_i32 = arith.constant 0 : i32
    %c0_i32_0 = arith.constant 0 : i32
    %c0_i32_1 = arith.constant 0 : i32
    %c0_i32_2 = arith.constant 0 : i32
    return %arg0, %c0_i32, %c0_i32_0, %c0_i32_1 : i32, i32, i32, i32
  }
  func.func @transform_1(%arg0: i32, %arg1: i32) -> (i32, i32) {
    %c0_i32 = arith.constant 0 : i32
    %c0_i32_0 = arith.constant 0 : i32
    %c0_i32_1 = arith.constant 0 : i32
    return %c0_i32, %c0_i32_0 : i32, i32
  }
  func.func @transform_2(%arg0: i32, %arg1: i32) -> (i32, i32) {
    %c0_i32 = arith.constant 0 : i32
    %c0_i32_0 = arith.constant 0 : i32
    %c0_i32_1 = arith.constant 0 : i32
    return %c0_i32, %c0_i32_0 : i32, i32
  }
  func.func @transform_3(%arg0: i32, %arg1: i32) -> (i32, i32, i32) {
    %c0_i32 = arith.constant 0 : i32
    %c0_i32_0 = arith.constant 0 : i32
    return %arg0, %arg1, %c0_i32 : i32, i32, i32
  }
}

module attributes {stable_mosaic.version = 11 : i64} {
  func.func @_fused_1x1_kernel(%arg0: i32, %arg1: memref<512x4xbf16, #tpu.memory_space<vmem>>, %arg2: memref<4x384xbf16, #tpu.memory_space<vmem>>, %arg3: memref<1x384xf32, #tpu.memory_space<vmem>>, %arg4: memref<512x8xbf16, #tpu.memory_space<vmem>>, %arg5: memref<512x128xbf16, #tpu.memory_space<vmem>>, %arg6: memref<512x128xbf16, #tpu.memory_space<vmem>>) attributes {dimension_semantics = [#tpu.dimension_semantics<parallel>], iteration_bounds = array<i64: 1>, scalar_prefetch = 0 : i64, scratch_operands = 0 : i64, tpu.core_type = #tpu.core_type<tc>, window_params = [{transform_indices = @transform_0, window_bounds = array<i64: 512, 4>}, {pipeline_mode = #tpu.pipeline_mode<synchronous>, transform_indices = @transform_1, window_bounds = array<i64: 4, 384>}, {pipeline_mode = #tpu.pipeline_mode<synchronous>, transform_indices = @transform_2, window_bounds = array<i64: 1, 384>}, {transform_indices = @transform_3, window_bounds = array<i64: 512, 8>}, {transform_indices = @transform_4, window_bounds = array<i64: 512, 128>}, {transform_indices = @transform_5, window_bounds = array<i64: 512, 128>}]} {
    %c0 = arith.constant 0 : index
    %c0_0 = arith.constant 0 : index
    %0 = vector.load %arg1[%c0, %c0_0] : memref<512x4xbf16, #tpu.memory_space<vmem>>, vector<512x4xbf16>
    %c0_1 = arith.constant 0 : index
    %c0_2 = arith.constant 0 : index
    %1 = vector.load %arg2[%c0_1, %c0_2] : memref<4x384xbf16, #tpu.memory_space<vmem>>, vector<4x384xbf16>
    %cst = arith.constant dense<0.000000e+00> : vector<512x384xf32>
    %2 = tpu.matmul %0, %1, %cst {dimension_numbers = #tpu.dot_dimension_numbers<[1], [0], [0], [1], [0, 0, 1, 1], [], []>} : vector<512x4xbf16>, vector<4x384xbf16>, vector<512x384xf32> -> vector<512x384xf32>
    %c0_3 = arith.constant 0 : index
    %c0_4 = arith.constant 0 : index
    %3 = vector.load %arg3[%c0_3, %c0_4] : memref<1x384xf32, #tpu.memory_space<vmem>>, vector<1x384xf32>
    %4 = vector.broadcast %3 : vector<1x384xf32> to vector<512x384xf32>
    %5 = arith.addf %2, %4 : vector<512x384xf32>
    %cst_5 = arith.constant 0.000000e+00 : f32
    %6 = vector.broadcast %cst_5 : f32 to vector<512x384xf32>
    %7 = arith.maximumf %5, %6 : vector<512x384xf32>
    %8 = vector.extract_strided_slice %7 {offsets = [0, 0], sizes = [512, 8], strides = [1, 1]} : vector<512x384xf32> to vector<512x8xf32>
    %9 = arith.truncf %8 : vector<512x8xf32> to vector<512x8xbf16>
    %c0_6 = arith.constant 0 : index
    %c0_7 = arith.constant 0 : index
    %10 = vector.load %arg4[%c0_6, %c0_7] : memref<512x8xbf16, #tpu.memory_space<vmem>>, vector<512x8xbf16>
    tpu.vector_store %arg4[%c0_6, %c0_7], %9 {strides = array<i32>} : memref<512x8xbf16, #tpu.memory_space<vmem>>, vector<512x8xbf16>,
    %11 = vector.extract_strided_slice %7 {offsets = [0, 128], sizes = [512, 128], strides = [1, 1]} : vector<512x384xf32> to vector<512x128xf32>
    %12 = arith.truncf %11 : vector<512x128xf32> to vector<512x128xbf16>
    %c0_8 = arith.constant 0 : index
    %c0_9 = arith.constant 0 : index
    %13 = vector.load %arg5[%c0_8, %c0_9] : memref<512x128xbf16, #tpu.memory_space<vmem>>, vector<512x128xbf16>
    tpu.vector_store %arg5[%c0_8, %c0_9], %12 {strides = array<i32>} : memref<512x128xbf16, #tpu.memory_space<vmem>>, vector<512x128xbf16>,
    %14 = vector.extract_strided_slice %7 {offsets = [0, 256], sizes = [512, 128], strides = [1, 1]} : vector<512x384xf32> to vector<512x128xf32>
    %15 = arith.truncf %14 : vector<512x128xf32> to vector<512x128xbf16>
    %c0_10 = arith.constant 0 : index
    %c0_11 = arith.constant 0 : index
    %16 = vector.load %arg6[%c0_10, %c0_11] : memref<512x128xbf16, #tpu.memory_space<vmem>>, vector<512x128xbf16>
    tpu.vector_store %arg6[%c0_10, %c0_11], %15 {strides = array<i32>} : memref<512x128xbf16, #tpu.memory_space<vmem>>, vector<512x128xbf16>,
    return
  }
  func.func @transform_0(%arg0: i32) -> (i32, i32) {
    %c0_i32 = arith.constant 0 : i32
    %c0_i32_0 = arith.constant 0 : i32
    return %arg0, %c0_i32 : i32, i32
  }
  func.func @transform_1(%arg0: i32) -> (i32, i32) {
    %c0_i32 = arith.constant 0 : i32
    %c0_i32_0 = arith.constant 0 : i32
    %c0_i32_1 = arith.constant 0 : i32
    return %c0_i32, %c0_i32_0 : i32, i32
  }
  func.func @transform_2(%arg0: i32) -> (i32, i32) {
    %c0_i32 = arith.constant 0 : i32
    %c0_i32_0 = arith.constant 0 : i32
    %c0_i32_1 = arith.constant 0 : i32
    return %c0_i32, %c0_i32_0 : i32, i32
  }
  func.func @transform_3(%arg0: i32) -> (i32, i32) {
    %c0_i32 = arith.constant 0 : i32
    %c0_i32_0 = arith.constant 0 : i32
    return %arg0, %c0_i32 : i32, i32
  }
  func.func @transform_4(%arg0: i32) -> (i32, i32) {
    %c0_i32 = arith.constant 0 : i32
    %c0_i32_0 = arith.constant 0 : i32
    return %arg0, %c0_i32 : i32, i32
  }
  func.func @transform_5(%arg0: i32) -> (i32, i32) {
    %c0_i32 = arith.constant 0 : i32
    %c0_i32_0 = arith.constant 0 : i32
    return %arg0, %c0_i32 : i32, i32
  }
}

module attributes {stable_mosaic.version = 11 : i64} {
  func.func @_conv_kxk_im2col_kernel(%arg0: i32, %arg1: i32, %arg2: memref<1x16x16x128xbf16, #tpu.memory_space<vmem>>, %arg3: memref<3200x8xbf16, #tpu.memory_space<vmem>>, %arg4: memref<1x8xf32, #tpu.memory_space<vmem>>, %arg5: memref<1x128x8xbf16, #tpu.memory_space<vmem>>, %arg6: memref<20x20x128xbf16, #tpu.memory_space<vmem>>, %arg7: memref<8x16x3200xbf16, #tpu.memory_space<vmem>>) attributes {dimension_semantics = [#tpu.dimension_semantics<parallel>, #tpu.dimension_semantics<arbitrary>], iteration_bounds = array<i64: 2, 2>, scalar_prefetch = 0 : i64, scratch_operands = 2 : i64, tpu.core_type = #tpu.core_type<tc>, window_params = [{transform_indices = @transform_0, window_bounds = array<i64: 1, 16, 16, 128>}, {pipeline_mode = #tpu.pipeline_mode<synchronous>, transform_indices = @transform_1, window_bounds = array<i64: 3200, 8>}, {pipeline_mode = #tpu.pipeline_mode<synchronous>, transform_indices = @transform_2, window_bounds = array<i64: 1, 8>}, {transform_indices = @transform_3, window_bounds = array<i64: 1, 128, 8>}]} {
    %c0_i32 = arith.constant 0 : i32
    %0 = arith.cmpi eq, %arg1, %c0_i32 : i32
    %1 = arith.extui %0 : i1 to i32
    %c0_i32_0 = arith.constant 0 : i32
    %2 = arith.cmpi ne, %1, %c0_i32_0 : i32
    scf.if %2 {
      %cst_73 = arith.constant 0.000000e+00 : bf16
      %82 = vector.broadcast %cst_73 : bf16 to vector<20x20x128xbf16>
      %c0_74 = arith.constant 0 : index
      %c0_75 = arith.constant 0 : index
      %c0_76 = arith.constant 0 : index
      %83 = vector.load %arg6[%c0_74, %c0_75, %c0_76] : memref<20x20x128xbf16, #tpu.memory_space<vmem>>, vector<20x20x128xbf16>
      tpu.vector_store %arg6[%c0_74, %c0_75, %c0_76], %82 {strides = array<i32>} : memref<20x20x128xbf16, #tpu.memory_space<vmem>>, vector<20x20x128xbf16>,
      %c0_77 = arith.constant 0 : index
      %c0_78 = arith.constant 0 : index
      %c0_79 = arith.constant 0 : index
      %c0_80 = arith.constant 0 : index
      %84 = vector.load %arg2[%c0_77, %c0_78, %c0_79, %c0_80] : memref<1x16x16x128xbf16, #tpu.memory_space<vmem>>, vector<1x16x16x128xbf16>
      %85 = vector.shape_cast %84 : vector<1x16x16x128xbf16> to vector<16x16x128xbf16>
      %c2 = arith.constant 2 : index
      %c2_81 = arith.constant 2 : index
      %c0_82 = arith.constant 0 : index
      %86 = vector.load %arg6[%c2, %c2_81, %c0_82] : memref<20x20x128xbf16, #tpu.memory_space<vmem>>, vector<16x16x128xbf16>
      tpu.vector_store %arg6[%c2, %c2_81, %c0_82], %85 {strides = array<i32>} : memref<20x20x128xbf16, #tpu.memory_space<vmem>>, vector<16x16x128xbf16>,
    } else {
    }
    %c8_i32 = arith.constant 8 : i32
    %3 = arith.muli %arg1, %c8_i32 : i32
    %c0_i32_1 = arith.constant 0 : i32
    %4 = arith.addi %3, %c0_i32_1 : i32
    %5 = arith.index_cast %4 : i32 to index
    %c0 = arith.constant 0 : index
    %c0_2 = arith.constant 0 : index
    %6 = vector.load %arg6[%5, %c0, %c0_2] : memref<20x20x128xbf16, #tpu.memory_space<vmem>>, vector<8x20x128xbf16>
    %7 = vector.extract_strided_slice %6 {offsets = [0, 0, 0], sizes = [8, 16, 128], strides = [1, 1, 1]} : vector<8x20x128xbf16> to vector<8x16x128xbf16>
    %c0_3 = arith.constant 0 : index
    %c0_4 = arith.constant 0 : index
    %c0_5 = arith.constant 0 : index
    %8 = vector.load %arg7[%c0_3, %c0_4, %c0_5] : memref<8x16x3200xbf16, #tpu.memory_space<vmem>>, vector<8x16x128xbf16>
    tpu.vector_store %arg7[%c0_3, %c0_4, %c0_5], %7 {strides = array<i32>} : memref<8x16x3200xbf16, #tpu.memory_space<vmem>>, vector<8x16x128xbf16>,
    %9 = vector.extract_strided_slice %6 {offsets = [0, 1, 0], sizes = [8, 16, 128], strides = [1, 1, 1]} : vector<8x20x128xbf16> to vector<8x16x128xbf16>
    %c0_6 = arith.constant 0 : index
    %c0_7 = arith.constant 0 : index
    %c128 = arith.constant 128 : index
    %10 = vector.load %arg7[%c0_6, %c0_7, %c128] : memref<8x16x3200xbf16, #tpu.memory_space<vmem>>, vector<8x16x128xbf16>
    tpu.vector_store %arg7[%c0_6, %c0_7, %c128], %9 {strides = array<i32>} : memref<8x16x3200xbf16, #tpu.memory_space<vmem>>, vector<8x16x128xbf16>,
    %11 = vector.extract_strided_slice %6 {offsets = [0, 2, 0], sizes = [8, 16, 128], strides = [1, 1, 1]} : vector<8x20x128xbf16> to vector<8x16x128xbf16>
    %c0_8 = arith.constant 0 : index
    %c0_9 = arith.constant 0 : index
    %c256 = arith.constant 256 : index
    %12 = vector.load %arg7[%c0_8, %c0_9, %c256] : memref<8x16x3200xbf16, #tpu.memory_space<vmem>>, vector<8x16x128xbf16>
    tpu.vector_store %arg7[%c0_8, %c0_9, %c256], %11 {strides = array<i32>} : memref<8x16x3200xbf16, #tpu.memory_space<vmem>>, vector<8x16x128xbf16>,
    %13 = vector.extract_strided_slice %6 {offsets = [0, 3, 0], sizes = [8, 16, 128], strides = [1, 1, 1]} : vector<8x20x128xbf16> to vector<8x16x128xbf16>
    %c0_10 = arith.constant 0 : index
    %c0_11 = arith.constant 0 : index
    %c384 = arith.constant 384 : index
    %14 = vector.load %arg7[%c0_10, %c0_11, %c384] : memref<8x16x3200xbf16, #tpu.memory_space<vmem>>, vector<8x16x128xbf16>
    tpu.vector_store %arg7[%c0_10, %c0_11, %c384], %13 {strides = array<i32>} : memref<8x16x3200xbf16, #tpu.memory_space<vmem>>, vector<8x16x128xbf16>,
    %15 = vector.extract_strided_slice %6 {offsets = [0, 4, 0], sizes = [8, 16, 128], strides = [1, 1, 1]} : vector<8x20x128xbf16> to vector<8x16x128xbf16>
    %c0_12 = arith.constant 0 : index
    %c0_13 = arith.constant 0 : index
    %c512 = arith.constant 512 : index
    %16 = vector.load %arg7[%c0_12, %c0_13, %c512] : memref<8x16x3200xbf16, #tpu.memory_space<vmem>>, vector<8x16x128xbf16>
    tpu.vector_store %arg7[%c0_12, %c0_13, %c512], %15 {strides = array<i32>} : memref<8x16x3200xbf16, #tpu.memory_space<vmem>>, vector<8x16x128xbf16>,
    %c1_i32 = arith.constant 1 : i32
    %17 = arith.addi %3, %c1_i32 : i32
    %18 = arith.index_cast %17 : i32 to index
    %c0_14 = arith.constant 0 : index
    %c0_15 = arith.constant 0 : index
    %19 = vector.load %arg6[%18, %c0_14, %c0_15] : memref<20x20x128xbf16, #tpu.memory_space<vmem>>, vector<8x20x128xbf16>
    %20 = vector.extract_strided_slice %19 {offsets = [0, 0, 0], sizes = [8, 16, 128], strides = [1, 1, 1]} : vector<8x20x128xbf16> to vector<8x16x128xbf16>
    %c0_16 = arith.constant 0 : index
    %c0_17 = arith.constant 0 : index
    %c640 = arith.constant 640 : index
    %21 = vector.load %arg7[%c0_16, %c0_17, %c640] : memref<8x16x3200xbf16, #tpu.memory_space<vmem>>, vector<8x16x128xbf16>
    tpu.vector_store %arg7[%c0_16, %c0_17, %c640], %20 {strides = array<i32>} : memref<8x16x3200xbf16, #tpu.memory_space<vmem>>, vector<8x16x128xbf16>,
    %22 = vector.extract_strided_slice %19 {offsets = [0, 1, 0], sizes = [8, 16, 128], strides = [1, 1, 1]} : vector<8x20x128xbf16> to vector<8x16x128xbf16>
    %c0_18 = arith.constant 0 : index
    %c0_19 = arith.constant 0 : index
    %c768 = arith.constant 768 : index
    %23 = vector.load %arg7[%c0_18, %c0_19, %c768] : memref<8x16x3200xbf16, #tpu.memory_space<vmem>>, vector<8x16x128xbf16>
    tpu.vector_store %arg7[%c0_18, %c0_19, %c768], %22 {strides = array<i32>} : memref<8x16x3200xbf16, #tpu.memory_space<vmem>>, vector<8x16x128xbf16>,
    %24 = vector.extract_strided_slice %19 {offsets = [0, 2, 0], sizes = [8, 16, 128], strides = [1, 1, 1]} : vector<8x20x128xbf16> to vector<8x16x128xbf16>
    %c0_20 = arith.constant 0 : index
    %c0_21 = arith.constant 0 : index
    %c896 = arith.constant 896 : index
    %25 = vector.load %arg7[%c0_20, %c0_21, %c896] : memref<8x16x3200xbf16, #tpu.memory_space<vmem>>, vector<8x16x128xbf16>
    tpu.vector_store %arg7[%c0_20, %c0_21, %c896], %24 {strides = array<i32>} : memref<8x16x3200xbf16, #tpu.memory_space<vmem>>, vector<8x16x128xbf16>,
    %26 = vector.extract_strided_slice %19 {offsets = [0, 3, 0], sizes = [8, 16, 128], strides = [1, 1, 1]} : vector<8x20x128xbf16> to vector<8x16x128xbf16>
    %c0_22 = arith.constant 0 : index
    %c0_23 = arith.constant 0 : index
    %c1024 = arith.constant 1024 : index
    %27 = vector.load %arg7[%c0_22, %c0_23, %c1024] : memref<8x16x3200xbf16, #tpu.memory_space<vmem>>, vector<8x16x128xbf16>
    tpu.vector_store %arg7[%c0_22, %c0_23, %c1024], %26 {strides = array<i32>} : memref<8x16x3200xbf16, #tpu.memory_space<vmem>>, vector<8x16x128xbf16>,
    %28 = vector.extract_strided_slice %19 {offsets = [0, 4, 0], sizes = [8, 16, 128], strides = [1, 1, 1]} : vector<8x20x128xbf16> to vector<8x16x128xbf16>
    %c0_24 = arith.constant 0 : index
    %c0_25 = arith.constant 0 : index
    %c1152 = arith.constant 1152 : index
    %29 = vector.load %arg7[%c0_24, %c0_25, %c1152] : memref<8x16x3200xbf16, #tpu.memory_space<vmem>>, vector<8x16x128xbf16>
    tpu.vector_store %arg7[%c0_24, %c0_25, %c1152], %28 {strides = array<i32>} : memref<8x16x3200xbf16, #tpu.memory_space<vmem>>, vector<8x16x128xbf16>,
    %c2_i32 = arith.constant 2 : i32
    %30 = arith.addi %3, %c2_i32 : i32
    %31 = arith.index_cast %30 : i32 to index
    %c0_26 = arith.constant 0 : index
    %c0_27 = arith.constant 0 : index
    %32 = vector.load %arg6[%31, %c0_26, %c0_27] : memref<20x20x128xbf16, #tpu.memory_space<vmem>>, vector<8x20x128xbf16>
    %33 = vector.extract_strided_slice %32 {offsets = [0, 0, 0], sizes = [8, 16, 128], strides = [1, 1, 1]} : vector<8x20x128xbf16> to vector<8x16x128xbf16>
    %c0_28 = arith.constant 0 : index
    %c0_29 = arith.constant 0 : index
    %c1280 = arith.constant 1280 : index
    %34 = vector.load %arg7[%c0_28, %c0_29, %c1280] : memref<8x16x3200xbf16, #tpu.memory_space<vmem>>, vector<8x16x128xbf16>
    tpu.vector_store %arg7[%c0_28, %c0_29, %c1280], %33 {strides = array<i32>} : memref<8x16x3200xbf16, #tpu.memory_space<vmem>>, vector<8x16x128xbf16>,
    %35 = vector.extract_strided_slice %32 {offsets = [0, 1, 0], sizes = [8, 16, 128], strides = [1, 1, 1]} : vector<8x20x128xbf16> to vector<8x16x128xbf16>
    %c0_30 = arith.constant 0 : index
    %c0_31 = arith.constant 0 : index
    %c1408 = arith.constant 1408 : index
    %36 = vector.load %arg7[%c0_30, %c0_31, %c1408] : memref<8x16x3200xbf16, #tpu.memory_space<vmem>>, vector<8x16x128xbf16>
    tpu.vector_store %arg7[%c0_30, %c0_31, %c1408], %35 {strides = array<i32>} : memref<8x16x3200xbf16, #tpu.memory_space<vmem>>, vector<8x16x128xbf16>,
    %37 = vector.extract_strided_slice %32 {offsets = [0, 2, 0], sizes = [8, 16, 128], strides = [1, 1, 1]} : vector<8x20x128xbf16> to vector<8x16x128xbf16>
    %c0_32 = arith.constant 0 : index
    %c0_33 = arith.constant 0 : index
    %c1536 = arith.constant 1536 : index
    %38 = vector.load %arg7[%c0_32, %c0_33, %c1536] : memref<8x16x3200xbf16, #tpu.memory_space<vmem>>, vector<8x16x128xbf16>
    tpu.vector_store %arg7[%c0_32, %c0_33, %c1536], %37 {strides = array<i32>} : memref<8x16x3200xbf16, #tpu.memory_space<vmem>>, vector<8x16x128xbf16>,
    %39 = vector.extract_strided_slice %32 {offsets = [0, 3, 0], sizes = [8, 16, 128], strides = [1, 1, 1]} : vector<8x20x128xbf16> to vector<8x16x128xbf16>
    %c0_34 = arith.constant 0 : index
    %c0_35 = arith.constant 0 : index
    %c1664 = arith.constant 1664 : index
    %40 = vector.load %arg7[%c0_34, %c0_35, %c1664] : memref<8x16x3200xbf16, #tpu.memory_space<vmem>>, vector<8x16x128xbf16>
    tpu.vector_store %arg7[%c0_34, %c0_35, %c1664], %39 {strides = array<i32>} : memref<8x16x3200xbf16, #tpu.memory_space<vmem>>, vector<8x16x128xbf16>,
    %41 = vector.extract_strided_slice %32 {offsets = [0, 4, 0], sizes = [8, 16, 128], strides = [1, 1, 1]} : vector<8x20x128xbf16> to vector<8x16x128xbf16>
    %c0_36 = arith.constant 0 : index
    %c0_37 = arith.constant 0 : index
    %c1792 = arith.constant 1792 : index
    %42 = vector.load %arg7[%c0_36, %c0_37, %c1792] : memref<8x16x3200xbf16, #tpu.memory_space<vmem>>, vector<8x16x128xbf16>
    tpu.vector_store %arg7[%c0_36, %c0_37, %c1792], %41 {strides = array<i32>} : memref<8x16x3200xbf16, #tpu.memory_space<vmem>>, vector<8x16x128xbf16>,
    %c3_i32 = arith.constant 3 : i32
    %43 = arith.addi %3, %c3_i32 : i32
    %44 = arith.index_cast %43 : i32 to index
    %c0_38 = arith.constant 0 : index
    %c0_39 = arith.constant 0 : index
    %45 = vector.load %arg6[%44, %c0_38, %c0_39] : memref<20x20x128xbf16, #tpu.memory_space<vmem>>, vector<8x20x128xbf16>
    %46 = vector.extract_strided_slice %45 {offsets = [0, 0, 0], sizes = [8, 16, 128], strides = [1, 1, 1]} : vector<8x20x128xbf16> to vector<8x16x128xbf16>
    %c0_40 = arith.constant 0 : index
    %c0_41 = arith.constant 0 : index
    %c1920 = arith.constant 1920 : index
    %47 = vector.load %arg7[%c0_40, %c0_41, %c1920] : memref<8x16x3200xbf16, #tpu.memory_space<vmem>>, vector<8x16x128xbf16>
    tpu.vector_store %arg7[%c0_40, %c0_41, %c1920], %46 {strides = array<i32>} : memref<8x16x3200xbf16, #tpu.memory_space<vmem>>, vector<8x16x128xbf16>,
    %48 = vector.extract_strided_slice %45 {offsets = [0, 1, 0], sizes = [8, 16, 128], strides = [1, 1, 1]} : vector<8x20x128xbf16> to vector<8x16x128xbf16>
    %c0_42 = arith.constant 0 : index
    %c0_43 = arith.constant 0 : index
    %c2048 = arith.constant 2048 : index
    %49 = vector.load %arg7[%c0_42, %c0_43, %c2048] : memref<8x16x3200xbf16, #tpu.memory_space<vmem>>, vector<8x16x128xbf16>
    tpu.vector_store %arg7[%c0_42, %c0_43, %c2048], %48 {strides = array<i32>} : memref<8x16x3200xbf16, #tpu.memory_space<vmem>>, vector<8x16x128xbf16>,
    %50 = vector.extract_strided_slice %45 {offsets = [0, 2, 0], sizes = [8, 16, 128], strides = [1, 1, 1]} : vector<8x20x128xbf16> to vector<8x16x128xbf16>
    %c0_44 = arith.constant 0 : index
    %c0_45 = arith.constant 0 : index
    %c2176 = arith.constant 2176 : index
    %51 = vector.load %arg7[%c0_44, %c0_45, %c2176] : memref<8x16x3200xbf16, #tpu.memory_space<vmem>>, vector<8x16x128xbf16>
    tpu.vector_store %arg7[%c0_44, %c0_45, %c2176], %50 {strides = array<i32>} : memref<8x16x3200xbf16, #tpu.memory_space<vmem>>, vector<8x16x128xbf16>,
    %52 = vector.extract_strided_slice %45 {offsets = [0, 3, 0], sizes = [8, 16, 128], strides = [1, 1, 1]} : vector<8x20x128xbf16> to vector<8x16x128xbf16>
    %c0_46 = arith.constant 0 : index
    %c0_47 = arith.constant 0 : index
    %c2304 = arith.constant 2304 : index
    %53 = vector.load %arg7[%c0_46, %c0_47, %c2304] : memref<8x16x3200xbf16, #tpu.memory_space<vmem>>, vector<8x16x128xbf16>
    tpu.vector_store %arg7[%c0_46, %c0_47, %c2304], %52 {strides = array<i32>} : memref<8x16x3200xbf16, #tpu.memory_space<vmem>>, vector<8x16x128xbf16>,
    %54 = vector.extract_strided_slice %45 {offsets = [0, 4, 0], sizes = [8, 16, 128], strides = [1, 1, 1]} : vector<8x20x128xbf16> to vector<8x16x128xbf16>
    %c0_48 = arith.constant 0 : index
    %c0_49 = arith.constant 0 : index
    %c2432 = arith.constant 2432 : index
    %55 = vector.load %arg7[%c0_48, %c0_49, %c2432] : memref<8x16x3200xbf16, #tpu.memory_space<vmem>>, vector<8x16x128xbf16>
    tpu.vector_store %arg7[%c0_48, %c0_49, %c2432], %54 {strides = array<i32>} : memref<8x16x3200xbf16, #tpu.memory_space<vmem>>, vector<8x16x128xbf16>,
    %c4_i32 = arith.constant 4 : i32
    %56 = arith.addi %3, %c4_i32 : i32
    %57 = arith.index_cast %56 : i32 to index
    %c0_50 = arith.constant 0 : index
    %c0_51 = arith.constant 0 : index
    %58 = vector.load %arg6[%57, %c0_50, %c0_51] : memref<20x20x128xbf16, #tpu.memory_space<vmem>>, vector<8x20x128xbf16>
    %59 = vector.extract_strided_slice %58 {offsets = [0, 0, 0], sizes = [8, 16, 128], strides = [1, 1, 1]} : vector<8x20x128xbf16> to vector<8x16x128xbf16>
    %c0_52 = arith.constant 0 : index
    %c0_53 = arith.constant 0 : index
    %c2560 = arith.constant 2560 : index
    %60 = vector.load %arg7[%c0_52, %c0_53, %c2560] : memref<8x16x3200xbf16, #tpu.memory_space<vmem>>, vector<8x16x128xbf16>
    tpu.vector_store %arg7[%c0_52, %c0_53, %c2560], %59 {strides = array<i32>} : memref<8x16x3200xbf16, #tpu.memory_space<vmem>>, vector<8x16x128xbf16>,
    %61 = vector.extract_strided_slice %58 {offsets = [0, 1, 0], sizes = [8, 16, 128], strides = [1, 1, 1]} : vector<8x20x128xbf16> to vector<8x16x128xbf16>
    %c0_54 = arith.constant 0 : index
    %c0_55 = arith.constant 0 : index
    %c2688 = arith.constant 2688 : index
    %62 = vector.load %arg7[%c0_54, %c0_55, %c2688] : memref<8x16x3200xbf16, #tpu.memory_space<vmem>>, vector<8x16x128xbf16>
    tpu.vector_store %arg7[%c0_54, %c0_55, %c2688], %61 {strides = array<i32>} : memref<8x16x3200xbf16, #tpu.memory_space<vmem>>, vector<8x16x128xbf16>,
    %63 = vector.extract_strided_slice %58 {offsets = [0, 2, 0], sizes = [8, 16, 128], strides = [1, 1, 1]} : vector<8x20x128xbf16> to vector<8x16x128xbf16>
    %c0_56 = arith.constant 0 : index
    %c0_57 = arith.constant 0 : index
    %c2816 = arith.constant 2816 : index
    %64 = vector.load %arg7[%c0_56, %c0_57, %c2816] : memref<8x16x3200xbf16, #tpu.memory_space<vmem>>, vector<8x16x128xbf16>
    tpu.vector_store %arg7[%c0_56, %c0_57, %c2816], %63 {strides = array<i32>} : memref<8x16x3200xbf16, #tpu.memory_space<vmem>>, vector<8x16x128xbf16>,
    %65 = vector.extract_strided_slice %58 {offsets = [0, 3, 0], sizes = [8, 16, 128], strides = [1, 1, 1]} : vector<8x20x128xbf16> to vector<8x16x128xbf16>
    %c0_58 = arith.constant 0 : index
    %c0_59 = arith.constant 0 : index
    %c2944 = arith.constant 2944 : index
    %66 = vector.load %arg7[%c0_58, %c0_59, %c2944] : memref<8x16x3200xbf16, #tpu.memory_space<vmem>>, vector<8x16x128xbf16>
    tpu.vector_store %arg7[%c0_58, %c0_59, %c2944], %65 {strides = array<i32>} : memref<8x16x3200xbf16, #tpu.memory_space<vmem>>, vector<8x16x128xbf16>,
    %67 = vector.extract_strided_slice %58 {offsets = [0, 4, 0], sizes = [8, 16, 128], strides = [1, 1, 1]} : vector<8x20x128xbf16> to vector<8x16x128xbf16>
    %c0_60 = arith.constant 0 : index
    %c0_61 = arith.constant 0 : index
    %c3072 = arith.constant 3072 : index
    %68 = vector.load %arg7[%c0_60, %c0_61, %c3072] : memref<8x16x3200xbf16, #tpu.memory_space<vmem>>, vector<8x16x128xbf16>
    tpu.vector_store %arg7[%c0_60, %c0_61, %c3072], %67 {strides = array<i32>} : memref<8x16x3200xbf16, #tpu.memory_space<vmem>>, vector<8x16x128xbf16>,
    %c0_62 = arith.constant 0 : index
    %c0_63 = arith.constant 0 : index
    %c0_64 = arith.constant 0 : index
    %69 = vector.load %arg7[%c0_62, %c0_63, %c0_64] : memref<8x16x3200xbf16, #tpu.memory_space<vmem>>, vector<8x16x3200xbf16>
    %70 = vector.shape_cast %69 : vector<8x16x3200xbf16> to vector<128x3200xbf16>
    %c0_65 = arith.constant 0 : index
    %c0_66 = arith.constant 0 : index
    %71 = vector.load %arg3[%c0_65, %c0_66] : memref<3200x8xbf16, #tpu.memory_space<vmem>>, vector<3200x8xbf16>
    %cst = arith.constant dense<0.000000e+00> : vector<128x8xf32>
    %72 = tpu.matmul %70, %71, %cst {dimension_numbers = #tpu.dot_dimension_numbers<[1], [0], [0], [1], [0, 0, 1, 1], [], []>} : vector<128x3200xbf16>, vector<3200x8xbf16>, vector<128x8xf32> -> vector<128x8xf32>
    %c0_67 = arith.constant 0 : index
    %c0_68 = arith.constant 0 : index
    %73 = vector.load %arg4[%c0_67, %c0_68] : memref<1x8xf32, #tpu.memory_space<vmem>>, vector<1x8xf32>
    %74 = vector.broadcast %73 : vector<1x8xf32> to vector<128x8xf32>
    %75 = arith.addf %72, %74 : vector<128x8xf32>
    %cst_69 = arith.constant 0.000000e+00 : f32
    %76 = vector.broadcast %cst_69 : f32 to vector<128x8xf32>
    %77 = arith.maximumf %75, %76 : vector<128x8xf32>
    %78 = arith.truncf %77 : vector<128x8xf32> to vector<128x8xbf16>
    %c0_70 = arith.constant 0 : index
    %c0_71 = arith.constant 0 : index
    %c0_72 = arith.constant 0 : index
    %79 = vector.load %arg5[%c0_70, %c0_71, %c0_72] : memref<1x128x8xbf16, #tpu.memory_space<vmem>>, vector<1x128x8xbf16>
    %80 = vector.shape_cast %79 : vector<1x128x8xbf16> to vector<128x8xbf16>
    %81 = vector.shape_cast %78 : vector<128x8xbf16> to vector<1x128x8xbf16>
    tpu.vector_store %arg5[%c0_70, %c0_71, %c0_72], %81 {strides = array<i32>} : memref<1x128x8xbf16, #tpu.memory_space<vmem>>, vector<1x128x8xbf16>,
    return
  }
  func.func @transform_0(%arg0: i32, %arg1: i32) -> (i32, i32, i32, i32) {
    %c0_i32 = arith.constant 0 : i32
    %c0_i32_0 = arith.constant 0 : i32
    %c0_i32_1 = arith.constant 0 : i32
    %c0_i32_2 = arith.constant 0 : i32
    return %arg0, %c0_i32, %c0_i32_0, %c0_i32_1 : i32, i32, i32, i32
  }
  func.func @transform_1(%arg0: i32, %arg1: i32) -> (i32, i32) {
    %c0_i32 = arith.constant 0 : i32
    %c0_i32_0 = arith.constant 0 : i32
    %c0_i32_1 = arith.constant 0 : i32
    return %c0_i32, %c0_i32_0 : i32, i32
  }
  func.func @transform_2(%arg0: i32, %arg1: i32) -> (i32, i32) {
    %c0_i32 = arith.constant 0 : i32
    %c0_i32_0 = arith.constant 0 : i32
    %c0_i32_1 = arith.constant 0 : i32
    return %c0_i32, %c0_i32_0 : i32, i32
  }
  func.func @transform_3(%arg0: i32, %arg1: i32) -> (i32, i32, i32) {
    %c0_i32 = arith.constant 0 : i32
    %c0_i32_0 = arith.constant 0 : i32
    return %arg0, %arg1, %c0_i32 : i32, i32, i32
  }
}

</mosaic_0001>

<llo_original>
// kernel: inception_forward.7
$region0: #{inception_forward.7}
  #allocation0 [shape = 'u32[]', space=smem, size = 0x4, offset = 0x4, fixed_abs, tag = 'smem constant byte address 0x4 - core index']
  #allocation1 [shape = 'u32[144,128]{1,0:T(1,128)}', space=vmem, size = 0x12000, scoped, tag = 'internal scratch']
  #allocation2 [shape = 'bf16[18,18,4]{2,1,0:T(8,128)(2,1)}', space=vmem, size = 0x1b000, scoped, tag = 'scratch operand']
  %s0 = inlined_call_operand.vmem [shape: bf16[2,16,16,4], index: 0, kind: input, shape index: {}]
  %s1 = inlined_call_operand.vmem [shape: bf16[4,8], index: 1, kind: input, shape index: {}]
  %s2 = inlined_call_operand.vmem [shape: f32[1,8], index: 2, kind: input, shape index: {}]
  %s3 = inlined_call_operand.vmem [shape: bf16[2,256,8], index: 3, kind: output, shape index: {}]
  %s4 = sld [smem:[#allocation0]]
  $region49: #{inception_forward.7} parent=0
    _
  %s6 = ssub.s32 1, %s4
  %s7 = scalar_select 0, %s6, %s4
  loop: start=0, step=1, limit=6
  $region2: #{inception_forward.7} parent=0 // loop_pre_header
    _
  $region3: #{inception_forward.7} parent=0 // loop_header
    %s9 = sphi 0, %s13
    %p10 = scmp.ge.s32.totalorder %s9, 6
    %s16 = sphi 0, %s28
    %s17 = sphi 0, %s24
    %s18 = sphi 0, %s16
    %s19 = sphi 0, %s17
    %s20 = sphi 0, %s18
    %s21 = sphi 0, %s19
    %s31 = sphi 0, %s33
    %s34 = sphi 0, %s31
    %s35 = sphi 0, %s34
    %s51 = sphi 0, %s35
    %s55 = sphi 0, %s55
    %s57 = sphi 0, %s55
    %s58 = sphi 0, %s57
    %s72 = sphi 0, %s58
    %s76 = sphi 0, %s76
    %s78 = sphi 0, %s76
    %s79 = sphi 0, %s78
    %s93 = sphi 0, %s79
    %s101 = sphi 0, %s103
    %s104 = sphi 0, %s101
    %s105 = sphi 0, %s104
    %s121 = sphi 0, %s105
  $region4: #{inception_forward.7} parent=0 // loop_header_branch
    %12 = sbr.rel (%p10) target = $region8
  $region5: #{inception_forward.7} parent=0 // loop_body
    %s14 = ssub.s32 %s9, 1
    %s15 = ssub.s32 %s9, 2
    %s22 = sadd.s32 1, %s17
    %p23 = scmp.ge.s32.totalorder %s22, 2
    %s24 = scalar_select %p23, 0, %s22
    %s25 = sadd.s32 1, %s16
    %s26 = scalar_select %p23, %s25, %s16
    %p27 = scmp.ge.s32.totalorder %s26, 2
    %s28 = scalar_select %p27, 0, %s26
    %s29 = ssub.s32 %s16, %s28
    %p30 = scmp.eq.s32.totalorder %s29, 0
    %s32 = sadd.s32 %s31, 1
    %s33 = scalar_select %p30, %s31, %s32
    %p36 = pneg %p30
    %p37 = scmp.eq.s32.totalorder %s9, 3
    %p38 = por %p36, %p37
    %p39 = scmp.ne.s32.totalorder %s31, %s34
    %p40 = scmp.eq.s32.totalorder %s9, 0
    %p41 = por %p39, %p40
    %p42 = scmp.ne.s32.totalorder %s31, %s34
    %p43 = scmp.eq.s32.totalorder %s14, 3
    %p44 = por %p42, %p43
    %p45 = scmp.ne.s32.totalorder %s34, %s35
    %p46 = scmp.eq.s32.totalorder %s14, 0
    %p47 = por %p45, %p46
    %p48 = scmp.ne.s32.totalorder %s34, %s35
    %p49 = scmp.eq.s32.totalorder %s15, 3
    %p50 = por %p48, %p49
    %p52 = scmp.ne.s32.totalorder %s35, %s51
    %p53 = scmp.eq.s32.totalorder %s15, 0
    %p54 = por %p52, %p53
    %s56 = sadd.s32 %s55, 1
    %p59 = scmp.eq.s32.totalorder %s9, 3
    %p60 = scmp.ne.s32.totalorder %s55, %s57
    %p61 = scmp.eq.s32.totalorder %s9, 0
    %p62 = por %p60, %p61
    %p63 = scmp.ne.s32.totalorder %s55, %s57
    %p64 = scmp.eq.s32.totalorder %s14, 3
    %p65 = por %p63, %p64
    %p66 = scmp.ne.s32.totalorder %s57, %s58
    %p67 = scmp.eq.s32.totalorder %s14, 0
    %p68 = por %p66, %p67
    %p69 = scmp.ne.s32.totalorder %s57, %s58
    %p70 = scmp.eq.s32.totalorder %s15, 3
    %p71 = por %p69, %p70
    %p73 = scmp.ne.s32.totalorder %s58, %s72
    %p74 = scmp.eq.s32.totalorder %s15, 0
    %p75 = por %p73, %p74
    %s77 = sadd.s32 %s76, 1
    %p80 = scmp.eq.s32.totalorder %s9, 3
    %p81 = scmp.ne.s32.totalorder %s76, %s78
    %p82 = scmp.eq.s32.totalorder %s9, 0
    %p83 = por %p81, %p82
    %p84 = scmp.ne.s32.totalorder %s76, %s78
    %p85 = scmp.eq.s32.totalorder %s14, 3
    %p86 = por %p84, %p85
    %p87 = scmp.ne.s32.totalorder %s78, %s79
    %p88 = scmp.eq.s32.totalorder %s14, 0
    %p89 = por %p87, %p88
    %p90 = scmp.ne.s32.totalorder %s78, %s79
    %p91 = scmp.eq.s32.totalorder %s15, 3
    %p92 = por %p90, %p91
    %p94 = scmp.ne.s32.totalorder %s79, %s93
    %p95 = scmp.eq.s32.totalorder %s15, 0
    %p96 = por %p94, %p95
    %s97 = ssub.s32 %s16, %s28
    %s98 = ssub.s32 %s17, %s24
    %s99 = sor.u32 %s97, %s98
    %p100 = scmp.eq.s32.totalorder %s99, 0
    %s102 = sadd.s32 %s101, 1
    %s103 = scalar_select %p100, %s101, %s102
    %p106 = pneg %p100
    %p107 = scmp.eq.s32.totalorder %s9, 3
    %p108 = por %p106, %p107
    %p109 = scmp.ne.s32.totalorder %s101, %s104
    %p110 = scmp.eq.s32.totalorder %s9, 0
    %p111 = por %p109, %p110
    %p112 = scmp.ne.s32.totalorder %s101, %s104
    %p113 = scmp.eq.s32.totalorder %s14, 3
    %p114 = por %p112, %p113
    %p115 = scmp.ne.s32.totalorder %s104, %s105
    %p116 = scmp.eq.s32.totalorder %s14, 0
    %p117 = por %p115, %p116
    %p118 = scmp.ne.s32.totalorder %s104, %s105
    %p119 = scmp.eq.s32.totalorder %s15, 3
    %p120 = por %p118, %p119
    %p122 = scmp.ne.s32.totalorder %s105, %s121
    %p123 = scmp.eq.s32.totalorder %s15, 0
    %p124 = por %p122, %p123
    %p125 = scmp.le.s32.totalorder 1, %s9
    %p126 = scmp.lt.s32.totalorder %s9, 5
    %p127 = pnand %p125, %p126
    %p128 = pneg %p127
    // Predicated region
    $region9: #{inception_forward.7} parent=5 // pred_check
      _
    $region10: #{inception_forward.7} parent=5 // pred_check_branch
      %130 = sbr.rel (%p127) target = $region12
    $region11: #{inception_forward.7} parent=5 // pred_region
      %s131 = ssub.s32 %s9, 1
      // Predicated region
      $region13: #{inception_forward.7} parent=11 // pred_check
        %p132 = pneg %p68
      $region14: #{inception_forward.7} parent=11 // pred_check_branch
        %134 = sbr.rel (%p132) target = $region16
      $region15: #{inception_forward.7} parent=11 // pred_region
        _
      $region16: #{inception_forward.7} parent=11 // pred_fallthru
        _
      // Predicated region
      $region17: #{inception_forward.7} parent=11 // pred_check
        %p135 = pneg %p89
      $region18: #{inception_forward.7} parent=11 // pred_check_branch
        %137 = sbr.rel (%p135) target = $region20
      $region19: #{inception_forward.7} parent=11 // pred_region
        _
      $region20: #{inception_forward.7} parent=11 // pred_fallthru
        _
    $region12: #{inception_forward.7} parent=5 // pred_fallthru
      _
    %p138 = scmp.lt.s32.totalorder %s9, 4
    // Predicated region
    $region21: #{inception_forward.7} parent=5 // pred_check
      %p139 = pneg %p138
    $region22: #{inception_forward.7} parent=5 // pred_check_branch
      %141 = sbr.rel (%p139) target = $region24
    $region23: #{inception_forward.7} parent=5 // pred_region
      // Predicated region
      $region25: #{inception_forward.7} parent=23 // pred_check
        %p142 = pneg %p41
      $region26: #{inception_forward.7} parent=23 // pred_check_branch
        %144 = sbr.rel (%p142) target = $region28
      $region27: #{inception_forward.7} parent=23 // pred_region
        %p145 = scmp.lt.s32.totalorder %s16, 1
        %s146 = scalar_select %p145, %s16, 1
        %s147 = smul.addr %s146, 32
        %s148 = smul.addr %s147, 4
        %s149 = scalar_lea.vmem %s0, %s148
      $region28: #{inception_forward.7} parent=23 // pred_fallthru
        _
    $region24: #{inception_forward.7} parent=5 // pred_fallthru
      _
    %p150 = scmp.le.s32.totalorder 1, %s9
    %p151 = scmp.lt.s32.totalorder %s9, 5
    %p152 = pnand %p150, %p151
    %p153 = pneg %p152
    // Predicated region
    $region29: #{inception_forward.7} parent=5 // pred_check
      _
    $region30: #{inception_forward.7} parent=5 // pred_check_branch
      %155 = sbr.rel (%p152) target = $region32
    $region31: #{inception_forward.7} parent=5 // pred_region
      %s156 = ssub.s32 %s9, 1
      %p157 = scmp.lt.s32.totalorder %s18, 1
      %s158 = scalar_select %p157, %s18, 1
      %s159 = smul.addr %s158, 32
      %s160 = smul.addr %s159, 4
      %s161 = scalar_lea.vmem %s0, %s160
      %p162 = pneg %p47
      %p163 = pneg %p44
      %p164 = pneg %p68
      %p165 = pneg %p65
      %p166 = pneg %p89
      %p167 = pneg %p86
      %p168 = pneg %p117
      %p169 = pneg %p114
      %s170 = smul.u32 16, %s19
      %p171 = scmp.lt.s32.totalorder %s18, 1
      %s172 = scalar_select %p171, %s18, 1
      %p173 = scmp.lt.s32.totalorder %s170, 31
      %s174 = scalar_select %p173, %s170, 31
      %s175 = smul.addr %s172, 32
      %s176 = sadd.s32 %s174, %s175
      %s177 = smul.addr %s176, 4
      %s178 = scalar_lea.vmem %s3, %s177
      %p179 = scmp.lt.s32.totalorder %s18, 1
      %s180 = scalar_select %p179, %s18, 1
      %s181 = smul.addr %s180, 32
      %s182 = smul.addr %s181, 4
      %s183 = scalar_lea.vmem %s0, %s182
      %s184 = smul.u32 16, %s19
      %p185 = scmp.lt.s32.totalorder %s18, 1
      %s186 = scalar_select %p185, %s18, 1
      %p187 = scmp.lt.s32.totalorder %s184, 31
      %s188 = scalar_select %p187, %s184, 31
      %s189 = smul.addr %s186, 32
      %s190 = sadd.s32 %s188, %s189
      %s191 = smul.addr %s190, 4
      %s192 = scalar_lea.vmem %s3, %s191
      %s193 = smul.u32 16, %s19
      %p196 = scmp.eq.s32.totalorder %s19, 0
      // Predicated region
      $region33: #{inception_forward.7} parent=31 // pred_check
        %p197 = pneg %p196
      $region34: #{inception_forward.7} parent=31 // pred_check_branch
        %199 = sbr.rel (%p197) target = $region36
      $region35: #{inception_forward.7} parent=31 // pred_region
        %vm200 = vcmask 27648
        %201 = vst.msk [vmem:[#allocation2] sm:$0xf] %vm200, 4286644096
        %202 = vst.msk [vmem:[#allocation2 + $0x4] sm:$0xf] %vm200, 4286644096
        %vm203 = vcmask 24576
        %204 = vst.msk [vmem:[#allocation2 + $0x8] sm:$0x1] %vm203, 4286644096
        %205 = vst.msk [vmem:[#allocation2 + $0xc] sm:$0xf] %vm200, 4286644096
        %206 = vst.msk [vmem:[#allocation2 + $0x10] sm:$0xf] %vm200, 4286644096
        %207 = vst.msk [vmem:[#allocation2 + $0x14] sm:$0x1] %vm203, 4286644096
        %208 = vst.msk [vmem:[#allocation2 + $0x18] sm:$0xf] %vm200, 4286644096
        %209 = vst.msk [vmem:[#allocation2 + $0x1c] sm:$0xf] %vm200, 4286644096
        %210 = vst.msk [vmem:[#allocation2 + $0x20] sm:$0x1] %vm203, 4286644096
        %211 = vst.msk [vmem:[#allocation2 + $0x24] sm:$0xf] %vm200, 4286644096
        %212 = vst.msk [vmem:[#allocation2 + $0x28] sm:$0xf] %vm200, 4286644096
        %213 = vst.msk [vmem:[#allocation2 + $0x2c] sm:$0x1] %vm203, 4286644096
        %214 = vst.msk [vmem:[#allocation2 + $0x30] sm:$0xf] %vm200, 4286644096
        %215 = vst.msk [vmem:[#allocation2 + $0x34] sm:$0xf] %vm200, 4286644096
        %216 = vst.msk [vmem:[#allocation2 + $0x38] sm:$0x1] %vm203, 4286644096
        %217 = vst.msk [vmem:[#allocation2 + $0x3c] sm:$0xf] %vm200, 4286644096
        %218 = vst.msk [vmem:[#allocation2 + $0x40] sm:$0xf] %vm200, 4286644096
        %219 = vst.msk [vmem:[#allocation2 + $0x44] sm:$0x1] %vm203, 4286644096
        %220 = vst.msk [vmem:[#allocation2 + $0x48] sm:$0xf] %vm200, 4286644096
        %221 = vst.msk [vmem:[#allocation2 + $0x4c] sm:$0xf] %vm200, 4286644096
        %222 = vst.msk [vmem:[#allocation2 + $0x50] sm:$0x1] %vm203, 4286644096
        %223 = vst.msk [vmem:[#allocation2 + $0x54] sm:$0xf] %vm200, 4286644096
        %224 = vst.msk [vmem:[#allocation2 + $0x58] sm:$0xf] %vm200, 4286644096
        %225 = vst.msk [vmem:[#allocation2 + $0x5c] sm:$0x1] %vm203, 4286644096
        %226 = vst.msk [vmem:[#allocation2 + $0x60] sm:$0xf] %vm200, 4286644096
        %227 = vst.msk [vmem:[#allocation2 + $0x64] sm:$0xf] %vm200, 4286644096
        %228 = vst.msk [vmem:[#allocation2 + $0x68] sm:$0x1] %vm203, 4286644096
        %229 = vst.msk [vmem:[#allocation2 + $0x6c] sm:$0xf] %vm200, 4286644096
        %230 = vst.msk [vmem:[#allocation2 + $0x70] sm:$0xf] %vm200, 4286644096
        %231 = vst.msk [vmem:[#allocation2 + $0x74] sm:$0x1] %vm203, 4286644096
        %232 = vst.msk [vmem:[#allocation2 + $0x78] sm:$0xf] %vm200, 4286644096
        %233 = vst.msk [vmem:[#allocation2 + $0x7c] sm:$0xf] %vm200, 4286644096
        %234 = vst.msk [vmem:[#allocation2 + $0x80] sm:$0x1] %vm203, 4286644096
        %235 = vst.msk [vmem:[#allocation2 + $0x84] sm:$0xf] %vm200, 4286644096
        %236 = vst.msk [vmem:[#allocation2 + $0x88] sm:$0xf] %vm200, 4286644096
        %237 = vst.msk [vmem:[#allocation2 + $0x8c] sm:$0x1] %vm203, 4286644096
        %238 = vst.msk [vmem:[#allocation2 + $0x90] sm:$0xf] %vm200, 4286644096
        %239 = vst.msk [vmem:[#allocation2 + $0x94] sm:$0xf] %vm200, 4286644096
        %240 = vst.msk [vmem:[#allocation2 + $0x98] sm:$0x1] %vm203, 4286644096
        %241 = vst.msk [vmem:[#allocation2 + $0x9c] sm:$0xf] %vm200, 4286644096
        %242 = vst.msk [vmem:[#allocation2 + $0xa0] sm:$0xf] %vm200, 4286644096
        %243 = vst.msk [vmem:[#allocation2 + $0xa4] sm:$0x1] %vm203, 4286644096
        %244 = vst.msk [vmem:[#allocation2 + $0xa8] sm:$0xf] %vm200, 4286644096
        %245 = vst.msk [vmem:[#allocation2 + $0xac] sm:$0xf] %vm200, 4286644096
        %246 = vst.msk [vmem:[#allocation2 + $0xb0] sm:$0x1] %vm203, 4286644096
        %247 = vst.msk [vmem:[#allocation2 + $0xb4] sm:$0xf] %vm200, 4286644096
        %248 = vst.msk [vmem:[#allocation2 + $0xb8] sm:$0xf] %vm200, 4286644096
        %249 = vst.msk [vmem:[#allocation2 + $0xbc] sm:$0x1] %vm203, 4286644096
        %250 = vst.msk [vmem:[#allocation2 + $0xc0] sm:$0xf] %vm200, 4286644096
        %251 = vst.msk [vmem:[#allocation2 + $0xc4] sm:$0xf] %vm200, 4286644096
        %252 = vst.msk [vmem:[#allocation2 + $0xc8] sm:$0x1] %vm203, 4286644096
        %253 = vst.msk [vmem:[#allocation2 + $0xcc] sm:$0xf] %vm200, 4286644096
        %254 = vst.msk [vmem:[#allocation2 + $0xd0] sm:$0xf] %vm200, 4286644096
        %255 = vst.msk [vmem:[#allocation2 + $0xd4] sm:$0x1] %vm203, 4286644096
        %v256 = vld [vmem:[%s183] sm:$0xf]
        %v257 = vld [vmem:[%s183 + $0x4] sm:$0xf]
        %v258 = vld [vmem:[%s183 + $0x8] sm:$0xf]
        %v259 = vld [vmem:[%s183 + $0xc] sm:$0xf]
        %v260 = vld [vmem:[%s183 + $0x10] sm:$0xf]
        %v261 = vld [vmem:[%s183 + $0x14] sm:$0xf]
        %v262 = vld [vmem:[%s183 + $0x18] sm:$0xf]
        %v263 = vld [vmem:[%s183 + $0x1c] sm:$0xf]
        %v264 = vld [vmem:[%s183 + $0x20] sm:$0xf]
        %v265 = vld [vmem:[%s183 + $0x24] sm:$0xf]
        %v266 = vld [vmem:[%s183 + $0x28] sm:$0xf]
        %v267 = vld [vmem:[%s183 + $0x2c] sm:$0xf]
        %v268 = vld [vmem:[%s183 + $0x30] sm:$0xf]
        %v269 = vld [vmem:[%s183 + $0x34] sm:$0xf]
        %v270 = vld [vmem:[%s183 + $0x38] sm:$0xf]
        %v271 = vld [vmem:[%s183 + $0x3c] sm:$0xf]
        %v272 = vld [vmem:[%s183 + $0x40] sm:$0xf]
        %v273 = vld [vmem:[%s183 + $0x44] sm:$0xf]
        %v274 = vld [vmem:[%s183 + $0x48] sm:$0xf]
        %v275 = vld [vmem:[%s183 + $0x4c] sm:$0xf]
        %v276 = vld [vmem:[%s183 + $0x50] sm:$0xf]
        %v277 = vld [vmem:[%s183 + $0x54] sm:$0xf]
        %v278 = vld [vmem:[%s183 + $0x58] sm:$0xf]
        %v279 = vld [vmem:[%s183 + $0x5c] sm:$0xf]
        %v280 = vld [vmem:[%s183 + $0x60] sm:$0xf]
        %v281 = vld [vmem:[%s183 + $0x64] sm:$0xf]
        %v282 = vld [vmem:[%s183 + $0x68] sm:$0xf]
        %v283 = vld [vmem:[%s183 + $0x6c] sm:$0xf]
        %v284 = vld [vmem:[%s183 + $0x70] sm:$0xf]
        %v285 = vld [vmem:[%s183 + $0x74] sm:$0xf]
        %v286 = vld [vmem:[%s183 + $0x78] sm:$0xf]
        %v287 = vld [vmem:[%s183 + $0x7c] sm:$0xf]
        %vm288 = vsmask.f32 256
        %vm289 = vsmask.f32 4368
        %vm290 = vmor %vm288, %vm289
        %v292 = vshrl.u32 %v256, 16
        %v294 = vrot.slane %v292, 7
        %v295 = vshll.u32 %v256, 16
        %v297 = vor.u32 %v294, %v295
        %v298 = vrot.slane %v294, 4
        %v300 = vshrl.u32 %v257, 16
        %v302 = vrot.slane %v300, 7
        %v303 = vshll.u32 %v257, 16
        %v305 = vor.u32 %v302, %v303
        %v306 = vsel %vm290, %v298, %v305
        %v307 = vrot.slane %v302, 4
        %v309 = vshrl.u32 %v258, 16
        %v311 = vrot.slane %v309, 7
        %v312 = vshll.u32 %v258, 16
        %v314 = vor.u32 %v311, %v312
        %v315 = vrot.slane %v311, 4
        %v317 = vshrl.u32 %v259, 16
        %v319 = vrot.slane %v317, 7
        %v320 = vshll.u32 %v259, 16
        %v322 = vor.u32 %v319, %v320
        %v323 = vsel %vm290, %v315, %v322
        %v324 = vrot.slane %v319, 4
        %v326 = vshrl.u32 %v260, 16
        %v328 = vrot.slane %v326, 7
        %v329 = vshll.u32 %v260, 16
        %v331 = vor.u32 %v328, %v329
        %v332 = vrot.slane %v328, 4
        %v334 = vshrl.u32 %v261, 16
        %v336 = vrot.slane %v334, 7
        %v337 = vshll.u32 %v261, 16
        %v339 = vor.u32 %v336, %v337
        %v340 = vsel %vm290, %v332, %v339
        %v341 = vrot.slane %v336, 4
        %v343 = vshrl.u32 %v262, 16
        %v345 = vrot.slane %v343, 7
        %v346 = vshll.u32 %v262, 16
        %v348 = vor.u32 %v345, %v346
        %v349 = vrot.slane %v345, 4
        %v351 = vshrl.u32 %v263, 16
        %v353 = vrot.slane %v351, 7
        %v354 = vshll.u32 %v263, 16
        %v356 = vor.u32 %v353, %v354
        %v357 = vsel %vm290, %v349, %v356
        %v358 = vrot.slane %v353, 4
        %v360 = vshrl.u32 %v264, 16
        %v362 = vrot.slane %v360, 7
        %v363 = vshll.u32 %v264, 16
        %v365 = vor.u32 %v362, %v363
        %v366 = vrot.slane %v362, 4
        %v368 = vshrl.u32 %v265, 16
        %v370 = vrot.slane %v368, 7
        %v371 = vshll.u32 %v265, 16
        %v373 = vor.u32 %v370, %v371
        %v374 = vsel %vm290, %v366, %v373
        %v375 = vrot.slane %v370, 4
        %v377 = vshrl.u32 %v266, 16
        %v379 = vrot.slane %v377, 7
        %v380 = vshll.u32 %v266, 16
        %v382 = vor.u32 %v379, %v380
        %v383 = vrot.slane %v379, 4
        %v385 = vshrl.u32 %v267, 16
        %v387 = vrot.slane %v385, 7
        %v388 = vshll.u32 %v267, 16
        %v390 = vor.u32 %v387, %v388
        %v391 = vsel %vm290, %v383, %v390
        %v392 = vrot.slane %v387, 4
        %v394 = vshrl.u32 %v268, 16
        %v396 = vrot.slane %v394, 7
        %v397 = vshll.u32 %v268, 16
        %v399 = vor.u32 %v396, %v397
        %v400 = vrot.slane %v396, 4
        %v402 = vshrl.u32 %v269, 16
        %v404 = vrot.slane %v402, 7
        %v405 = vshll.u32 %v269, 16
        %v407 = vor.u32 %v404, %v405
        %v408 = vsel %vm290, %v400, %v407
        %v409 = vrot.slane %v404, 4
        %v411 = vshrl.u32 %v270, 16
        %v413 = vrot.slane %v411, 7
        %v414 = vshll.u32 %v270, 16
        %v416 = vor.u32 %v413, %v414
        %v417 = vrot.slane %v413, 4
        %v419 = vshrl.u32 %v271, 16
        %v421 = vrot.slane %v419, 7
        %v422 = vshll.u32 %v271, 16
        %v424 = vor.u32 %v421, %v422
        %v425 = vsel %vm290, %v417, %v424
        %v426 = vrot.slane %v421, 4
        %v428 = vshrl.u32 %v272, 16
        %v430 = vrot.slane %v428, 7
        %v431 = vshll.u32 %v272, 16
        %v433 = vor.u32 %v430, %v431
        %v434 = vrot.slane %v430, 4
        %v436 = vshrl.u32 %v273, 16
        %v438 = vrot.slane %v436, 7
        %v439 = vshll.u32 %v273, 16
        %v441 = vor.u32 %v438, %v439
        %v442 = vsel %vm290, %v434, %v441
        %v443 = vrot.slane %v438, 4
        %v445 = vshrl.u32 %v274, 16
        %v447 = vrot.slane %v445, 7
        %v448 = vshll.u32 %v274, 16
        %v450 = vor.u32 %v447, %v448
        %v451 = vrot.slane %v447, 4
        %v453 = vshrl.u32 %v275, 16
        %v455 = vrot.slane %v453, 7
        %v456 = vshll.u32 %v275, 16
        %v458 = vor.u32 %v455, %v456
        %v459 = vsel %vm290, %v451, %v458
        %v460 = vrot.slane %v455, 4
        %v462 = vshrl.u32 %v276, 16
        %v464 = vrot.slane %v462, 7
        %v465 = vshll.u32 %v276, 16
        %v467 = vor.u32 %v464, %v465
        %v468 = vrot.slane %v464, 4
        %v470 = vshrl.u32 %v277, 16
        %v472 = vrot.slane %v470, 7
        %v473 = vshll.u32 %v277, 16
        %v475 = vor.u32 %v472, %v473
        %v476 = vsel %vm290, %v468, %v475
        %v477 = vrot.slane %v472, 4
        %v479 = vshrl.u32 %v278, 16
        %v481 = vrot.slane %v479, 7
        %v482 = vshll.u32 %v278, 16
        %v484 = vor.u32 %v481, %v482
        %v485 = vrot.slane %v481, 4
        %v487 = vshrl.u32 %v279, 16
        %v489 = vrot.slane %v487, 7
        %v490 = vshll.u32 %v279, 16
        %v492 = vor.u32 %v489, %v490
        %v493 = vsel %vm290, %v485, %v492
        %v494 = vrot.slane %v489, 4
        %v496 = vshrl.u32 %v280, 16
        %v498 = vrot.slane %v496, 7
        %v499 = vshll.u32 %v280, 16
        %v501 = vor.u32 %v498, %v499
        %v502 = vrot.slane %v498, 4
        %v504 = vshrl.u32 %v281, 16
        %v506 = vrot.slane %v504, 7
        %v507 = vshll.u32 %v281, 16
        %v509 = vor.u32 %v506, %v507
        %v510 = vsel %vm290, %v502, %v509
        %v511 = vrot.slane %v506, 4
        %v513 = vshrl.u32 %v282, 16
        %v515 = vrot.slane %v513, 7
        %v516 = vshll.u32 %v282, 16
        %v518 = vor.u32 %v515, %v516
        %v519 = vrot.slane %v515, 4
        %v521 = vshrl.u32 %v283, 16
        %v523 = vrot.slane %v521, 7
        %v524 = vshll.u32 %v283, 16
        %v526 = vor.u32 %v523, %v524
        %v527 = vsel %vm290, %v519, %v526
        %v528 = vrot.slane %v523, 4
        %v530 = vshrl.u32 %v284, 16
        %v532 = vrot.slane %v530, 7
        %v533 = vshll.u32 %v284, 16
        %v535 = vor.u32 %v532, %v533
        %v536 = vrot.slane %v532, 4
        %v538 = vshrl.u32 %v285, 16
        %v540 = vrot.slane %v538, 7
        %v541 = vshll.u32 %v285, 16
        %v543 = vor.u32 %v540, %v541
        %v544 = vsel %vm290, %v536, %v543
        %v545 = vrot.slane %v540, 4
        %v547 = vshrl.u32 %v286, 16
        %v549 = vrot.slane %v547, 7
        %v550 = vshll.u32 %v286, 16
        %v552 = vor.u32 %v549, %v550
        %v553 = vrot.slane %v549, 4
        %v555 = vshrl.u32 %v287, 16
        %v557 = vrot.slane %v555, 7
        %v558 = vshll.u32 %v287, 16
        %v560 = vor.u32 %v557, %v558
        %v561 = vsel %vm290, %v553, %v560
        %v562 = vrot.slane %v557, 4
        %s611 = scalar_lea.vmem [#allocation2], 12
        %vm612 = vcmask 27648
        %vm613 = vsmask.f32 7938
        %vm614 = vmand %vm612, %vm613
        %v615 = vld [vmem:[%s611] sm:$0xf]
        %v616 = vsel %vm614, %v297, %v615
        %617 = vst [vmem:[%s611] sm:$0xf] %v616
        %618 = vst.msk [vmem:[%s611 + $0x4] sm:$0xf] %vm200, %v306
        %vm619 = vcmask 24576
        %vm620 = vmand %vm619, %vm288
        %v621 = vld [vmem:[%s611 + $0x8] sm:$0x1]
        %v622 = vsel %vm620, %v307, %v621
        %623 = vst [vmem:[%s611 + $0x8] sm:$0x1] %v622
        %v624 = vld [vmem:[%s611 + $0xc] sm:$0xf]
        %v625 = vsel %vm614, %v314, %v624
        %626 = vst [vmem:[%s611 + $0xc] sm:$0xf] %v625
        %627 = vst.msk [vmem:[%s611 + $0x10] sm:$0xf] %vm200, %v323
        %v628 = vld [vmem:[%s611 + $0x14] sm:$0x1]
        %v629 = vsel %vm620, %v324, %v628
        %630 = vst [vmem:[%s611 + $0x14] sm:$0x1] %v629
        %v631 = vld [vmem:[%s611 + $0x18] sm:$0xf]
        %v632 = vsel %vm614, %v331, %v631
        %633 = vst [vmem:[%s611 + $0x18] sm:$0xf] %v632
        %634 = vst.msk [vmem:[%s611 + $0x1c] sm:$0xf] %vm200, %v340
        %v635 = vld [vmem:[%s611 + $0x20] sm:$0x1]
        %v636 = vsel %vm620, %v341, %v635
        %637 = vst [vmem:[%s611 + $0x20] sm:$0x1] %v636
        %v638 = vld [vmem:[%s611 + $0x24] sm:$0xf]
        %v639 = vsel %vm614, %v348, %v638
        %640 = vst [vmem:[%s611 + $0x24] sm:$0xf] %v639
        %641 = vst.msk [vmem:[%s611 + $0x28] sm:$0xf] %vm200, %v357
        %v642 = vld [vmem:[%s611 + $0x2c] sm:$0x1]
        %v643 = vsel %vm620, %v358, %v642
        %644 = vst [vmem:[%s611 + $0x2c] sm:$0x1] %v643
        %v645 = vld [vmem:[%s611 + $0x30] sm:$0xf]
        %v646 = vsel %vm614, %v365, %v645
        %647 = vst [vmem:[%s611 + $0x30] sm:$0xf] %v646
        %648 = vst.msk [vmem:[%s611 + $0x34] sm:$0xf] %vm200, %v374
        %v649 = vld [vmem:[%s611 + $0x38] sm:$0x1]
        %v650 = vsel %vm620, %v375, %v649
        %651 = vst [vmem:[%s611 + $0x38] sm:$0x1] %v650
        %v652 = vld [vmem:[%s611 + $0x3c] sm:$0xf]
        %v653 = vsel %vm614, %v382, %v652
        %654 = vst [vmem:[%s611 + $0x3c] sm:$0xf] %v653
        %655 = vst.msk [vmem:[%s611 + $0x40] sm:$0xf] %vm200, %v391
        %v656 = vld [vmem:[%s611 + $0x44] sm:$0x1]
        %v657 = vsel %vm620, %v392, %v656
        %658 = vst [vmem:[%s611 + $0x44] sm:$0x1] %v657
        %v659 = vld [vmem:[%s611 + $0x48] sm:$0xf]
        %v660 = vsel %vm614, %v399, %v659
        %661 = vst [vmem:[%s611 + $0x48] sm:$0xf] %v660
        %662 = vst.msk [vmem:[%s611 + $0x4c] sm:$0xf] %vm200, %v408
        %v663 = vld [vmem:[%s611 + $0x50] sm:$0x1]
        %v664 = vsel %vm620, %v409, %v663
        %665 = vst [vmem:[%s611 + $0x50] sm:$0x1] %v664
        %v666 = vld [vmem:[%s611 + $0x54] sm:$0xf]
        %v667 = vsel %vm614, %v416, %v666
        %668 = vst [vmem:[%s611 + $0x54] sm:$0xf] %v667
        %669 = vst.msk [vmem:[%s611 + $0x58] sm:$0xf] %vm200, %v425
        %v670 = vld [vmem:[%s611 + $0x5c] sm:$0x1]
        %v671 = vsel %vm620, %v426, %v670
        %672 = vst [vmem:[%s611 + $0x5c] sm:$0x1] %v671
        %v673 = vld [vmem:[%s611 + $0x60] sm:$0xf]
        %v674 = vsel %vm614, %v433, %v673
        %675 = vst [vmem:[%s611 + $0x60] sm:$0xf] %v674
        %676 = vst.msk [vmem:[%s611 + $0x64] sm:$0xf] %vm200, %v442
        %v677 = vld [vmem:[%s611 + $0x68] sm:$0x1]
        %v678 = vsel %vm620, %v443, %v677
        %679 = vst [vmem:[%s611 + $0x68] sm:$0x1] %v678
        %v680 = vld [vmem:[%s611 + $0x6c] sm:$0xf]
        %v681 = vsel %vm614, %v450, %v680
        %682 = vst [vmem:[%s611 + $0x6c] sm:$0xf] %v681
        %683 = vst.msk [vmem:[%s611 + $0x70] sm:$0xf] %vm200, %v459
        %v684 = vld [vmem:[%s611 + $0x74] sm:$0x1]
        %v685 = vsel %vm620, %v460, %v684
        %686 = vst [vmem:[%s611 + $0x74] sm:$0x1] %v685
        %v687 = vld [vmem:[%s611 + $0x78] sm:$0xf]
        %v688 = vsel %vm614, %v467, %v687
        %689 = vst [vmem:[%s611 + $0x78] sm:$0xf] %v688
        %690 = vst.msk [vmem:[%s611 + $0x7c] sm:$0xf] %vm200, %v476
        %v691 = vld [vmem:[%s611 + $0x80] sm:$0x1]
        %v692 = vsel %vm620, %v477, %v691
        %693 = vst [vmem:[%s611 + $0x80] sm:$0x1] %v692
        %v694 = vld [vmem:[%s611 + $0x84] sm:$0xf]
        %v695 = vsel %vm614, %v484, %v694
        %696 = vst [vmem:[%s611 + $0x84] sm:$0xf] %v695
        %697 = vst.msk [vmem:[%s611 + $0x88] sm:$0xf] %vm200, %v493
        %v698 = vld [vmem:[%s611 + $0x8c] sm:$0x1]
        %v699 = vsel %vm620, %v494, %v698
        %700 = vst [vmem:[%s611 + $0x8c] sm:$0x1] %v699
        %v701 = vld [vmem:[%s611 + $0x90] sm:$0xf]
        %v702 = vsel %vm614, %v501, %v701
        %703 = vst [vmem:[%s611 + $0x90] sm:$0xf] %v702
        %704 = vst.msk [vmem:[%s611 + $0x94] sm:$0xf] %vm200, %v510
        %v705 = vld [vmem:[%s611 + $0x98] sm:$0x1]
        %v706 = vsel %vm620, %v511, %v705
        %707 = vst [vmem:[%s611 + $0x98] sm:$0x1] %v706
        %v708 = vld [vmem:[%s611 + $0x9c] sm:$0xf]
        %v709 = vsel %vm614, %v518, %v708
        %710 = vst [vmem:[%s611 + $0x9c] sm:$0xf] %v709
        %711 = vst.msk [vmem:[%s611 + $0xa0] sm:$0xf] %vm200, %v527
        %v712 = vld [vmem:[%s611 + $0xa4] sm:$0x1]
        %v713 = vsel %vm620, %v528, %v712
        %714 = vst [vmem:[%s611 + $0xa4] sm:$0x1] %v713
        %v715 = vld [vmem:[%s611 + $0xa8] sm:$0xf]
        %v716 = vsel %vm614, %v535, %v715
        %717 = vst [vmem:[%s611 + $0xa8] sm:$0xf] %v716
        %718 = vst.msk [vmem:[%s611 + $0xac] sm:$0xf] %vm200, %v544
        %v719 = vld [vmem:[%s611 + $0xb0] sm:$0x1]
        %v720 = vsel %vm620, %v545, %v719
        %721 = vst [vmem:[%s611 + $0xb0] sm:$0x1] %v720
        %v722 = vld [vmem:[%s611 + $0xb4] sm:$0xf]
        %v723 = vsel %vm614, %v552, %v722
        %724 = vst [vmem:[%s611 + $0xb4] sm:$0xf] %v723
        %725 = vst.msk [vmem:[%s611 + $0xb8] sm:$0xf] %vm200, %v561
        %v726 = vld [vmem:[%s611 + $0xbc] sm:$0x1]
        %v727 = vsel %vm620, %v562, %v726
        %728 = vst [vmem:[%s611 + $0xbc] sm:$0x1] %v727
      $region36: #{inception_forward.7} parent=31 // pred_fallthru
        _
      %s729 = smul.u32 %s19, 8
      %s730 = smul.u32 %s729, 3
      %s731 = smul.addr %s730, 4
      %s732 = scalar_lea.vmem [#allocation2], %s731
      %v733 = vld [vmem:[%s732] sm:$0xf]
      %v734 = vld [vmem:[%s732 + $0x4] sm:$0xf]
      %v735 = vld [vmem:[%s732 + $0x8] sm:$0x1]
      %v736 = vld [vmem:[%s732 + $0xc] sm:$0xf]
      %v737 = vld [vmem:[%s732 + $0x10] sm:$0xf]
      %v738 = vld [vmem:[%s732 + $0x14] sm:$0x1]
      %v739 = vld [vmem:[%s732 + $0x18] sm:$0xf]
      %v740 = vld [vmem:[%s732 + $0x1c] sm:$0xf]
      %v741 = vld [vmem:[%s732 + $0x20] sm:$0x1]
      %v742 = vld [vmem:[%s732 + $0x24] sm:$0xf]
      %v743 = vld [vmem:[%s732 + $0x28] sm:$0xf]
      %v744 = vld [vmem:[%s732 + $0x2c] sm:$0x1]
      %v745 = vld [vmem:[%s732 + $0x30] sm:$0xf]
      %v746 = vld [vmem:[%s732 + $0x34] sm:$0xf]
      %v747 = vld [vmem:[%s732 + $0x38] sm:$0x1]
      %v748 = vld [vmem:[%s732 + $0x3c] sm:$0xf]
      %v749 = vld [vmem:[%s732 + $0x40] sm:$0xf]
      %v750 = vld [vmem:[%s732 + $0x44] sm:$0x1]
      %v751 = vld [vmem:[%s732 + $0x48] sm:$0xf]
      %v752 = vld [vmem:[%s732 + $0x4c] sm:$0xf]
      %v753 = vld [vmem:[%s732 + $0x50] sm:$0x1]
      %v754 = vld [vmem:[%s732 + $0x54] sm:$0xf]
      %v755 = vld [vmem:[%s732 + $0x58] sm:$0xf]
      %v756 = vld [vmem:[%s732 + $0x5c] sm:$0x1]
      %v757 = vld [vmem:[%s732 + $0x60] sm:$0xf]
      %v758 = vld [vmem:[%s732 + $0x64] sm:$0xf]
      %v759 = vld [vmem:[%s732 + $0x68] sm:$0x1]
      %v760 = vld [vmem:[%s732 + $0x6c] sm:$0xf]
      %v761 = vld [vmem:[%s732 + $0x70] sm:$0xf]
      %v762 = vld [vmem:[%s732 + $0x74] sm:$0x1]
      %vm763 = vsmask.f32 3328
      %vm764 = vsmask.f32 7440
      %vm765 = vmor %vm763, %vm764
      %v767 = vshrl.u32 %v733, 16
      %v769 = vrot.slane %v767, 4
      %v770 = vshll.u32 %v733, 16
      %v772 = vrot.slane %v770, 5
      %v773 = vor.u32 %v769, %v772
      %v774 = vrot.slane %v773, 4
      %v776 = vshll.u32 %v734, 16
      %v778 = vrot.slane %v776, 5
      %v779 = vsel %vm765, %v774, %v778
      %v780 = vshrl.u32 %v734, 16
      %v782 = vrot.slane %v780, 4
      %v783 = vor.u32 %v782, %v778
      %v784 = vrot.slane %v783, 4
      %v786 = vshll.u32 %v735, 16
      %v788 = vrot.slane %v786, 5
      %v789 = vsel %vm765, %v784, %v788
      %v791 = vshrl.u32 %v736, 16
      %v793 = vrot.slane %v791, 4
      %v794 = vshll.u32 %v736, 16
      %v796 = vrot.slane %v794, 5
      %v797 = vor.u32 %v793, %v796
      %v798 = vrot.slane %v797, 4
      %v800 = vshll.u32 %v737, 16
      %v802 = vrot.slane %v800, 5
      %v803 = vsel %vm765, %v798, %v802
      %v804 = vshrl.u32 %v737, 16
      %v806 = vrot.slane %v804, 4
      %v807 = vor.u32 %v806, %v802
      %v808 = vrot.slane %v807, 4
      %v810 = vshll.u32 %v738, 16
      %v812 = vrot.slane %v810, 5
      %v813 = vsel %vm765, %v808, %v812
      %v815 = vshrl.u32 %v739, 16
      %v817 = vrot.slane %v815, 4
      %v818 = vshll.u32 %v739, 16
      %v820 = vrot.slane %v818, 5
      %v821 = vor.u32 %v817, %v820
      %v822 = vrot.slane %v821, 4
      %v824 = vshll.u32 %v740, 16
      %v826 = vrot.slane %v824, 5
      %v827 = vsel %vm765, %v822, %v826
      %v828 = vshrl.u32 %v740, 16
      %v830 = vrot.slane %v828, 4
      %v831 = vor.u32 %v830, %v826
      %v832 = vrot.slane %v831, 4
      %v834 = vshll.u32 %v741, 16
      %v836 = vrot.slane %v834, 5
      %v837 = vsel %vm765, %v832, %v836
      %v839 = vshrl.u32 %v742, 16
      %v841 = vrot.slane %v839, 4
      %v842 = vshll.u32 %v742, 16
      %v844 = vrot.slane %v842, 5
      %v845 = vor.u32 %v841, %v844
      %v846 = vrot.slane %v845, 4
      %v848 = vshll.u32 %v743, 16
      %v850 = vrot.slane %v848, 5
      %v851 = vsel %vm765, %v846, %v850
      %v852 = vshrl.u32 %v743, 16
      %v854 = vrot.slane %v852, 4
      %v855 = vor.u32 %v854, %v850
      %v856 = vrot.slane %v855, 4
      %v858 = vshll.u32 %v744, 16
      %v860 = vrot.slane %v858, 5
      %v861 = vsel %vm765, %v856, %v860
      %v863 = vshrl.u32 %v745, 16
      %v865 = vrot.slane %v863, 4
      %v866 = vshll.u32 %v745, 16
      %v868 = vrot.slane %v866, 5
      %v869 = vor.u32 %v865, %v868
      %v870 = vrot.slane %v869, 4
      %v872 = vshll.u32 %v746, 16
      %v874 = vrot.slane %v872, 5
      %v875 = vsel %vm765, %v870, %v874
      %v876 = vshrl.u32 %v746, 16
      %v878 = vrot.slane %v876, 4
      %v879 = vor.u32 %v878, %v874
      %v880 = vrot.slane %v879, 4
      %v882 = vshll.u32 %v747, 16
      %v884 = vrot.slane %v882, 5
      %v885 = vsel %vm765, %v880, %v884
      %v887 = vshrl.u32 %v748, 16
      %v889 = vrot.slane %v887, 4
      %v890 = vshll.u32 %v748, 16
      %v892 = vrot.slane %v890, 5
      %v893 = vor.u32 %v889, %v892
      %v894 = vrot.slane %v893, 4
      %v896 = vshll.u32 %v749, 16
      %v898 = vrot.slane %v896, 5
      %v899 = vsel %vm765, %v894, %v898
      %v900 = vshrl.u32 %v749, 16
      %v902 = vrot.slane %v900, 4
      %v903 = vor.u32 %v902, %v898
      %v904 = vrot.slane %v903, 4
      %v906 = vshll.u32 %v750, 16
      %v908 = vrot.slane %v906, 5
      %v909 = vsel %vm765, %v904, %v908
      %v911 = vshrl.u32 %v751, 16
      %v913 = vrot.slane %v911, 4
      %v914 = vshll.u32 %v751, 16
      %v916 = vrot.slane %v914, 5
      %v917 = vor.u32 %v913, %v916
      %v918 = vrot.slane %v917, 4
      %v920 = vshll.u32 %v752, 16
      %v922 = vrot.slane %v920, 5
      %v923 = vsel %vm765, %v918, %v922
      %v924 = vshrl.u32 %v752, 16
      %v926 = vrot.slane %v924, 4
      %v927 = vor.u32 %v926, %v922
      %v928 = vrot.slane %v927, 4
      %v930 = vshll.u32 %v753, 16
      %v932 = vrot.slane %v930, 5
      %v933 = vsel %vm765, %v928, %v932
      %v935 = vshrl.u32 %v754, 16
      %v937 = vrot.slane %v935, 4
      %v938 = vshll.u32 %v754, 16
      %v940 = vrot.slane %v938, 5
      %v941 = vor.u32 %v937, %v940
      %v942 = vrot.slane %v941, 4
      %v944 = vshll.u32 %v755, 16
      %v946 = vrot.slane %v944, 5
      %v947 = vsel %vm765, %v942, %v946
      %v948 = vshrl.u32 %v755, 16
      %v950 = vrot.slane %v948, 4
      %v951 = vor.u32 %v950, %v946
      %v952 = vrot.slane %v951, 4
      %v954 = vshll.u32 %v756, 16
      %v956 = vrot.slane %v954, 5
      %v957 = vsel %vm765, %v952, %v956
      %v959 = vshrl.u32 %v757, 16
      %v961 = vrot.slane %v959, 4
      %v962 = vshll.u32 %v757, 16
      %v964 = vrot.slane %v962, 5
      %v965 = vor.u32 %v961, %v964
      %v966 = vrot.slane %v965, 4
      %v968 = vshll.u32 %v758, 16
      %v970 = vrot.slane %v968, 5
      %v971 = vsel %vm765, %v966, %v970
      %v972 = vshrl.u32 %v758, 16
      %v974 = vrot.slane %v972, 4
      %v975 = vor.u32 %v974, %v970
      %v976 = vrot.slane %v975, 4
      %v978 = vshll.u32 %v759, 16
      %v980 = vrot.slane %v978, 5
      %v981 = vsel %vm765, %v976, %v980
      %v983 = vshrl.u32 %v760, 16
      %v985 = vrot.slane %v983, 4
      %v986 = vshll.u32 %v760, 16
      %v988 = vrot.slane %v986, 5
      %v989 = vor.u32 %v985, %v988
      %v990 = vrot.slane %v989, 4
      %v992 = vshll.u32 %v761, 16
      %v994 = vrot.slane %v992, 5
      %v995 = vsel %vm765, %v990, %v994
      %v996 = vshrl.u32 %v761, 16
      %v998 = vrot.slane %v996, 4
      %v999 = vor.u32 %v998, %v994
      %v1000 = vrot.slane %v999, 4
      %v1002 = vshll.u32 %v762, 16
      %v1004 = vrot.slane %v1002, 5
      %v1005 = vsel %vm765, %v1000, %v1004
      %v1026 = vmax.bf16 %v733, %v779
      %v1027 = vmax.bf16 %v734, %v789
      %v1028 = vmax.bf16 %v736, %v803
      %v1029 = vmax.bf16 %v737, %v813
      %v1030 = vmax.bf16 %v739, %v827
      %v1031 = vmax.bf16 %v740, %v837
      %v1032 = vmax.bf16 %v742, %v851
      %v1033 = vmax.bf16 %v743, %v861
      %v1034 = vmax.bf16 %v745, %v875
      %v1035 = vmax.bf16 %v746, %v885
      %v1036 = vmax.bf16 %v748, %v899
      %v1037 = vmax.bf16 %v749, %v909
      %v1038 = vmax.bf16 %v751, %v923
      %v1039 = vmax.bf16 %v752, %v933
      %v1040 = vmax.bf16 %v754, %v947
      %v1041 = vmax.bf16 %v755, %v957
      %v1042 = vmax.bf16 %v757, %v971
      %v1043 = vmax.bf16 %v758, %v981
      %v1044 = vmax.bf16 %v760, %v995
      %v1045 = vmax.bf16 %v761, %v1005
      %vm1076 = vcmask 1042432
      %vm1077 = vcmask 1046532
      %vm1078 = vmor %vm1076, %vm1077
      %v1079 = vrot.slane %v733, 5
      %v1080 = vrot.slane %v1079, 4
      %v1081 = vrot.slane %v734, 5
      %v1082 = vsel %vm1078, %v1080, %v1081
      %v1083 = vrot.slane %v1081, 4
      %v1084 = vrot.slane %v735, 5
      %v1085 = vsel %vm1078, %v1083, %v1084
      %v1086 = vrot.slane %v736, 5
      %v1087 = vrot.slane %v1086, 4
      %v1088 = vrot.slane %v737, 5
      %v1089 = vsel %vm1078, %v1087, %v1088
      %v1090 = vrot.slane %v1088, 4
      %v1091 = vrot.slane %v738, 5
      %v1092 = vsel %vm1078, %v1090, %v1091
      %v1093 = vrot.slane %v739, 5
      %v1094 = vrot.slane %v1093, 4
      %v1095 = vrot.slane %v740, 5
      %v1096 = vsel %vm1078, %v1094, %v1095
      %v1097 = vrot.slane %v1095, 4
      %v1098 = vrot.slane %v741, 5
      %v1099 = vsel %vm1078, %v1097, %v1098
      %v1100 = vrot.slane %v742, 5
      %v1101 = vrot.slane %v1100, 4
      %v1102 = vrot.slane %v743, 5
      %v1103 = vsel %vm1078, %v1101, %v1102
      %v1104 = vrot.slane %v1102, 4
      %v1105 = vrot.slane %v744, 5
      %v1106 = vsel %vm1078, %v1104, %v1105
      %v1107 = vrot.slane %v745, 5
      %v1108 = vrot.slane %v1107, 4
      %v1109 = vrot.slane %v746, 5
      %v1110 = vsel %vm1078, %v1108, %v1109
      %v1111 = vrot.slane %v1109, 4
      %v1112 = vrot.slane %v747, 5
      %v1113 = vsel %vm1078, %v1111, %v1112
      %v1114 = vrot.slane %v748, 5
      %v1115 = vrot.slane %v1114, 4
      %v1116 = vrot.slane %v749, 5
      %v1117 = vsel %vm1078, %v1115, %v1116
      %v1118 = vrot.slane %v1116, 4
      %v1119 = vrot.slane %v750, 5
      %v1120 = vsel %vm1078, %v1118, %v1119
      %v1121 = vrot.slane %v751, 5
      %v1122 = vrot.slane %v1121, 4
      %v1123 = vrot.slane %v752, 5
      %v1124 = vsel %vm1078, %v1122, %v1123
      %v1125 = vrot.slane %v1123, 4
      %v1126 = vrot.slane %v753, 5
      %v1127 = vsel %vm1078, %v1125, %v1126
      %v1128 = vrot.slane %v754, 5
      %v1129 = vrot.slane %v1128, 4
      %v1130 = vrot.slane %v755, 5
      %v1131 = vsel %vm1078, %v1129, %v1130
      %v1132 = vrot.slane %v1130, 4
      %v1133 = vrot.slane %v756, 5
      %v1134 = vsel %vm1078, %v1132, %v1133
      %v1135 = vrot.slane %v757, 5
      %v1136 = vrot.slane %v1135, 4
      %v1137 = vrot.slane %v758, 5
      %v1138 = vsel %vm1078, %v1136, %v1137
      %v1139 = vrot.slane %v1137, 4
      %v1140 = vrot.slane %v759, 5
      %v1141 = vsel %vm1078, %v1139, %v1140
      %v1142 = vrot.slane %v760, 5
      %v1143 = vrot.slane %v1142, 4
      %v1144 = vrot.slane %v761, 5
      %v1145 = vsel %vm1078, %v1143, %v1144
      %v1146 = vrot.slane %v1144, 4
      %v1147 = vrot.slane %v762, 5
      %v1148 = vsel %vm1078, %v1146, %v1147
      %v1169 = vmax.bf16 %v1026, %v1082
      %v1170 = vmax.bf16 %v1027, %v1085
      %v1171 = vmax.bf16 %v1028, %v1089
      %v1172 = vmax.bf16 %v1029, %v1092
      %v1173 = vmax.bf16 %v1030, %v1096
      %v1174 = vmax.bf16 %v1031, %v1099
      %v1175 = vmax.bf16 %v1032, %v1103
      %v1176 = vmax.bf16 %v1033, %v1106
      %v1177 = vmax.bf16 %v1034, %v1110
      %v1178 = vmax.bf16 %v1035, %v1113
      %v1179 = vmax.bf16 %v1036, %v1117
      %v1180 = vmax.bf16 %v1037, %v1120
      %v1181 = vmax.bf16 %v1038, %v1124
      %v1182 = vmax.bf16 %v1039, %v1127
      %v1183 = vmax.bf16 %v1040, %v1131
      %v1184 = vmax.bf16 %v1041, %v1134
      %v1185 = vmax.bf16 %v1042, %v1138
      %v1186 = vmax.bf16 %v1043, %v1141
      %v1187 = vmax.bf16 %v1044, %v1145
      %v1188 = vmax.bf16 %v1045, %v1148
      %v1189 = vmax.bf16 %v1169, %v1171
      %v1190 = vmax.bf16 %v1170, %v1172
      %v1191 = vmax.bf16 %v1171, %v1173
      %v1192 = vmax.bf16 %v1172, %v1174
      %v1193 = vmax.bf16 %v1173, %v1175
      %v1194 = vmax.bf16 %v1174, %v1176
      %v1195 = vmax.bf16 %v1175, %v1177
      %v1196 = vmax.bf16 %v1176, %v1178
      %v1197 = vmax.bf16 %v1177, %v1179
      %v1198 = vmax.bf16 %v1178, %v1180
      %v1199 = vmax.bf16 %v1179, %v1181
      %v1200 = vmax.bf16 %v1180, %v1182
      %v1201 = vmax.bf16 %v1181, %v1183
      %v1202 = vmax.bf16 %v1182, %v1184
      %v1203 = vmax.bf16 %v1183, %v1185
      %v1204 = vmax.bf16 %v1184, %v1186
      %v1205 = vmax.bf16 %v1189, %v1173
      %v1206 = vmax.bf16 %v1190, %v1174
      %v1207 = vmax.bf16 %v1191, %v1175
      %v1208 = vmax.bf16 %v1192, %v1176
      %v1209 = vmax.bf16 %v1193, %v1177
      %v1210 = vmax.bf16 %v1194, %v1178
      %v1211 = vmax.bf16 %v1195, %v1179
      %v1212 = vmax.bf16 %v1196, %v1180
      %v1213 = vmax.bf16 %v1197, %v1181
      %v1214 = vmax.bf16 %v1198, %v1182
      %v1215 = vmax.bf16 %v1199, %v1183
      %v1216 = vmax.bf16 %v1200, %v1184
      %v1217 = vmax.bf16 %v1201, %v1185
      %v1218 = vmax.bf16 %v1202, %v1186
      %v1219 = vmax.bf16 %v1203, %v1187
      %v1220 = vmax.bf16 %v1204, %v1188
      %v1221 = vld [vmem:[%s1] sm:$0x3]
      %v1222 = vld [vmem:[%s2] sm:$0x1]
      %v1224 = vlaneseq
      %v1225 = vshrl.u32 %v1224, 7
      %v1226 = vsub.s32 0, %v1225
      %v1227 = vrot.slane %v1222, %v1226
      %v1245 = vunpack.c.l.b16 %v1205
      %v1246 = vunpack.c.l.b16 %v1206
      %v1247 = vunpack.c.l.b16 %v1207
      %v1248 = vunpack.c.l.b16 %v1208
      %v1249 = vunpack.c.l.b16 %v1209
      %v1250 = vunpack.c.l.b16 %v1210
      %v1251 = vunpack.c.l.b16 %v1211
      %v1252 = vunpack.c.l.b16 %v1212
      %v1253 = vunpack.c.l.b16 %v1213
      %v1254 = vunpack.c.l.b16 %v1214
      %v1255 = vunpack.c.l.b16 %v1215
      %v1256 = vunpack.c.l.b16 %v1216
      %v1257 = vunpack.c.l.b16 %v1217
      %v1258 = vunpack.c.l.b16 %v1218
      %v1259 = vunpack.c.l.b16 %v1219
      %v1260 = vunpack.c.l.b16 %v1220
      %v1261 = vpack.c.b16 %v1246, %v1245
      %v1262 = vpack.c.b16 %v1248, %v1247
      %v1263 = vpack.c.b16 %v1250, %v1249
      %v1264 = vpack.c.b16 %v1252, %v1251
      %v1265 = vpack.c.b16 %v1254, %v1253
      %v1266 = vpack.c.b16 %v1256, %v1255
      %v1267 = vpack.c.b16 %v1258, %v1257
      %v1268 = vpack.c.b16 %v1260, %v1259
      %vm1269 = vcmask 31744
      %v1271 = vsel %vm1269, %v1261, 0
      %v1274 = vsel %vm1269, %v1262, 0
      %v1277 = vsel %vm1269, %v1263, 0
      %v1280 = vsel %vm1269, %v1264, 0
      %v1283 = vsel %vm1269, %v1265, 0
      %v1286 = vsel %vm1269, %v1266, 0
      %v1289 = vsel %vm1269, %v1267, 0
      %v1292 = vsel %vm1269, %v1268, 0
      %vm1294 = vcmask 1041408
      %v1296 = vsel %vm1294, %v1221, 0
      %1298 = vmatprep.subr.bf16.mxu0 0
      %1299 = vmatpush1.bf16.msra.mxu0 %v1296
      %1300 = vmatprep.subr.bf16.mxu0 0
      %1301 = vmatpush1.bf16.msra.mxu0 0
      %1302 = vmatprep.subr.bf16.mxu0 0
      %1303 = vmatpush1.bf16.msra.mxu0 0
      %1304 = vmatprep.subr.bf16.mxu0 0
      %1305 = vmatpush1.bf16.msra.mxu0 0
      %1306 = vmatprep.subr.bf16.mxu0 0
      %1307 = vmatpush1.bf16.msra.mxu0 0
      %1308 = vmatprep.subr.bf16.mxu0 0
      %1309 = vmatpush1.bf16.msra.mxu0 0
      %1310 = vmatprep.subr.bf16.mxu0 0
      %1311 = vmatpush1.bf16.msra.mxu0 0
      %1312 = vmatprep.subr.bf16.mxu0 0
      %1313 = vmatpush1.bf16.msra.mxu0 0
      %1314 = vmatprep.subr.bf16.mxu0 0
      %1315 = vmatpush1.bf16.msra.mxu0 0
      %1316 = vmatprep.subr.bf16.mxu0 0
      %1317 = vmatpush1.bf16.msra.mxu0 0
      %1318 = vmatprep.subr.bf16.mxu0 0
      %1319 = vmatpush1.bf16.msra.mxu0 0
      %1320 = vmatprep.subr.bf16.mxu0 0
      %1321 = vmatpush1.bf16.msra.mxu0 0
      %1322 = vmatprep.subr.bf16.mxu0 0
      %1323 = vmatpush1.bf16.msra.mxu0 0
      %1324 = vmatprep.subr.bf16.mxu0 0
      %1325 = vmatpush1.bf16.msra.mxu0 0
      %1326 = vmatprep.subr.bf16.mxu0 0
      %1327 = vmatpush1.bf16.msra.mxu0 0
      %1328 = vmatprep.subr.bf16.mxu0 0
      %1329 = vmatpush1.bf16.msra.mxu0 0
      %1330 = vmatprep.mubr.bf16.mxu0 0
      %1331 = vmatmul.mubr.bf16.gmra.mrb[0].mxu0 %v1271
      %v1332 = vpop.f32.mrb[0].mxu0
      %v1333 = vadd.f32 %v1227, %v1332
      %v1334 = vpop.f32.mrb[0].mxu0
      %v1335 = vpop.f32.mrb[0].mxu0
      %v1336 = vadd.f32 %v1227, %v1335
      %v1337 = vpop.f32.mrb[0].mxu0
      %1338 = vmatprep.mubr.bf16.mxu0 0
      %1339 = vmatmul.mubr.bf16.gmra.mrb[0].mxu0 %v1274
      %v1340 = vpop.f32.mrb[0].mxu0
      %v1341 = vadd.f32 %v1227, %v1340
      %v1342 = vpop.f32.mrb[0].mxu0
      %v1343 = vpop.f32.mrb[0].mxu0
      %v1344 = vadd.f32 %v1227, %v1343
      %v1345 = vpop.f32.mrb[0].mxu0
      %1346 = vmatprep.mubr.bf16.mxu0 0
      %1347 = vmatmul.mubr.bf16.gmra.mrb[0].mxu0 %v1277
      %v1348 = vpop.f32.mrb[0].mxu0
      %v1349 = vadd.f32 %v1227, %v1348
      %v1350 = vpop.f32.mrb[0].mxu0
      %v1351 = vpop.f32.mrb[0].mxu0
      %v1352 = vadd.f32 %v1227, %v1351
      %v1353 = vpop.f32.mrb[0].mxu0
      %1354 = vmatprep.mubr.bf16.mxu0 0
      %1355 = vmatmul.mubr.bf16.gmra.mrb[0].mxu0 %v1280
      %v1356 = vpop.f32.mrb[0].mxu0
      %v1357 = vadd.f32 %v1227, %v1356
      %v1358 = vpop.f32.mrb[0].mxu0
      %v1359 = vpop.f32.mrb[0].mxu0
      %v1360 = vadd.f32 %v1227, %v1359
      %v1361 = vpop.f32.mrb[0].mxu0
      %1362 = vmatprep.mubr.bf16.mxu0 0
      %1363 = vmatmul.mubr.bf16.gmra.mrb[0].mxu0 %v1283
      %v1364 = vpop.f32.mrb[0].mxu0
      %v1365 = vadd.f32 %v1227, %v1364
      %v1366 = vpop.f32.mrb[0].mxu0
      %v1367 = vpop.f32.mrb[0].mxu0
      %v1368 = vadd.f32 %v1227, %v1367
      %v1369 = vpop.f32.mrb[0].mxu0
      %1370 = vmatprep.mubr.bf16.mxu0 0
      %1371 = vmatmul.mubr.bf16.gmra.mrb[0].mxu0 %v1286
      %v1372 = vpop.f32.mrb[0].mxu0
      %v1373 = vadd.f32 %v1227, %v1372
      %v1374 = vpop.f32.mrb[0].mxu0
      %v1375 = vpop.f32.mrb[0].mxu0
      %v1376 = vadd.f32 %v1227, %v1375
      %v1377 = vpop.f32.mrb[0].mxu0
      %1378 = vmatprep.mubr.bf16.mxu0 0
      %1379 = vmatmul.mubr.bf16.gmra.mrb[0].mxu0 %v1289
      %v1380 = vpop.f32.mrb[0].mxu0
      %v1381 = vadd.f32 %v1227, %v1380
      %v1382 = vpop.f32.mrb[0].mxu0
      %v1383 = vpop.f32.mrb[0].mxu0
      %v1384 = vadd.f32 %v1227, %v1383
      %v1385 = vpop.f32.mrb[0].mxu0
      %1386 = vmatprep.mubr.bf16.mxu0 0
      %1387 = vmatmul.mubr.bf16.gmra.mrb[0].mxu0 %v1292
      %v1388 = vpop.f32.mrb[0].mxu0
      %v1389 = vadd.f32 %v1227, %v1388
      %v1390 = vpop.f32.mrb[0].mxu0
      %v1391 = vpop.f32.mrb[0].mxu0
      %v1392 = vadd.f32 %v1227, %v1391
      %v1393 = vpop.f32.mrb[0].mxu0
      %1394 = vdwg.mxu0
      %v1395 = vmax.f32 %v1333, 0.0
      %v1396 = vmax.f32 %v1336, 0.0
      %v1397 = vmax.f32 %v1341, 0.0
      %v1398 = vmax.f32 %v1344, 0.0
      %v1399 = vmax.f32 %v1349, 0.0
      %v1400 = vmax.f32 %v1352, 0.0
      %v1401 = vmax.f32 %v1357, 0.0
      %v1402 = vmax.f32 %v1360, 0.0
      %v1403 = vmax.f32 %v1365, 0.0
      %v1404 = vmax.f32 %v1368, 0.0
      %v1405 = vmax.f32 %v1373, 0.0
      %v1406 = vmax.f32 %v1376, 0.0
      %v1407 = vmax.f32 %v1381, 0.0
      %v1408 = vmax.f32 %v1384, 0.0
      %v1409 = vmax.f32 %v1389, 0.0
      %v1410 = vmax.f32 %v1392, 0.0
      %v1411 = vpack.c.bf16 %v1396, %v1395
      %v1412 = vpack.c.bf16 %v1398, %v1397
      %v1413 = vpack.c.bf16 %v1400, %v1399
      %v1414 = vpack.c.bf16 %v1402, %v1401
      %v1415 = vpack.c.bf16 %v1404, %v1403
      %v1416 = vpack.c.bf16 %v1406, %v1405
      %v1417 = vpack.c.bf16 %v1408, %v1407
      %v1418 = vpack.c.bf16 %v1410, %v1409
      %v1427 = vunpack.c.l.b16 %v1411
      %v1428 = vunpack.c.h.b16 %v1411
      %v1429 = vunpack.c.l.b16 %v1412
      %v1430 = vunpack.c.h.b16 %v1412
      %v1431 = vunpack.c.l.b16 %v1413
      %v1432 = vunpack.c.h.b16 %v1413
      %v1433 = vunpack.c.l.b16 %v1414
      %v1434 = vunpack.c.h.b16 %v1414
      %v1435 = vunpack.c.l.b16 %v1415
      %v1436 = vunpack.c.h.b16 %v1415
      %v1437 = vunpack.c.l.b16 %v1416
      %v1438 = vunpack.c.h.b16 %v1416
      %v1439 = vunpack.c.l.b16 %v1417
      %v1440 = vunpack.c.h.b16 %v1417
      %v1441 = vunpack.c.l.b16 %v1418
      %v1442 = vunpack.c.h.b16 %v1418
      %v1443 = vpack.c.b16 %v1427, %v1427
      %v1444 = vpack.c.b16 %v1428, %v1428
      %v1445 = vpack.c.b16 %v1429, %v1429
      %v1446 = vpack.c.b16 %v1430, %v1430
      %v1447 = vpack.c.b16 %v1431, %v1431
      %v1448 = vpack.c.b16 %v1432, %v1432
      %v1449 = vpack.c.b16 %v1433, %v1433
      %v1450 = vpack.c.b16 %v1434, %v1434
      %v1451 = vpack.c.b16 %v1435, %v1435
      %v1452 = vpack.c.b16 %v1436, %v1436
      %v1453 = vpack.c.b16 %v1437, %v1437
      %v1454 = vpack.c.b16 %v1438, %v1438
      %v1455 = vpack.c.b16 %v1439, %v1439
      %v1456 = vpack.c.b16 %v1440, %v1440
      %v1457 = vpack.c.b16 %v1441, %v1441
      %v1458 = vpack.c.b16 %v1442, %v1442
      %vm1475 = vcmask 60416
      %1476 = vst.msk [vmem:[%s192] sm:$0xf] %vm1475, %v1443
      %1477 = vst.msk [vmem:[%s192 + $0x4] sm:$0xf] %vm1475, %v1444
      %1478 = vst.msk [vmem:[%s192 + $0x8] sm:$0xf] %vm1475, %v1445
      %1479 = vst.msk [vmem:[%s192 + $0xc] sm:$0xf] %vm1475, %v1446
      %1480 = vst.msk [vmem:[%s192 + $0x10] sm:$0xf] %vm1475, %v1447
      %1481 = vst.msk [vmem:[%s192 + $0x14] sm:$0xf] %vm1475, %v1448
      %1482 = vst.msk [vmem:[%s192 + $0x18] sm:$0xf] %vm1475, %v1449
      %1483 = vst.msk [vmem:[%s192 + $0x1c] sm:$0xf] %vm1475, %v1450
      %1484 = vst.msk [vmem:[%s192 + $0x20] sm:$0xf] %vm1475, %v1451
      %1485 = vst.msk [vmem:[%s192 + $0x24] sm:$0xf] %vm1475, %v1452
      %1486 = vst.msk [vmem:[%s192 + $0x28] sm:$0xf] %vm1475, %v1453
      %1487 = vst.msk [vmem:[%s192 + $0x2c] sm:$0xf] %vm1475, %v1454
      %1488 = vst.msk [vmem:[%s192 + $0x30] sm:$0xf] %vm1475, %v1455
      %1489 = vst.msk [vmem:[%s192 + $0x34] sm:$0xf] %vm1475, %v1456
      %1490 = vst.msk [vmem:[%s192 + $0x38] sm:$0xf] %vm1475, %v1457
      %1491 = vst.msk [vmem:[%s192 + $0x3c] sm:$0xf] %vm1475, %v1458
      %s1492 = smul.u32 16, %s19
      %p1493 = scmp.lt.s32.totalorder %s18, 1
      %s1494 = scalar_select %p1493, %s18, 1
      %p1495 = scmp.lt.s32.totalorder %s1492, 31
      %s1496 = scalar_select %p1495, %s1492, 31
      %s1497 = smul.addr %s1494, 32
      %s1498 = sadd.s32 %s1496, %s1497
      %s1499 = smul.addr %s1498, 4
      %s1500 = scalar_lea.vmem %s3, %s1499
      // Predicated region
      $region37: #{inception_forward.7} parent=31 // pred_check
        %p1501 = pneg %p114
      $region38: #{inception_forward.7} parent=31 // pred_check_branch
        %1503 = sbr.rel (%p1501) target = $region40
      $region39: #{inception_forward.7} parent=31 // pred_region
        %s1504 = smul.u32 16, %s19
      $region40: #{inception_forward.7} parent=31 // pred_fallthru
        _
    $region32: #{inception_forward.7} parent=5 // pred_fallthru
      _
    %p1505 = scmp.le.s32.totalorder 2, %s9
    // Predicated region
    $region41: #{inception_forward.7} parent=5 // pred_check
      %p1506 = pneg %p1505
    $region42: #{inception_forward.7} parent=5 // pred_check_branch
      %1508 = sbr.rel (%p1506) target = $region44
    $region43: #{inception_forward.7} parent=5 // pred_region
      %s1509 = ssub.s32 %s9, 2
      // Predicated region
      $region45: #{inception_forward.7} parent=43 // pred_check
        %p1510 = pneg %p120
      $region46: #{inception_forward.7} parent=43 // pred_check_branch
        %1512 = sbr.rel (%p1510) target = $region48
      $region47: #{inception_forward.7} parent=43 // pred_region
        %s1513 = smul.u32 16, %s21
        %p1514 = scmp.lt.s32.totalorder %s20, 1
        %s1515 = scalar_select %p1514, %s20, 1
        %p1516 = scmp.lt.s32.totalorder %s1513, 31
        %s1517 = scalar_select %p1516, %s1513, 31
        %s1518 = smul.addr %s1515, 32
        %s1519 = sadd.s32 %s1517, %s1518
        %s1520 = smul.addr %s1519, 4
        %s1521 = scalar_lea.vmem %s3, %s1520
      $region48: #{inception_forward.7} parent=43 // pred_fallthru
        _
    $region44: #{inception_forward.7} parent=5 // pred_fallthru
      _
  $region6: #{inception_forward.7} parent=0 // loop_footer
    %s13 = sadd.s32 1, %s9
  $region7: #{inception_forward.7} parent=0 // loop_footer_branch
    %8 = sbr.rel target = $region3
  $region8: #{inception_forward.7} parent=0 // loop_exit
    _

// kernel: inception_forward.4
$region0: #{inception_forward.4}
  #allocation0 [shape = 'u32[]', space=smem, size = 0x4, offset = 0x4, fixed_abs, tag = 'smem constant byte address 0x4 - core index']
  #allocation1 [shape = 'u32[144,128]{1,0:T(1,128)}', space=vmem, size = 0x12000, scoped, tag = 'internal scratch']
  %s0 = inlined_call_operand.vmem [shape: bf16[512,4], index: 0, kind: input, shape index: {}]
  %s1 = inlined_call_operand.vmem [shape: bf16[4,384], index: 1, kind: input, shape index: {}]
  %s2 = inlined_call_operand.vmem [shape: f32[1,384], index: 2, kind: input, shape index: {}]
  %s3 = inlined_call_operand.vmem [shape: bf16[512,8], index: 3, kind: output, shape index: {0}]
  %s4 = inlined_call_operand.vmem [shape: bf16[512,128], index: 4, kind: output, shape index: {1}]
  %s5 = inlined_call_operand.vmem [shape: bf16[512,128], index: 5, kind: output, shape index: {2}]
  %6 = xla_tuple %s3, %s4, %s5
  %s7 = sld [smem:[#allocation0]]
  $region38: #{inception_forward.4} parent=0
    _
  %s9 = ssub.s32 1, %s7
  %s10 = scalar_select 0, %s9, %s7
  // Predicated region
  $region2: #{inception_forward.4} parent=0 // pred_check
    _
  $region3: #{inception_forward.4} parent=0 // pred_check_branch
    %12 = sbr.rel (0) target = $region5
  $region4: #{inception_forward.4} parent=0 // pred_region
    _
  $region5: #{inception_forward.4} parent=0 // pred_fallthru
    _
  // Predicated region
  $region6: #{inception_forward.4} parent=0 // pred_check
    _
  $region7: #{inception_forward.4} parent=0 // pred_check_branch
    %14 = sbr.rel (0) target = $region9
  $region8: #{inception_forward.4} parent=0 // pred_region
    _
  $region9: #{inception_forward.4} parent=0 // pred_fallthru
    _
  // Predicated region
  $region10: #{inception_forward.4} parent=0 // pred_check
    _
  $region11: #{inception_forward.4} parent=0 // pred_check_branch
    %16 = sbr.rel (0) target = $region13
  $region12: #{inception_forward.4} parent=0 // pred_region
    _
  $region13: #{inception_forward.4} parent=0 // pred_fallthru
    _
  %v18 = vld [vmem:[%s0] sm:$0xf]
  %v19 = vld [vmem:[%s0 + $0x4] sm:$0xf]
  %v20 = vld [vmem:[%s0 + $0x8] sm:$0xf]
  %v21 = vld [vmem:[%s0 + $0xc] sm:$0xf]
  %v22 = vld [vmem:[%s0 + $0x10] sm:$0xf]
  %v23 = vld [vmem:[%s0 + $0x14] sm:$0xf]
  %v24 = vld [vmem:[%s0 + $0x18] sm:$0xf]
  %v25 = vld [vmem:[%s0 + $0x1c] sm:$0xf]
  %v26 = vld [vmem:[%s0 + $0x20] sm:$0xf]
  %v27 = vld [vmem:[%s0 + $0x24] sm:$0xf]
  %v28 = vld [vmem:[%s0 + $0x28] sm:$0xf]
  %v29 = vld [vmem:[%s0 + $0x2c] sm:$0xf]
  %v30 = vld [vmem:[%s0 + $0x30] sm:$0xf]
  %v31 = vld [vmem:[%s0 + $0x34] sm:$0xf]
  %v32 = vld [vmem:[%s0 + $0x38] sm:$0xf]
  %v33 = vld [vmem:[%s0 + $0x3c] sm:$0xf]
  %v34 = vld [vmem:[%s0 + $0x40] sm:$0xf]
  %v35 = vld [vmem:[%s0 + $0x44] sm:$0xf]
  %v36 = vld [vmem:[%s0 + $0x48] sm:$0xf]
  %v37 = vld [vmem:[%s0 + $0x4c] sm:$0xf]
  %v38 = vld [vmem:[%s0 + $0x50] sm:$0xf]
  %v39 = vld [vmem:[%s0 + $0x54] sm:$0xf]
  %v40 = vld [vmem:[%s0 + $0x58] sm:$0xf]
  %v41 = vld [vmem:[%s0 + $0x5c] sm:$0xf]
  %v42 = vld [vmem:[%s0 + $0x60] sm:$0xf]
  %v43 = vld [vmem:[%s0 + $0x64] sm:$0xf]
  %v44 = vld [vmem:[%s0 + $0x68] sm:$0xf]
  %v45 = vld [vmem:[%s0 + $0x6c] sm:$0xf]
  %v46 = vld [vmem:[%s0 + $0x70] sm:$0xf]
  %v47 = vld [vmem:[%s0 + $0x74] sm:$0xf]
  %v48 = vld [vmem:[%s0 + $0x78] sm:$0xf]
  %v49 = vld [vmem:[%s0 + $0x7c] sm:$0xf]
  %v50 = vld [vmem:[%s0 + $0x80] sm:$0xf]
  %v51 = vld [vmem:[%s0 + $0x84] sm:$0xf]
  %v52 = vld [vmem:[%s0 + $0x88] sm:$0xf]
  %v53 = vld [vmem:[%s0 + $0x8c] sm:$0xf]
  %v54 = vld [vmem:[%s0 + $0x90] sm:$0xf]
  %v55 = vld [vmem:[%s0 + $0x94] sm:$0xf]
  %v56 = vld [vmem:[%s0 + $0x98] sm:$0xf]
  %v57 = vld [vmem:[%s0 + $0x9c] sm:$0xf]
  %v58 = vld [vmem:[%s0 + $0xa0] sm:$0xf]
  %v59 = vld [vmem:[%s0 + $0xa4] sm:$0xf]
  %v60 = vld [vmem:[%s0 + $0xa8] sm:$0xf]
  %v61 = vld [vmem:[%s0 + $0xac] sm:$0xf]
  %v62 = vld [vmem:[%s0 + $0xb0] sm:$0xf]
  %v63 = vld [vmem:[%s0 + $0xb4] sm:$0xf]
  %v64 = vld [vmem:[%s0 + $0xb8] sm:$0xf]
  %v65 = vld [vmem:[%s0 + $0xbc] sm:$0xf]
  %v66 = vld [vmem:[%s0 + $0xc0] sm:$0xf]
  %v67 = vld [vmem:[%s0 + $0xc4] sm:$0xf]
  %v68 = vld [vmem:[%s0 + $0xc8] sm:$0xf]
  %v69 = vld [vmem:[%s0 + $0xcc] sm:$0xf]
  %v70 = vld [vmem:[%s0 + $0xd0] sm:$0xf]
  %v71 = vld [vmem:[%s0 + $0xd4] sm:$0xf]
  %v72 = vld [vmem:[%s0 + $0xd8] sm:$0xf]
  %v73 = vld [vmem:[%s0 + $0xdc] sm:$0xf]
  %v74 = vld [vmem:[%s0 + $0xe0] sm:$0xf]
  %v75 = vld [vmem:[%s0 + $0xe4] sm:$0xf]
  %v76 = vld [vmem:[%s0 + $0xe8] sm:$0xf]
  %v77 = vld [vmem:[%s0 + $0xec] sm:$0xf]
  %v78 = vld [vmem:[%s0 + $0xf0] sm:$0xf]
  %v79 = vld [vmem:[%s0 + $0xf4] sm:$0xf]
  %v80 = vld [vmem:[%s0 + $0xf8] sm:$0xf]
  %v81 = vld [vmem:[%s0 + $0xfc] sm:$0xf]
  %v82 = vld [vmem:[%s1] sm:$0x3f]
  %v83 = vld [vmem:[%s2] sm:$0x7]
  %v85 = vlaneseq
  %v86 = vshrl.u32 %v85, 7
  %v87 = vsub.s32 0, %v86
  %v88 = vrot.slane %v83, %v87
  %v89 = vlaneseq
  %v90 = vshrl.u32 %v89, 7
  %v91 = vsub.s32 1, %v90
  %v92 = vrot.slane %v83, %v91
  %v93 = vlaneseq
  %v94 = vshrl.u32 %v93, 7
  %v95 = vsub.s32 2, %v94
  %v96 = vrot.slane %v83, %v95
  %v164 = vunpack.c.l.b16 %v18
  %v165 = vunpack.c.l.b16 %v19
  %v166 = vunpack.c.l.b16 %v20
  %v167 = vunpack.c.l.b16 %v21
  %v168 = vunpack.c.l.b16 %v22
  %v169 = vunpack.c.l.b16 %v23
  %v170 = vunpack.c.l.b16 %v24
  %v171 = vunpack.c.l.b16 %v25
  %v172 = vunpack.c.l.b16 %v26
  %v173 = vunpack.c.l.b16 %v27
  %v174 = vunpack.c.l.b16 %v28
  %v175 = vunpack.c.l.b16 %v29
  %v176 = vunpack.c.l.b16 %v30
  %v177 = vunpack.c.l.b16 %v31
  %v178 = vunpack.c.l.b16 %v32
  %v179 = vunpack.c.l.b16 %v33
  %v180 = vunpack.c.l.b16 %v34
  %v181 = vunpack.c.l.b16 %v35
  %v182 = vunpack.c.l.b16 %v36
  %v183 = vunpack.c.l.b16 %v37
  %v184 = vunpack.c.l.b16 %v38
  %v185 = vunpack.c.l.b16 %v39
  %v186 = vunpack.c.l.b16 %v40
  %v187 = vunpack.c.l.b16 %v41
  %v188 = vunpack.c.l.b16 %v42
  %v189 = vunpack.c.l.b16 %v43
  %v190 = vunpack.c.l.b16 %v44
  %v191 = vunpack.c.l.b16 %v45
  %v192 = vunpack.c.l.b16 %v46
  %v193 = vunpack.c.l.b16 %v47
  %v194 = vunpack.c.l.b16 %v48
  %v195 = vunpack.c.l.b16 %v49
  %v196 = vunpack.c.l.b16 %v50
  %v197 = vunpack.c.l.b16 %v51
  %v198 = vunpack.c.l.b16 %v52
  %v199 = vunpack.c.l.b16 %v53
  %v200 = vunpack.c.l.b16 %v54
  %v201 = vunpack.c.l.b16 %v55
  %v202 = vunpack.c.l.b16 %v56
  %v203 = vunpack.c.l.b16 %v57
  %v204 = vunpack.c.l.b16 %v58
  %v205 = vunpack.c.l.b16 %v59
  %v206 = vunpack.c.l.b16 %v60
  %v207 = vunpack.c.l.b16 %v61
  %v208 = vunpack.c.l.b16 %v62
  %v209 = vunpack.c.l.b16 %v63
  %v210 = vunpack.c.l.b16 %v64
  %v211 = vunpack.c.l.b16 %v65
  %v212 = vunpack.c.l.b16 %v66
  %v213 = vunpack.c.l.b16 %v67
  %v214 = vunpack.c.l.b16 %v68
  %v215 = vunpack.c.l.b16 %v69
  %v216 = vunpack.c.l.b16 %v70
  %v217 = vunpack.c.l.b16 %v71
  %v218 = vunpack.c.l.b16 %v72
  %v219 = vunpack.c.l.b16 %v73
  %v220 = vunpack.c.l.b16 %v74
  %v221 = vunpack.c.l.b16 %v75
  %v222 = vunpack.c.l.b16 %v76
  %v223 = vunpack.c.l.b16 %v77
  %v224 = vunpack.c.l.b16 %v78
  %v225 = vunpack.c.l.b16 %v79
  %v226 = vunpack.c.l.b16 %v80
  %v227 = vunpack.c.l.b16 %v81
  %v228 = vpack.c.b16 %v165, %v164
  %v229 = vpack.c.b16 %v167, %v166
  %v230 = vpack.c.b16 %v169, %v168
  %v231 = vpack.c.b16 %v171, %v170
  %v232 = vpack.c.b16 %v173, %v172
  %v233 = vpack.c.b16 %v175, %v174
  %v234 = vpack.c.b16 %v177, %v176
  %v235 = vpack.c.b16 %v179, %v178
  %v236 = vpack.c.b16 %v181, %v180
  %v237 = vpack.c.b16 %v183, %v182
  %v238 = vpack.c.b16 %v185, %v184
  %v239 = vpack.c.b16 %v187, %v186
  %v240 = vpack.c.b16 %v189, %v188
  %v241 = vpack.c.b16 %v191, %v190
  %v242 = vpack.c.b16 %v193, %v192
  %v243 = vpack.c.b16 %v195, %v194
  %v244 = vpack.c.b16 %v197, %v196
  %v245 = vpack.c.b16 %v199, %v198
  %v246 = vpack.c.b16 %v201, %v200
  %v247 = vpack.c.b16 %v203, %v202
  %v248 = vpack.c.b16 %v205, %v204
  %v249 = vpack.c.b16 %v207, %v206
  %v250 = vpack.c.b16 %v209, %v208
  %v251 = vpack.c.b16 %v211, %v210
  %v252 = vpack.c.b16 %v213, %v212
  %v253 = vpack.c.b16 %v215, %v214
  %v254 = vpack.c.b16 %v217, %v216
  %v255 = vpack.c.b16 %v219, %v218
  %v256 = vpack.c.b16 %v221, %v220
  %v257 = vpack.c.b16 %v223, %v222
  %v258 = vpack.c.b16 %v225, %v224
  %v259 = vpack.c.b16 %v227, %v226
  %v261 = vcombine.high %v82, %v82
  %v263 = vunpack.c.l.s4 1983009808
  %v264 = vunpack.c.0.s8 %v263
  %v265 = vlaneseq
  %v266 = vshrl.u32 %v265, 7
  %v267 = vsub.s32 %v264, %v266
  %v268 = vrot.slane %v82, %v267
  %v270 = vunpack.c.l.s4 1983009808
  %v271 = vunpack.c.0.s8 %v270
  %v272 = vlaneseq
  %v273 = vshrl.u32 %v272, 7
  %v274 = vsub.s32 %v271, %v273
  %v275 = vrot.slane %v261, %v274
  %v276 = vcombine.high %v268, %v268
  %vm277 = vcmask 31744
  %v279 = vsel %vm277, %v228, 0
  %v282 = vsel %vm277, %v229, 0
  %v285 = vsel %vm277, %v230, 0
  %v288 = vsel %vm277, %v231, 0
  %v291 = vsel %vm277, %v232, 0
  %v294 = vsel %vm277, %v233, 0
  %v297 = vsel %vm277, %v234, 0
  %v300 = vsel %vm277, %v235, 0
  %v303 = vsel %vm277, %v236, 0
  %v306 = vsel %vm277, %v237, 0
  %v309 = vsel %vm277, %v238, 0
  %v312 = vsel %vm277, %v239, 0
  %v315 = vsel %vm277, %v240, 0
  %v318 = vsel %vm277, %v241, 0
  %v321 = vsel %vm277, %v242, 0
  %v324 = vsel %vm277, %v243, 0
  %v327 = vsel %vm277, %v244, 0
  %v330 = vsel %vm277, %v245, 0
  %v333 = vsel %vm277, %v246, 0
  %v336 = vsel %vm277, %v247, 0
  %v339 = vsel %vm277, %v248, 0
  %v342 = vsel %vm277, %v249, 0
  %v345 = vsel %vm277, %v250, 0
  %v348 = vsel %vm277, %v251, 0
  %v351 = vsel %vm277, %v252, 0
  %v354 = vsel %vm277, %v253, 0
  %v357 = vsel %vm277, %v254, 0
  %v360 = vsel %vm277, %v255, 0
  %v363 = vsel %vm277, %v256, 0
  %v366 = vsel %vm277, %v257, 0
  %v369 = vsel %vm277, %v258, 0
  %v372 = vsel %vm277, %v259, 0
  %vm374 = vcmask 1041408
  %v376 = vsel %vm374, %v268, 0
  %v379 = vsel %vm374, %v276, 0
  %v382 = vsel %vm374, %v275, 0
  %384 = vmatprep.subr.bf16.mxu0 %v379
  %385 = vmatpush1.bf16.msra.mxu0 %v376
  %386 = vmatprep.subr.bf16.mxu0 0
  %387 = vmatpush1.bf16.msra.mxu0 0
  %388 = vmatprep.subr.bf16.mxu0 0
  %389 = vmatpush1.bf16.msra.mxu0 0
  %390 = vmatprep.subr.bf16.mxu0 0
  %391 = vmatpush1.bf16.msra.mxu0 0
  %392 = vmatprep.subr.bf16.mxu0 0
  %393 = vmatpush1.bf16.msra.mxu0 0
  %394 = vmatprep.subr.bf16.mxu0 0
  %395 = vmatpush1.bf16.msra.mxu0 0
  %396 = vmatprep.subr.bf16.mxu0 0
  %397 = vmatpush1.bf16.msra.mxu0 0
  %398 = vmatprep.subr.bf16.mxu0 0
  %399 = vmatpush1.bf16.msra.mxu0 0
  %400 = vmatprep.subr.bf16.mxu0 0
  %401 = vmatpush1.bf16.msra.mxu0 0
  %402 = vmatprep.subr.bf16.mxu0 0
  %403 = vmatpush1.bf16.msra.mxu0 0
  %404 = vmatprep.subr.bf16.mxu0 0
  %405 = vmatpush1.bf16.msra.mxu0 0
  %406 = vmatprep.subr.bf16.mxu0 0
  %407 = vmatpush1.bf16.msra.mxu0 0
  %408 = vmatprep.subr.bf16.mxu0 0
  %409 = vmatpush1.bf16.msra.mxu0 0
  %410 = vmatprep.subr.bf16.mxu0 0
  %411 = vmatpush1.bf16.msra.mxu0 0
  %412 = vmatprep.subr.bf16.mxu0 0
  %413 = vmatpush1.bf16.msra.mxu0 0
  %414 = vmatprep.subr.bf16.mxu0 0
  %415 = vmatpush1.bf16.msra.mxu0 0
  %416 = vmatprep.mubr.bf16.mxu0 0
  %417 = vmatmul.mubr.bf16.gmra.mrb[0].mxu0 %v279
  %v418 = vpop.f32.mrb[0].mxu0
  %v419 = vadd.f32 %v88, %v418
  %v420 = vpop.f32.mrb[0].mxu0
  %v421 = vadd.f32 %v92, %v420
  %v422 = vpop.f32.mrb[0].mxu0
  %v423 = vadd.f32 %v88, %v422
  %v424 = vpop.f32.mrb[0].mxu0
  %v425 = vadd.f32 %v92, %v424
  %426 = vmatprep.mubr.bf16.mxu0 0
  %427 = vmatmul.mubr.bf16.gmra.mrb[0].mxu0 %v282
  %v428 = vpop.f32.mrb[0].mxu0
  %v429 = vadd.f32 %v88, %v428
  %v430 = vpop.f32.mrb[0].mxu0
  %v431 = vadd.f32 %v92, %v430
  %v432 = vpop.f32.mrb[0].mxu0
  %v433 = vadd.f32 %v88, %v432
  %v434 = vpop.f32.mrb[0].mxu0
  %v435 = vadd.f32 %v92, %v434
  %436 = vmatprep.mubr.bf16.mxu0 0
  %437 = vmatmul.mubr.bf16.gmra.mrb[0].mxu0 %v285
  %v438 = vpop.f32.mrb[0].mxu0
  %v439 = vadd.f32 %v88, %v438
  %v440 = vpop.f32.mrb[0].mxu0
  %v441 = vadd.f32 %v92, %v440
  %v442 = vpop.f32.mrb[0].mxu0
  %v443 = vadd.f32 %v88, %v442
  %v444 = vpop.f32.mrb[0].mxu0
  %v445 = vadd.f32 %v92, %v444
  %446 = vmatprep.mubr.bf16.mxu0 0
  %447 = vmatmul.mubr.bf16.gmra.mrb[0].mxu0 %v288
  %v448 = vpop.f32.mrb[0].mxu0
  %v449 = vadd.f32 %v88, %v448
  %v450 = vpop.f32.mrb[0].mxu0
  %v451 = vadd.f32 %v92, %v450
  %v452 = vpop.f32.mrb[0].mxu0
  %v453 = vadd.f32 %v88, %v452
  %v454 = vpop.f32.mrb[0].mxu0
  %v455 = vadd.f32 %v92, %v454
  %456 = vmatprep.mubr.bf16.mxu0 0
  %457 = vmatmul.mubr.bf16.gmra.mrb[0].mxu0 %v291
  %v458 = vpop.f32.mrb[0].mxu0
  %v459 = vadd.f32 %v88, %v458
  %v460 = vpop.f32.mrb[0].mxu0
  %v461 = vadd.f32 %v92, %v460
  %v462 = vpop.f32.mrb[0].mxu0
  %v463 = vadd.f32 %v88, %v462
  %v464 = vpop.f32.mrb[0].mxu0
  %v465 = vadd.f32 %v92, %v464
  %466 = vmatprep.mubr.bf16.mxu0 0
  %467 = vmatmul.mubr.bf16.gmra.mrb[0].mxu0 %v294
  %v468 = vpop.f32.mrb[0].mxu0
  %v469 = vadd.f32 %v88, %v468
  %v470 = vpop.f32.mrb[0].mxu0
  %v471 = vadd.f32 %v92, %v470
  %v472 = vpop.f32.mrb[0].mxu0
  %v473 = vadd.f32 %v88, %v472
  %v474 = vpop.f32.mrb[0].mxu0
  %v475 = vadd.f32 %v92, %v474
  %476 = vmatprep.mubr.bf16.mxu0 0
  %477 = vmatmul.mubr.bf16.gmra.mrb[0].mxu0 %v297
  %v478 = vpop.f32.mrb[0].mxu0
  %v479 = vadd.f32 %v88, %v478
  %v480 = vpop.f32.mrb[0].mxu0
  %v481 = vadd.f32 %v92, %v480
  %v482 = vpop.f32.mrb[0].mxu0
  %v483 = vadd.f32 %v88, %v482
  %v484 = vpop.f32.mrb[0].mxu0
  %v485 = vadd.f32 %v92, %v484
  %486 = vmatprep.mubr.bf16.mxu0 0
  %487 = vmatmul.mubr.bf16.gmra.mrb[0].mxu0 %v300
  %v488 = vpop.f32.mrb[0].mxu0
  %v489 = vadd.f32 %v88, %v488
  %v490 = vpop.f32.mrb[0].mxu0
  %v491 = vadd.f32 %v92, %v490
  %v492 = vpop.f32.mrb[0].mxu0
  %v493 = vadd.f32 %v88, %v492
  %v494 = vpop.f32.mrb[0].mxu0
  %v495 = vadd.f32 %v92, %v494
  %496 = vmatprep.mubr.bf16.mxu0 0
  %497 = vmatmul.mubr.bf16.gmra.mrb[0].mxu0 %v303
  %v498 = vpop.f32.mrb[0].mxu0
  %v499 = vadd.f32 %v88, %v498
  %v500 = vpop.f32.mrb[0].mxu0
  %v501 = vadd.f32 %v92, %v500
  %v502 = vpop.f32.mrb[0].mxu0
  %v503 = vadd.f32 %v88, %v502
  %v504 = vpop.f32.mrb[0].mxu0
  %v505 = vadd.f32 %v92, %v504
  %506 = vmatprep.mubr.bf16.mxu0 0
  %507 = vmatmul.mubr.bf16.gmra.mrb[0].mxu0 %v306
  %v508 = vpop.f32.mrb[0].mxu0
  %v509 = vadd.f32 %v88, %v508
  %v510 = vpop.f32.mrb[0].mxu0
  %v511 = vadd.f32 %v92, %v510
  %v512 = vpop.f32.mrb[0].mxu0
  %v513 = vadd.f32 %v88, %v512
  %v514 = vpop.f32.mrb[0].mxu0
  %v515 = vadd.f32 %v92, %v514
  %516 = vmatprep.mubr.bf16.mxu0 0
  %517 = vmatmul.mubr.bf16.gmra.mrb[0].mxu0 %v309
  %v518 = vpop.f32.mrb[0].mxu0
  %v519 = vadd.f32 %v88, %v518
  %v520 = vpop.f32.mrb[0].mxu0
  %v521 = vadd.f32 %v92, %v520
  %v522 = vpop.f32.mrb[0].mxu0
  %v523 = vadd.f32 %v88, %v522
  %v524 = vpop.f32.mrb[0].mxu0
  %v525 = vadd.f32 %v92, %v524
  %526 = vmatprep.mubr.bf16.mxu0 0
  %527 = vmatmul.mubr.bf16.gmra.mrb[0].mxu0 %v312
  %v528 = vpop.f32.mrb[0].mxu0
  %v529 = vadd.f32 %v88, %v528
  %v530 = vpop.f32.mrb[0].mxu0
  %v531 = vadd.f32 %v92, %v530
  %v532 = vpop.f32.mrb[0].mxu0
  %v533 = vadd.f32 %v88, %v532
  %v534 = vpop.f32.mrb[0].mxu0
  %v535 = vadd.f32 %v92, %v534
  %536 = vmatprep.mubr.bf16.mxu0 0
  %537 = vmatmul.mubr.bf16.gmra.mrb[0].mxu0 %v315
  %v538 = vpop.f32.mrb[0].mxu0
  %v539 = vadd.f32 %v88, %v538
  %v540 = vpop.f32.mrb[0].mxu0
  %v541 = vadd.f32 %v92, %v540
  %v542 = vpop.f32.mrb[0].mxu0
  %v543 = vadd.f32 %v88, %v542
  %v544 = vpop.f32.mrb[0].mxu0
  %v545 = vadd.f32 %v92, %v544
  %546 = vmatprep.mubr.bf16.mxu0 0
  %547 = vmatmul.mubr.bf16.gmra.mrb[0].mxu0 %v318
  %v548 = vpop.f32.mrb[0].mxu0
  %v549 = vadd.f32 %v88, %v548
  %v550 = vpop.f32.mrb[0].mxu0
  %v551 = vadd.f32 %v92, %v550
  %v552 = vpop.f32.mrb[0].mxu0
  %v553 = vadd.f32 %v88, %v552
  %v554 = vpop.f32.mrb[0].mxu0
  %v555 = vadd.f32 %v92, %v554
  %556 = vmatprep.mubr.bf16.mxu0 0
  %557 = vmatmul.mubr.bf16.gmra.mrb[0].mxu0 %v321
  %v558 = vpop.f32.mrb[0].mxu0
  %v559 = vadd.f32 %v88, %v558
  %v560 = vpop.f32.mrb[0].mxu0
  %v561 = vadd.f32 %v92, %v560
  %v562 = vpop.f32.mrb[0].mxu0
  %v563 = vadd.f32 %v88, %v562
  %v564 = vpop.f32.mrb[0].mxu0
  %v565 = vadd.f32 %v92, %v564
  %566 = vmatprep.mubr.bf16.mxu0 0
  %567 = vmatmul.mubr.bf16.gmra.mrb[0].mxu0 %v324
  %v568 = vpop.f32.mrb[0].mxu0
  %v569 = vadd.f32 %v88, %v568
  %v570 = vpop.f32.mrb[0].mxu0
  %v571 = vadd.f32 %v92, %v570
  %v572 = vpop.f32.mrb[0].mxu0
  %v573 = vadd.f32 %v88, %v572
  %v574 = vpop.f32.mrb[0].mxu0
  %v575 = vadd.f32 %v92, %v574
  %576 = vmatprep.mubr.bf16.mxu0 0
  %577 = vmatmul.mubr.bf16.gmra.mrb[0].mxu0 %v327
  %v578 = vpop.f32.mrb[0].mxu0
  %v579 = vadd.f32 %v88, %v578
  %v580 = vpop.f32.mrb[0].mxu0
  %v581 = vadd.f32 %v92, %v580
  %v582 = vpop.f32.mrb[0].mxu0
  %v583 = vadd.f32 %v88, %v582
  %v584 = vpop.f32.mrb[0].mxu0
  %v585 = vadd.f32 %v92, %v584
  %586 = vmatprep.mubr.bf16.mxu0 0
  %587 = vmatmul.mubr.bf16.gmra.mrb[0].mxu0 %v330
  %v588 = vpop.f32.mrb[0].mxu0
  %v589 = vadd.f32 %v88, %v588
  %v590 = vpop.f32.mrb[0].mxu0
  %v591 = vadd.f32 %v92, %v590
  %v592 = vpop.f32.mrb[0].mxu0
  %v593 = vadd.f32 %v88, %v592
  %v594 = vpop.f32.mrb[0].mxu0
  %v595 = vadd.f32 %v92, %v594
  %596 = vmatprep.mubr.bf16.mxu0 0
  %597 = vmatmul.mubr.bf16.gmra.mrb[0].mxu0 %v333
  %v598 = vpop.f32.mrb[0].mxu0
  %v599 = vadd.f32 %v88, %v598
  %v600 = vpop.f32.mrb[0].mxu0
  %v601 = vadd.f32 %v92, %v600
  %v602 = vpop.f32.mrb[0].mxu0
  %v603 = vadd.f32 %v88, %v602
  %v604 = vpop.f32.mrb[0].mxu0
  %v605 = vadd.f32 %v92, %v604
  %606 = vmatprep.mubr.bf16.mxu0 0
  %607 = vmatmul.mubr.bf16.gmra.mrb[0].mxu0 %v336
  %v608 = vpop.f32.mrb[0].mxu0
  %v609 = vadd.f32 %v88, %v608
  %v610 = vpop.f32.mrb[0].mxu0
  %v611 = vadd.f32 %v92, %v610
  %v612 = vpop.f32.mrb[0].mxu0
  %v613 = vadd.f32 %v88, %v612
  %v614 = vpop.f32.mrb[0].mxu0
  %v615 = vadd.f32 %v92, %v614
  %616 = vmatprep.mubr.bf16.mxu0 0
  %617 = vmatmul.mubr.bf16.gmra.mrb[0].mxu0 %v339
  %v618 = vpop.f32.mrb[0].mxu0
  %v619 = vadd.f32 %v88, %v618
  %v620 = vpop.f32.mrb[0].mxu0
  %v621 = vadd.f32 %v92, %v620
  %v622 = vpop.f32.mrb[0].mxu0
  %v623 = vadd.f32 %v88, %v622
  %v624 = vpop.f32.mrb[0].mxu0
  %v625 = vadd.f32 %v92, %v624
  %626 = vmatprep.mubr.bf16.mxu0 0
  %627 = vmatmul.mubr.bf16.gmra.mrb[0].mxu0 %v342
  %v628 = vpop.f32.mrb[0].mxu0
  %v629 = vadd.f32 %v88, %v628
  %v630 = vpop.f32.mrb[0].mxu0
  %v631 = vadd.f32 %v92, %v630
  %v632 = vpop.f32.mrb[0].mxu0
  %v633 = vadd.f32 %v88, %v632
  %v634 = vpop.f32.mrb[0].mxu0
  %v635 = vadd.f32 %v92, %v634
  %636 = vmatprep.mubr.bf16.mxu0 0
  %637 = vmatmul.mubr.bf16.gmra.mrb[0].mxu0 %v345
  %v638 = vpop.f32.mrb[0].mxu0
  %v639 = vadd.f32 %v88, %v638
  %v640 = vpop.f32.mrb[0].mxu0
  %v641 = vadd.f32 %v92, %v640
  %v642 = vpop.f32.mrb[0].mxu0
  %v643 = vadd.f32 %v88, %v642
  %v644 = vpop.f32.mrb[0].mxu0
  %v645 = vadd.f32 %v92, %v644
  %646 = vmatprep.mubr.bf16.mxu0 0
  %647 = vmatmul.mubr.bf16.gmra.mrb[0].mxu0 %v348
  %v648 = vpop.f32.mrb[0].mxu0
  %v649 = vadd.f32 %v88, %v648
  %v650 = vpop.f32.mrb[0].mxu0
  %v651 = vadd.f32 %v92, %v650
  %v652 = vpop.f32.mrb[0].mxu0
  %v653 = vadd.f32 %v88, %v652
  %v654 = vpop.f32.mrb[0].mxu0
  %v655 = vadd.f32 %v92, %v654
  %656 = vmatprep.mubr.bf16.mxu0 0
  %657 = vmatmul.mubr.bf16.gmra.mrb[0].mxu0 %v351
  %v658 = vpop.f32.mrb[0].mxu0
  %v659 = vadd.f32 %v88, %v658
  %v660 = vpop.f32.mrb[0].mxu0
  %v661 = vadd.f32 %v92, %v660
  %v662 = vpop.f32.mrb[0].mxu0
  %v663 = vadd.f32 %v88, %v662
  %v664 = vpop.f32.mrb[0].mxu0
  %v665 = vadd.f32 %v92, %v664
  %666 = vmatprep.mubr.bf16.mxu0 0
  %667 = vmatmul.mubr.bf16.gmra.mrb[0].mxu0 %v354
  %v668 = vpop.f32.mrb[0].mxu0
  %v669 = vadd.f32 %v88, %v668
  %v670 = vpop.f32.mrb[0].mxu0
  %v671 = vadd.f32 %v92, %v670
  %v672 = vpop.f32.mrb[0].mxu0
  %v673 = vadd.f32 %v88, %v672
  %v674 = vpop.f32.mrb[0].mxu0
  %v675 = vadd.f32 %v92, %v674
  %676 = vmatprep.mubr.bf16.mxu0 0
  %677 = vmatmul.mubr.bf16.gmra.mrb[0].mxu0 %v357
  %v678 = vpop.f32.mrb[0].mxu0
  %v679 = vadd.f32 %v88, %v678
  %v680 = vpop.f32.mrb[0].mxu0
  %v681 = vadd.f32 %v92, %v680
  %v682 = vpop.f32.mrb[0].mxu0
  %v683 = vadd.f32 %v88, %v682
  %v684 = vpop.f32.mrb[0].mxu0
  %v685 = vadd.f32 %v92, %v684
  %686 = vmatprep.mubr.bf16.mxu0 0
  %687 = vmatmul.mubr.bf16.gmra.mrb[0].mxu0 %v360
  %v688 = vpop.f32.mrb[0].mxu0
  %v689 = vadd.f32 %v88, %v688
  %v690 = vpop.f32.mrb[0].mxu0
  %v691 = vadd.f32 %v92, %v690
  %v692 = vpop.f32.mrb[0].mxu0
  %v693 = vadd.f32 %v88, %v692
  %v694 = vpop.f32.mrb[0].mxu0
  %v695 = vadd.f32 %v92, %v694
  %696 = vmatprep.mubr.bf16.mxu0 0
  %697 = vmatmul.mubr.bf16.gmra.mrb[0].mxu0 %v363
  %v698 = vpop.f32.mrb[0].mxu0
  %v699 = vadd.f32 %v88, %v698
  %v700 = vpop.f32.mrb[0].mxu0
  %v701 = vadd.f32 %v92, %v700
  %v702 = vpop.f32.mrb[0].mxu0
  %v703 = vadd.f32 %v88, %v702
  %v704 = vpop.f32.mrb[0].mxu0
  %v705 = vadd.f32 %v92, %v704
  %706 = vmatprep.mubr.bf16.mxu0 0
  %707 = vmatmul.mubr.bf16.gmra.mrb[0].mxu0 %v366
  %v708 = vpop.f32.mrb[0].mxu0
  %v709 = vadd.f32 %v88, %v708
  %v710 = vpop.f32.mrb[0].mxu0
  %v711 = vadd.f32 %v92, %v710
  %v712 = vpop.f32.mrb[0].mxu0
  %v713 = vadd.f32 %v88, %v712
  %v714 = vpop.f32.mrb[0].mxu0
  %v715 = vadd.f32 %v92, %v714
  %716 = vmatprep.mubr.bf16.mxu0 0
  %717 = vmatmul.mubr.bf16.gmra.mrb[0].mxu0 %v369
  %v718 = vpop.f32.mrb[0].mxu0
  %v719 = vadd.f32 %v88, %v718
  %v720 = vpop.f32.mrb[0].mxu0
  %v721 = vadd.f32 %v92, %v720
  %v722 = vpop.f32.mrb[0].mxu0
  %v723 = vadd.f32 %v88, %v722
  %v724 = vpop.f32.mrb[0].mxu0
  %v725 = vadd.f32 %v92, %v724
  %726 = vmatprep.mubr.bf16.mxu0 0
  %727 = vmatmul.mubr.bf16.gmra.mrb[0].mxu0 %v372
  %v728 = vpop.f32.mrb[0].mxu0
  %v729 = vadd.f32 %v88, %v728
  %v730 = vpop.f32.mrb[0].mxu0
  %v731 = vadd.f32 %v92, %v730
  %v732 = vpop.f32.mrb[0].mxu0
  %v733 = vadd.f32 %v88, %v732
  %v734 = vpop.f32.mrb[0].mxu0
  %v735 = vadd.f32 %v92, %v734
  %736 = vdwg.mxu0
  %737 = vmatprep.subr.bf16.mxu0 0
  %738 = vmatpush1.bf16.msra.mxu0 %v382
  %739 = vmatprep.subr.bf16.mxu0 0
  %740 = vmatpush1.bf16.msra.mxu0 0
  %741 = vmatprep.subr.bf16.mxu0 0
  %742 = vmatpush1.bf16.msra.mxu0 0
  %743 = vmatprep.subr.bf16.mxu0 0
  %744 = vmatpush1.bf16.msra.mxu0 0
  %745 = vmatprep.subr.bf16.mxu0 0
  %746 = vmatpush1.bf16.msra.mxu0 0
  %747 = vmatprep.subr.bf16.mxu0 0
  %748 = vmatpush1.bf16.msra.mxu0 0
  %749 = vmatprep.subr.bf16.mxu0 0
  %750 = vmatpush1.bf16.msra.mxu0 0
  %751 = vmatprep.subr.bf16.mxu0 0
  %752 = vmatpush1.bf16.msra.mxu0 0
  %753 = vmatprep.subr.bf16.mxu0 0
  %754 = vmatpush1.bf16.msra.mxu0 0
  %755 = vmatprep.subr.bf16.mxu0 0
  %756 = vmatpush1.bf16.msra.mxu0 0
  %757 = vmatprep.subr.bf16.mxu0 0
  %758 = vmatpush1.bf16.msra.mxu0 0
  %759 = vmatprep.subr.bf16.mxu0 0
  %760 = vmatpush1.bf16.msra.mxu0 0
  %761 = vmatprep.subr.bf16.mxu0 0
  %762 = vmatpush1.bf16.msra.mxu0 0
  %763 = vmatprep.subr.bf16.mxu0 0
  %764 = vmatpush1.bf16.msra.mxu0 0
  %765 = vmatprep.subr.bf16.mxu0 0
  %766 = vmatpush1.bf16.msra.mxu0 0
  %767 = vmatprep.subr.bf16.mxu0 0
  %768 = vmatpush1.bf16.msra.mxu0 0
  %769 = vmatprep.mubr.bf16.mxu0 0
  %770 = vmatmul.mubr.bf16.gmra.mrb[0].mxu0 %v279
  %v771 = vpop.f32.mrb[0].mxu0
  %v772 = vadd.f32 %v96, %v771
  %v773 = vpop.f32.mrb[0].mxu0
  %v774 = vpop.f32.mrb[0].mxu0
  %v775 = vadd.f32 %v96, %v774
  %v776 = vpop.f32.mrb[0].mxu0
  %777 = vmatprep.mubr.bf16.mxu0 0
  %778 = vmatmul.mubr.bf16.gmra.mrb[0].mxu0 %v282
  %v779 = vpop.f32.mrb[0].mxu0
  %v780 = vadd.f32 %v96, %v779
  %v781 = vpop.f32.mrb[0].mxu0
  %v782 = vpop.f32.mrb[0].mxu0
  %v783 = vadd.f32 %v96, %v782
  %v784 = vpop.f32.mrb[0].mxu0
  %785 = vmatprep.mubr.bf16.mxu0 0
  %786 = vmatmul.mubr.bf16.gmra.mrb[0].mxu0 %v285
  %v787 = vpop.f32.mrb[0].mxu0
  %v788 = vadd.f32 %v96, %v787
  %v789 = vpop.f32.mrb[0].mxu0
  %v790 = vpop.f32.mrb[0].mxu0
  %v791 = vadd.f32 %v96, %v790
  %v792 = vpop.f32.mrb[0].mxu0
  %793 = vmatprep.mubr.bf16.mxu0 0
  %794 = vmatmul.mubr.bf16.gmra.mrb[0].mxu0 %v288
  %v795 = vpop.f32.mrb[0].mxu0
  %v796 = vadd.f32 %v96, %v795
  %v797 = vpop.f32.mrb[0].mxu0
  %v798 = vpop.f32.mrb[0].mxu0
  %v799 = vadd.f32 %v96, %v798
  %v800 = vpop.f32.mrb[0].mxu0
  %801 = vmatprep.mubr.bf16.mxu0 0
  %802 = vmatmul.mubr.bf16.gmra.mrb[0].mxu0 %v291
  %v803 = vpop.f32.mrb[0].mxu0
  %v804 = vadd.f32 %v96, %v803
  %v805 = vpop.f32.mrb[0].mxu0
  %v806 = vpop.f32.mrb[0].mxu0
  %v807 = vadd.f32 %v96, %v806
  %v808 = vpop.f32.mrb[0].mxu0
  %809 = vmatprep.mubr.bf16.mxu0 0
  %810 = vmatmul.mubr.bf16.gmra.mrb[0].mxu0 %v294
  %v811 = vpop.f32.mrb[0].mxu0
  %v812 = vadd.f32 %v96, %v811
  %v813 = vpop.f32.mrb[0].mxu0
  %v814 = vpop.f32.mrb[0].mxu0
  %v815 = vadd.f32 %v96, %v814
  %v816 = vpop.f32.mrb[0].mxu0
  %817 = vmatprep.mubr.bf16.mxu0 0
  %818 = vmatmul.mubr.bf16.gmra.mrb[0].mxu0 %v297
  %v819 = vpop.f32.mrb[0].mxu0
  %v820 = vadd.f32 %v96, %v819
  %v821 = vpop.f32.mrb[0].mxu0
  %v822 = vpop.f32.mrb[0].mxu0
  %v823 = vadd.f32 %v96, %v822
  %v824 = vpop.f32.mrb[0].mxu0
  %825 = vmatprep.mubr.bf16.mxu0 0
  %826 = vmatmul.mubr.bf16.gmra.mrb[0].mxu0 %v300
  %v827 = vpop.f32.mrb[0].mxu0
  %v828 = vadd.f32 %v96, %v827
  %v829 = vpop.f32.mrb[0].mxu0
  %v830 = vpop.f32.mrb[0].mxu0
  %v831 = vadd.f32 %v96, %v830
  %v832 = vpop.f32.mrb[0].mxu0
  %833 = vmatprep.mubr.bf16.mxu0 0
  %834 = vmatmul.mubr.bf16.gmra.mrb[0].mxu0 %v303
  %v835 = vpop.f32.mrb[0].mxu0
  %v836 = vadd.f32 %v96, %v835
  %v837 = vpop.f32.mrb[0].mxu0
  %v838 = vpop.f32.mrb[0].mxu0
  %v839 = vadd.f32 %v96, %v838
  %v840 = vpop.f32.mrb[0].mxu0
  %841 = vmatprep.mubr.bf16.mxu0 0
  %842 = vmatmul.mubr.bf16.gmra.mrb[0].mxu0 %v306
  %v843 = vpop.f32.mrb[0].mxu0
  %v844 = vadd.f32 %v96, %v843
  %v845 = vpop.f32.mrb[0].mxu0
  %v846 = vpop.f32.mrb[0].mxu0
  %v847 = vadd.f32 %v96, %v846
  %v848 = vpop.f32.mrb[0].mxu0
  %849 = vmatprep.mubr.bf16.mxu0 0
  %850 = vmatmul.mubr.bf16.gmra.mrb[0].mxu0 %v309
  %v851 = vpop.f32.mrb[0].mxu0
  %v852 = vadd.f32 %v96, %v851
  %v853 = vpop.f32.mrb[0].mxu0
  %v854 = vpop.f32.mrb[0].mxu0
  %v855 = vadd.f32 %v96, %v854
  %v856 = vpop.f32.mrb[0].mxu0
  %857 = vmatprep.mubr.bf16.mxu0 0
  %858 = vmatmul.mubr.bf16.gmra.mrb[0].mxu0 %v312
  %v859 = vpop.f32.mrb[0].mxu0
  %v860 = vadd.f32 %v96, %v859
  %v861 = vpop.f32.mrb[0].mxu0
  %v862 = vpop.f32.mrb[0].mxu0
  %v863 = vadd.f32 %v96, %v862
  %v864 = vpop.f32.mrb[0].mxu0
  %865 = vmatprep.mubr.bf16.mxu0 0
  %866 = vmatmul.mubr.bf16.gmra.mrb[0].mxu0 %v315
  %v867 = vpop.f32.mrb[0].mxu0
  %v868 = vadd.f32 %v96, %v867
  %v869 = vpop.f32.mrb[0].mxu0
  %v870 = vpop.f32.mrb[0].mxu0
  %v871 = vadd.f32 %v96, %v870
  %v872 = vpop.f32.mrb[0].mxu0
  %873 = vmatprep.mubr.bf16.mxu0 0
  %874 = vmatmul.mubr.bf16.gmra.mrb[0].mxu0 %v318
  %v875 = vpop.f32.mrb[0].mxu0
  %v876 = vadd.f32 %v96, %v875
  %v877 = vpop.f32.mrb[0].mxu0
  %v878 = vpop.f32.mrb[0].mxu0
  %v879 = vadd.f32 %v96, %v878
  %v880 = vpop.f32.mrb[0].mxu0
  %881 = vmatprep.mubr.bf16.mxu0 0
  %882 = vmatmul.mubr.bf16.gmra.mrb[0].mxu0 %v321
  %v883 = vpop.f32.mrb[0].mxu0
  %v884 = vadd.f32 %v96, %v883
  %v885 = vpop.f32.mrb[0].mxu0
  %v886 = vpop.f32.mrb[0].mxu0
  %v887 = vadd.f32 %v96, %v886
  %v888 = vpop.f32.mrb[0].mxu0
  %889 = vmatprep.mubr.bf16.mxu0 0
  %890 = vmatmul.mubr.bf16.gmra.mrb[0].mxu0 %v324
  %v891 = vpop.f32.mrb[0].mxu0
  %v892 = vadd.f32 %v96, %v891
  %v893 = vpop.f32.mrb[0].mxu0
  %v894 = vpop.f32.mrb[0].mxu0
  %v895 = vadd.f32 %v96, %v894
  %v896 = vpop.f32.mrb[0].mxu0
  %897 = vmatprep.mubr.bf16.mxu0 0
  %898 = vmatmul.mubr.bf16.gmra.mrb[0].mxu0 %v327
  %v899 = vpop.f32.mrb[0].mxu0
  %v900 = vadd.f32 %v96, %v899
  %v901 = vpop.f32.mrb[0].mxu0
  %v902 = vpop.f32.mrb[0].mxu0
  %v903 = vadd.f32 %v96, %v902
  %v904 = vpop.f32.mrb[0].mxu0
  %905 = vmatprep.mubr.bf16.mxu0 0
  %906 = vmatmul.mubr.bf16.gmra.mrb[0].mxu0 %v330
  %v907 = vpop.f32.mrb[0].mxu0
  %v908 = vadd.f32 %v96, %v907
  %v909 = vpop.f32.mrb[0].mxu0
  %v910 = vpop.f32.mrb[0].mxu0
  %v911 = vadd.f32 %v96, %v910
  %v912 = vpop.f32.mrb[0].mxu0
  %913 = vmatprep.mubr.bf16.mxu0 0
  %914 = vmatmul.mubr.bf16.gmra.mrb[0].mxu0 %v333
  %v915 = vpop.f32.mrb[0].mxu0
  %v916 = vadd.f32 %v96, %v915
  %v917 = vpop.f32.mrb[0].mxu0
  %v918 = vpop.f32.mrb[0].mxu0
  %v919 = vadd.f32 %v96, %v918
  %v920 = vpop.f32.mrb[0].mxu0
  %921 = vmatprep.mubr.bf16.mxu0 0
  %922 = vmatmul.mubr.bf16.gmra.mrb[0].mxu0 %v336
  %v923 = vpop.f32.mrb[0].mxu0
  %v924 = vadd.f32 %v96, %v923
  %v925 = vpop.f32.mrb[0].mxu0
  %v926 = vpop.f32.mrb[0].mxu0
  %v927 = vadd.f32 %v96, %v926
  %v928 = vpop.f32.mrb[0].mxu0
  %929 = vmatprep.mubr.bf16.mxu0 0
  %930 = vmatmul.mubr.bf16.gmra.mrb[0].mxu0 %v339
  %v931 = vpop.f32.mrb[0].mxu0
  %v932 = vadd.f32 %v96, %v931
  %v933 = vpop.f32.mrb[0].mxu0
  %v934 = vpop.f32.mrb[0].mxu0
  %v935 = vadd.f32 %v96, %v934
  %v936 = vpop.f32.mrb[0].mxu0
  %937 = vmatprep.mubr.bf16.mxu0 0
  %938 = vmatmul.mubr.bf16.gmra.mrb[0].mxu0 %v342
  %v939 = vpop.f32.mrb[0].mxu0
  %v940 = vadd.f32 %v96, %v939
  %v941 = vpop.f32.mrb[0].mxu0
  %v942 = vpop.f32.mrb[0].mxu0
  %v943 = vadd.f32 %v96, %v942
  %v944 = vpop.f32.mrb[0].mxu0
  %945 = vmatprep.mubr.bf16.mxu0 0
  %946 = vmatmul.mubr.bf16.gmra.mrb[0].mxu0 %v345
  %v947 = vpop.f32.mrb[0].mxu0
  %v948 = vadd.f32 %v96, %v947
  %v949 = vpop.f32.mrb[0].mxu0
  %v950 = vpop.f32.mrb[0].mxu0
  %v951 = vadd.f32 %v96, %v950
  %v952 = vpop.f32.mrb[0].mxu0
  %953 = vmatprep.mubr.bf16.mxu0 0
  %954 = vmatmul.mubr.bf16.gmra.mrb[0].mxu0 %v348
  %v955 = vpop.f32.mrb[0].mxu0
  %v956 = vadd.f32 %v96, %v955
  %v957 = vpop.f32.mrb[0].mxu0
  %v958 = vpop.f32.mrb[0].mxu0
  %v959 = vadd.f32 %v96, %v958
  %v960 = vpop.f32.mrb[0].mxu0
  %961 = vmatprep.mubr.bf16.mxu0 0
  %962 = vmatmul.mubr.bf16.gmra.mrb[0].mxu0 %v351
  %v963 = vpop.f32.mrb[0].mxu0
  %v964 = vadd.f32 %v96, %v963
  %v965 = vpop.f32.mrb[0].mxu0
  %v966 = vpop.f32.mrb[0].mxu0
  %v967 = vadd.f32 %v96, %v966
  %v968 = vpop.f32.mrb[0].mxu0
  %969 = vmatprep.mubr.bf16.mxu0 0
  %970 = vmatmul.mubr.bf16.gmra.mrb[0].mxu0 %v354
  %v971 = vpop.f32.mrb[0].mxu0
  %v972 = vadd.f32 %v96, %v971
  %v973 = vpop.f32.mrb[0].mxu0
  %v974 = vpop.f32.mrb[0].mxu0
  %v975 = vadd.f32 %v96, %v974
  %v976 = vpop.f32.mrb[0].mxu0
  %977 = vmatprep.mubr.bf16.mxu0 0
  %978 = vmatmul.mubr.bf16.gmra.mrb[0].mxu0 %v357
  %v979 = vpop.f32.mrb[0].mxu0
  %v980 = vadd.f32 %v96, %v979
  %v981 = vpop.f32.mrb[0].mxu0
  %v982 = vpop.f32.mrb[0].mxu0
  %v983 = vadd.f32 %v96, %v982
  %v984 = vpop.f32.mrb[0].mxu0
  %985 = vmatprep.mubr.bf16.mxu0 0
  %986 = vmatmul.mubr.bf16.gmra.mrb[0].mxu0 %v360
  %v987 = vpop.f32.mrb[0].mxu0
  %v988 = vadd.f32 %v96, %v987
  %v989 = vpop.f32.mrb[0].mxu0
  %v990 = vpop.f32.mrb[0].mxu0
  %v991 = vadd.f32 %v96, %v990
  %v992 = vpop.f32.mrb[0].mxu0
  %993 = vmatprep.mubr.bf16.mxu0 0
  %994 = vmatmul.mubr.bf16.gmra.mrb[0].mxu0 %v363
  %v995 = vpop.f32.mrb[0].mxu0
  %v996 = vadd.f32 %v96, %v995
  %v997 = vpop.f32.mrb[0].mxu0
  %v998 = vpop.f32.mrb[0].mxu0
  %v999 = vadd.f32 %v96, %v998
  %v1000 = vpop.f32.mrb[0].mxu0
  %1001 = vmatprep.mubr.bf16.mxu0 0
  %1002 = vmatmul.mubr.bf16.gmra.mrb[0].mxu0 %v366
  %v1003 = vpop.f32.mrb[0].mxu0
  %v1004 = vadd.f32 %v96, %v1003
  %v1005 = vpop.f32.mrb[0].mxu0
  %v1006 = vpop.f32.mrb[0].mxu0
  %v1007 = vadd.f32 %v96, %v1006
  %v1008 = vpop.f32.mrb[0].mxu0
  %1009 = vmatprep.mubr.bf16.mxu0 0
  %1010 = vmatmul.mubr.bf16.gmra.mrb[0].mxu0 %v369
  %v1011 = vpop.f32.mrb[0].mxu0
  %v1012 = vadd.f32 %v96, %v1011
  %v1013 = vpop.f32.mrb[0].mxu0
  %v1014 = vpop.f32.mrb[0].mxu0
  %v1015 = vadd.f32 %v96, %v1014
  %v1016 = vpop.f32.mrb[0].mxu0
  %1017 = vmatprep.mubr.bf16.mxu0 0
  %1018 = vmatmul.mubr.bf16.gmra.mrb[0].mxu0 %v372
  %v1019 = vpop.f32.mrb[0].mxu0
  %v1020 = vadd.f32 %v96, %v1019
  %v1021 = vpop.f32.mrb[0].mxu0
  %v1022 = vpop.f32.mrb[0].mxu0
  %v1023 = vadd.f32 %v96, %v1022
  %v1024 = vpop.f32.mrb[0].mxu0
  %1025 = vdwg.mxu0
  %v1026 = vmax.f32 %v419, 0.0
  %v1027 = vmax.f32 %v421, 0.0
  %v1028 = vmax.f32 %v772, 0.0
  %v1029 = vmax.f32 %v423, 0.0
  %v1030 = vmax.f32 %v425, 0.0
  %v1031 = vmax.f32 %v775, 0.0
  %v1032 = vmax.f32 %v429, 0.0
  %v1033 = vmax.f32 %v431, 0.0
  %v1034 = vmax.f32 %v780, 0.0
  %v1035 = vmax.f32 %v433, 0.0
  %v1036 = vmax.f32 %v435, 0.0
  %v1037 = vmax.f32 %v783, 0.0
  %v1038 = vmax.f32 %v439, 0.0
  %v1039 = vmax.f32 %v441, 0.0
  %v1040 = vmax.f32 %v788, 0.0
  %v1041 = vmax.f32 %v443, 0.0
  %v1042 = vmax.f32 %v445, 0.0
  %v1043 = vmax.f32 %v791, 0.0
  %v1044 = vmax.f32 %v449, 0.0
  %v1045 = vmax.f32 %v451, 0.0
  %v1046 = vmax.f32 %v796, 0.0
  %v1047 = vmax.f32 %v453, 0.0
  %v1048 = vmax.f32 %v455, 0.0
  %v1049 = vmax.f32 %v799, 0.0
  %v1050 = vmax.f32 %v459, 0.0
  %v1051 = vmax.f32 %v461, 0.0
  %v1052 = vmax.f32 %v804, 0.0
  %v1053 = vmax.f32 %v463, 0.0
  %v1054 = vmax.f32 %v465, 0.0
  %v1055 = vmax.f32 %v807, 0.0
  %v1056 = vmax.f32 %v469, 0.0
  %v1057 = vmax.f32 %v471, 0.0
  %v1058 = vmax.f32 %v812, 0.0
  %v1059 = vmax.f32 %v473, 0.0
  %v1060 = vmax.f32 %v475, 0.0
  %v1061 = vmax.f32 %v815, 0.0
  %v1062 = vmax.f32 %v479, 0.0
  %v1063 = vmax.f32 %v481, 0.0
  %v1064 = vmax.f32 %v820, 0.0
  %v1065 = vmax.f32 %v483, 0.0
  %v1066 = vmax.f32 %v485, 0.0
  %v1067 = vmax.f32 %v823, 0.0
  %v1068 = vmax.f32 %v489, 0.0
  %v1069 = vmax.f32 %v491, 0.0
  %v1070 = vmax.f32 %v828, 0.0
  %v1071 = vmax.f32 %v493, 0.0
  %v1072 = vmax.f32 %v495, 0.0
  %v1073 = vmax.f32 %v831, 0.0
  %v1074 = vmax.f32 %v499, 0.0
  %v1075 = vmax.f32 %v501, 0.0
  %v1076 = vmax.f32 %v836, 0.0
  %v1077 = vmax.f32 %v503, 0.0
  %v1078 = vmax.f32 %v505, 0.0
  %v1079 = vmax.f32 %v839, 0.0
  %v1080 = vmax.f32 %v509, 0.0
  %v1081 = vmax.f32 %v511, 0.0
  %v1082 = vmax.f32 %v844, 0.0
  %v1083 = vmax.f32 %v513, 0.0
  %v1084 = vmax.f32 %v515, 0.0
  %v1085 = vmax.f32 %v847, 0.0
  %v1086 = vmax.f32 %v519, 0.0
  %v1087 = vmax.f32 %v521, 0.0
  %v1088 = vmax.f32 %v852, 0.0
  %v1089 = vmax.f32 %v523, 0.0
  %v1090 = vmax.f32 %v525, 0.0
  %v1091 = vmax.f32 %v855, 0.0
  %v1092 = vmax.f32 %v529, 0.0
  %v1093 = vmax.f32 %v531, 0.0
  %v1094 = vmax.f32 %v860, 0.0
  %v1095 = vmax.f32 %v533, 0.0
  %v1096 = vmax.f32 %v535, 0.0
  %v1097 = vmax.f32 %v863, 0.0
  %v1098 = vmax.f32 %v539, 0.0
  %v1099 = vmax.f32 %v541, 0.0
  %v1100 = vmax.f32 %v868, 0.0
  %v1101 = vmax.f32 %v543, 0.0
  %v1102 = vmax.f32 %v545, 0.0
  %v1103 = vmax.f32 %v871, 0.0
  %v1104 = vmax.f32 %v549, 0.0
  %v1105 = vmax.f32 %v551, 0.0
  %v1106 = vmax.f32 %v876, 0.0
  %v1107 = vmax.f32 %v553, 0.0
  %v1108 = vmax.f32 %v555, 0.0
  %v1109 = vmax.f32 %v879, 0.0
  %v1110 = vmax.f32 %v559, 0.0
  %v1111 = vmax.f32 %v561, 0.0
  %v1112 = vmax.f32 %v884, 0.0
  %v1113 = vmax.f32 %v563, 0.0
  %v1114 = vmax.f32 %v565, 0.0
  %v1115 = vmax.f32 %v887, 0.0
  %v1116 = vmax.f32 %v569, 0.0
  %v1117 = vmax.f32 %v571, 0.0
  %v1118 = vmax.f32 %v892, 0.0
  %v1119 = vmax.f32 %v573, 0.0
  %v1120 = vmax.f32 %v575, 0.0
  %v1121 = vmax.f32 %v895, 0.0
  %v1122 = vmax.f32 %v579, 0.0
  %v1123 = vmax.f32 %v581, 0.0
  %v1124 = vmax.f32 %v900, 0.0
  %v1125 = vmax.f32 %v583, 0.0
  %v1126 = vmax.f32 %v585, 0.0
  %v1127 = vmax.f32 %v903, 0.0
  %v1128 = vmax.f32 %v589, 0.0
  %v1129 = vmax.f32 %v591, 0.0
  %v1130 = vmax.f32 %v908, 0.0
  %v1131 = vmax.f32 %v593, 0.0
  %v1132 = vmax.f32 %v595, 0.0
  %v1133 = vmax.f32 %v911, 0.0
  %v1134 = vmax.f32 %v599, 0.0
  %v1135 = vmax.f32 %v601, 0.0
  %v1136 = vmax.f32 %v916, 0.0
  %v1137 = vmax.f32 %v603, 0.0
  %v1138 = vmax.f32 %v605, 0.0
  %v1139 = vmax.f32 %v919, 0.0
  %v1140 = vmax.f32 %v609, 0.0
  %v1141 = vmax.f32 %v611, 0.0
  %v1142 = vmax.f32 %v924, 0.0
  %v1143 = vmax.f32 %v613, 0.0
  %v1144 = vmax.f32 %v615, 0.0
  %v1145 = vmax.f32 %v927, 0.0
  %v1146 = vmax.f32 %v619, 0.0
  %v1147 = vmax.f32 %v621, 0.0
  %v1148 = vmax.f32 %v932, 0.0
  %v1149 = vmax.f32 %v623, 0.0
  %v1150 = vmax.f32 %v625, 0.0
  %v1151 = vmax.f32 %v935, 0.0
  %v1152 = vmax.f32 %v629, 0.0
  %v1153 = vmax.f32 %v631, 0.0
  %v1154 = vmax.f32 %v940, 0.0
  %v1155 = vmax.f32 %v633, 0.0
  %v1156 = vmax.f32 %v635, 0.0
  %v1157 = vmax.f32 %v943, 0.0
  %v1158 = vmax.f32 %v639, 0.0
  %v1159 = vmax.f32 %v641, 0.0
  %v1160 = vmax.f32 %v948, 0.0
  %v1161 = vmax.f32 %v643, 0.0
  %v1162 = vmax.f32 %v645, 0.0
  %v1163 = vmax.f32 %v951, 0.0
  %v1164 = vmax.f32 %v649, 0.0
  %v1165 = vmax.f32 %v651, 0.0
  %v1166 = vmax.f32 %v956, 0.0
  %v1167 = vmax.f32 %v653, 0.0
  %v1168 = vmax.f32 %v655, 0.0
  %v1169 = vmax.f32 %v959, 0.0
  %v1170 = vmax.f32 %v659, 0.0
  %v1171 = vmax.f32 %v661, 0.0
  %v1172 = vmax.f32 %v964, 0.0
  %v1173 = vmax.f32 %v663, 0.0
  %v1174 = vmax.f32 %v665, 0.0
  %v1175 = vmax.f32 %v967, 0.0
  %v1176 = vmax.f32 %v669, 0.0
  %v1177 = vmax.f32 %v671, 0.0
  %v1178 = vmax.f32 %v972, 0.0
  %v1179 = vmax.f32 %v673, 0.0
  %v1180 = vmax.f32 %v675, 0.0
  %v1181 = vmax.f32 %v975, 0.0
  %v1182 = vmax.f32 %v679, 0.0
  %v1183 = vmax.f32 %v681, 0.0
  %v1184 = vmax.f32 %v980, 0.0
  %v1185 = vmax.f32 %v683, 0.0
  %v1186 = vmax.f32 %v685, 0.0
  %v1187 = vmax.f32 %v983, 0.0
  %v1188 = vmax.f32 %v689, 0.0
  %v1189 = vmax.f32 %v691, 0.0
  %v1190 = vmax.f32 %v988, 0.0
  %v1191 = vmax.f32 %v693, 0.0
  %v1192 = vmax.f32 %v695, 0.0
  %v1193 = vmax.f32 %v991, 0.0
  %v1194 = vmax.f32 %v699, 0.0
  %v1195 = vmax.f32 %v701, 0.0
  %v1196 = vmax.f32 %v996, 0.0
  %v1197 = vmax.f32 %v703, 0.0
  %v1198 = vmax.f32 %v705, 0.0
  %v1199 = vmax.f32 %v999, 0.0
  %v1200 = vmax.f32 %v709, 0.0
  %v1201 = vmax.f32 %v711, 0.0
  %v1202 = vmax.f32 %v1004, 0.0
  %v1203 = vmax.f32 %v713, 0.0
  %v1204 = vmax.f32 %v715, 0.0
  %v1205 = vmax.f32 %v1007, 0.0
  %v1206 = vmax.f32 %v719, 0.0
  %v1207 = vmax.f32 %v721, 0.0
  %v1208 = vmax.f32 %v1012, 0.0
  %v1209 = vmax.f32 %v723, 0.0
  %v1210 = vmax.f32 %v725, 0.0
  %v1211 = vmax.f32 %v1015, 0.0
  %v1212 = vmax.f32 %v729, 0.0
  %v1213 = vmax.f32 %v731, 0.0
  %v1214 = vmax.f32 %v1020, 0.0
  %v1215 = vmax.f32 %v733, 0.0
  %v1216 = vmax.f32 %v735, 0.0
  %v1217 = vmax.f32 %v1023, 0.0
  %v1218 = vpack.c.bf16 %v1029, %v1026
  %v1219 = vpack.c.bf16 %v1035, %v1032
  %v1220 = vpack.c.bf16 %v1041, %v1038
  %v1221 = vpack.c.bf16 %v1047, %v1044
  %v1222 = vpack.c.bf16 %v1053, %v1050
  %v1223 = vpack.c.bf16 %v1059, %v1056
  %v1224 = vpack.c.bf16 %v1065, %v1062
  %v1225 = vpack.c.bf16 %v1071, %v1068
  %v1226 = vpack.c.bf16 %v1077, %v1074
  %v1227 = vpack.c.bf16 %v1083, %v1080
  %v1228 = vpack.c.bf16 %v1089, %v1086
  %v1229 = vpack.c.bf16 %v1095, %v1092
  %v1230 = vpack.c.bf16 %v1101, %v1098
  %v1231 = vpack.c.bf16 %v1107, %v1104
  %v1232 = vpack.c.bf16 %v1113, %v1110
  %v1233 = vpack.c.bf16 %v1119, %v1116
  %v1234 = vpack.c.bf16 %v1125, %v1122
  %v1235 = vpack.c.bf16 %v1131, %v1128
  %v1236 = vpack.c.bf16 %v1137, %v1134
  %v1237 = vpack.c.bf16 %v1143, %v1140
  %v1238 = vpack.c.bf16 %v1149, %v1146
  %v1239 = vpack.c.bf16 %v1155, %v1152
  %v1240 = vpack.c.bf16 %v1161, %v1158
  %v1241 = vpack.c.bf16 %v1167, %v1164
  %v1242 = vpack.c.bf16 %v1173, %v1170
  %v1243 = vpack.c.bf16 %v1179, %v1176
  %v1244 = vpack.c.bf16 %v1185, %v1182
  %v1245 = vpack.c.bf16 %v1191, %v1188
  %v1246 = vpack.c.bf16 %v1197, %v1194
  %v1247 = vpack.c.bf16 %v1203, %v1200
  %v1248 = vpack.c.bf16 %v1209, %v1206
  %v1249 = vpack.c.bf16 %v1215, %v1212
  %v1282 = vunpack.c.l.b16 %v1218
  %v1283 = vunpack.c.h.b16 %v1218
  %v1284 = vunpack.c.l.b16 %v1219
  %v1285 = vunpack.c.h.b16 %v1219
  %v1286 = vunpack.c.l.b16 %v1220
  %v1287 = vunpack.c.h.b16 %v1220
  %v1288 = vunpack.c.l.b16 %v1221
  %v1289 = vunpack.c.h.b16 %v1221
  %v1290 = vunpack.c.l.b16 %v1222
  %v1291 = vunpack.c.h.b16 %v1222
  %v1292 = vunpack.c.l.b16 %v1223
  %v1293 = vunpack.c.h.b16 %v1223
  %v1294 = vunpack.c.l.b16 %v1224
  %v1295 = vunpack.c.h.b16 %v1224
  %v1296 = vunpack.c.l.b16 %v1225
  %v1297 = vunpack.c.h.b16 %v1225
  %v1298 = vunpack.c.l.b16 %v1226
  %v1299 = vunpack.c.h.b16 %v1226
  %v1300 = vunpack.c.l.b16 %v1227
  %v1301 = vunpack.c.h.b16 %v1227
  %v1302 = vunpack.c.l.b16 %v1228
  %v1303 = vunpack.c.h.b16 %v1228
  %v1304 = vunpack.c.l.b16 %v1229
  %v1305 = vunpack.c.h.b16 %v1229
  %v1306 = vunpack.c.l.b16 %v1230
  %v1307 = vunpack.c.h.b16 %v1230
  %v1308 = vunpack.c.l.b16 %v1231
  %v1309 = vunpack.c.h.b16 %v1231
  %v1310 = vunpack.c.l.b16 %v1232
  %v1311 = vunpack.c.h.b16 %v1232
  %v1312 = vunpack.c.l.b16 %v1233
  %v1313 = vunpack.c.h.b16 %v1233
  %v1314 = vunpack.c.l.b16 %v1234
  %v1315 = vunpack.c.h.b16 %v1234
  %v1316 = vunpack.c.l.b16 %v1235
  %v1317 = vunpack.c.h.b16 %v1235
  %v1318 = vunpack.c.l.b16 %v1236
  %v1319 = vunpack.c.h.b16 %v1236
  %v1320 = vunpack.c.l.b16 %v1237
  %v1321 = vunpack.c.h.b16 %v1237
  %v1322 = vunpack.c.l.b16 %v1238
  %v1323 = vunpack.c.h.b16 %v1238
  %v1324 = vunpack.c.l.b16 %v1239
  %v1325 = vunpack.c.h.b16 %v1239
  %v1326 = vunpack.c.l.b16 %v1240
  %v1327 = vunpack.c.h.b16 %v1240
  %v1328 = vunpack.c.l.b16 %v1241
  %v1329 = vunpack.c.h.b16 %v1241
  %v1330 = vunpack.c.l.b16 %v1242
  %v1331 = vunpack.c.h.b16 %v1242
  %v1332 = vunpack.c.l.b16 %v1243
  %v1333 = vunpack.c.h.b16 %v1243
  %v1334 = vunpack.c.l.b16 %v1244
  %v1335 = vunpack.c.h.b16 %v1244
  %v1336 = vunpack.c.l.b16 %v1245
  %v1337 = vunpack.c.h.b16 %v1245
  %v1338 = vunpack.c.l.b16 %v1246
  %v1339 = vunpack.c.h.b16 %v1246
  %v1340 = vunpack.c.l.b16 %v1247
  %v1341 = vunpack.c.h.b16 %v1247
  %v1342 = vunpack.c.l.b16 %v1248
  %v1343 = vunpack.c.h.b16 %v1248
  %v1344 = vunpack.c.l.b16 %v1249
  %v1345 = vunpack.c.h.b16 %v1249
  %v1346 = vpack.c.b16 %v1282, %v1282
  %v1347 = vpack.c.b16 %v1283, %v1283
  %v1348 = vpack.c.b16 %v1284, %v1284
  %v1349 = vpack.c.b16 %v1285, %v1285
  %v1350 = vpack.c.b16 %v1286, %v1286
  %v1351 = vpack.c.b16 %v1287, %v1287
  %v1352 = vpack.c.b16 %v1288, %v1288
  %v1353 = vpack.c.b16 %v1289, %v1289
  %v1354 = vpack.c.b16 %v1290, %v1290
  %v1355 = vpack.c.b16 %v1291, %v1291
  %v1356 = vpack.c.b16 %v1292, %v1292
  %v1357 = vpack.c.b16 %v1293, %v1293
  %v1358 = vpack.c.b16 %v1294, %v1294
  %v1359 = vpack.c.b16 %v1295, %v1295
  %v1360 = vpack.c.b16 %v1296, %v1296
  %v1361 = vpack.c.b16 %v1297, %v1297
  %v1362 = vpack.c.b16 %v1298, %v1298
  %v1363 = vpack.c.b16 %v1299, %v1299
  %v1364 = vpack.c.b16 %v1300, %v1300
  %v1365 = vpack.c.b16 %v1301, %v1301
  %v1366 = vpack.c.b16 %v1302, %v1302
  %v1367 = vpack.c.b16 %v1303, %v1303
  %v1368 = vpack.c.b16 %v1304, %v1304
  %v1369 = vpack.c.b16 %v1305, %v1305
  %v1370 = vpack.c.b16 %v1306, %v1306
  %v1371 = vpack.c.b16 %v1307, %v1307
  %v1372 = vpack.c.b16 %v1308, %v1308
  %v1373 = vpack.c.b16 %v1309, %v1309
  %v1374 = vpack.c.b16 %v1310, %v1310
  %v1375 = vpack.c.b16 %v1311, %v1311
  %v1376 = vpack.c.b16 %v1312, %v1312
  %v1377 = vpack.c.b16 %v1313, %v1313
  %v1378 = vpack.c.b16 %v1314, %v1314
  %v1379 = vpack.c.b16 %v1315, %v1315
  %v1380 = vpack.c.b16 %v1316, %v1316
  %v1381 = vpack.c.b16 %v1317, %v1317
  %v1382 = vpack.c.b16 %v1318, %v1318
  %v1383 = vpack.c.b16 %v1319, %v1319
  %v1384 = vpack.c.b16 %v1320, %v1320
  %v1385 = vpack.c.b16 %v1321, %v1321
  %v1386 = vpack.c.b16 %v1322, %v1322
  %v1387 = vpack.c.b16 %v1323, %v1323
  %v1388 = vpack.c.b16 %v1324, %v1324
  %v1389 = vpack.c.b16 %v1325, %v1325
  %v1390 = vpack.c.b16 %v1326, %v1326
  %v1391 = vpack.c.b16 %v1327, %v1327
  %v1392 = vpack.c.b16 %v1328, %v1328
  %v1393 = vpack.c.b16 %v1329, %v1329
  %v1394 = vpack.c.b16 %v1330, %v1330
  %v1395 = vpack.c.b16 %v1331, %v1331
  %v1396 = vpack.c.b16 %v1332, %v1332
  %v1397 = vpack.c.b16 %v1333, %v1333
  %v1398 = vpack.c.b16 %v1334, %v1334
  %v1399 = vpack.c.b16 %v1335, %v1335
  %v1400 = vpack.c.b16 %v1336, %v1336
  %v1401 = vpack.c.b16 %v1337, %v1337
  %v1402 = vpack.c.b16 %v1338, %v1338
  %v1403 = vpack.c.b16 %v1339, %v1339
  %v1404 = vpack.c.b16 %v1340, %v1340
  %v1405 = vpack.c.b16 %v1341, %v1341
  %v1406 = vpack.c.b16 %v1342, %v1342
  %v1407 = vpack.c.b16 %v1343, %v1343
  %v1408 = vpack.c.b16 %v1344, %v1344
  %v1409 = vpack.c.b16 %v1345, %v1345
  %vm1474 = vcmask 60416
  %1475 = vst.msk [vmem:[%s3] sm:$0xf] %vm1474, %v1346
  %1476 = vst.msk [vmem:[%s3 + $0x4] sm:$0xf] %vm1474, %v1347
  %1477 = vst.msk [vmem:[%s3 + $0x8] sm:$0xf] %vm1474, %v1348
  %1478 = vst.msk [vmem:[%s3 + $0xc] sm:$0xf] %vm1474, %v1349
  %1479 = vst.msk [vmem:[%s3 + $0x10] sm:$0xf] %vm1474, %v1350
  %1480 = vst.msk [vmem:[%s3 + $0x14] sm:$0xf] %vm1474, %v1351
  %1481 = vst.msk [vmem:[%s3 + $0x18] sm:$0xf] %vm1474, %v1352
  %1482 = vst.msk [vmem:[%s3 + $0x1c] sm:$0xf] %vm1474, %v1353
  %1483 = vst.msk [vmem:[%s3 + $0x20] sm:$0xf] %vm1474, %v1354
  %1484 = vst.msk [vmem:[%s3 + $0x24] sm:$0xf] %vm1474, %v1355
  %1485 = vst.msk [vmem:[%s3 + $0x28] sm:$0xf] %vm1474, %v1356
  %1486 = vst.msk [vmem:[%s3 + $0x2c] sm:$0xf] %vm1474, %v1357
  %1487 = vst.msk [vmem:[%s3 + $0x30] sm:$0xf] %vm1474, %v1358
  %1488 = vst.msk [vmem:[%s3 + $0x34] sm:$0xf] %vm1474, %v1359
  %1489 = vst.msk [vmem:[%s3 + $0x38] sm:$0xf] %vm1474, %v1360
  %1490 = vst.msk [vmem:[%s3 + $0x3c] sm:$0xf] %vm1474, %v1361
  %1491 = vst.msk [vmem:[%s3 + $0x40] sm:$0xf] %vm1474, %v1362
  %1492 = vst.msk [vmem:[%s3 + $0x44] sm:$0xf] %vm1474, %v1363
  %1493 = vst.msk [vmem:[%s3 + $0x48] sm:$0xf] %vm1474, %v1364
  %1494 = vst.msk [vmem:[%s3 + $0x4c] sm:$0xf] %vm1474, %v1365
  %1495 = vst.msk [vmem:[%s3 + $0x50] sm:$0xf] %vm1474, %v1366
  %1496 = vst.msk [vmem:[%s3 + $0x54] sm:$0xf] %vm1474, %v1367
  %1497 = vst.msk [vmem:[%s3 + $0x58] sm:$0xf] %vm1474, %v1368
  %1498 = vst.msk [vmem:[%s3 + $0x5c] sm:$0xf] %vm1474, %v1369
  %1499 = vst.msk [vmem:[%s3 + $0x60] sm:$0xf] %vm1474, %v1370
  %1500 = vst.msk [vmem:[%s3 + $0x64] sm:$0xf] %vm1474, %v1371
  %1501 = vst.msk [vmem:[%s3 + $0x68] sm:$0xf] %vm1474, %v1372
  %1502 = vst.msk [vmem:[%s3 + $0x6c] sm:$0xf] %vm1474, %v1373
  %1503 = vst.msk [vmem:[%s3 + $0x70] sm:$0xf] %vm1474, %v1374
  %1504 = vst.msk [vmem:[%s3 + $0x74] sm:$0xf] %vm1474, %v1375
  %1505 = vst.msk [vmem:[%s3 + $0x78] sm:$0xf] %vm1474, %v1376
  %1506 = vst.msk [vmem:[%s3 + $0x7c] sm:$0xf] %vm1474, %v1377
  %1507 = vst.msk [vmem:[%s3 + $0x80] sm:$0xf] %vm1474, %v1378
  %1508 = vst.msk [vmem:[%s3 + $0x84] sm:$0xf] %vm1474, %v1379
  %1509 = vst.msk [vmem:[%s3 + $0x88] sm:$0xf] %vm1474, %v1380
  %1510 = vst.msk [vmem:[%s3 + $0x8c] sm:$0xf] %vm1474, %v1381
  %1511 = vst.msk [vmem:[%s3 + $0x90] sm:$0xf] %vm1474, %v1382
  %1512 = vst.msk [vmem:[%s3 + $0x94] sm:$0xf] %vm1474, %v1383
  %1513 = vst.msk [vmem:[%s3 + $0x98] sm:$0xf] %vm1474, %v1384
  %1514 = vst.msk [vmem:[%s3 + $0x9c] sm:$0xf] %vm1474, %v1385
  %1515 = vst.msk [vmem:[%s3 + $0xa0] sm:$0xf] %vm1474, %v1386
  %1516 = vst.msk [vmem:[%s3 + $0xa4] sm:$0xf] %vm1474, %v1387
  %1517 = vst.msk [vmem:[%s3 + $0xa8] sm:$0xf] %vm1474, %v1388
  %1518 = vst.msk [vmem:[%s3 + $0xac] sm:$0xf] %vm1474, %v1389
  %1519 = vst.msk [vmem:[%s3 + $0xb0] sm:$0xf] %vm1474, %v1390
  %1520 = vst.msk [vmem:[%s3 + $0xb4] sm:$0xf] %vm1474, %v1391
  %1521 = vst.msk [vmem:[%s3 + $0xb8] sm:$0xf] %vm1474, %v1392
  %1522 = vst.msk [vmem:[%s3 + $0xbc] sm:$0xf] %vm1474, %v1393
  %1523 = vst.msk [vmem:[%s3 + $0xc0] sm:$0xf] %vm1474, %v1394
  %1524 = vst.msk [vmem:[%s3 + $0xc4] sm:$0xf] %vm1474, %v1395
  %1525 = vst.msk [vmem:[%s3 + $0xc8] sm:$0xf] %vm1474, %v1396
  %1526 = vst.msk [vmem:[%s3 + $0xcc] sm:$0xf] %vm1474, %v1397
  %1527 = vst.msk [vmem:[%s3 + $0xd0] sm:$0xf] %vm1474, %v1398
  %1528 = vst.msk [vmem:[%s3 + $0xd4] sm:$0xf] %vm1474, %v1399
  %1529 = vst.msk [vmem:[%s3 + $0xd8] sm:$0xf] %vm1474, %v1400
  %1530 = vst.msk [vmem:[%s3 + $0xdc] sm:$0xf] %vm1474, %v1401
  %1531 = vst.msk [vmem:[%s3 + $0xe0] sm:$0xf] %vm1474, %v1402
  %1532 = vst.msk [vmem:[%s3 + $0xe4] sm:$0xf] %vm1474, %v1403
  %1533 = vst.msk [vmem:[%s3 + $0xe8] sm:$0xf] %vm1474, %v1404
  %1534 = vst.msk [vmem:[%s3 + $0xec] sm:$0xf] %vm1474, %v1405
  %1535 = vst.msk [vmem:[%s3 + $0xf0] sm:$0xf] %vm1474, %v1406
  %1536 = vst.msk [vmem:[%s3 + $0xf4] sm:$0xf] %vm1474, %v1407
  %1537 = vst.msk [vmem:[%s3 + $0xf8] sm:$0xf] %vm1474, %v1408
  %1538 = vst.msk [vmem:[%s3 + $0xfc] sm:$0xf] %vm1474, %v1409
  %v1539 = vpack.c.bf16 %v1030, %v1027
  %v1540 = vpack.c.bf16 %v1036, %v1033
  %v1541 = vpack.c.bf16 %v1042, %v1039
  %v1542 = vpack.c.bf16 %v1048, %v1045
  %v1543 = vpack.c.bf16 %v1054, %v1051
  %v1544 = vpack.c.bf16 %v1060, %v1057
  %v1545 = vpack.c.bf16 %v1066, %v1063
  %v1546 = vpack.c.bf16 %v1072, %v1069
  %v1547 = vpack.c.bf16 %v1078, %v1075
  %v1548 = vpack.c.bf16 %v1084, %v1081
  %v1549 = vpack.c.bf16 %v1090, %v1087
  %v1550 = vpack.c.bf16 %v1096, %v1093
  %v1551 = vpack.c.bf16 %v1102, %v1099
  %v1552 = vpack.c.bf16 %v1108, %v1105
  %v1553 = vpack.c.bf16 %v1114, %v1111
  %v1554 = vpack.c.bf16 %v1120, %v1117
  %v1555 = vpack.c.bf16 %v1126, %v1123
  %v1556 = vpack.c.bf16 %v1132, %v1129
  %v1557 = vpack.c.bf16 %v1138, %v1135
  %v1558 = vpack.c.bf16 %v1144, %v1141
  %v1559 = vpack.c.bf16 %v1150, %v1147
  %v1560 = vpack.c.bf16 %v1156, %v1153
  %v1561 = vpack.c.bf16 %v1162, %v1159
  %v1562 = vpack.c.bf16 %v1168, %v1165
  %v1563 = vpack.c.bf16 %v1174, %v1171
  %v1564 = vpack.c.bf16 %v1180, %v1177
  %v1565 = vpack.c.bf16 %v1186, %v1183
  %v1566 = vpack.c.bf16 %v1192, %v1189
  %v1567 = vpack.c.bf16 %v1198, %v1195
  %v1568 = vpack.c.bf16 %v1204, %v1201
  %v1569 = vpack.c.bf16 %v1210, %v1207
  %v1570 = vpack.c.bf16 %v1216, %v1213
  %v1603 = vunpack.c.l.b16 %v1539
  %v1604 = vunpack.c.h.b16 %v1539
  %v1605 = vunpack.c.l.b16 %v1540
  %v1606 = vunpack.c.h.b16 %v1540
  %v1607 = vunpack.c.l.b16 %v1541
  %v1608 = vunpack.c.h.b16 %v1541
  %v1609 = vunpack.c.l.b16 %v1542
  %v1610 = vunpack.c.h.b16 %v1542
  %v1611 = vunpack.c.l.b16 %v1543
  %v1612 = vunpack.c.h.b16 %v1543
  %v1613 = vunpack.c.l.b16 %v1544
  %v1614 = vunpack.c.h.b16 %v1544
  %v1615 = vunpack.c.l.b16 %v1545
  %v1616 = vunpack.c.h.b16 %v1545
  %v1617 = vunpack.c.l.b16 %v1546
  %v1618 = vunpack.c.h.b16 %v1546
  %v1619 = vunpack.c.l.b16 %v1547
  %v1620 = vunpack.c.h.b16 %v1547
  %v1621 = vunpack.c.l.b16 %v1548
  %v1622 = vunpack.c.h.b16 %v1548
  %v1623 = vunpack.c.l.b16 %v1549
  %v1624 = vunpack.c.h.b16 %v1549
  %v1625 = vunpack.c.l.b16 %v1550
  %v1626 = vunpack.c.h.b16 %v1550
  %v1627 = vunpack.c.l.b16 %v1551
  %v1628 = vunpack.c.h.b16 %v1551
  %v1629 = vunpack.c.l.b16 %v1552
  %v1630 = vunpack.c.h.b16 %v1552
  %v1631 = vunpack.c.l.b16 %v1553
  %v1632 = vunpack.c.h.b16 %v1553
  %v1633 = vunpack.c.l.b16 %v1554
  %v1634 = vunpack.c.h.b16 %v1554
  %v1635 = vunpack.c.l.b16 %v1555
  %v1636 = vunpack.c.h.b16 %v1555
  %v1637 = vunpack.c.l.b16 %v1556
  %v1638 = vunpack.c.h.b16 %v1556
  %v1639 = vunpack.c.l.b16 %v1557
  %v1640 = vunpack.c.h.b16 %v1557
  %v1641 = vunpack.c.l.b16 %v1558
  %v1642 = vunpack.c.h.b16 %v1558
  %v1643 = vunpack.c.l.b16 %v1559
  %v1644 = vunpack.c.h.b16 %v1559
  %v1645 = vunpack.c.l.b16 %v1560
  %v1646 = vunpack.c.h.b16 %v1560
  %v1647 = vunpack.c.l.b16 %v1561
  %v1648 = vunpack.c.h.b16 %v1561
  %v1649 = vunpack.c.l.b16 %v1562
  %v1650 = vunpack.c.h.b16 %v1562
  %v1651 = vunpack.c.l.b16 %v1563
  %v1652 = vunpack.c.h.b16 %v1563
  %v1653 = vunpack.c.l.b16 %v1564
  %v1654 = vunpack.c.h.b16 %v1564
  %v1655 = vunpack.c.l.b16 %v1565
  %v1656 = vunpack.c.h.b16 %v1565
  %v1657 = vunpack.c.l.b16 %v1566
  %v1658 = vunpack.c.h.b16 %v1566
  %v1659 = vunpack.c.l.b16 %v1567
  %v1660 = vunpack.c.h.b16 %v1567
  %v1661 = vunpack.c.l.b16 %v1568
  %v1662 = vunpack.c.h.b16 %v1568
  %v1663 = vunpack.c.l.b16 %v1569
  %v1664 = vunpack.c.h.b16 %v1569
  %v1665 = vunpack.c.l.b16 %v1570
  %v1666 = vunpack.c.h.b16 %v1570
  %v1667 = vpack.c.b16 %v1603, %v1603
  %v1668 = vpack.c.b16 %v1604, %v1604
  %v1669 = vpack.c.b16 %v1605, %v1605
  %v1670 = vpack.c.b16 %v1606, %v1606
  %v1671 = vpack.c.b16 %v1607, %v1607
  %v1672 = vpack.c.b16 %v1608, %v1608
  %v1673 = vpack.c.b16 %v1609, %v1609
  %v1674 = vpack.c.b16 %v1610, %v1610
  %v1675 = vpack.c.b16 %v1611, %v1611
  %v1676 = vpack.c.b16 %v1612, %v1612
  %v1677 = vpack.c.b16 %v1613, %v1613
  %v1678 = vpack.c.b16 %v1614, %v1614
  %v1679 = vpack.c.b16 %v1615, %v1615
  %v1680 = vpack.c.b16 %v1616, %v1616
  %v1681 = vpack.c.b16 %v1617, %v1617
  %v1682 = vpack.c.b16 %v1618, %v1618
  %v1683 = vpack.c.b16 %v1619, %v1619
  %v1684 = vpack.c.b16 %v1620, %v1620
  %v1685 = vpack.c.b16 %v1621, %v1621
  %v1686 = vpack.c.b16 %v1622, %v1622
  %v1687 = vpack.c.b16 %v1623, %v1623
  %v1688 = vpack.c.b16 %v1624, %v1624
  %v1689 = vpack.c.b16 %v1625, %v1625
  %v1690 = vpack.c.b16 %v1626, %v1626
  %v1691 = vpack.c.b16 %v1627, %v1627
  %v1692 = vpack.c.b16 %v1628, %v1628
  %v1693 = vpack.c.b16 %v1629, %v1629
  %v1694 = vpack.c.b16 %v1630, %v1630
  %v1695 = vpack.c.b16 %v1631, %v1631
  %v1696 = vpack.c.b16 %v1632, %v1632
  %v1697 = vpack.c.b16 %v1633, %v1633
  %v1698 = vpack.c.b16 %v1634, %v1634
  %v1699 = vpack.c.b16 %v1635, %v1635
  %v1700 = vpack.c.b16 %v1636, %v1636
  %v1701 = vpack.c.b16 %v1637, %v1637
  %v1702 = vpack.c.b16 %v1638, %v1638
  %v1703 = vpack.c.b16 %v1639, %v1639
  %v1704 = vpack.c.b16 %v1640, %v1640
  %v1705 = vpack.c.b16 %v1641, %v1641
  %v1706 = vpack.c.b16 %v1642, %v1642
  %v1707 = vpack.c.b16 %v1643, %v1643
  %v1708 = vpack.c.b16 %v1644, %v1644
  %v1709 = vpack.c.b16 %v1645, %v1645
  %v1710 = vpack.c.b16 %v1646, %v1646
  %v1711 = vpack.c.b16 %v1647, %v1647
  %v1712 = vpack.c.b16 %v1648, %v1648
  %v1713 = vpack.c.b16 %v1649, %v1649
  %v1714 = vpack.c.b16 %v1650, %v1650
  %v1715 = vpack.c.b16 %v1651, %v1651
  %v1716 = vpack.c.b16 %v1652, %v1652
  %v1717 = vpack.c.b16 %v1653, %v1653
  %v1718 = vpack.c.b16 %v1654, %v1654
  %v1719 = vpack.c.b16 %v1655, %v1655
  %v1720 = vpack.c.b16 %v1656, %v1656
  %v1721 = vpack.c.b16 %v1657, %v1657
  %v1722 = vpack.c.b16 %v1658, %v1658
  %v1723 = vpack.c.b16 %v1659, %v1659
  %v1724 = vpack.c.b16 %v1660, %v1660
  %v1725 = vpack.c.b16 %v1661, %v1661
  %v1726 = vpack.c.b16 %v1662, %v1662
  %v1727 = vpack.c.b16 %v1663, %v1663
  %v1728 = vpack.c.b16 %v1664, %v1664
  %v1729 = vpack.c.b16 %v1665, %v1665
  %v1730 = vpack.c.b16 %v1666, %v1666
  %1795 = vst [vmem:[%s4] sm:$0xf] %v1667
  %1796 = vst [vmem:[%s4 + $0x4] sm:$0xf] %v1668
  %1797 = vst [vmem:[%s4 + $0x8] sm:$0xf] %v1669
  %1798 = vst [vmem:[%s4 + $0xc] sm:$0xf] %v1670
  %1799 = vst [vmem:[%s4 + $0x10] sm:$0xf] %v1671
  %1800 = vst [vmem:[%s4 + $0x14] sm:$0xf] %v1672
  %1801 = vst [vmem:[%s4 + $0x18] sm:$0xf] %v1673
  %1802 = vst [vmem:[%s4 + $0x1c] sm:$0xf] %v1674
  %1803 = vst [vmem:[%s4 + $0x20] sm:$0xf] %v1675
  %1804 = vst [vmem:[%s4 + $0x24] sm:$0xf] %v1676
  %1805 = vst [vmem:[%s4 + $0x28] sm:$0xf] %v1677
  %1806 = vst [vmem:[%s4 + $0x2c] sm:$0xf] %v1678
  %1807 = vst [vmem:[%s4 + $0x30] sm:$0xf] %v1679
  %1808 = vst [vmem:[%s4 + $0x34] sm:$0xf] %v1680
  %1809 = vst [vmem:[%s4 + $0x38] sm:$0xf] %v1681
  %1810 = vst [vmem:[%s4 + $0x3c] sm:$0xf] %v1682
  %1811 = vst [vmem:[%s4 + $0x40] sm:$0xf] %v1683
  %1812 = vst [vmem:[%s4 + $0x44] sm:$0xf] %v1684
  %1813 = vst [vmem:[%s4 + $0x48] sm:$0xf] %v1685
  %1814 = vst [vmem:[%s4 + $0x4c] sm:$0xf] %v1686
  %1815 = vst [vmem:[%s4 + $0x50] sm:$0xf] %v1687
  %1816 = vst [vmem:[%s4 + $0x54] sm:$0xf] %v1688
  %1817 = vst [vmem:[%s4 + $0x58] sm:$0xf] %v1689
  %1818 = vst [vmem:[%s4 + $0x5c] sm:$0xf] %v1690
  %1819 = vst [vmem:[%s4 + $0x60] sm:$0xf] %v1691
  %1820 = vst [vmem:[%s4 + $0x64] sm:$0xf] %v1692
  %1821 = vst [vmem:[%s4 + $0x68] sm:$0xf] %v1693
  %1822 = vst [vmem:[%s4 + $0x6c] sm:$0xf] %v1694
  %1823 = vst [vmem:[%s4 + $0x70] sm:$0xf] %v1695
  %1824 = vst [vmem:[%s4 + $0x74] sm:$0xf] %v1696
  %1825 = vst [vmem:[%s4 + $0x78] sm:$0xf] %v1697
  %1826 = vst [vmem:[%s4 + $0x7c] sm:$0xf] %v1698
  %1827 = vst [vmem:[%s4 + $0x80] sm:$0xf] %v1699
  %1828 = vst [vmem:[%s4 + $0x84] sm:$0xf] %v1700
  %1829 = vst [vmem:[%s4 + $0x88] sm:$0xf] %v1701
  %1830 = vst [vmem:[%s4 + $0x8c] sm:$0xf] %v1702
  %1831 = vst [vmem:[%s4 + $0x90] sm:$0xf] %v1703
  %1832 = vst [vmem:[%s4 + $0x94] sm:$0xf] %v1704
  %1833 = vst [vmem:[%s4 + $0x98] sm:$0xf] %v1705
  %1834 = vst [vmem:[%s4 + $0x9c] sm:$0xf] %v1706
  %1835 = vst [vmem:[%s4 + $0xa0] sm:$0xf] %v1707
  %1836 = vst [vmem:[%s4 + $0xa4] sm:$0xf] %v1708
  %1837 = vst [vmem:[%s4 + $0xa8] sm:$0xf] %v1709
  %1838 = vst [vmem:[%s4 + $0xac] sm:$0xf] %v1710
  %1839 = vst [vmem:[%s4 + $0xb0] sm:$0xf] %v1711
  %1840 = vst [vmem:[%s4 + $0xb4] sm:$0xf] %v1712
  %1841 = vst [vmem:[%s4 + $0xb8] sm:$0xf] %v1713
  %1842 = vst [vmem:[%s4 + $0xbc] sm:$0xf] %v1714
  %1843 = vst [vmem:[%s4 + $0xc0] sm:$0xf] %v1715
  %1844 = vst [vmem:[%s4 + $0xc4] sm:$0xf] %v1716
  %1845 = vst [vmem:[%s4 + $0xc8] sm:$0xf] %v1717
  %1846 = vst [vmem:[%s4 + $0xcc] sm:$0xf] %v1718
  %1847 = vst [vmem:[%s4 + $0xd0] sm:$0xf] %v1719
  %1848 = vst [vmem:[%s4 + $0xd4] sm:$0xf] %v1720
  %1849 = vst [vmem:[%s4 + $0xd8] sm:$0xf] %v1721
  %1850 = vst [vmem:[%s4 + $0xdc] sm:$0xf] %v1722
  %1851 = vst [vmem:[%s4 + $0xe0] sm:$0xf] %v1723
  %1852 = vst [vmem:[%s4 + $0xe4] sm:$0xf] %v1724
  %1853 = vst [vmem:[%s4 + $0xe8] sm:$0xf] %v1725
  %1854 = vst [vmem:[%s4 + $0xec] sm:$0xf] %v1726
  %1855 = vst [vmem:[%s4 + $0xf0] sm:$0xf] %v1727
  %1856 = vst [vmem:[%s4 + $0xf4] sm:$0xf] %v1728
  %1857 = vst [vmem:[%s4 + $0xf8] sm:$0xf] %v1729
  %1858 = vst [vmem:[%s4 + $0xfc] sm:$0xf] %v1730
  %v1859 = vpack.c.bf16 %v1031, %v1028
  %v1860 = vpack.c.bf16 %v1037, %v1034
  %v1861 = vpack.c.bf16 %v1043, %v1040
  %v1862 = vpack.c.bf16 %v1049, %v1046
  %v1863 = vpack.c.bf16 %v1055, %v1052
  %v1864 = vpack.c.bf16 %v1061, %v1058
  %v1865 = vpack.c.bf16 %v1067, %v1064
  %v1866 = vpack.c.bf16 %v1073, %v1070
  %v1867 = vpack.c.bf16 %v1079, %v1076
  %v1868 = vpack.c.bf16 %v1085, %v1082
  %v1869 = vpack.c.bf16 %v1091, %v1088
  %v1870 = vpack.c.bf16 %v1097, %v1094
  %v1871 = vpack.c.bf16 %v1103, %v1100
  %v1872 = vpack.c.bf16 %v1109, %v1106
  %v1873 = vpack.c.bf16 %v1115, %v1112
  %v1874 = vpack.c.bf16 %v1121, %v1118
  %v1875 = vpack.c.bf16 %v1127, %v1124
  %v1876 = vpack.c.bf16 %v1133, %v1130
  %v1877 = vpack.c.bf16 %v1139, %v1136
  %v1878 = vpack.c.bf16 %v1145, %v1142
  %v1879 = vpack.c.bf16 %v1151, %v1148
  %v1880 = vpack.c.bf16 %v1157, %v1154
  %v1881 = vpack.c.bf16 %v1163, %v1160
  %v1882 = vpack.c.bf16 %v1169, %v1166
  %v1883 = vpack.c.bf16 %v1175, %v1172
  %v1884 = vpack.c.bf16 %v1181, %v1178
  %v1885 = vpack.c.bf16 %v1187, %v1184
  %v1886 = vpack.c.bf16 %v1193, %v1190
  %v1887 = vpack.c.bf16 %v1199, %v1196
  %v1888 = vpack.c.bf16 %v1205, %v1202
  %v1889 = vpack.c.bf16 %v1211, %v1208
  %v1890 = vpack.c.bf16 %v1217, %v1214
  %v1923 = vunpack.c.l.b16 %v1859
  %v1924 = vunpack.c.h.b16 %v1859
  %v1925 = vunpack.c.l.b16 %v1860
  %v1926 = vunpack.c.h.b16 %v1860
  %v1927 = vunpack.c.l.b16 %v1861
  %v1928 = vunpack.c.h.b16 %v1861
  %v1929 = vunpack.c.l.b16 %v1862
  %v1930 = vunpack.c.h.b16 %v1862
  %v1931 = vunpack.c.l.b16 %v1863
  %v1932 = vunpack.c.h.b16 %v1863
  %v1933 = vunpack.c.l.b16 %v1864
  %v1934 = vunpack.c.h.b16 %v1864
  %v1935 = vunpack.c.l.b16 %v1865
  %v1936 = vunpack.c.h.b16 %v1865
  %v1937 = vunpack.c.l.b16 %v1866
  %v1938 = vunpack.c.h.b16 %v1866
  %v1939 = vunpack.c.l.b16 %v1867
  %v1940 = vunpack.c.h.b16 %v1867
  %v1941 = vunpack.c.l.b16 %v1868
  %v1942 = vunpack.c.h.b16 %v1868
  %v1943 = vunpack.c.l.b16 %v1869
  %v1944 = vunpack.c.h.b16 %v1869
  %v1945 = vunpack.c.l.b16 %v1870
  %v1946 = vunpack.c.h.b16 %v1870
  %v1947 = vunpack.c.l.b16 %v1871
  %v1948 = vunpack.c.h.b16 %v1871
  %v1949 = vunpack.c.l.b16 %v1872
  %v1950 = vunpack.c.h.b16 %v1872
  %v1951 = vunpack.c.l.b16 %v1873
  %v1952 = vunpack.c.h.b16 %v1873
  %v1953 = vunpack.c.l.b16 %v1874
  %v1954 = vunpack.c.h.b16 %v1874
  %v1955 = vunpack.c.l.b16 %v1875
  %v1956 = vunpack.c.h.b16 %v1875
  %v1957 = vunpack.c.l.b16 %v1876
  %v1958 = vunpack.c.h.b16 %v1876
  %v1959 = vunpack.c.l.b16 %v1877
  %v1960 = vunpack.c.h.b16 %v1877
  %v1961 = vunpack.c.l.b16 %v1878
  %v1962 = vunpack.c.h.b16 %v1878
  %v1963 = vunpack.c.l.b16 %v1879
  %v1964 = vunpack.c.h.b16 %v1879
  %v1965 = vunpack.c.l.b16 %v1880
  %v1966 = vunpack.c.h.b16 %v1880
  %v1967 = vunpack.c.l.b16 %v1881
  %v1968 = vunpack.c.h.b16 %v1881
  %v1969 = vunpack.c.l.b16 %v1882
  %v1970 = vunpack.c.h.b16 %v1882
  %v1971 = vunpack.c.l.b16 %v1883
  %v1972 = vunpack.c.h.b16 %v1883
  %v1973 = vunpack.c.l.b16 %v1884
  %v1974 = vunpack.c.h.b16 %v1884
  %v1975 = vunpack.c.l.b16 %v1885
  %v1976 = vunpack.c.h.b16 %v1885
  %v1977 = vunpack.c.l.b16 %v1886
  %v1978 = vunpack.c.h.b16 %v1886
  %v1979 = vunpack.c.l.b16 %v1887
  %v1980 = vunpack.c.h.b16 %v1887
  %v1981 = vunpack.c.l.b16 %v1888
  %v1982 = vunpack.c.h.b16 %v1888
  %v1983 = vunpack.c.l.b16 %v1889
  %v1984 = vunpack.c.h.b16 %v1889
  %v1985 = vunpack.c.l.b16 %v1890
  %v1986 = vunpack.c.h.b16 %v1890
  %v1987 = vpack.c.b16 %v1923, %v1923
  %v1988 = vpack.c.b16 %v1924, %v1924
  %v1989 = vpack.c.b16 %v1925, %v1925
  %v1990 = vpack.c.b16 %v1926, %v1926
  %v1991 = vpack.c.b16 %v1927, %v1927
  %v1992 = vpack.c.b16 %v1928, %v1928
  %v1993 = vpack.c.b16 %v1929, %v1929
  %v1994 = vpack.c.b16 %v1930, %v1930
  %v1995 = vpack.c.b16 %v1931, %v1931
  %v1996 = vpack.c.b16 %v1932, %v1932
  %v1997 = vpack.c.b16 %v1933, %v1933
  %v1998 = vpack.c.b16 %v1934, %v1934
  %v1999 = vpack.c.b16 %v1935, %v1935
  %v2000 = vpack.c.b16 %v1936, %v1936
  %v2001 = vpack.c.b16 %v1937, %v1937
  %v2002 = vpack.c.b16 %v1938, %v1938
  %v2003 = vpack.c.b16 %v1939, %v1939
  %v2004 = vpack.c.b16 %v1940, %v1940
  %v2005 = vpack.c.b16 %v1941, %v1941
  %v2006 = vpack.c.b16 %v1942, %v1942
  %v2007 = vpack.c.b16 %v1943, %v1943
  %v2008 = vpack.c.b16 %v1944, %v1944
  %v2009 = vpack.c.b16 %v1945, %v1945
  %v2010 = vpack.c.b16 %v1946, %v1946
  %v2011 = vpack.c.b16 %v1947, %v1947
  %v2012 = vpack.c.b16 %v1948, %v1948
  %v2013 = vpack.c.b16 %v1949, %v1949
  %v2014 = vpack.c.b16 %v1950, %v1950
  %v2015 = vpack.c.b16 %v1951, %v1951
  %v2016 = vpack.c.b16 %v1952, %v1952
  %v2017 = vpack.c.b16 %v1953, %v1953
  %v2018 = vpack.c.b16 %v1954, %v1954
  %v2019 = vpack.c.b16 %v1955, %v1955
  %v2020 = vpack.c.b16 %v1956, %v1956
  %v2021 = vpack.c.b16 %v1957, %v1957
  %v2022 = vpack.c.b16 %v1958, %v1958
  %v2023 = vpack.c.b16 %v1959, %v1959
  %v2024 = vpack.c.b16 %v1960, %v1960
  %v2025 = vpack.c.b16 %v1961, %v1961
  %v2026 = vpack.c.b16 %v1962, %v1962
  %v2027 = vpack.c.b16 %v1963, %v1963
  %v2028 = vpack.c.b16 %v1964, %v1964
  %v2029 = vpack.c.b16 %v1965, %v1965
  %v2030 = vpack.c.b16 %v1966, %v1966
  %v2031 = vpack.c.b16 %v1967, %v1967
  %v2032 = vpack.c.b16 %v1968, %v1968
  %v2033 = vpack.c.b16 %v1969, %v1969
  %v2034 = vpack.c.b16 %v1970, %v1970
  %v2035 = vpack.c.b16 %v1971, %v1971
  %v2036 = vpack.c.b16 %v1972, %v1972
  %v2037 = vpack.c.b16 %v1973, %v1973
  %v2038 = vpack.c.b16 %v1974, %v1974
  %v2039 = vpack.c.b16 %v1975, %v1975
  %v2040 = vpack.c.b16 %v1976, %v1976
  %v2041 = vpack.c.b16 %v1977, %v1977
  %v2042 = vpack.c.b16 %v1978, %v1978
  %v2043 = vpack.c.b16 %v1979, %v1979
  %v2044 = vpack.c.b16 %v1980, %v1980
  %v2045 = vpack.c.b16 %v1981, %v1981
  %v2046 = vpack.c.b16 %v1982, %v1982
  %v2047 = vpack.c.b16 %v1983, %v1983
  %v2048 = vpack.c.b16 %v1984, %v1984
  %v2049 = vpack.c.b16 %v1985, %v1985
  %v2050 = vpack.c.b16 %v1986, %v1986
  %2115 = vst [vmem:[%s5] sm:$0xf] %v1987
  %2116 = vst [vmem:[%s5 + $0x4] sm:$0xf] %v1988
  %2117 = vst [vmem:[%s5 + $0x8] sm:$0xf] %v1989
  %2118 = vst [vmem:[%s5 + $0xc] sm:$0xf] %v1990
  %2119 = vst [vmem:[%s5 + $0x10] sm:$0xf] %v1991
  %2120 = vst [vmem:[%s5 + $0x14] sm:$0xf] %v1992
  %2121 = vst [vmem:[%s5 + $0x18] sm:$0xf] %v1993
  %2122 = vst [vmem:[%s5 + $0x1c] sm:$0xf] %v1994
  %2123 = vst [vmem:[%s5 + $0x20] sm:$0xf] %v1995
  %2124 = vst [vmem:[%s5 + $0x24] sm:$0xf] %v1996
  %2125 = vst [vmem:[%s5 + $0x28] sm:$0xf] %v1997
  %2126 = vst [vmem:[%s5 + $0x2c] sm:$0xf] %v1998
  %2127 = vst [vmem:[%s5 + $0x30] sm:$0xf] %v1999
  %2128 = vst [vmem:[%s5 + $0x34] sm:$0xf] %v2000
  %2129 = vst [vmem:[%s5 + $0x38] sm:$0xf] %v2001
  %2130 = vst [vmem:[%s5 + $0x3c] sm:$0xf] %v2002
  %2131 = vst [vmem:[%s5 + $0x40] sm:$0xf] %v2003
  %2132 = vst [vmem:[%s5 + $0x44] sm:$0xf] %v2004
  %2133 = vst [vmem:[%s5 + $0x48] sm:$0xf] %v2005
  %2134 = vst [vmem:[%s5 + $0x4c] sm:$0xf] %v2006
  %2135 = vst [vmem:[%s5 + $0x50] sm:$0xf] %v2007
  %2136 = vst [vmem:[%s5 + $0x54] sm:$0xf] %v2008
  %2137 = vst [vmem:[%s5 + $0x58] sm:$0xf] %v2009
  %2138 = vst [vmem:[%s5 + $0x5c] sm:$0xf] %v2010
  %2139 = vst [vmem:[%s5 + $0x60] sm:$0xf] %v2011
  %2140 = vst [vmem:[%s5 + $0x64] sm:$0xf] %v2012
  %2141 = vst [vmem:[%s5 + $0x68] sm:$0xf] %v2013
  %2142 = vst [vmem:[%s5 + $0x6c] sm:$0xf] %v2014
  %2143 = vst [vmem:[%s5 + $0x70] sm:$0xf] %v2015
  %2144 = vst [vmem:[%s5 + $0x74] sm:$0xf] %v2016
  %2145 = vst [vmem:[%s5 + $0x78] sm:$0xf] %v2017
  %2146 = vst [vmem:[%s5 + $0x7c] sm:$0xf] %v2018
  %2147 = vst [vmem:[%s5 + $0x80] sm:$0xf] %v2019
  %2148 = vst [vmem:[%s5 + $0x84] sm:$0xf] %v2020
  %2149 = vst [vmem:[%s5 + $0x88] sm:$0xf] %v2021
  %2150 = vst [vmem:[%s5 + $0x8c] sm:$0xf] %v2022
  %2151 = vst [vmem:[%s5 + $0x90] sm:$0xf] %v2023
  %2152 = vst [vmem:[%s5 + $0x94] sm:$0xf] %v2024
  %2153 = vst [vmem:[%s5 + $0x98] sm:$0xf] %v2025
  %2154 = vst [vmem:[%s5 + $0x9c] sm:$0xf] %v2026
  %2155 = vst [vmem:[%s5 + $0xa0] sm:$0xf] %v2027
  %2156 = vst [vmem:[%s5 + $0xa4] sm:$0xf] %v2028
  %2157 = vst [vmem:[%s5 + $0xa8] sm:$0xf] %v2029
  %2158 = vst [vmem:[%s5 + $0xac] sm:$0xf] %v2030
  %2159 = vst [vmem:[%s5 + $0xb0] sm:$0xf] %v2031
  %2160 = vst [vmem:[%s5 + $0xb4] sm:$0xf] %v2032
  %2161 = vst [vmem:[%s5 + $0xb8] sm:$0xf] %v2033
  %2162 = vst [vmem:[%s5 + $0xbc] sm:$0xf] %v2034
  %2163 = vst [vmem:[%s5 + $0xc0] sm:$0xf] %v2035
  %2164 = vst [vmem:[%s5 + $0xc4] sm:$0xf] %v2036
  %2165 = vst [vmem:[%s5 + $0xc8] sm:$0xf] %v2037
  %2166 = vst [vmem:[%s5 + $0xcc] sm:$0xf] %v2038
  %2167 = vst [vmem:[%s5 + $0xd0] sm:$0xf] %v2039
  %2168 = vst [vmem:[%s5 + $0xd4] sm:$0xf] %v2040
  %2169 = vst [vmem:[%s5 + $0xd8] sm:$0xf] %v2041
  %2170 = vst [vmem:[%s5 + $0xdc] sm:$0xf] %v2042
  %2171 = vst [vmem:[%s5 + $0xe0] sm:$0xf] %v2043
  %2172 = vst [vmem:[%s5 + $0xe4] sm:$0xf] %v2044
  %2173 = vst [vmem:[%s5 + $0xe8] sm:$0xf] %v2045
  %2174 = vst [vmem:[%s5 + $0xec] sm:$0xf] %v2046
  %2175 = vst [vmem:[%s5 + $0xf0] sm:$0xf] %v2047
  %2176 = vst [vmem:[%s5 + $0xf4] sm:$0xf] %v2048
  %2177 = vst [vmem:[%s5 + $0xf8] sm:$0xf] %v2049
  %2178 = vst [vmem:[%s5 + $0xfc] sm:$0xf] %v2050
  // Predicated region
  $region14: #{inception_forward.4} parent=0 // pred_check
    _
  $region15: #{inception_forward.4} parent=0 // pred_check_branch
    %2180 = sbr.rel (0) target = $region17
  $region16: #{inception_forward.4} parent=0 // pred_region
    _
  $region17: #{inception_forward.4} parent=0 // pred_fallthru
    _
  // Predicated region
  $region18: #{inception_forward.4} parent=0 // pred_check
    _
  $region19: #{inception_forward.4} parent=0 // pred_check_branch
    %2182 = sbr.rel (0) target = $region21
  $region20: #{inception_forward.4} parent=0 // pred_region
    _
  $region21: #{inception_forward.4} parent=0 // pred_fallthru
    _
  // Predicated region
  $region22: #{inception_forward.4} parent=0 // pred_check
    _
  $region23: #{inception_forward.4} parent=0 // pred_check_branch
    %2184 = sbr.rel (0) target = $region25
  $region24: #{inception_forward.4} parent=0 // pred_region
    _
  $region25: #{inception_forward.4} parent=0 // pred_fallthru
    _
  // Predicated region
  $region26: #{inception_forward.4} parent=0 // pred_check
    _
  $region27: #{inception_forward.4} parent=0 // pred_check_branch
    %2186 = sbr.rel (0) target = $region29
  $region28: #{inception_forward.4} parent=0 // pred_region
    _
  $region29: #{inception_forward.4} parent=0 // pred_fallthru
    _
  // Predicated region
  $region30: #{inception_forward.4} parent=0 // pred_check
    _
  $region31: #{inception_forward.4} parent=0 // pred_check_branch
    %2188 = sbr.rel (0) target = $region33
  $region32: #{inception_forward.4} parent=0 // pred_region
    _
  $region33: #{inception_forward.4} parent=0 // pred_fallthru
    _
  // Predicated region
  $region34: #{inception_forward.4} parent=0 // pred_check
    _
  $region35: #{inception_forward.4} parent=0 // pred_check_branch
    %2190 = sbr.rel (0) target = $region37
  $region36: #{inception_forward.4} parent=0 // pred_region
    _
  $region37: #{inception_forward.4} parent=0 // pred_fallthru
    _

// kernel: inception_forward.5
$region0: #{inception_forward.5}
  #allocation0 [shape = 'u32[]', space=smem, size = 0x4, offset = 0x4, fixed_abs, tag = 'smem constant byte address 0x4 - core index']
  #allocation1 [shape = 'u32[144,128]{1,0:T(1,128)}', space=vmem, size = 0x12000, scoped, tag = 'internal scratch']
  #allocation2 [shape = 'bf16[18,18,128]{2,1,0:T(8,128)(2,1)}', space=vmem, size = 0x1b000, scoped, tag = 'scratch operand']
  #allocation3 [shape = 'bf16[8,16,1152]{2,1,0:T(16,128)(2,1)}', space=vmem, size = 0x48000, scoped, tag = 'scratch operand']
  %s0 = inlined_call_operand.vmem [shape: bf16[2,16,16,128], index: 0, kind: input, shape index: {}]
  %s1 = inlined_call_operand.vmem [shape: bf16[1152,16], index: 1, kind: input, shape index: {}]
  %s2 = inlined_call_operand.vmem [shape: f32[1,16], index: 2, kind: input, shape index: {}]
  %s3 = inlined_call_operand.vmem [shape: bf16[2,256,16], index: 3, kind: output, shape index: {}]
  %s4 = sld [smem:[#allocation0]]
  $region49: #{inception_forward.5} parent=0
    _
  %s6 = ssub.s32 1, %s4
  %s7 = scalar_select 0, %s6, %s4
  loop: start=0, step=1, limit=6
  $region2: #{inception_forward.5} parent=0 // loop_pre_header
    _
  $region3: #{inception_forward.5} parent=0 // loop_header
    %s9 = sphi 0, %s13
    %p10 = scmp.ge.s32.totalorder %s9, 6
    %s16 = sphi 0, %s28
    %s17 = sphi 0, %s24
    %s18 = sphi 0, %s16
    %s19 = sphi 0, %s17
    %s20 = sphi 0, %s18
    %s21 = sphi 0, %s19
    %s31 = sphi 0, %s33
    %s34 = sphi 0, %s31
    %s35 = sphi 0, %s34
    %s51 = sphi 0, %s35
    %s55 = sphi 0, %s55
    %s57 = sphi 0, %s55
    %s58 = sphi 0, %s57
    %s72 = sphi 0, %s58
    %s76 = sphi 0, %s76
    %s78 = sphi 0, %s76
    %s79 = sphi 0, %s78
    %s93 = sphi 0, %s79
    %s101 = sphi 0, %s103
    %s104 = sphi 0, %s101
    %s105 = sphi 0, %s104
    %s121 = sphi 0, %s105
  $region4: #{inception_forward.5} parent=0 // loop_header_branch
    %12 = sbr.rel (%p10) target = $region8
  $region5: #{inception_forward.5} parent=0 // loop_body
    %s14 = ssub.s32 %s9, 1
    %s15 = ssub.s32 %s9, 2
    %s22 = sadd.s32 1, %s17
    %p23 = scmp.ge.s32.totalorder %s22, 2
    %s24 = scalar_select %p23, 0, %s22
    %s25 = sadd.s32 1, %s16
    %s26 = scalar_select %p23, %s25, %s16
    %p27 = scmp.ge.s32.totalorder %s26, 2
    %s28 = scalar_select %p27, 0, %s26
    %s29 = ssub.s32 %s16, %s28
    %p30 = scmp.eq.s32.totalorder %s29, 0
    %s32 = sadd.s32 %s31, 1
    %s33 = scalar_select %p30, %s31, %s32
    %p36 = pneg %p30
    %p37 = scmp.eq.s32.totalorder %s9, 3
    %p38 = por %p36, %p37
    %p39 = scmp.ne.s32.totalorder %s31, %s34
    %p40 = scmp.eq.s32.totalorder %s9, 0
    %p41 = por %p39, %p40
    %p42 = scmp.ne.s32.totalorder %s31, %s34
    %p43 = scmp.eq.s32.totalorder %s14, 3
    %p44 = por %p42, %p43
    %p45 = scmp.ne.s32.totalorder %s34, %s35
    %p46 = scmp.eq.s32.totalorder %s14, 0
    %p47 = por %p45, %p46
    %p48 = scmp.ne.s32.totalorder %s34, %s35
    %p49 = scmp.eq.s32.totalorder %s15, 3
    %p50 = por %p48, %p49
    %p52 = scmp.ne.s32.totalorder %s35, %s51
    %p53 = scmp.eq.s32.totalorder %s15, 0
    %p54 = por %p52, %p53
    %s56 = sadd.s32 %s55, 1
    %p59 = scmp.eq.s32.totalorder %s9, 3
    %p60 = scmp.ne.s32.totalorder %s55, %s57
    %p61 = scmp.eq.s32.totalorder %s9, 0
    %p62 = por %p60, %p61
    %p63 = scmp.ne.s32.totalorder %s55, %s57
    %p64 = scmp.eq.s32.totalorder %s14, 3
    %p65 = por %p63, %p64
    %p66 = scmp.ne.s32.totalorder %s57, %s58
    %p67 = scmp.eq.s32.totalorder %s14, 0
    %p68 = por %p66, %p67
    %p69 = scmp.ne.s32.totalorder %s57, %s58
    %p70 = scmp.eq.s32.totalorder %s15, 3
    %p71 = por %p69, %p70
    %p73 = scmp.ne.s32.totalorder %s58, %s72
    %p74 = scmp.eq.s32.totalorder %s15, 0
    %p75 = por %p73, %p74
    %s77 = sadd.s32 %s76, 1
    %p80 = scmp.eq.s32.totalorder %s9, 3
    %p81 = scmp.ne.s32.totalorder %s76, %s78
    %p82 = scmp.eq.s32.totalorder %s9, 0
    %p83 = por %p81, %p82
    %p84 = scmp.ne.s32.totalorder %s76, %s78
    %p85 = scmp.eq.s32.totalorder %s14, 3
    %p86 = por %p84, %p85
    %p87 = scmp.ne.s32.totalorder %s78, %s79
    %p88 = scmp.eq.s32.totalorder %s14, 0
    %p89 = por %p87, %p88
    %p90 = scmp.ne.s32.totalorder %s78, %s79
    %p91 = scmp.eq.s32.totalorder %s15, 3
    %p92 = por %p90, %p91
    %p94 = scmp.ne.s32.totalorder %s79, %s93
    %p95 = scmp.eq.s32.totalorder %s15, 0
    %p96 = por %p94, %p95
    %s97 = ssub.s32 %s16, %s28
    %s98 = ssub.s32 %s17, %s24
    %s99 = sor.u32 %s97, %s98
    %p100 = scmp.eq.s32.totalorder %s99, 0
    %s102 = sadd.s32 %s101, 1
    %s103 = scalar_select %p100, %s101, %s102
    %p106 = pneg %p100
    %p107 = scmp.eq.s32.totalorder %s9, 3
    %p108 = por %p106, %p107
    %p109 = scmp.ne.s32.totalorder %s101, %s104
    %p110 = scmp.eq.s32.totalorder %s9, 0
    %p111 = por %p109, %p110
    %p112 = scmp.ne.s32.totalorder %s101, %s104
    %p113 = scmp.eq.s32.totalorder %s14, 3
    %p114 = por %p112, %p113
    %p115 = scmp.ne.s32.totalorder %s104, %s105
    %p116 = scmp.eq.s32.totalorder %s14, 0
    %p117 = por %p115, %p116
    %p118 = scmp.ne.s32.totalorder %s104, %s105
    %p119 = scmp.eq.s32.totalorder %s15, 3
    %p120 = por %p118, %p119
    %p122 = scmp.ne.s32.totalorder %s105, %s121
    %p123 = scmp.eq.s32.totalorder %s15, 0
    %p124 = por %p122, %p123
    %p125 = scmp.le.s32.totalorder 1, %s9
    %p126 = scmp.lt.s32.totalorder %s9, 5
    %p127 = pnand %p125, %p126
    %p128 = pneg %p127
    // Predicated region
    $region9: #{inception_forward.5} parent=5 // pred_check
      _
    $region10: #{inception_forward.5} parent=5 // pred_check_branch
      %130 = sbr.rel (%p127) target = $region12
    $region11: #{inception_forward.5} parent=5 // pred_region
      %s131 = ssub.s32 %s9, 1
      // Predicated region
      $region13: #{inception_forward.5} parent=11 // pred_check
        %p132 = pneg %p68
      $region14: #{inception_forward.5} parent=11 // pred_check_branch
        %134 = sbr.rel (%p132) target = $region16
      $region15: #{inception_forward.5} parent=11 // pred_region
        _
      $region16: #{inception_forward.5} parent=11 // pred_fallthru
        _
      // Predicated region
      $region17: #{inception_forward.5} parent=11 // pred_check
        %p135 = pneg %p89
      $region18: #{inception_forward.5} parent=11 // pred_check_branch
        %137 = sbr.rel (%p135) target = $region20
      $region19: #{inception_forward.5} parent=11 // pred_region
        _
      $region20: #{inception_forward.5} parent=11 // pred_fallthru
        _
    $region12: #{inception_forward.5} parent=5 // pred_fallthru
      _
    %p138 = scmp.lt.s32.totalorder %s9, 4
    // Predicated region
    $region21: #{inception_forward.5} parent=5 // pred_check
      %p139 = pneg %p138
    $region22: #{inception_forward.5} parent=5 // pred_check_branch
      %141 = sbr.rel (%p139) target = $region24
    $region23: #{inception_forward.5} parent=5 // pred_region
      // Predicated region
      $region25: #{inception_forward.5} parent=23 // pred_check
        %p142 = pneg %p41
      $region26: #{inception_forward.5} parent=23 // pred_check_branch
        %144 = sbr.rel (%p142) target = $region28
      $region27: #{inception_forward.5} parent=23 // pred_region
        %p145 = scmp.lt.s32.totalorder %s16, 1
        %s146 = scalar_select %p145, %s16, 1
        %s147 = smul.addr %s146, 32
        %s148 = smul.addr %s147, 4
        %s149 = scalar_lea.vmem %s0, %s148
      $region28: #{inception_forward.5} parent=23 // pred_fallthru
        _
    $region24: #{inception_forward.5} parent=5 // pred_fallthru
      _
    %p150 = scmp.le.s32.totalorder 1, %s9
    %p151 = scmp.lt.s32.totalorder %s9, 5
    %p152 = pnand %p150, %p151
    %p153 = pneg %p152
    // Predicated region
    $region29: #{inception_forward.5} parent=5 // pred_check
      _
    $region30: #{inception_forward.5} parent=5 // pred_check_branch
      %155 = sbr.rel (%p152) target = $region32
    $region31: #{inception_forward.5} parent=5 // pred_region
      %s156 = ssub.s32 %s9, 1
      %p157 = scmp.lt.s32.totalorder %s18, 1
      %s158 = scalar_select %p157, %s18, 1
      %s159 = smul.addr %s158, 32
      %s160 = smul.addr %s159, 4
      %s161 = scalar_lea.vmem %s0, %s160
      %p162 = pneg %p47
      %p163 = pneg %p44
      %p164 = pneg %p68
      %p165 = pneg %p65
      %p166 = pneg %p89
      %p167 = pneg %p86
      %p168 = pneg %p117
      %p169 = pneg %p114
      %s170 = smul.u32 16, %s19
      %p171 = scmp.lt.s32.totalorder %s18, 1
      %s172 = scalar_select %p171, %s18, 1
      %p173 = scmp.lt.s32.totalorder %s170, 31
      %s174 = scalar_select %p173, %s170, 31
      %s175 = smul.addr %s172, 32
      %s176 = sadd.s32 %s174, %s175
      %s177 = smul.addr %s176, 4
      %s178 = scalar_lea.vmem %s3, %s177
      %p179 = scmp.lt.s32.totalorder %s18, 1
      %s180 = scalar_select %p179, %s18, 1
      %s181 = smul.addr %s180, 32
      %s182 = smul.addr %s181, 4
      %s183 = scalar_lea.vmem %s0, %s182
      %s184 = smul.u32 16, %s19
      %p185 = scmp.lt.s32.totalorder %s18, 1
      %s186 = scalar_select %p185, %s18, 1
      %p187 = scmp.lt.s32.totalorder %s184, 31
      %s188 = scalar_select %p187, %s184, 31
      %s189 = smul.addr %s186, 32
      %s190 = sadd.s32 %s188, %s189
      %s191 = smul.addr %s190, 4
      %s192 = scalar_lea.vmem %s3, %s191
      %s193 = smul.u32 16, %s19
      %p195 = scmp.eq.s32.totalorder %s19, 0
      // Predicated region
      $region33: #{inception_forward.5} parent=31 // pred_check
        %p196 = pneg %p195
      $region34: #{inception_forward.5} parent=31 // pred_check_branch
        %198 = sbr.rel (%p196) target = $region36
      $region35: #{inception_forward.5} parent=31 // pred_region
        %199 = vst [vmem:[#allocation2] sm:$0xf] 0
        %200 = vst [vmem:[#allocation2 + $0x4] sm:$0xf] 0
        %201 = vst [vmem:[#allocation2 + $0x8] sm:$0x1] 0
        %202 = vst [vmem:[#allocation2 + $0xc] sm:$0xf] 0
        %203 = vst [vmem:[#allocation2 + $0x10] sm:$0xf] 0
        %204 = vst [vmem:[#allocation2 + $0x14] sm:$0x1] 0
        %205 = vst [vmem:[#allocation2 + $0x18] sm:$0xf] 0
        %206 = vst [vmem:[#allocation2 + $0x1c] sm:$0xf] 0
        %207 = vst [vmem:[#allocation2 + $0x20] sm:$0x1] 0
        %208 = vst [vmem:[#allocation2 + $0x24] sm:$0xf] 0
        %209 = vst [vmem:[#allocation2 + $0x28] sm:$0xf] 0
        %210 = vst [vmem:[#allocation2 + $0x2c] sm:$0x1] 0
        %211 = vst [vmem:[#allocation2 + $0x30] sm:$0xf] 0
        %212 = vst [vmem:[#allocation2 + $0x34] sm:$0xf] 0
        %213 = vst [vmem:[#allocation2 + $0x38] sm:$0x1] 0
        %214 = vst [vmem:[#allocation2 + $0x3c] sm:$0xf] 0
        %215 = vst [vmem:[#allocation2 + $0x40] sm:$0xf] 0
        %216 = vst [vmem:[#allocation2 + $0x44] sm:$0x1] 0
        %217 = vst [vmem:[#allocation2 + $0x48] sm:$0xf] 0
        %218 = vst [vmem:[#allocation2 + $0x4c] sm:$0xf] 0
        %219 = vst [vmem:[#allocation2 + $0x50] sm:$0x1] 0
        %220 = vst [vmem:[#allocation2 + $0x54] sm:$0xf] 0
        %221 = vst [vmem:[#allocation2 + $0x58] sm:$0xf] 0
        %222 = vst [vmem:[#allocation2 + $0x5c] sm:$0x1] 0
        %223 = vst [vmem:[#allocation2 + $0x60] sm:$0xf] 0
        %224 = vst [vmem:[#allocation2 + $0x64] sm:$0xf] 0
        %225 = vst [vmem:[#allocation2 + $0x68] sm:$0x1] 0
        %226 = vst [vmem:[#allocation2 + $0x6c] sm:$0xf] 0
        %227 = vst [vmem:[#allocation2 + $0x70] sm:$0xf] 0
        %228 = vst [vmem:[#allocation2 + $0x74] sm:$0x1] 0
        %229 = vst [vmem:[#allocation2 + $0x78] sm:$0xf] 0
        %230 = vst [vmem:[#allocation2 + $0x7c] sm:$0xf] 0
        %231 = vst [vmem:[#allocation2 + $0x80] sm:$0x1] 0
        %232 = vst [vmem:[#allocation2 + $0x84] sm:$0xf] 0
        %233 = vst [vmem:[#allocation2 + $0x88] sm:$0xf] 0
        %234 = vst [vmem:[#allocation2 + $0x8c] sm:$0x1] 0
        %235 = vst [vmem:[#allocation2 + $0x90] sm:$0xf] 0
        %236 = vst [vmem:[#allocation2 + $0x94] sm:$0xf] 0
        %237 = vst [vmem:[#allocation2 + $0x98] sm:$0x1] 0
        %238 = vst [vmem:[#allocation2 + $0x9c] sm:$0xf] 0
        %239 = vst [vmem:[#allocation2 + $0xa0] sm:$0xf] 0
        %240 = vst [vmem:[#allocation2 + $0xa4] sm:$0x1] 0
        %241 = vst [vmem:[#allocation2 + $0xa8] sm:$0xf] 0
        %242 = vst [vmem:[#allocation2 + $0xac] sm:$0xf] 0
        %243 = vst [vmem:[#allocation2 + $0xb0] sm:$0x1] 0
        %244 = vst [vmem:[#allocation2 + $0xb4] sm:$0xf] 0
        %245 = vst [vmem:[#allocation2 + $0xb8] sm:$0xf] 0
        %246 = vst [vmem:[#allocation2 + $0xbc] sm:$0x1] 0
        %247 = vst [vmem:[#allocation2 + $0xc0] sm:$0xf] 0
        %248 = vst [vmem:[#allocation2 + $0xc4] sm:$0xf] 0
        %249 = vst [vmem:[#allocation2 + $0xc8] sm:$0x1] 0
        %250 = vst [vmem:[#allocation2 + $0xcc] sm:$0xf] 0
        %251 = vst [vmem:[#allocation2 + $0xd0] sm:$0xf] 0
        %252 = vst [vmem:[#allocation2 + $0xd4] sm:$0x1] 0
        %v253 = vld [vmem:[%s183] sm:$0xf]
        %v254 = vld [vmem:[%s183 + $0x4] sm:$0xf]
        %v255 = vld [vmem:[%s183 + $0x8] sm:$0xf]
        %v256 = vld [vmem:[%s183 + $0xc] sm:$0xf]
        %v257 = vld [vmem:[%s183 + $0x10] sm:$0xf]
        %v258 = vld [vmem:[%s183 + $0x14] sm:$0xf]
        %v259 = vld [vmem:[%s183 + $0x18] sm:$0xf]
        %v260 = vld [vmem:[%s183 + $0x1c] sm:$0xf]
        %v261 = vld [vmem:[%s183 + $0x20] sm:$0xf]
        %v262 = vld [vmem:[%s183 + $0x24] sm:$0xf]
        %v263 = vld [vmem:[%s183 + $0x28] sm:$0xf]
        %v264 = vld [vmem:[%s183 + $0x2c] sm:$0xf]
        %v265 = vld [vmem:[%s183 + $0x30] sm:$0xf]
        %v266 = vld [vmem:[%s183 + $0x34] sm:$0xf]
        %v267 = vld [vmem:[%s183 + $0x38] sm:$0xf]
        %v268 = vld [vmem:[%s183 + $0x3c] sm:$0xf]
        %v269 = vld [vmem:[%s183 + $0x40] sm:$0xf]
        %v270 = vld [vmem:[%s183 + $0x44] sm:$0xf]
        %v271 = vld [vmem:[%s183 + $0x48] sm:$0xf]
        %v272 = vld [vmem:[%s183 + $0x4c] sm:$0xf]
        %v273 = vld [vmem:[%s183 + $0x50] sm:$0xf]
        %v274 = vld [vmem:[%s183 + $0x54] sm:$0xf]
        %v275 = vld [vmem:[%s183 + $0x58] sm:$0xf]
        %v276 = vld [vmem:[%s183 + $0x5c] sm:$0xf]
        %v277 = vld [vmem:[%s183 + $0x60] sm:$0xf]
        %v278 = vld [vmem:[%s183 + $0x64] sm:$0xf]
        %v279 = vld [vmem:[%s183 + $0x68] sm:$0xf]
        %v280 = vld [vmem:[%s183 + $0x6c] sm:$0xf]
        %v281 = vld [vmem:[%s183 + $0x70] sm:$0xf]
        %v282 = vld [vmem:[%s183 + $0x74] sm:$0xf]
        %v283 = vld [vmem:[%s183 + $0x78] sm:$0xf]
        %v284 = vld [vmem:[%s183 + $0x7c] sm:$0xf]
        %vm285 = vsmask.f32 256
        %vm286 = vsmask.f32 4368
        %vm287 = vmor %vm285, %vm286
        %v289 = vshrl.u32 %v253, 16
        %v291 = vrot.slane %v289, 7
        %v292 = vshll.u32 %v253, 16
        %v294 = vor.u32 %v291, %v292
        %v295 = vrot.slane %v291, 4
        %v297 = vshrl.u32 %v254, 16
        %v299 = vrot.slane %v297, 7
        %v300 = vshll.u32 %v254, 16
        %v302 = vor.u32 %v299, %v300
        %v303 = vsel %vm287, %v295, %v302
        %v304 = vrot.slane %v299, 4
        %v306 = vshrl.u32 %v255, 16
        %v308 = vrot.slane %v306, 7
        %v309 = vshll.u32 %v255, 16
        %v311 = vor.u32 %v308, %v309
        %v312 = vrot.slane %v308, 4
        %v314 = vshrl.u32 %v256, 16
        %v316 = vrot.slane %v314, 7
        %v317 = vshll.u32 %v256, 16
        %v319 = vor.u32 %v316, %v317
        %v320 = vsel %vm287, %v312, %v319
        %v321 = vrot.slane %v316, 4
        %v323 = vshrl.u32 %v257, 16
        %v325 = vrot.slane %v323, 7
        %v326 = vshll.u32 %v257, 16
        %v328 = vor.u32 %v325, %v326
        %v329 = vrot.slane %v325, 4
        %v331 = vshrl.u32 %v258, 16
        %v333 = vrot.slane %v331, 7
        %v334 = vshll.u32 %v258, 16
        %v336 = vor.u32 %v333, %v334
        %v337 = vsel %vm287, %v329, %v336
        %v338 = vrot.slane %v333, 4
        %v340 = vshrl.u32 %v259, 16
        %v342 = vrot.slane %v340, 7
        %v343 = vshll.u32 %v259, 16
        %v345 = vor.u32 %v342, %v343
        %v346 = vrot.slane %v342, 4
        %v348 = vshrl.u32 %v260, 16
        %v350 = vrot.slane %v348, 7
        %v351 = vshll.u32 %v260, 16
        %v353 = vor.u32 %v350, %v351
        %v354 = vsel %vm287, %v346, %v353
        %v355 = vrot.slane %v350, 4
        %v357 = vshrl.u32 %v261, 16
        %v359 = vrot.slane %v357, 7
        %v360 = vshll.u32 %v261, 16
        %v362 = vor.u32 %v359, %v360
        %v363 = vrot.slane %v359, 4
        %v365 = vshrl.u32 %v262, 16
        %v367 = vrot.slane %v365, 7
        %v368 = vshll.u32 %v262, 16
        %v370 = vor.u32 %v367, %v368
        %v371 = vsel %vm287, %v363, %v370
        %v372 = vrot.slane %v367, 4
        %v374 = vshrl.u32 %v263, 16
        %v376 = vrot.slane %v374, 7
        %v377 = vshll.u32 %v263, 16
        %v379 = vor.u32 %v376, %v377
        %v380 = vrot.slane %v376, 4
        %v382 = vshrl.u32 %v264, 16
        %v384 = vrot.slane %v382, 7
        %v385 = vshll.u32 %v264, 16
        %v387 = vor.u32 %v384, %v385
        %v388 = vsel %vm287, %v380, %v387
        %v389 = vrot.slane %v384, 4
        %v391 = vshrl.u32 %v265, 16
        %v393 = vrot.slane %v391, 7
        %v394 = vshll.u32 %v265, 16
        %v396 = vor.u32 %v393, %v394
        %v397 = vrot.slane %v393, 4
        %v399 = vshrl.u32 %v266, 16
        %v401 = vrot.slane %v399, 7
        %v402 = vshll.u32 %v266, 16
        %v404 = vor.u32 %v401, %v402
        %v405 = vsel %vm287, %v397, %v404
        %v406 = vrot.slane %v401, 4
        %v408 = vshrl.u32 %v267, 16
        %v410 = vrot.slane %v408, 7
        %v411 = vshll.u32 %v267, 16
        %v413 = vor.u32 %v410, %v411
        %v414 = vrot.slane %v410, 4
        %v416 = vshrl.u32 %v268, 16
        %v418 = vrot.slane %v416, 7
        %v419 = vshll.u32 %v268, 16
        %v421 = vor.u32 %v418, %v419
        %v422 = vsel %vm287, %v414, %v421
        %v423 = vrot.slane %v418, 4
        %v425 = vshrl.u32 %v269, 16
        %v427 = vrot.slane %v425, 7
        %v428 = vshll.u32 %v269, 16
        %v430 = vor.u32 %v427, %v428
        %v431 = vrot.slane %v427, 4
        %v433 = vshrl.u32 %v270, 16
        %v435 = vrot.slane %v433, 7
        %v436 = vshll.u32 %v270, 16
        %v438 = vor.u32 %v435, %v436
        %v439 = vsel %vm287, %v431, %v438
        %v440 = vrot.slane %v435, 4
        %v442 = vshrl.u32 %v271, 16
        %v444 = vrot.slane %v442, 7
        %v445 = vshll.u32 %v271, 16
        %v447 = vor.u32 %v444, %v445
        %v448 = vrot.slane %v444, 4
        %v450 = vshrl.u32 %v272, 16
        %v452 = vrot.slane %v450, 7
        %v453 = vshll.u32 %v272, 16
        %v455 = vor.u32 %v452, %v453
        %v456 = vsel %vm287, %v448, %v455
        %v457 = vrot.slane %v452, 4
        %v459 = vshrl.u32 %v273, 16
        %v461 = vrot.slane %v459, 7
        %v462 = vshll.u32 %v273, 16
        %v464 = vor.u32 %v461, %v462
        %v465 = vrot.slane %v461, 4
        %v467 = vshrl.u32 %v274, 16
        %v469 = vrot.slane %v467, 7
        %v470 = vshll.u32 %v274, 16
        %v472 = vor.u32 %v469, %v470
        %v473 = vsel %vm287, %v465, %v472
        %v474 = vrot.slane %v469, 4
        %v476 = vshrl.u32 %v275, 16
        %v478 = vrot.slane %v476, 7
        %v479 = vshll.u32 %v275, 16
        %v481 = vor.u32 %v478, %v479
        %v482 = vrot.slane %v478, 4
        %v484 = vshrl.u32 %v276, 16
        %v486 = vrot.slane %v484, 7
        %v487 = vshll.u32 %v276, 16
        %v489 = vor.u32 %v486, %v487
        %v490 = vsel %vm287, %v482, %v489
        %v491 = vrot.slane %v486, 4
        %v493 = vshrl.u32 %v277, 16
        %v495 = vrot.slane %v493, 7
        %v496 = vshll.u32 %v277, 16
        %v498 = vor.u32 %v495, %v496
        %v499 = vrot.slane %v495, 4
        %v501 = vshrl.u32 %v278, 16
        %v503 = vrot.slane %v501, 7
        %v504 = vshll.u32 %v278, 16
        %v506 = vor.u32 %v503, %v504
        %v507 = vsel %vm287, %v499, %v506
        %v508 = vrot.slane %v503, 4
        %v510 = vshrl.u32 %v279, 16
        %v512 = vrot.slane %v510, 7
        %v513 = vshll.u32 %v279, 16
        %v515 = vor.u32 %v512, %v513
        %v516 = vrot.slane %v512, 4
        %v518 = vshrl.u32 %v280, 16
        %v520 = vrot.slane %v518, 7
        %v521 = vshll.u32 %v280, 16
        %v523 = vor.u32 %v520, %v521
        %v524 = vsel %vm287, %v516, %v523
        %v525 = vrot.slane %v520, 4
        %v527 = vshrl.u32 %v281, 16
        %v529 = vrot.slane %v527, 7
        %v530 = vshll.u32 %v281, 16
        %v532 = vor.u32 %v529, %v530
        %v533 = vrot.slane %v529, 4
        %v535 = vshrl.u32 %v282, 16
        %v537 = vrot.slane %v535, 7
        %v538 = vshll.u32 %v282, 16
        %v540 = vor.u32 %v537, %v538
        %v541 = vsel %vm287, %v533, %v540
        %v542 = vrot.slane %v537, 4
        %v544 = vshrl.u32 %v283, 16
        %v546 = vrot.slane %v544, 7
        %v547 = vshll.u32 %v283, 16
        %v549 = vor.u32 %v546, %v547
        %v550 = vrot.slane %v546, 4
        %v552 = vshrl.u32 %v284, 16
        %v554 = vrot.slane %v552, 7
        %v555 = vshll.u32 %v284, 16
        %v557 = vor.u32 %v554, %v555
        %v558 = vsel %vm287, %v550, %v557
        %v559 = vrot.slane %v554, 4
        %s608 = scalar_lea.vmem [#allocation2], 12
        %vm609 = vcmask 1043456
        %vm610 = vsmask.f32 7938
        %vm611 = vmand %vm609, %vm610
        %v612 = vld [vmem:[%s608] sm:$0xf]
        %v613 = vsel %vm611, %v294, %v612
        %614 = vst [vmem:[%s608] sm:$0xf] %v613
        %615 = vst [vmem:[%s608 + $0x4] sm:$0xf] %v303
        %vm616 = vcmask 1040384
        %vm617 = vmand %vm616, %vm285
        %v618 = vld [vmem:[%s608 + $0x8] sm:$0x1]
        %v619 = vsel %vm617, %v304, %v618
        %620 = vst [vmem:[%s608 + $0x8] sm:$0x1] %v619
        %v621 = vld [vmem:[%s608 + $0xc] sm:$0xf]
        %v622 = vsel %vm611, %v311, %v621
        %623 = vst [vmem:[%s608 + $0xc] sm:$0xf] %v622
        %624 = vst [vmem:[%s608 + $0x10] sm:$0xf] %v320
        %v625 = vld [vmem:[%s608 + $0x14] sm:$0x1]
        %v626 = vsel %vm617, %v321, %v625
        %627 = vst [vmem:[%s608 + $0x14] sm:$0x1] %v626
        %v628 = vld [vmem:[%s608 + $0x18] sm:$0xf]
        %v629 = vsel %vm611, %v328, %v628
        %630 = vst [vmem:[%s608 + $0x18] sm:$0xf] %v629
        %631 = vst [vmem:[%s608 + $0x1c] sm:$0xf] %v337
        %v632 = vld [vmem:[%s608 + $0x20] sm:$0x1]
        %v633 = vsel %vm617, %v338, %v632
        %634 = vst [vmem:[%s608 + $0x20] sm:$0x1] %v633
        %v635 = vld [vmem:[%s608 + $0x24] sm:$0xf]
        %v636 = vsel %vm611, %v345, %v635
        %637 = vst [vmem:[%s608 + $0x24] sm:$0xf] %v636
        %638 = vst [vmem:[%s608 + $0x28] sm:$0xf] %v354
        %v639 = vld [vmem:[%s608 + $0x2c] sm:$0x1]
        %v640 = vsel %vm617, %v355, %v639
        %641 = vst [vmem:[%s608 + $0x2c] sm:$0x1] %v640
        %v642 = vld [vmem:[%s608 + $0x30] sm:$0xf]
        %v643 = vsel %vm611, %v362, %v642
        %644 = vst [vmem:[%s608 + $0x30] sm:$0xf] %v643
        %645 = vst [vmem:[%s608 + $0x34] sm:$0xf] %v371
        %v646 = vld [vmem:[%s608 + $0x38] sm:$0x1]
        %v647 = vsel %vm617, %v372, %v646
        %648 = vst [vmem:[%s608 + $0x38] sm:$0x1] %v647
        %v649 = vld [vmem:[%s608 + $0x3c] sm:$0xf]
        %v650 = vsel %vm611, %v379, %v649
        %651 = vst [vmem:[%s608 + $0x3c] sm:$0xf] %v650
        %652 = vst [vmem:[%s608 + $0x40] sm:$0xf] %v388
        %v653 = vld [vmem:[%s608 + $0x44] sm:$0x1]
        %v654 = vsel %vm617, %v389, %v653
        %655 = vst [vmem:[%s608 + $0x44] sm:$0x1] %v654
        %v656 = vld [vmem:[%s608 + $0x48] sm:$0xf]
        %v657 = vsel %vm611, %v396, %v656
        %658 = vst [vmem:[%s608 + $0x48] sm:$0xf] %v657
        %659 = vst [vmem:[%s608 + $0x4c] sm:$0xf] %v405
        %v660 = vld [vmem:[%s608 + $0x50] sm:$0x1]
        %v661 = vsel %vm617, %v406, %v660
        %662 = vst [vmem:[%s608 + $0x50] sm:$0x1] %v661
        %v663 = vld [vmem:[%s608 + $0x54] sm:$0xf]
        %v664 = vsel %vm611, %v413, %v663
        %665 = vst [vmem:[%s608 + $0x54] sm:$0xf] %v664
        %666 = vst [vmem:[%s608 + $0x58] sm:$0xf] %v422
        %v667 = vld [vmem:[%s608 + $0x5c] sm:$0x1]
        %v668 = vsel %vm617, %v423, %v667
        %669 = vst [vmem:[%s608 + $0x5c] sm:$0x1] %v668
        %v670 = vld [vmem:[%s608 + $0x60] sm:$0xf]
        %v671 = vsel %vm611, %v430, %v670
        %672 = vst [vmem:[%s608 + $0x60] sm:$0xf] %v671
        %673 = vst [vmem:[%s608 + $0x64] sm:$0xf] %v439
        %v674 = vld [vmem:[%s608 + $0x68] sm:$0x1]
        %v675 = vsel %vm617, %v440, %v674
        %676 = vst [vmem:[%s608 + $0x68] sm:$0x1] %v675
        %v677 = vld [vmem:[%s608 + $0x6c] sm:$0xf]
        %v678 = vsel %vm611, %v447, %v677
        %679 = vst [vmem:[%s608 + $0x6c] sm:$0xf] %v678
        %680 = vst [vmem:[%s608 + $0x70] sm:$0xf] %v456
        %v681 = vld [vmem:[%s608 + $0x74] sm:$0x1]
        %v682 = vsel %vm617, %v457, %v681
        %683 = vst [vmem:[%s608 + $0x74] sm:$0x1] %v682
        %v684 = vld [vmem:[%s608 + $0x78] sm:$0xf]
        %v685 = vsel %vm611, %v464, %v684
        %686 = vst [vmem:[%s608 + $0x78] sm:$0xf] %v685
        %687 = vst [vmem:[%s608 + $0x7c] sm:$0xf] %v473
        %v688 = vld [vmem:[%s608 + $0x80] sm:$0x1]
        %v689 = vsel %vm617, %v474, %v688
        %690 = vst [vmem:[%s608 + $0x80] sm:$0x1] %v689
        %v691 = vld [vmem:[%s608 + $0x84] sm:$0xf]
        %v692 = vsel %vm611, %v481, %v691
        %693 = vst [vmem:[%s608 + $0x84] sm:$0xf] %v692
        %694 = vst [vmem:[%s608 + $0x88] sm:$0xf] %v490
        %v695 = vld [vmem:[%s608 + $0x8c] sm:$0x1]
        %v696 = vsel %vm617, %v491, %v695
        %697 = vst [vmem:[%s608 + $0x8c] sm:$0x1] %v696
        %v698 = vld [vmem:[%s608 + $0x90] sm:$0xf]
        %v699 = vsel %vm611, %v498, %v698
        %700 = vst [vmem:[%s608 + $0x90] sm:$0xf] %v699
        %701 = vst [vmem:[%s608 + $0x94] sm:$0xf] %v507
        %v702 = vld [vmem:[%s608 + $0x98] sm:$0x1]
        %v703 = vsel %vm617, %v508, %v702
        %704 = vst [vmem:[%s608 + $0x98] sm:$0x1] %v703
        %v705 = vld [vmem:[%s608 + $0x9c] sm:$0xf]
        %v706 = vsel %vm611, %v515, %v705
        %707 = vst [vmem:[%s608 + $0x9c] sm:$0xf] %v706
        %708 = vst [vmem:[%s608 + $0xa0] sm:$0xf] %v524
        %v709 = vld [vmem:[%s608 + $0xa4] sm:$0x1]
        %v710 = vsel %vm617, %v525, %v709
        %711 = vst [vmem:[%s608 + $0xa4] sm:$0x1] %v710
        %v712 = vld [vmem:[%s608 + $0xa8] sm:$0xf]
        %v713 = vsel %vm611, %v532, %v712
        %714 = vst [vmem:[%s608 + $0xa8] sm:$0xf] %v713
        %715 = vst [vmem:[%s608 + $0xac] sm:$0xf] %v541
        %v716 = vld [vmem:[%s608 + $0xb0] sm:$0x1]
        %v717 = vsel %vm617, %v542, %v716
        %718 = vst [vmem:[%s608 + $0xb0] sm:$0x1] %v717
        %v719 = vld [vmem:[%s608 + $0xb4] sm:$0xf]
        %v720 = vsel %vm611, %v549, %v719
        %721 = vst [vmem:[%s608 + $0xb4] sm:$0xf] %v720
        %722 = vst [vmem:[%s608 + $0xb8] sm:$0xf] %v558
        %v723 = vld [vmem:[%s608 + $0xbc] sm:$0x1]
        %v724 = vsel %vm617, %v559, %v723
        %725 = vst [vmem:[%s608 + $0xbc] sm:$0x1] %v724
      $region36: #{inception_forward.5} parent=31 // pred_fallthru
        _
      %s726 = smul.u32 %s19, 8
      %s727 = smul.u32 %s726, 3
      %s728 = smul.addr %s727, 4
      %s729 = scalar_lea.vmem [#allocation2], %s728
      %v730 = vld [vmem:[%s729] sm:$0xf]
      %v731 = vld [vmem:[%s729 + $0x4] sm:$0xf]
      %v732 = vld [vmem:[%s729 + $0x8] sm:$0x1]
      %v733 = vld [vmem:[%s729 + $0xc] sm:$0xf]
      %v734 = vld [vmem:[%s729 + $0x10] sm:$0xf]
      %v735 = vld [vmem:[%s729 + $0x14] sm:$0x1]
      %v736 = vld [vmem:[%s729 + $0x18] sm:$0xf]
      %v737 = vld [vmem:[%s729 + $0x1c] sm:$0xf]
      %v738 = vld [vmem:[%s729 + $0x20] sm:$0x1]
      %v739 = vld [vmem:[%s729 + $0x24] sm:$0xf]
      %v740 = vld [vmem:[%s729 + $0x28] sm:$0xf]
      %v741 = vld [vmem:[%s729 + $0x2c] sm:$0x1]
      %v742 = vld [vmem:[%s729 + $0x30] sm:$0xf]
      %v743 = vld [vmem:[%s729 + $0x34] sm:$0xf]
      %v744 = vld [vmem:[%s729 + $0x38] sm:$0x1]
      %v745 = vld [vmem:[%s729 + $0x3c] sm:$0xf]
      %v746 = vld [vmem:[%s729 + $0x40] sm:$0xf]
      %v747 = vld [vmem:[%s729 + $0x44] sm:$0x1]
      %v748 = vld [vmem:[%s729 + $0x48] sm:$0xf]
      %v749 = vld [vmem:[%s729 + $0x4c] sm:$0xf]
      %v750 = vld [vmem:[%s729 + $0x50] sm:$0x1]
      %v751 = vld [vmem:[%s729 + $0x54] sm:$0xf]
      %v752 = vld [vmem:[%s729 + $0x58] sm:$0xf]
      %v753 = vld [vmem:[%s729 + $0x5c] sm:$0x1]
      %v770 = vunpack.c.l.b16 %v730
      %v771 = vunpack.c.l.b16 %v731
      %v772 = vunpack.c.l.b16 %v733
      %v773 = vunpack.c.l.b16 %v734
      %v774 = vunpack.c.l.b16 %v736
      %v775 = vunpack.c.l.b16 %v737
      %v776 = vunpack.c.l.b16 %v739
      %v777 = vunpack.c.l.b16 %v740
      %v778 = vunpack.c.l.b16 %v742
      %v779 = vunpack.c.l.b16 %v743
      %v780 = vunpack.c.l.b16 %v745
      %v781 = vunpack.c.l.b16 %v746
      %v782 = vunpack.c.l.b16 %v748
      %v783 = vunpack.c.l.b16 %v749
      %v784 = vunpack.c.l.b16 %v751
      %v785 = vunpack.c.l.b16 %v752
      %v786 = vpack.c.b16 %v771, %v770
      %v787 = vpack.c.b16 %v773, %v772
      %v788 = vpack.c.b16 %v775, %v774
      %v789 = vpack.c.b16 %v777, %v776
      %v790 = vpack.c.b16 %v779, %v778
      %v791 = vpack.c.b16 %v781, %v780
      %v792 = vpack.c.b16 %v783, %v782
      %v793 = vpack.c.b16 %v785, %v784
      %802 = vst [vmem:[#allocation3] sm:$0xff] %v786
      %803 = vst [vmem:[#allocation3 + $0x48] sm:$0xff] %v787
      %804 = vst [vmem:[#allocation3 + $0x90] sm:$0xff] %v788
      %805 = vst [vmem:[#allocation3 + $0xd8] sm:$0xff] %v789
      %806 = vst [vmem:[#allocation3 + $0x120] sm:$0xff] %v790
      %807 = vst [vmem:[#allocation3 + $0x168] sm:$0xff] %v791
      %808 = vst [vmem:[#allocation3 + $0x1b0] sm:$0xff] %v792
      %809 = vst [vmem:[#allocation3 + $0x1f8] sm:$0xff] %v793
      %v818 = vunpack.c.l.b16 %v732
      %v819 = vunpack.c.l.b16 %v735
      %v820 = vunpack.c.l.b16 %v738
      %v821 = vunpack.c.l.b16 %v741
      %v822 = vunpack.c.l.b16 %v744
      %v823 = vunpack.c.l.b16 %v747
      %v824 = vunpack.c.l.b16 %v750
      %v825 = vunpack.c.l.b16 %v753
      %v826 = vpack.c.b16 %v818, %v818
      %v827 = vpack.c.b16 %v819, %v819
      %v828 = vpack.c.b16 %v820, %v820
      %v829 = vpack.c.b16 %v821, %v821
      %v830 = vpack.c.b16 %v822, %v822
      %v831 = vpack.c.b16 %v823, %v823
      %v832 = vpack.c.b16 %v824, %v824
      %v833 = vpack.c.b16 %v825, %v825
      %vm834 = vsmask.f32 7424
      %v836 = vshrl.u32 %v786, 16
      %v838 = vshll.u32 %v786, 16
      %v840 = vrot.slane %v838, 1
      %v841 = vor.u32 %v836, %v840
      %v843 = vshll.u32 %v826, 16
      %v845 = vrot.slane %v843, 1
      %v846 = vsel %vm834, %v841, %v845
      %v848 = vshrl.u32 %v787, 16
      %v850 = vshll.u32 %v787, 16
      %v852 = vrot.slane %v850, 1
      %v853 = vor.u32 %v848, %v852
      %v855 = vshll.u32 %v827, 16
      %v857 = vrot.slane %v855, 1
      %v858 = vsel %vm834, %v853, %v857
      %v860 = vshrl.u32 %v788, 16
      %v862 = vshll.u32 %v788, 16
      %v864 = vrot.slane %v862, 1
      %v865 = vor.u32 %v860, %v864
      %v867 = vshll.u32 %v828, 16
      %v869 = vrot.slane %v867, 1
      %v870 = vsel %vm834, %v865, %v869
      %v872 = vshrl.u32 %v789, 16
      %v874 = vshll.u32 %v789, 16
      %v876 = vrot.slane %v874, 1
      %v877 = vor.u32 %v872, %v876
      %v879 = vshll.u32 %v829, 16
      %v881 = vrot.slane %v879, 1
      %v882 = vsel %vm834, %v877, %v881
      %v884 = vshrl.u32 %v790, 16
      %v886 = vshll.u32 %v790, 16
      %v888 = vrot.slane %v886, 1
      %v889 = vor.u32 %v884, %v888
      %v891 = vshll.u32 %v830, 16
      %v893 = vrot.slane %v891, 1
      %v894 = vsel %vm834, %v889, %v893
      %v896 = vshrl.u32 %v791, 16
      %v898 = vshll.u32 %v791, 16
      %v900 = vrot.slane %v898, 1
      %v901 = vor.u32 %v896, %v900
      %v903 = vshll.u32 %v831, 16
      %v905 = vrot.slane %v903, 1
      %v906 = vsel %vm834, %v901, %v905
      %v908 = vshrl.u32 %v792, 16
      %v910 = vshll.u32 %v792, 16
      %v912 = vrot.slane %v910, 1
      %v913 = vor.u32 %v908, %v912
      %v915 = vshll.u32 %v832, 16
      %v917 = vrot.slane %v915, 1
      %v918 = vsel %vm834, %v913, %v917
      %v920 = vshrl.u32 %v793, 16
      %v922 = vshll.u32 %v793, 16
      %v924 = vrot.slane %v922, 1
      %v925 = vor.u32 %v920, %v924
      %v927 = vshll.u32 %v833, 16
      %v929 = vrot.slane %v927, 1
      %v930 = vsel %vm834, %v925, %v929
      %939 = vst [vmem:[#allocation3 + $0x8] sm:$0xff] %v846
      %940 = vst [vmem:[#allocation3 + $0x50] sm:$0xff] %v858
      %941 = vst [vmem:[#allocation3 + $0x98] sm:$0xff] %v870
      %942 = vst [vmem:[#allocation3 + $0xe0] sm:$0xff] %v882
      %943 = vst [vmem:[#allocation3 + $0x128] sm:$0xff] %v894
      %944 = vst [vmem:[#allocation3 + $0x170] sm:$0xff] %v906
      %945 = vst [vmem:[#allocation3 + $0x1b8] sm:$0xff] %v918
      %946 = vst [vmem:[#allocation3 + $0x200] sm:$0xff] %v930
      %vm947 = vcmask 1046528
      %v948 = vrot.slane %v786, 1
      %v949 = vrot.slane %v826, 1
      %v950 = vsel %vm947, %v948, %v949
      %v951 = vrot.slane %v787, 1
      %v952 = vrot.slane %v827, 1
      %v953 = vsel %vm947, %v951, %v952
      %v954 = vrot.slane %v788, 1
      %v955 = vrot.slane %v828, 1
      %v956 = vsel %vm947, %v954, %v955
      %v957 = vrot.slane %v789, 1
      %v958 = vrot.slane %v829, 1
      %v959 = vsel %vm947, %v957, %v958
      %v960 = vrot.slane %v790, 1
      %v961 = vrot.slane %v830, 1
      %v962 = vsel %vm947, %v960, %v961
      %v963 = vrot.slane %v791, 1
      %v964 = vrot.slane %v831, 1
      %v965 = vsel %vm947, %v963, %v964
      %v966 = vrot.slane %v792, 1
      %v967 = vrot.slane %v832, 1
      %v968 = vsel %vm947, %v966, %v967
      %v969 = vrot.slane %v793, 1
      %v970 = vrot.slane %v833, 1
      %v971 = vsel %vm947, %v969, %v970
      %980 = vst [vmem:[#allocation3 + $0x10] sm:$0xff] %v950
      %981 = vst [vmem:[#allocation3 + $0x58] sm:$0xff] %v953
      %982 = vst [vmem:[#allocation3 + $0xa0] sm:$0xff] %v956
      %983 = vst [vmem:[#allocation3 + $0xe8] sm:$0xff] %v959
      %984 = vst [vmem:[#allocation3 + $0x130] sm:$0xff] %v962
      %985 = vst [vmem:[#allocation3 + $0x178] sm:$0xff] %v965
      %986 = vst [vmem:[#allocation3 + $0x1c0] sm:$0xff] %v968
      %987 = vst [vmem:[#allocation3 + $0x208] sm:$0xff] %v971
      %s988 = sadd.s32 %s726, 1
      %s989 = smul.u32 %s988, 3
      %s990 = smul.addr %s989, 4
      %s991 = scalar_lea.vmem [#allocation2], %s990
      %v992 = vld [vmem:[%s991] sm:$0xf]
      %v993 = vld [vmem:[%s991 + $0x4] sm:$0xf]
      %v994 = vld [vmem:[%s991 + $0x8] sm:$0x1]
      %v995 = vld [vmem:[%s991 + $0xc] sm:$0xf]
      %v996 = vld [vmem:[%s991 + $0x10] sm:$0xf]
      %v997 = vld [vmem:[%s991 + $0x14] sm:$0x1]
      %v998 = vld [vmem:[%s991 + $0x18] sm:$0xf]
      %v999 = vld [vmem:[%s991 + $0x1c] sm:$0xf]
      %v1000 = vld [vmem:[%s991 + $0x20] sm:$0x1]
      %v1001 = vld [vmem:[%s991 + $0x24] sm:$0xf]
      %v1002 = vld [vmem:[%s991 + $0x28] sm:$0xf]
      %v1003 = vld [vmem:[%s991 + $0x2c] sm:$0x1]
      %v1004 = vld [vmem:[%s991 + $0x30] sm:$0xf]
      %v1005 = vld [vmem:[%s991 + $0x34] sm:$0xf]
      %v1006 = vld [vmem:[%s991 + $0x38] sm:$0x1]
      %v1007 = vld [vmem:[%s991 + $0x3c] sm:$0xf]
      %v1008 = vld [vmem:[%s991 + $0x40] sm:$0xf]
      %v1009 = vld [vmem:[%s991 + $0x44] sm:$0x1]
      %v1010 = vld [vmem:[%s991 + $0x48] sm:$0xf]
      %v1011 = vld [vmem:[%s991 + $0x4c] sm:$0xf]
      %v1012 = vld [vmem:[%s991 + $0x50] sm:$0x1]
      %v1013 = vld [vmem:[%s991 + $0x54] sm:$0xf]
      %v1014 = vld [vmem:[%s991 + $0x58] sm:$0xf]
      %v1015 = vld [vmem:[%s991 + $0x5c] sm:$0x1]
      %v1032 = vunpack.c.l.b16 %v992
      %v1033 = vunpack.c.l.b16 %v993
      %v1034 = vunpack.c.l.b16 %v995
      %v1035 = vunpack.c.l.b16 %v996
      %v1036 = vunpack.c.l.b16 %v998
      %v1037 = vunpack.c.l.b16 %v999
      %v1038 = vunpack.c.l.b16 %v1001
      %v1039 = vunpack.c.l.b16 %v1002
      %v1040 = vunpack.c.l.b16 %v1004
      %v1041 = vunpack.c.l.b16 %v1005
      %v1042 = vunpack.c.l.b16 %v1007
      %v1043 = vunpack.c.l.b16 %v1008
      %v1044 = vunpack.c.l.b16 %v1010
      %v1045 = vunpack.c.l.b16 %v1011
      %v1046 = vunpack.c.l.b16 %v1013
      %v1047 = vunpack.c.l.b16 %v1014
      %v1048 = vpack.c.b16 %v1033, %v1032
      %v1049 = vpack.c.b16 %v1035, %v1034
      %v1050 = vpack.c.b16 %v1037, %v1036
      %v1051 = vpack.c.b16 %v1039, %v1038
      %v1052 = vpack.c.b16 %v1041, %v1040
      %v1053 = vpack.c.b16 %v1043, %v1042
      %v1054 = vpack.c.b16 %v1045, %v1044
      %v1055 = vpack.c.b16 %v1047, %v1046
      %1064 = vst [vmem:[#allocation3 + $0x18] sm:$0xff] %v1048
      %1065 = vst [vmem:[#allocation3 + $0x60] sm:$0xff] %v1049
      %1066 = vst [vmem:[#allocation3 + $0xa8] sm:$0xff] %v1050
      %1067 = vst [vmem:[#allocation3 + $0xf0] sm:$0xff] %v1051
      %1068 = vst [vmem:[#allocation3 + $0x138] sm:$0xff] %v1052
      %1069 = vst [vmem:[#allocation3 + $0x180] sm:$0xff] %v1053
      %1070 = vst [vmem:[#allocation3 + $0x1c8] sm:$0xff] %v1054
      %1071 = vst [vmem:[#allocation3 + $0x210] sm:$0xff] %v1055
      %v1080 = vunpack.c.l.b16 %v994
      %v1081 = vunpack.c.l.b16 %v997
      %v1082 = vunpack.c.l.b16 %v1000
      %v1083 = vunpack.c.l.b16 %v1003
      %v1084 = vunpack.c.l.b16 %v1006
      %v1085 = vunpack.c.l.b16 %v1009
      %v1086 = vunpack.c.l.b16 %v1012
      %v1087 = vunpack.c.l.b16 %v1015
      %v1088 = vpack.c.b16 %v1080, %v1080
      %v1089 = vpack.c.b16 %v1081, %v1081
      %v1090 = vpack.c.b16 %v1082, %v1082
      %v1091 = vpack.c.b16 %v1083, %v1083
      %v1092 = vpack.c.b16 %v1084, %v1084
      %v1093 = vpack.c.b16 %v1085, %v1085
      %v1094 = vpack.c.b16 %v1086, %v1086
      %v1095 = vpack.c.b16 %v1087, %v1087
      %v1097 = vshrl.u32 %v1048, 16
      %v1099 = vshll.u32 %v1048, 16
      %v1101 = vrot.slane %v1099, 1
      %v1102 = vor.u32 %v1097, %v1101
      %v1104 = vshll.u32 %v1088, 16
      %v1106 = vrot.slane %v1104, 1
      %v1107 = vsel %vm834, %v1102, %v1106
      %v1109 = vshrl.u32 %v1049, 16
      %v1111 = vshll.u32 %v1049, 16
      %v1113 = vrot.slane %v1111, 1
      %v1114 = vor.u32 %v1109, %v1113
      %v1116 = vshll.u32 %v1089, 16
      %v1118 = vrot.slane %v1116, 1
      %v1119 = vsel %vm834, %v1114, %v1118
      %v1121 = vshrl.u32 %v1050, 16
      %v1123 = vshll.u32 %v1050, 16
      %v1125 = vrot.slane %v1123, 1
      %v1126 = vor.u32 %v1121, %v1125
      %v1128 = vshll.u32 %v1090, 16
      %v1130 = vrot.slane %v1128, 1
      %v1131 = vsel %vm834, %v1126, %v1130
      %v1133 = vshrl.u32 %v1051, 16
      %v1135 = vshll.u32 %v1051, 16
      %v1137 = vrot.slane %v1135, 1
      %v1138 = vor.u32 %v1133, %v1137
      %v1140 = vshll.u32 %v1091, 16
      %v1142 = vrot.slane %v1140, 1
      %v1143 = vsel %vm834, %v1138, %v1142
      %v1145 = vshrl.u32 %v1052, 16
      %v1147 = vshll.u32 %v1052, 16
      %v1149 = vrot.slane %v1147, 1
      %v1150 = vor.u32 %v1145, %v1149
      %v1152 = vshll.u32 %v1092, 16
      %v1154 = vrot.slane %v1152, 1
      %v1155 = vsel %vm834, %v1150, %v1154
      %v1157 = vshrl.u32 %v1053, 16
      %v1159 = vshll.u32 %v1053, 16
      %v1161 = vrot.slane %v1159, 1
      %v1162 = vor.u32 %v1157, %v1161
      %v1164 = vshll.u32 %v1093, 16
      %v1166 = vrot.slane %v1164, 1
      %v1167 = vsel %vm834, %v1162, %v1166
      %v1169 = vshrl.u32 %v1054, 16
      %v1171 = vshll.u32 %v1054, 16
      %v1173 = vrot.slane %v1171, 1
      %v1174 = vor.u32 %v1169, %v1173
      %v1176 = vshll.u32 %v1094, 16
      %v1178 = vrot.slane %v1176, 1
      %v1179 = vsel %vm834, %v1174, %v1178
      %v1181 = vshrl.u32 %v1055, 16
      %v1183 = vshll.u32 %v1055, 16
      %v1185 = vrot.slane %v1183, 1
      %v1186 = vor.u32 %v1181, %v1185
      %v1188 = vshll.u32 %v1095, 16
      %v1190 = vrot.slane %v1188, 1
      %v1191 = vsel %vm834, %v1186, %v1190
      %1200 = vst [vmem:[#allocation3 + $0x20] sm:$0xff] %v1107
      %1201 = vst [vmem:[#allocation3 + $0x68] sm:$0xff] %v1119
      %1202 = vst [vmem:[#allocation3 + $0xb0] sm:$0xff] %v1131
      %1203 = vst [vmem:[#allocation3 + $0xf8] sm:$0xff] %v1143
      %1204 = vst [vmem:[#allocation3 + $0x140] sm:$0xff] %v1155
      %1205 = vst [vmem:[#allocation3 + $0x188] sm:$0xff] %v1167
      %1206 = vst [vmem:[#allocation3 + $0x1d0] sm:$0xff] %v1179
      %1207 = vst [vmem:[#allocation3 + $0x218] sm:$0xff] %v1191
      %v1208 = vrot.slane %v1048, 1
      %v1209 = vrot.slane %v1088, 1
      %v1210 = vsel %vm947, %v1208, %v1209
      %v1211 = vrot.slane %v1049, 1
      %v1212 = vrot.slane %v1089, 1
      %v1213 = vsel %vm947, %v1211, %v1212
      %v1214 = vrot.slane %v1050, 1
      %v1215 = vrot.slane %v1090, 1
      %v1216 = vsel %vm947, %v1214, %v1215
      %v1217 = vrot.slane %v1051, 1
      %v1218 = vrot.slane %v1091, 1
      %v1219 = vsel %vm947, %v1217, %v1218
      %v1220 = vrot.slane %v1052, 1
      %v1221 = vrot.slane %v1092, 1
      %v1222 = vsel %vm947, %v1220, %v1221
      %v1223 = vrot.slane %v1053, 1
      %v1224 = vrot.slane %v1093, 1
      %v1225 = vsel %vm947, %v1223, %v1224
      %v1226 = vrot.slane %v1054, 1
      %v1227 = vrot.slane %v1094, 1
      %v1228 = vsel %vm947, %v1226, %v1227
      %v1229 = vrot.slane %v1055, 1
      %v1230 = vrot.slane %v1095, 1
      %v1231 = vsel %vm947, %v1229, %v1230
      %1240 = vst [vmem:[#allocation3 + $0x28] sm:$0xff] %v1210
      %1241 = vst [vmem:[#allocation3 + $0x70] sm:$0xff] %v1213
      %1242 = vst [vmem:[#allocation3 + $0xb8] sm:$0xff] %v1216
      %1243 = vst [vmem:[#allocation3 + $0x100] sm:$0xff] %v1219
      %1244 = vst [vmem:[#allocation3 + $0x148] sm:$0xff] %v1222
      %1245 = vst [vmem:[#allocation3 + $0x190] sm:$0xff] %v1225
      %1246 = vst [vmem:[#allocation3 + $0x1d8] sm:$0xff] %v1228
      %1247 = vst [vmem:[#allocation3 + $0x220] sm:$0xff] %v1231
      %s1248 = sadd.s32 %s726, 2
      %s1249 = smul.u32 %s1248, 3
      %s1250 = smul.addr %s1249, 4
      %s1251 = scalar_lea.vmem [#allocation2], %s1250
      %v1252 = vld [vmem:[%s1251] sm:$0xf]
      %v1253 = vld [vmem:[%s1251 + $0x4] sm:$0xf]
      %v1254 = vld [vmem:[%s1251 + $0x8] sm:$0x1]
      %v1255 = vld [vmem:[%s1251 + $0xc] sm:$0xf]
      %v1256 = vld [vmem:[%s1251 + $0x10] sm:$0xf]
      %v1257 = vld [vmem:[%s1251 + $0x14] sm:$0x1]
      %v1258 = vld [vmem:[%s1251 + $0x18] sm:$0xf]
      %v1259 = vld [vmem:[%s1251 + $0x1c] sm:$0xf]
      %v1260 = vld [vmem:[%s1251 + $0x20] sm:$0x1]
      %v1261 = vld [vmem:[%s1251 + $0x24] sm:$0xf]
      %v1262 = vld [vmem:[%s1251 + $0x28] sm:$0xf]
      %v1263 = vld [vmem:[%s1251 + $0x2c] sm:$0x1]
      %v1264 = vld [vmem:[%s1251 + $0x30] sm:$0xf]
      %v1265 = vld [vmem:[%s1251 + $0x34] sm:$0xf]
      %v1266 = vld [vmem:[%s1251 + $0x38] sm:$0x1]
      %v1267 = vld [vmem:[%s1251 + $0x3c] sm:$0xf]
      %v1268 = vld [vmem:[%s1251 + $0x40] sm:$0xf]
      %v1269 = vld [vmem:[%s1251 + $0x44] sm:$0x1]
      %v1270 = vld [vmem:[%s1251 + $0x48] sm:$0xf]
      %v1271 = vld [vmem:[%s1251 + $0x4c] sm:$0xf]
      %v1272 = vld [vmem:[%s1251 + $0x50] sm:$0x1]
      %v1273 = vld [vmem:[%s1251 + $0x54] sm:$0xf]
      %v1274 = vld [vmem:[%s1251 + $0x58] sm:$0xf]
      %v1275 = vld [vmem:[%s1251 + $0x5c] sm:$0x1]
      %v1292 = vunpack.c.l.b16 %v1252
      %v1293 = vunpack.c.l.b16 %v1253
      %v1294 = vunpack.c.l.b16 %v1255
      %v1295 = vunpack.c.l.b16 %v1256
      %v1296 = vunpack.c.l.b16 %v1258
      %v1297 = vunpack.c.l.b16 %v1259
      %v1298 = vunpack.c.l.b16 %v1261
      %v1299 = vunpack.c.l.b16 %v1262
      %v1300 = vunpack.c.l.b16 %v1264
      %v1301 = vunpack.c.l.b16 %v1265
      %v1302 = vunpack.c.l.b16 %v1267
      %v1303 = vunpack.c.l.b16 %v1268
      %v1304 = vunpack.c.l.b16 %v1270
      %v1305 = vunpack.c.l.b16 %v1271
      %v1306 = vunpack.c.l.b16 %v1273
      %v1307 = vunpack.c.l.b16 %v1274
      %v1308 = vpack.c.b16 %v1293, %v1292
      %v1309 = vpack.c.b16 %v1295, %v1294
      %v1310 = vpack.c.b16 %v1297, %v1296
      %v1311 = vpack.c.b16 %v1299, %v1298
      %v1312 = vpack.c.b16 %v1301, %v1300
      %v1313 = vpack.c.b16 %v1303, %v1302
      %v1314 = vpack.c.b16 %v1305, %v1304
      %v1315 = vpack.c.b16 %v1307, %v1306
      %1324 = vst [vmem:[#allocation3 + $0x30] sm:$0xff] %v1308
      %1325 = vst [vmem:[#allocation3 + $0x78] sm:$0xff] %v1309
      %1326 = vst [vmem:[#allocation3 + $0xc0] sm:$0xff] %v1310
      %1327 = vst [vmem:[#allocation3 + $0x108] sm:$0xff] %v1311
      %1328 = vst [vmem:[#allocation3 + $0x150] sm:$0xff] %v1312
      %1329 = vst [vmem:[#allocation3 + $0x198] sm:$0xff] %v1313
      %1330 = vst [vmem:[#allocation3 + $0x1e0] sm:$0xff] %v1314
      %1331 = vst [vmem:[#allocation3 + $0x228] sm:$0xff] %v1315
      %v1340 = vunpack.c.l.b16 %v1254
      %v1341 = vunpack.c.l.b16 %v1257
      %v1342 = vunpack.c.l.b16 %v1260
      %v1343 = vunpack.c.l.b16 %v1263
      %v1344 = vunpack.c.l.b16 %v1266
      %v1345 = vunpack.c.l.b16 %v1269
      %v1346 = vunpack.c.l.b16 %v1272
      %v1347 = vunpack.c.l.b16 %v1275
      %v1348 = vpack.c.b16 %v1340, %v1340
      %v1349 = vpack.c.b16 %v1341, %v1341
      %v1350 = vpack.c.b16 %v1342, %v1342
      %v1351 = vpack.c.b16 %v1343, %v1343
      %v1352 = vpack.c.b16 %v1344, %v1344
      %v1353 = vpack.c.b16 %v1345, %v1345
      %v1354 = vpack.c.b16 %v1346, %v1346
      %v1355 = vpack.c.b16 %v1347, %v1347
      %v1357 = vshrl.u32 %v1308, 16
      %v1359 = vshll.u32 %v1308, 16
      %v1361 = vrot.slane %v1359, 1
      %v1362 = vor.u32 %v1357, %v1361
      %v1364 = vshll.u32 %v1348, 16
      %v1366 = vrot.slane %v1364, 1
      %v1367 = vsel %vm834, %v1362, %v1366
      %v1369 = vshrl.u32 %v1309, 16
      %v1371 = vshll.u32 %v1309, 16
      %v1373 = vrot.slane %v1371, 1
      %v1374 = vor.u32 %v1369, %v1373
      %v1376 = vshll.u32 %v1349, 16
      %v1378 = vrot.slane %v1376, 1
      %v1379 = vsel %vm834, %v1374, %v1378
      %v1381 = vshrl.u32 %v1310, 16
      %v1383 = vshll.u32 %v1310, 16
      %v1385 = vrot.slane %v1383, 1
      %v1386 = vor.u32 %v1381, %v1385
      %v1388 = vshll.u32 %v1350, 16
      %v1390 = vrot.slane %v1388, 1
      %v1391 = vsel %vm834, %v1386, %v1390
      %v1393 = vshrl.u32 %v1311, 16
      %v1395 = vshll.u32 %v1311, 16
      %v1397 = vrot.slane %v1395, 1
      %v1398 = vor.u32 %v1393, %v1397
      %v1400 = vshll.u32 %v1351, 16
      %v1402 = vrot.slane %v1400, 1
      %v1403 = vsel %vm834, %v1398, %v1402
      %v1405 = vshrl.u32 %v1312, 16
      %v1407 = vshll.u32 %v1312, 16
      %v1409 = vrot.slane %v1407, 1
      %v1410 = vor.u32 %v1405, %v1409
      %v1412 = vshll.u32 %v1352, 16
      %v1414 = vrot.slane %v1412, 1
      %v1415 = vsel %vm834, %v1410, %v1414
      %v1417 = vshrl.u32 %v1313, 16
      %v1419 = vshll.u32 %v1313, 16
      %v1421 = vrot.slane %v1419, 1
      %v1422 = vor.u32 %v1417, %v1421
      %v1424 = vshll.u32 %v1353, 16
      %v1426 = vrot.slane %v1424, 1
      %v1427 = vsel %vm834, %v1422, %v1426
      %v1429 = vshrl.u32 %v1314, 16
      %v1431 = vshll.u32 %v1314, 16
      %v1433 = vrot.slane %v1431, 1
      %v1434 = vor.u32 %v1429, %v1433
      %v1436 = vshll.u32 %v1354, 16
      %v1438 = vrot.slane %v1436, 1
      %v1439 = vsel %vm834, %v1434, %v1438
      %v1441 = vshrl.u32 %v1315, 16
      %v1443 = vshll.u32 %v1315, 16
      %v1445 = vrot.slane %v1443, 1
      %v1446 = vor.u32 %v1441, %v1445
      %v1448 = vshll.u32 %v1355, 16
      %v1450 = vrot.slane %v1448, 1
      %v1451 = vsel %vm834, %v1446, %v1450
      %1460 = vst [vmem:[#allocation3 + $0x38] sm:$0xff] %v1367
      %1461 = vst [vmem:[#allocation3 + $0x80] sm:$0xff] %v1379
      %1462 = vst [vmem:[#allocation3 + $0xc8] sm:$0xff] %v1391
      %1463 = vst [vmem:[#allocation3 + $0x110] sm:$0xff] %v1403
      %1464 = vst [vmem:[#allocation3 + $0x158] sm:$0xff] %v1415
      %1465 = vst [vmem:[#allocation3 + $0x1a0] sm:$0xff] %v1427
      %1466 = vst [vmem:[#allocation3 + $0x1e8] sm:$0xff] %v1439
      %1467 = vst [vmem:[#allocation3 + $0x230] sm:$0xff] %v1451
      %v1468 = vrot.slane %v1308, 1
      %v1469 = vrot.slane %v1348, 1
      %v1470 = vsel %vm947, %v1468, %v1469
      %v1471 = vrot.slane %v1309, 1
      %v1472 = vrot.slane %v1349, 1
      %v1473 = vsel %vm947, %v1471, %v1472
      %v1474 = vrot.slane %v1310, 1
      %v1475 = vrot.slane %v1350, 1
      %v1476 = vsel %vm947, %v1474, %v1475
      %v1477 = vrot.slane %v1311, 1
      %v1478 = vrot.slane %v1351, 1
      %v1479 = vsel %vm947, %v1477, %v1478
      %v1480 = vrot.slane %v1312, 1
      %v1481 = vrot.slane %v1352, 1
      %v1482 = vsel %vm947, %v1480, %v1481
      %v1483 = vrot.slane %v1313, 1
      %v1484 = vrot.slane %v1353, 1
      %v1485 = vsel %vm947, %v1483, %v1484
      %v1486 = vrot.slane %v1314, 1
      %v1487 = vrot.slane %v1354, 1
      %v1488 = vsel %vm947, %v1486, %v1487
      %v1489 = vrot.slane %v1315, 1
      %v1490 = vrot.slane %v1355, 1
      %v1491 = vsel %vm947, %v1489, %v1490
      %1500 = vst [vmem:[#allocation3 + $0x40] sm:$0xff] %v1470
      %1501 = vst [vmem:[#allocation3 + $0x88] sm:$0xff] %v1473
      %1502 = vst [vmem:[#allocation3 + $0xd0] sm:$0xff] %v1476
      %1503 = vst [vmem:[#allocation3 + $0x118] sm:$0xff] %v1479
      %1504 = vst [vmem:[#allocation3 + $0x160] sm:$0xff] %v1482
      %1505 = vst [vmem:[#allocation3 + $0x1a8] sm:$0xff] %v1485
      %1506 = vst [vmem:[#allocation3 + $0x1f0] sm:$0xff] %v1488
      %1507 = vst [vmem:[#allocation3 + $0x238] sm:$0xff] %v1491
      %v1508 = vld [vmem:[#allocation3] sm:$0xff]
      %v1509 = vld [vmem:[#allocation3 + $0x8] sm:$0xff]
      %v1510 = vld [vmem:[#allocation3 + $0x10] sm:$0xff]
      %v1511 = vld [vmem:[#allocation3 + $0x18] sm:$0xff]
      %v1512 = vld [vmem:[#allocation3 + $0x20] sm:$0xff]
      %v1513 = vld [vmem:[#allocation3 + $0x28] sm:$0xff]
      %v1514 = vld [vmem:[#allocation3 + $0x30] sm:$0xff]
      %v1515 = vld [vmem:[#allocation3 + $0x38] sm:$0xff]
      %v1516 = vld [vmem:[#allocation3 + $0x40] sm:$0xff]
      %v1517 = vld [vmem:[#allocation3 + $0x48] sm:$0xff]
      %v1518 = vld [vmem:[#allocation3 + $0x50] sm:$0xff]
      %v1519 = vld [vmem:[#allocation3 + $0x58] sm:$0xff]
      %v1520 = vld [vmem:[#allocation3 + $0x60] sm:$0xff]
      %v1521 = vld [vmem:[#allocation3 + $0x68] sm:$0xff]
      %v1522 = vld [vmem:[#allocation3 + $0x70] sm:$0xff]
      %v1523 = vld [vmem:[#allocation3 + $0x78] sm:$0xff]
      %v1524 = vld [vmem:[#allocation3 + $0x80] sm:$0xff]
      %v1525 = vld [vmem:[#allocation3 + $0x88] sm:$0xff]
      %v1526 = vld [vmem:[#allocation3 + $0x90] sm:$0xff]
      %v1527 = vld [vmem:[#allocation3 + $0x98] sm:$0xff]
      %v1528 = vld [vmem:[#allocation3 + $0xa0] sm:$0xff]
      %v1529 = vld [vmem:[#allocation3 + $0xa8] sm:$0xff]
      %v1530 = vld [vmem:[#allocation3 + $0xb0] sm:$0xff]
      %v1531 = vld [vmem:[#allocation3 + $0xb8] sm:$0xff]
      %v1532 = vld [vmem:[#allocation3 + $0xc0] sm:$0xff]
      %v1533 = vld [vmem:[#allocation3 + $0xc8] sm:$0xff]
      %v1534 = vld [vmem:[#allocation3 + $0xd0] sm:$0xff]
      %v1535 = vld [vmem:[#allocation3 + $0xd8] sm:$0xff]
      %v1536 = vld [vmem:[#allocation3 + $0xe0] sm:$0xff]
      %v1537 = vld [vmem:[#allocation3 + $0xe8] sm:$0xff]
      %v1538 = vld [vmem:[#allocation3 + $0xf0] sm:$0xff]
      %v1539 = vld [vmem:[#allocation3 + $0xf8] sm:$0xff]
      %v1540 = vld [vmem:[#allocation3 + $0x100] sm:$0xff]
      %v1541 = vld [vmem:[#allocation3 + $0x108] sm:$0xff]
      %v1542 = vld [vmem:[#allocation3 + $0x110] sm:$0xff]
      %v1543 = vld [vmem:[#allocation3 + $0x118] sm:$0xff]
      %v1544 = vld [vmem:[#allocation3 + $0x120] sm:$0xff]
      %v1545 = vld [vmem:[#allocation3 + $0x128] sm:$0xff]
      %v1546 = vld [vmem:[#allocation3 + $0x130] sm:$0xff]
      %v1547 = vld [vmem:[#allocation3 + $0x138] sm:$0xff]
      %v1548 = vld [vmem:[#allocation3 + $0x140] sm:$0xff]
      %v1549 = vld [vmem:[#allocation3 + $0x148] sm:$0xff]
      %v1550 = vld [vmem:[#allocation3 + $0x150] sm:$0xff]
      %v1551 = vld [vmem:[#allocation3 + $0x158] sm:$0xff]
      %v1552 = vld [vmem:[#allocation3 + $0x160] sm:$0xff]
      %v1553 = vld [vmem:[#allocation3 + $0x168] sm:$0xff]
      %v1554 = vld [vmem:[#allocation3 + $0x170] sm:$0xff]
      %v1555 = vld [vmem:[#allocation3 + $0x178] sm:$0xff]
      %v1556 = vld [vmem:[#allocation3 + $0x180] sm:$0xff]
      %v1557 = vld [vmem:[#allocation3 + $0x188] sm:$0xff]
      %v1558 = vld [vmem:[#allocation3 + $0x190] sm:$0xff]
      %v1559 = vld [vmem:[#allocation3 + $0x198] sm:$0xff]
      %v1560 = vld [vmem:[#allocation3 + $0x1a0] sm:$0xff]
      %v1561 = vld [vmem:[#allocation3 + $0x1a8] sm:$0xff]
      %v1562 = vld [vmem:[#allocation3 + $0x1b0] sm:$0xff]
      %v1563 = vld [vmem:[#allocation3 + $0x1b8] sm:$0xff]
      %v1564 = vld [vmem:[#allocation3 + $0x1c0] sm:$0xff]
      %v1565 = vld [vmem:[#allocation3 + $0x1c8] sm:$0xff]
      %v1566 = vld [vmem:[#allocation3 + $0x1d0] sm:$0xff]
      %v1567 = vld [vmem:[#allocation3 + $0x1d8] sm:$0xff]
      %v1568 = vld [vmem:[#allocation3 + $0x1e0] sm:$0xff]
      %v1569 = vld [vmem:[#allocation3 + $0x1e8] sm:$0xff]
      %v1570 = vld [vmem:[#allocation3 + $0x1f0] sm:$0xff]
      %v1571 = vld [vmem:[#allocation3 + $0x1f8] sm:$0xff]
      %v1572 = vld [vmem:[#allocation3 + $0x200] sm:$0xff]
      %v1573 = vld [vmem:[#allocation3 + $0x208] sm:$0xff]
      %v1574 = vld [vmem:[#allocation3 + $0x210] sm:$0xff]
      %v1575 = vld [vmem:[#allocation3 + $0x218] sm:$0xff]
      %v1576 = vld [vmem:[#allocation3 + $0x220] sm:$0xff]
      %v1577 = vld [vmem:[#allocation3 + $0x228] sm:$0xff]
      %v1578 = vld [vmem:[#allocation3 + $0x230] sm:$0xff]
      %v1579 = vld [vmem:[#allocation3 + $0x238] sm:$0xff]
      %v1580 = vld [vmem:[%s1] sm:$0xf]
      %v1581 = vld [vmem:[%s1 + $0x4] sm:$0xf]
      %v1582 = vld [vmem:[%s1 + $0x8] sm:$0xf]
      %v1583 = vld [vmem:[%s1 + $0xc] sm:$0xf]
      %v1584 = vld [vmem:[%s1 + $0x10] sm:$0xf]
      %v1585 = vld [vmem:[%s1 + $0x14] sm:$0xf]
      %v1586 = vld [vmem:[%s1 + $0x18] sm:$0xf]
      %v1587 = vld [vmem:[%s1 + $0x1c] sm:$0xf]
      %v1588 = vld [vmem:[%s1 + $0x20] sm:$0xf]
      %v1589 = vld [vmem:[%s1 + $0x24] sm:$0xf]
      %v1590 = vld [vmem:[%s1 + $0x28] sm:$0xf]
      %v1591 = vld [vmem:[%s1 + $0x2c] sm:$0xf]
      %v1592 = vld [vmem:[%s1 + $0x30] sm:$0xf]
      %v1593 = vld [vmem:[%s1 + $0x34] sm:$0xf]
      %v1594 = vld [vmem:[%s1 + $0x38] sm:$0xf]
      %v1595 = vld [vmem:[%s1 + $0x3c] sm:$0xf]
      %v1596 = vld [vmem:[%s1 + $0x40] sm:$0xf]
      %v1597 = vld [vmem:[%s1 + $0x44] sm:$0xf]
      %v1598 = vld [vmem:[%s1 + $0x48] sm:$0xf]
      %v1599 = vld [vmem:[%s1 + $0x4c] sm:$0xf]
      %v1600 = vld [vmem:[%s1 + $0x50] sm:$0xf]
      %v1601 = vld [vmem:[%s1 + $0x54] sm:$0xf]
      %v1602 = vld [vmem:[%s1 + $0x58] sm:$0xf]
      %v1603 = vld [vmem:[%s1 + $0x5c] sm:$0xf]
      %v1604 = vld [vmem:[%s1 + $0x60] sm:$0xf]
      %v1605 = vld [vmem:[%s1 + $0x64] sm:$0xf]
      %v1606 = vld [vmem:[%s1 + $0x68] sm:$0xf]
      %v1607 = vld [vmem:[%s1 + $0x6c] sm:$0xf]
      %v1608 = vld [vmem:[%s1 + $0x70] sm:$0xf]
      %v1609 = vld [vmem:[%s1 + $0x74] sm:$0xf]
      %v1610 = vld [vmem:[%s1 + $0x78] sm:$0xf]
      %v1611 = vld [vmem:[%s1 + $0x7c] sm:$0xf]
      %v1612 = vld [vmem:[%s1 + $0x80] sm:$0xf]
      %v1613 = vld [vmem:[%s1 + $0x84] sm:$0xf]
      %v1614 = vld [vmem:[%s1 + $0x88] sm:$0xf]
      %v1615 = vld [vmem:[%s1 + $0x8c] sm:$0xf]
      %v1616 = vld [vmem:[%s1 + $0x90] sm:$0xf]
      %v1617 = vld [vmem:[%s1 + $0x94] sm:$0xf]
      %v1618 = vld [vmem:[%s1 + $0x98] sm:$0xf]
      %v1619 = vld [vmem:[%s1 + $0x9c] sm:$0xf]
      %v1620 = vld [vmem:[%s1 + $0xa0] sm:$0xf]
      %v1621 = vld [vmem:[%s1 + $0xa4] sm:$0xf]
      %v1622 = vld [vmem:[%s1 + $0xa8] sm:$0xf]
      %v1623 = vld [vmem:[%s1 + $0xac] sm:$0xf]
      %v1624 = vld [vmem:[%s1 + $0xb0] sm:$0xf]
      %v1625 = vld [vmem:[%s1 + $0xb4] sm:$0xf]
      %v1626 = vld [vmem:[%s1 + $0xb8] sm:$0xf]
      %v1627 = vld [vmem:[%s1 + $0xbc] sm:$0xf]
      %v1628 = vld [vmem:[%s1 + $0xc0] sm:$0xf]
      %v1629 = vld [vmem:[%s1 + $0xc4] sm:$0xf]
      %v1630 = vld [vmem:[%s1 + $0xc8] sm:$0xf]
      %v1631 = vld [vmem:[%s1 + $0xcc] sm:$0xf]
      %v1632 = vld [vmem:[%s1 + $0xd0] sm:$0xf]
      %v1633 = vld [vmem:[%s1 + $0xd4] sm:$0xf]
      %v1634 = vld [vmem:[%s1 + $0xd8] sm:$0xf]
      %v1635 = vld [vmem:[%s1 + $0xdc] sm:$0xf]
      %v1636 = vld [vmem:[%s1 + $0xe0] sm:$0xf]
      %v1637 = vld [vmem:[%s1 + $0xe4] sm:$0xf]
      %v1638 = vld [vmem:[%s1 + $0xe8] sm:$0xf]
      %v1639 = vld [vmem:[%s1 + $0xec] sm:$0xf]
      %v1640 = vld [vmem:[%s1 + $0xf0] sm:$0xf]
      %v1641 = vld [vmem:[%s1 + $0xf4] sm:$0xf]
      %v1642 = vld [vmem:[%s1 + $0xf8] sm:$0xf]
      %v1643 = vld [vmem:[%s1 + $0xfc] sm:$0xf]
      %v1644 = vld [vmem:[%s1 + $0x100] sm:$0xf]
      %v1645 = vld [vmem:[%s1 + $0x104] sm:$0xf]
      %v1646 = vld [vmem:[%s1 + $0x108] sm:$0xf]
      %v1647 = vld [vmem:[%s1 + $0x10c] sm:$0xf]
      %v1648 = vld [vmem:[%s1 + $0x110] sm:$0xf]
      %v1649 = vld [vmem:[%s1 + $0x114] sm:$0xf]
      %v1650 = vld [vmem:[%s1 + $0x118] sm:$0xf]
      %v1651 = vld [vmem:[%s1 + $0x11c] sm:$0xf]
      %v1652 = vld [vmem:[%s1 + $0x120] sm:$0xf]
      %v1653 = vld [vmem:[%s1 + $0x124] sm:$0xf]
      %v1654 = vld [vmem:[%s1 + $0x128] sm:$0xf]
      %v1655 = vld [vmem:[%s1 + $0x12c] sm:$0xf]
      %v1656 = vld [vmem:[%s1 + $0x130] sm:$0xf]
      %v1657 = vld [vmem:[%s1 + $0x134] sm:$0xf]
      %v1658 = vld [vmem:[%s1 + $0x138] sm:$0xf]
      %v1659 = vld [vmem:[%s1 + $0x13c] sm:$0xf]
      %v1660 = vld [vmem:[%s1 + $0x140] sm:$0xf]
      %v1661 = vld [vmem:[%s1 + $0x144] sm:$0xf]
      %v1662 = vld [vmem:[%s1 + $0x148] sm:$0xf]
      %v1663 = vld [vmem:[%s1 + $0x14c] sm:$0xf]
      %v1664 = vld [vmem:[%s1 + $0x150] sm:$0xf]
      %v1665 = vld [vmem:[%s1 + $0x154] sm:$0xf]
      %v1666 = vld [vmem:[%s1 + $0x158] sm:$0xf]
      %v1667 = vld [vmem:[%s1 + $0x15c] sm:$0xf]
      %v1668 = vld [vmem:[%s1 + $0x160] sm:$0xf]
      %v1669 = vld [vmem:[%s1 + $0x164] sm:$0xf]
      %v1670 = vld [vmem:[%s1 + $0x168] sm:$0xf]
      %v1671 = vld [vmem:[%s1 + $0x16c] sm:$0xf]
      %v1672 = vld [vmem:[%s1 + $0x170] sm:$0xf]
      %v1673 = vld [vmem:[%s1 + $0x174] sm:$0xf]
      %v1674 = vld [vmem:[%s1 + $0x178] sm:$0xf]
      %v1675 = vld [vmem:[%s1 + $0x17c] sm:$0xf]
      %v1676 = vld [vmem:[%s1 + $0x180] sm:$0xf]
      %v1677 = vld [vmem:[%s1 + $0x184] sm:$0xf]
      %v1678 = vld [vmem:[%s1 + $0x188] sm:$0xf]
      %v1679 = vld [vmem:[%s1 + $0x18c] sm:$0xf]
      %v1680 = vld [vmem:[%s1 + $0x190] sm:$0xf]
      %v1681 = vld [vmem:[%s1 + $0x194] sm:$0xf]
      %v1682 = vld [vmem:[%s1 + $0x198] sm:$0xf]
      %v1683 = vld [vmem:[%s1 + $0x19c] sm:$0xf]
      %v1684 = vld [vmem:[%s1 + $0x1a0] sm:$0xf]
      %v1685 = vld [vmem:[%s1 + $0x1a4] sm:$0xf]
      %v1686 = vld [vmem:[%s1 + $0x1a8] sm:$0xf]
      %v1687 = vld [vmem:[%s1 + $0x1ac] sm:$0xf]
      %v1688 = vld [vmem:[%s1 + $0x1b0] sm:$0xf]
      %v1689 = vld [vmem:[%s1 + $0x1b4] sm:$0xf]
      %v1690 = vld [vmem:[%s1 + $0x1b8] sm:$0xf]
      %v1691 = vld [vmem:[%s1 + $0x1bc] sm:$0xf]
      %v1692 = vld [vmem:[%s1 + $0x1c0] sm:$0xf]
      %v1693 = vld [vmem:[%s1 + $0x1c4] sm:$0xf]
      %v1694 = vld [vmem:[%s1 + $0x1c8] sm:$0xf]
      %v1695 = vld [vmem:[%s1 + $0x1cc] sm:$0xf]
      %v1696 = vld [vmem:[%s1 + $0x1d0] sm:$0xf]
      %v1697 = vld [vmem:[%s1 + $0x1d4] sm:$0xf]
      %v1698 = vld [vmem:[%s1 + $0x1d8] sm:$0xf]
      %v1699 = vld [vmem:[%s1 + $0x1dc] sm:$0xf]
      %v1700 = vld [vmem:[%s1 + $0x1e0] sm:$0xf]
      %v1701 = vld [vmem:[%s1 + $0x1e4] sm:$0xf]
      %v1702 = vld [vmem:[%s1 + $0x1e8] sm:$0xf]
      %v1703 = vld [vmem:[%s1 + $0x1ec] sm:$0xf]
      %v1704 = vld [vmem:[%s1 + $0x1f0] sm:$0xf]
      %v1705 = vld [vmem:[%s1 + $0x1f4] sm:$0xf]
      %v1706 = vld [vmem:[%s1 + $0x1f8] sm:$0xf]
      %v1707 = vld [vmem:[%s1 + $0x1fc] sm:$0xf]
      %v1708 = vld [vmem:[%s1 + $0x200] sm:$0xf]
      %v1709 = vld [vmem:[%s1 + $0x204] sm:$0xf]
      %v1710 = vld [vmem:[%s1 + $0x208] sm:$0xf]
      %v1711 = vld [vmem:[%s1 + $0x20c] sm:$0xf]
      %v1712 = vld [vmem:[%s1 + $0x210] sm:$0xf]
      %v1713 = vld [vmem:[%s1 + $0x214] sm:$0xf]
      %v1714 = vld [vmem:[%s1 + $0x218] sm:$0xf]
      %v1715 = vld [vmem:[%s1 + $0x21c] sm:$0xf]
      %v1716 = vld [vmem:[%s1 + $0x220] sm:$0xf]
      %v1717 = vld [vmem:[%s1 + $0x224] sm:$0xf]
      %v1718 = vld [vmem:[%s1 + $0x228] sm:$0xf]
      %v1719 = vld [vmem:[%s1 + $0x22c] sm:$0xf]
      %v1720 = vld [vmem:[%s1 + $0x230] sm:$0xf]
      %v1721 = vld [vmem:[%s1 + $0x234] sm:$0xf]
      %v1722 = vld [vmem:[%s1 + $0x238] sm:$0xf]
      %v1723 = vld [vmem:[%s1 + $0x23c] sm:$0xf]
      %v1724 = vld [vmem:[%s2] sm:$0x1]
      %v1726 = vlaneseq
      %v1727 = vshrl.u32 %v1726, 7
      %v1728 = vsub.s32 0, %v1727
      %v1729 = vrot.slane %v1724, %v1728
      %v1875 = vunpack.c.l.b16 %v1580
      %v1876 = vunpack.c.l.b16 %v1581
      %v1877 = vunpack.c.l.b16 %v1582
      %v1878 = vunpack.c.l.b16 %v1583
      %v1879 = vunpack.c.l.b16 %v1584
      %v1880 = vunpack.c.l.b16 %v1585
      %v1881 = vunpack.c.l.b16 %v1586
      %v1882 = vunpack.c.l.b16 %v1587
      %v1883 = vunpack.c.l.b16 %v1588
      %v1884 = vunpack.c.l.b16 %v1589
      %v1885 = vunpack.c.l.b16 %v1590
      %v1886 = vunpack.c.l.b16 %v1591
      %v1887 = vunpack.c.l.b16 %v1592
      %v1888 = vunpack.c.l.b16 %v1593
      %v1889 = vunpack.c.l.b16 %v1594
      %v1890 = vunpack.c.l.b16 %v1595
      %v1891 = vunpack.c.l.b16 %v1596
      %v1892 = vunpack.c.l.b16 %v1597
      %v1893 = vunpack.c.l.b16 %v1598
      %v1894 = vunpack.c.l.b16 %v1599
      %v1895 = vunpack.c.l.b16 %v1600
      %v1896 = vunpack.c.l.b16 %v1601
      %v1897 = vunpack.c.l.b16 %v1602
      %v1898 = vunpack.c.l.b16 %v1603
      %v1899 = vunpack.c.l.b16 %v1604
      %v1900 = vunpack.c.l.b16 %v1605
      %v1901 = vunpack.c.l.b16 %v1606
      %v1902 = vunpack.c.l.b16 %v1607
      %v1903 = vunpack.c.l.b16 %v1608
      %v1904 = vunpack.c.l.b16 %v1609
      %v1905 = vunpack.c.l.b16 %v1610
      %v1906 = vunpack.c.l.b16 %v1611
      %v1907 = vunpack.c.l.b16 %v1612
      %v1908 = vunpack.c.l.b16 %v1613
      %v1909 = vunpack.c.l.b16 %v1614
      %v1910 = vunpack.c.l.b16 %v1615
      %v1911 = vunpack.c.l.b16 %v1616
      %v1912 = vunpack.c.l.b16 %v1617
      %v1913 = vunpack.c.l.b16 %v1618
      %v1914 = vunpack.c.l.b16 %v1619
      %v1915 = vunpack.c.l.b16 %v1620
      %v1916 = vunpack.c.l.b16 %v1621
      %v1917 = vunpack.c.l.b16 %v1622
      %v1918 = vunpack.c.l.b16 %v1623
      %v1919 = vunpack.c.l.b16 %v1624
      %v1920 = vunpack.c.l.b16 %v1625
      %v1921 = vunpack.c.l.b16 %v1626
      %v1922 = vunpack.c.l.b16 %v1627
      %v1923 = vunpack.c.l.b16 %v1628
      %v1924 = vunpack.c.l.b16 %v1629
      %v1925 = vunpack.c.l.b16 %v1630
      %v1926 = vunpack.c.l.b16 %v1631
      %v1927 = vunpack.c.l.b16 %v1632
      %v1928 = vunpack.c.l.b16 %v1633
      %v1929 = vunpack.c.l.b16 %v1634
      %v1930 = vunpack.c.l.b16 %v1635
      %v1931 = vunpack.c.l.b16 %v1636
      %v1932 = vunpack.c.l.b16 %v1637
      %v1933 = vunpack.c.l.b16 %v1638
      %v1934 = vunpack.c.l.b16 %v1639
      %v1935 = vunpack.c.l.b16 %v1640
      %v1936 = vunpack.c.l.b16 %v1641
      %v1937 = vunpack.c.l.b16 %v1642
      %v1938 = vunpack.c.l.b16 %v1643
      %v1939 = vunpack.c.l.b16 %v1644
      %v1940 = vunpack.c.l.b16 %v1645
      %v1941 = vunpack.c.l.b16 %v1646
      %v1942 = vunpack.c.l.b16 %v1647
      %v1943 = vunpack.c.l.b16 %v1648
      %v1944 = vunpack.c.l.b16 %v1649
      %v1945 = vunpack.c.l.b16 %v1650
      %v1946 = vunpack.c.l.b16 %v1651
      %v1947 = vunpack.c.l.b16 %v1652
      %v1948 = vunpack.c.l.b16 %v1653
      %v1949 = vunpack.c.l.b16 %v1654
      %v1950 = vunpack.c.l.b16 %v1655
      %v1951 = vunpack.c.l.b16 %v1656
      %v1952 = vunpack.c.l.b16 %v1657
      %v1953 = vunpack.c.l.b16 %v1658
      %v1954 = vunpack.c.l.b16 %v1659
      %v1955 = vunpack.c.l.b16 %v1660
      %v1956 = vunpack.c.l.b16 %v1661
      %v1957 = vunpack.c.l.b16 %v1662
      %v1958 = vunpack.c.l.b16 %v1663
      %v1959 = vunpack.c.l.b16 %v1664
      %v1960 = vunpack.c.l.b16 %v1665
      %v1961 = vunpack.c.l.b16 %v1666
      %v1962 = vunpack.c.l.b16 %v1667
      %v1963 = vunpack.c.l.b16 %v1668
      %v1964 = vunpack.c.l.b16 %v1669
      %v1965 = vunpack.c.l.b16 %v1670
      %v1966 = vunpack.c.l.b16 %v1671
      %v1967 = vunpack.c.l.b16 %v1672
      %v1968 = vunpack.c.l.b16 %v1673
      %v1969 = vunpack.c.l.b16 %v1674
      %v1970 = vunpack.c.l.b16 %v1675
      %v1971 = vunpack.c.l.b16 %v1676
      %v1972 = vunpack.c.l.b16 %v1677
      %v1973 = vunpack.c.l.b16 %v1678
      %v1974 = vunpack.c.l.b16 %v1679
      %v1975 = vunpack.c.l.b16 %v1680
      %v1976 = vunpack.c.l.b16 %v1681
      %v1977 = vunpack.c.l.b16 %v1682
      %v1978 = vunpack.c.l.b16 %v1683
      %v1979 = vunpack.c.l.b16 %v1684
      %v1980 = vunpack.c.l.b16 %v1685
      %v1981 = vunpack.c.l.b16 %v1686
      %v1982 = vunpack.c.l.b16 %v1687
      %v1983 = vunpack.c.l.b16 %v1688
      %v1984 = vunpack.c.l.b16 %v1689
      %v1985 = vunpack.c.l.b16 %v1690
      %v1986 = vunpack.c.l.b16 %v1691
      %v1987 = vunpack.c.l.b16 %v1692
      %v1988 = vunpack.c.l.b16 %v1693
      %v1989 = vunpack.c.l.b16 %v1694
      %v1990 = vunpack.c.l.b16 %v1695
      %v1991 = vunpack.c.l.b16 %v1696
      %v1992 = vunpack.c.l.b16 %v1697
      %v1993 = vunpack.c.l.b16 %v1698
      %v1994 = vunpack.c.l.b16 %v1699
      %v1995 = vunpack.c.l.b16 %v1700
      %v1996 = vunpack.c.l.b16 %v1701
      %v1997 = vunpack.c.l.b16 %v1702
      %v1998 = vunpack.c.l.b16 %v1703
      %v1999 = vunpack.c.l.b16 %v1704
      %v2000 = vunpack.c.l.b16 %v1705
      %v2001 = vunpack.c.l.b16 %v1706
      %v2002 = vunpack.c.l.b16 %v1707
      %v2003 = vunpack.c.l.b16 %v1708
      %v2004 = vunpack.c.l.b16 %v1709
      %v2005 = vunpack.c.l.b16 %v1710
      %v2006 = vunpack.c.l.b16 %v1711
      %v2007 = vunpack.c.l.b16 %v1712
      %v2008 = vunpack.c.l.b16 %v1713
      %v2009 = vunpack.c.l.b16 %v1714
      %v2010 = vunpack.c.l.b16 %v1715
      %v2011 = vunpack.c.l.b16 %v1716
      %v2012 = vunpack.c.l.b16 %v1717
      %v2013 = vunpack.c.l.b16 %v1718
      %v2014 = vunpack.c.l.b16 %v1719
      %v2015 = vunpack.c.l.b16 %v1720
      %v2016 = vunpack.c.l.b16 %v1721
      %v2017 = vunpack.c.l.b16 %v1722
      %v2018 = vunpack.c.l.b16 %v1723
      %v2019 = vpack.c.b16 %v1876, %v1875
      %v2020 = vpack.c.b16 %v1878, %v1877
      %v2021 = vpack.c.b16 %v1880, %v1879
      %v2022 = vpack.c.b16 %v1882, %v1881
      %v2023 = vpack.c.b16 %v1884, %v1883
      %v2024 = vpack.c.b16 %v1886, %v1885
      %v2025 = vpack.c.b16 %v1888, %v1887
      %v2026 = vpack.c.b16 %v1890, %v1889
      %v2027 = vpack.c.b16 %v1892, %v1891
      %v2028 = vpack.c.b16 %v1894, %v1893
      %v2029 = vpack.c.b16 %v1896, %v1895
      %v2030 = vpack.c.b16 %v1898, %v1897
      %v2031 = vpack.c.b16 %v1900, %v1899
      %v2032 = vpack.c.b16 %v1902, %v1901
      %v2033 = vpack.c.b16 %v1904, %v1903
      %v2034 = vpack.c.b16 %v1906, %v1905
      %v2035 = vpack.c.b16 %v1908, %v1907
      %v2036 = vpack.c.b16 %v1910, %v1909
      %v2037 = vpack.c.b16 %v1912, %v1911
      %v2038 = vpack.c.b16 %v1914, %v1913
      %v2039 = vpack.c.b16 %v1916, %v1915
      %v2040 = vpack.c.b16 %v1918, %v1917
      %v2041 = vpack.c.b16 %v1920, %v1919
      %v2042 = vpack.c.b16 %v1922, %v1921
      %v2043 = vpack.c.b16 %v1924, %v1923
      %v2044 = vpack.c.b16 %v1926, %v1925
      %v2045 = vpack.c.b16 %v1928, %v1927
      %v2046 = vpack.c.b16 %v1930, %v1929
      %v2047 = vpack.c.b16 %v1932, %v1931
      %v2048 = vpack.c.b16 %v1934, %v1933
      %v2049 = vpack.c.b16 %v1936, %v1935
      %v2050 = vpack.c.b16 %v1938, %v1937
      %v2051 = vpack.c.b16 %v1940, %v1939
      %v2052 = vpack.c.b16 %v1942, %v1941
      %v2053 = vpack.c.b16 %v1944, %v1943
      %v2054 = vpack.c.b16 %v1946, %v1945
      %v2055 = vpack.c.b16 %v1948, %v1947
      %v2056 = vpack.c.b16 %v1950, %v1949
      %v2057 = vpack.c.b16 %v1952, %v1951
      %v2058 = vpack.c.b16 %v1954, %v1953
      %v2059 = vpack.c.b16 %v1956, %v1955
      %v2060 = vpack.c.b16 %v1958, %v1957
      %v2061 = vpack.c.b16 %v1960, %v1959
      %v2062 = vpack.c.b16 %v1962, %v1961
      %v2063 = vpack.c.b16 %v1964, %v1963
      %v2064 = vpack.c.b16 %v1966, %v1965
      %v2065 = vpack.c.b16 %v1968, %v1967
      %v2066 = vpack.c.b16 %v1970, %v1969
      %v2067 = vpack.c.b16 %v1972, %v1971
      %v2068 = vpack.c.b16 %v1974, %v1973
      %v2069 = vpack.c.b16 %v1976, %v1975
      %v2070 = vpack.c.b16 %v1978, %v1977
      %v2071 = vpack.c.b16 %v1980, %v1979
      %v2072 = vpack.c.b16 %v1982, %v1981
      %v2073 = vpack.c.b16 %v1984, %v1983
      %v2074 = vpack.c.b16 %v1986, %v1985
      %v2075 = vpack.c.b16 %v1988, %v1987
      %v2076 = vpack.c.b16 %v1990, %v1989
      %v2077 = vpack.c.b16 %v1992, %v1991
      %v2078 = vpack.c.b16 %v1994, %v1993
      %v2079 = vpack.c.b16 %v1996, %v1995
      %v2080 = vpack.c.b16 %v1998, %v1997
      %v2081 = vpack.c.b16 %v2000, %v1999
      %v2082 = vpack.c.b16 %v2002, %v2001
      %v2083 = vpack.c.b16 %v2004, %v2003
      %v2084 = vpack.c.b16 %v2006, %v2005
      %v2085 = vpack.c.b16 %v2008, %v2007
      %v2086 = vpack.c.b16 %v2010, %v2009
      %v2087 = vpack.c.b16 %v2012, %v2011
      %v2088 = vpack.c.b16 %v2014, %v2013
      %v2089 = vpack.c.b16 %v2016, %v2015
      %v2090 = vpack.c.b16 %v2018, %v2017
      %2163 = vmatprep.subr.bf16.mxu0 0
      %2164 = vmatpush1.bf16.msra.mxu0 %v2019
      %2165 = vmatprep.subr.bf16.mxu0 0
      %2166 = vmatpush1.bf16.msra.mxu0 %v2020
      %2167 = vmatprep.subr.bf16.mxu0 0
      %2168 = vmatpush1.bf16.msra.mxu0 %v2021
      %2169 = vmatprep.subr.bf16.mxu0 0
      %2170 = vmatpush1.bf16.msra.mxu0 %v2022
      %2171 = vmatprep.subr.bf16.mxu0 0
      %2172 = vmatpush1.bf16.msra.mxu0 %v2023
      %2173 = vmatprep.subr.bf16.mxu0 0
      %2174 = vmatpush1.bf16.msra.mxu0 %v2024
      %2175 = vmatprep.subr.bf16.mxu0 0
      %2176 = vmatpush1.bf16.msra.mxu0 %v2025
      %2177 = vmatprep.subr.bf16.mxu0 0
      %2178 = vmatpush1.bf16.msra.mxu0 %v2026
      %2179 = vmatprep.subr.bf16.mxu0 0
      %2180 = vmatpush1.bf16.msra.mxu0 %v2027
      %2181 = vmatprep.subr.bf16.mxu0 0
      %2182 = vmatpush1.bf16.msra.mxu0 %v2028
      %2183 = vmatprep.subr.bf16.mxu0 0
      %2184 = vmatpush1.bf16.msra.mxu0 %v2029
      %2185 = vmatprep.subr.bf16.mxu0 0
      %2186 = vmatpush1.bf16.msra.mxu0 %v2030
      %2187 = vmatprep.subr.bf16.mxu0 0
      %2188 = vmatpush1.bf16.msra.mxu0 %v2031
      %2189 = vmatprep.subr.bf16.mxu0 0
      %2190 = vmatpush1.bf16.msra.mxu0 %v2032
      %2191 = vmatprep.subr.bf16.mxu0 0
      %2192 = vmatpush1.bf16.msra.mxu0 %v2033
      %2193 = vmatprep.subr.bf16.mxu0 0
      %2194 = vmatpush1.bf16.msra.mxu0 %v2034
      %2195 = vmatprep.mubr.bf16.mxu0 %v1509
      %2196 = vmatmul.mubr.bf16.gmra.mrb[0].mxu0 %v1508
      %v2197 = vpop.f32.mrb[0].mxu0
      %v2198 = vadd.f32 %v1729, %v2197
      %v2199 = vpop.f32.mrb[0].mxu0
      %v2200 = vpop.f32.mrb[0].mxu0
      %v2201 = vadd.f32 %v1729, %v2200
      %v2202 = vpop.f32.mrb[0].mxu0
      %2203 = vmatprep.mubr.bf16.mxu0 %v1518
      %2204 = vmatmul.mubr.bf16.gmra.mrb[0].mxu0 %v1517
      %v2205 = vpop.f32.mrb[0].mxu0
      %v2206 = vadd.f32 %v1729, %v2205
      %v2207 = vpop.f32.mrb[0].mxu0
      %v2208 = vpop.f32.mrb[0].mxu0
      %v2209 = vadd.f32 %v1729, %v2208
      %v2210 = vpop.f32.mrb[0].mxu0
      %2211 = vmatprep.mubr.bf16.mxu0 %v1527
      %2212 = vmatmul.mubr.bf16.gmra.mrb[0].mxu0 %v1526
      %v2213 = vpop.f32.mrb[0].mxu0
      %v2214 = vadd.f32 %v1729, %v2213
      %v2215 = vpop.f32.mrb[0].mxu0
      %v2216 = vpop.f32.mrb[0].mxu0
      %v2217 = vadd.f32 %v1729, %v2216
      %v2218 = vpop.f32.mrb[0].mxu0
      %2219 = vmatprep.mubr.bf16.mxu0 %v1536
      %2220 = vmatmul.mubr.bf16.gmra.mrb[0].mxu0 %v1535
      %v2221 = vpop.f32.mrb[0].mxu0
      %v2222 = vadd.f32 %v1729, %v2221
      %v2223 = vpop.f32.mrb[0].mxu0
      %v2224 = vpop.f32.mrb[0].mxu0
      %v2225 = vadd.f32 %v1729, %v2224
      %v2226 = vpop.f32.mrb[0].mxu0
      %2227 = vmatprep.mubr.bf16.mxu0 %v1545
      %2228 = vmatmul.mubr.bf16.gmra.mrb[0].mxu0 %v1544
      %v2229 = vpop.f32.mrb[0].mxu0
      %v2230 = vadd.f32 %v1729, %v2229
      %v2231 = vpop.f32.mrb[0].mxu0
      %v2232 = vpop.f32.mrb[0].mxu0
      %v2233 = vadd.f32 %v1729, %v2232
      %v2234 = vpop.f32.mrb[0].mxu0
      %2235 = vmatprep.mubr.bf16.mxu0 %v1554
      %2236 = vmatmul.mubr.bf16.gmra.mrb[0].mxu0 %v1553
      %v2237 = vpop.f32.mrb[0].mxu0
      %v2238 = vadd.f32 %v1729, %v2237
      %v2239 = vpop.f32.mrb[0].mxu0
      %v2240 = vpop.f32.mrb[0].mxu0
      %v2241 = vadd.f32 %v1729, %v2240
      %v2242 = vpop.f32.mrb[0].mxu0
      %2243 = vmatprep.mubr.bf16.mxu0 %v1563
      %2244 = vmatmul.mubr.bf16.gmra.mrb[0].mxu0 %v1562
      %v2245 = vpop.f32.mrb[0].mxu0
      %v2246 = vadd.f32 %v1729, %v2245
      %v2247 = vpop.f32.mrb[0].mxu0
      %v2248 = vpop.f32.mrb[0].mxu0
      %v2249 = vadd.f32 %v1729, %v2248
      %v2250 = vpop.f32.mrb[0].mxu0
      %2251 = vmatprep.mubr.bf16.mxu0 %v1572
      %2252 = vmatmul.mubr.bf16.gmra.mrb[0].mxu0 %v1571
      %v2253 = vpop.f32.mrb[0].mxu0
      %v2254 = vadd.f32 %v1729, %v2253
      %v2255 = vpop.f32.mrb[0].mxu0
      %v2256 = vpop.f32.mrb[0].mxu0
      %v2257 = vadd.f32 %v1729, %v2256
      %v2258 = vpop.f32.mrb[0].mxu0
      %2259 = vdwg.mxu0
      %2260 = vmatprep.subr.bf16.mxu0 0
      %2261 = vmatpush1.bf16.msra.mxu0 %v2035
      %2262 = vmatprep.subr.bf16.mxu0 0
      %2263 = vmatpush1.bf16.msra.mxu0 %v2036
      %2264 = vmatprep.subr.bf16.mxu0 0
      %2265 = vmatpush1.bf16.msra.mxu0 %v2037
      %2266 = vmatprep.subr.bf16.mxu0 0
      %2267 = vmatpush1.bf16.msra.mxu0 %v2038
      %2268 = vmatprep.subr.bf16.mxu0 0
      %2269 = vmatpush1.bf16.msra.mxu0 %v2039
      %2270 = vmatprep.subr.bf16.mxu0 0
      %2271 = vmatpush1.bf16.msra.mxu0 %v2040
      %2272 = vmatprep.subr.bf16.mxu0 0
      %2273 = vmatpush1.bf16.msra.mxu0 %v2041
      %2274 = vmatprep.subr.bf16.mxu0 0
      %2275 = vmatpush1.bf16.msra.mxu0 %v2042
      %2276 = vmatprep.subr.bf16.mxu0 0
      %2277 = vmatpush1.bf16.msra.mxu0 %v2043
      %2278 = vmatprep.subr.bf16.mxu0 0
      %2279 = vmatpush1.bf16.msra.mxu0 %v2044
      %2280 = vmatprep.subr.bf16.mxu0 0
      %2281 = vmatpush1.bf16.msra.mxu0 %v2045
      %2282 = vmatprep.subr.bf16.mxu0 0
      %2283 = vmatpush1.bf16.msra.mxu0 %v2046
      %2284 = vmatprep.subr.bf16.mxu0 0
      %2285 = vmatpush1.bf16.msra.mxu0 %v2047
      %2286 = vmatprep.subr.bf16.mxu0 0
      %2287 = vmatpush1.bf16.msra.mxu0 %v2048
      %2288 = vmatprep.subr.bf16.mxu0 0
      %2289 = vmatpush1.bf16.msra.mxu0 %v2049
      %2290 = vmatprep.subr.bf16.mxu0 0
      %2291 = vmatpush1.bf16.msra.mxu0 %v2050
      %2292 = vmatprep.mubr.bf16.mxu0 %v1511
      %2293 = vmatmul.mubr.bf16.gmra.mrb[0].mxu0 %v1510
      %v2294 = vpop.f32.mrb[0].mxu0
      %v2295 = vadd.f32 %v2198, %v2294
      %v2296 = vpop.f32.mrb[0].mxu0
      %v2297 = vpop.f32.mrb[0].mxu0
      %v2298 = vadd.f32 %v2201, %v2297
      %v2299 = vpop.f32.mrb[0].mxu0
      %2300 = vmatprep.mubr.bf16.mxu0 %v1520
      %2301 = vmatmul.mubr.bf16.gmra.mrb[0].mxu0 %v1519
      %v2302 = vpop.f32.mrb[0].mxu0
      %v2303 = vadd.f32 %v2206, %v2302
      %v2304 = vpop.f32.mrb[0].mxu0
      %v2305 = vpop.f32.mrb[0].mxu0
      %v2306 = vadd.f32 %v2209, %v2305
      %v2307 = vpop.f32.mrb[0].mxu0
      %2308 = vmatprep.mubr.bf16.mxu0 %v1529
      %2309 = vmatmul.mubr.bf16.gmra.mrb[0].mxu0 %v1528
      %v2310 = vpop.f32.mrb[0].mxu0
      %v2311 = vadd.f32 %v2214, %v2310
      %v2312 = vpop.f32.mrb[0].mxu0
      %v2313 = vpop.f32.mrb[0].mxu0
      %v2314 = vadd.f32 %v2217, %v2313
      %v2315 = vpop.f32.mrb[0].mxu0
      %2316 = vmatprep.mubr.bf16.mxu0 %v1538
      %2317 = vmatmul.mubr.bf16.gmra.mrb[0].mxu0 %v1537
      %v2318 = vpop.f32.mrb[0].mxu0
      %v2319 = vadd.f32 %v2222, %v2318
      %v2320 = vpop.f32.mrb[0].mxu0
      %v2321 = vpop.f32.mrb[0].mxu0
      %v2322 = vadd.f32 %v2225, %v2321
      %v2323 = vpop.f32.mrb[0].mxu0
      %2324 = vmatprep.mubr.bf16.mxu0 %v1547
      %2325 = vmatmul.mubr.bf16.gmra.mrb[0].mxu0 %v1546
      %v2326 = vpop.f32.mrb[0].mxu0
      %v2327 = vadd.f32 %v2230, %v2326
      %v2328 = vpop.f32.mrb[0].mxu0
      %v2329 = vpop.f32.mrb[0].mxu0
      %v2330 = vadd.f32 %v2233, %v2329
      %v2331 = vpop.f32.mrb[0].mxu0
      %2332 = vmatprep.mubr.bf16.mxu0 %v1556
      %2333 = vmatmul.mubr.bf16.gmra.mrb[0].mxu0 %v1555
      %v2334 = vpop.f32.mrb[0].mxu0
      %v2335 = vadd.f32 %v2238, %v2334
      %v2336 = vpop.f32.mrb[0].mxu0
      %v2337 = vpop.f32.mrb[0].mxu0
      %v2338 = vadd.f32 %v2241, %v2337
      %v2339 = vpop.f32.mrb[0].mxu0
      %2340 = vmatprep.mubr.bf16.mxu0 %v1565
      %2341 = vmatmul.mubr.bf16.gmra.mrb[0].mxu0 %v1564
      %v2342 = vpop.f32.mrb[0].mxu0
      %v2343 = vadd.f32 %v2246, %v2342
      %v2344 = vpop.f32.mrb[0].mxu0
      %v2345 = vpop.f32.mrb[0].mxu0
      %v2346 = vadd.f32 %v2249, %v2345
      %v2347 = vpop.f32.mrb[0].mxu0
      %2348 = vmatprep.mubr.bf16.mxu0 %v1574
      %2349 = vmatmul.mubr.bf16.gmra.mrb[0].mxu0 %v1573
      %v2350 = vpop.f32.mrb[0].mxu0
      %v2351 = vadd.f32 %v2254, %v2350
      %v2352 = vpop.f32.mrb[0].mxu0
      %v2353 = vpop.f32.mrb[0].mxu0
      %v2354 = vadd.f32 %v2257, %v2353
      %v2355 = vpop.f32.mrb[0].mxu0
      %2356 = vdwg.mxu0
      %2357 = vmatprep.subr.bf16.mxu0 0
      %2358 = vmatpush1.bf16.msra.mxu0 %v2051
      %2359 = vmatprep.subr.bf16.mxu0 0
      %2360 = vmatpush1.bf16.msra.mxu0 %v2052
      %2361 = vmatprep.subr.bf16.mxu0 0
      %2362 = vmatpush1.bf16.msra.mxu0 %v2053
      %2363 = vmatprep.subr.bf16.mxu0 0
      %2364 = vmatpush1.bf16.msra.mxu0 %v2054
      %2365 = vmatprep.subr.bf16.mxu0 0
      %2366 = vmatpush1.bf16.msra.mxu0 %v2055
      %2367 = vmatprep.subr.bf16.mxu0 0
      %2368 = vmatpush1.bf16.msra.mxu0 %v2056
      %2369 = vmatprep.subr.bf16.mxu0 0
      %2370 = vmatpush1.bf16.msra.mxu0 %v2057
      %2371 = vmatprep.subr.bf16.mxu0 0
      %2372 = vmatpush1.bf16.msra.mxu0 %v2058
      %2373 = vmatprep.subr.bf16.mxu0 0
      %2374 = vmatpush1.bf16.msra.mxu0 %v2059
      %2375 = vmatprep.subr.bf16.mxu0 0
      %2376 = vmatpush1.bf16.msra.mxu0 %v2060
      %2377 = vmatprep.subr.bf16.mxu0 0
      %2378 = vmatpush1.bf16.msra.mxu0 %v2061
      %2379 = vmatprep.subr.bf16.mxu0 0
      %2380 = vmatpush1.bf16.msra.mxu0 %v2062
      %2381 = vmatprep.subr.bf16.mxu0 0
      %2382 = vmatpush1.bf16.msra.mxu0 %v2063
      %2383 = vmatprep.subr.bf16.mxu0 0
      %2384 = vmatpush1.bf16.msra.mxu0 %v2064
      %2385 = vmatprep.subr.bf16.mxu0 0
      %2386 = vmatpush1.bf16.msra.mxu0 %v2065
      %2387 = vmatprep.subr.bf16.mxu0 0
      %2388 = vmatpush1.bf16.msra.mxu0 %v2066
      %2389 = vmatprep.mubr.bf16.mxu0 %v1513
      %2390 = vmatmul.mubr.bf16.gmra.mrb[0].mxu0 %v1512
      %v2391 = vpop.f32.mrb[0].mxu0
      %v2392 = vadd.f32 %v2295, %v2391
      %v2393 = vpop.f32.mrb[0].mxu0
      %v2394 = vpop.f32.mrb[0].mxu0
      %v2395 = vadd.f32 %v2298, %v2394
      %v2396 = vpop.f32.mrb[0].mxu0
      %2397 = vmatprep.mubr.bf16.mxu0 %v1522
      %2398 = vmatmul.mubr.bf16.gmra.mrb[0].mxu0 %v1521
      %v2399 = vpop.f32.mrb[0].mxu0
      %v2400 = vadd.f32 %v2303, %v2399
      %v2401 = vpop.f32.mrb[0].mxu0
      %v2402 = vpop.f32.mrb[0].mxu0
      %v2403 = vadd.f32 %v2306, %v2402
      %v2404 = vpop.f32.mrb[0].mxu0
      %2405 = vmatprep.mubr.bf16.mxu0 %v1531
      %2406 = vmatmul.mubr.bf16.gmra.mrb[0].mxu0 %v1530
      %v2407 = vpop.f32.mrb[0].mxu0
      %v2408 = vadd.f32 %v2311, %v2407
      %v2409 = vpop.f32.mrb[0].mxu0
      %v2410 = vpop.f32.mrb[0].mxu0
      %v2411 = vadd.f32 %v2314, %v2410
      %v2412 = vpop.f32.mrb[0].mxu0
      %2413 = vmatprep.mubr.bf16.mxu0 %v1540
      %2414 = vmatmul.mubr.bf16.gmra.mrb[0].mxu0 %v1539
      %v2415 = vpop.f32.mrb[0].mxu0
      %v2416 = vadd.f32 %v2319, %v2415
      %v2417 = vpop.f32.mrb[0].mxu0
      %v2418 = vpop.f32.mrb[0].mxu0
      %v2419 = vadd.f32 %v2322, %v2418
      %v2420 = vpop.f32.mrb[0].mxu0
      %2421 = vmatprep.mubr.bf16.mxu0 %v1549
      %2422 = vmatmul.mubr.bf16.gmra.mrb[0].mxu0 %v1548
      %v2423 = vpop.f32.mrb[0].mxu0
      %v2424 = vadd.f32 %v2327, %v2423
      %v2425 = vpop.f32.mrb[0].mxu0
      %v2426 = vpop.f32.mrb[0].mxu0
      %v2427 = vadd.f32 %v2330, %v2426
      %v2428 = vpop.f32.mrb[0].mxu0
      %2429 = vmatprep.mubr.bf16.mxu0 %v1558
      %2430 = vmatmul.mubr.bf16.gmra.mrb[0].mxu0 %v1557
      %v2431 = vpop.f32.mrb[0].mxu0
      %v2432 = vadd.f32 %v2335, %v2431
      %v2433 = vpop.f32.mrb[0].mxu0
      %v2434 = vpop.f32.mrb[0].mxu0
      %v2435 = vadd.f32 %v2338, %v2434
      %v2436 = vpop.f32.mrb[0].mxu0
      %2437 = vmatprep.mubr.bf16.mxu0 %v1567
      %2438 = vmatmul.mubr.bf16.gmra.mrb[0].mxu0 %v1566
      %v2439 = vpop.f32.mrb[0].mxu0
      %v2440 = vadd.f32 %v2343, %v2439
      %v2441 = vpop.f32.mrb[0].mxu0
      %v2442 = vpop.f32.mrb[0].mxu0
      %v2443 = vadd.f32 %v2346, %v2442
      %v2444 = vpop.f32.mrb[0].mxu0
      %2445 = vmatprep.mubr.bf16.mxu0 %v1576
      %2446 = vmatmul.mubr.bf16.gmra.mrb[0].mxu0 %v1575
      %v2447 = vpop.f32.mrb[0].mxu0
      %v2448 = vadd.f32 %v2351, %v2447
      %v2449 = vpop.f32.mrb[0].mxu0
      %v2450 = vpop.f32.mrb[0].mxu0
      %v2451 = vadd.f32 %v2354, %v2450
      %v2452 = vpop.f32.mrb[0].mxu0
      %2453 = vdwg.mxu0
      %2454 = vmatprep.subr.bf16.mxu0 0
      %2455 = vmatpush1.bf16.msra.mxu0 %v2067
      %2456 = vmatprep.subr.bf16.mxu0 0
      %2457 = vmatpush1.bf16.msra.mxu0 %v2068
      %2458 = vmatprep.subr.bf16.mxu0 0
      %2459 = vmatpush1.bf16.msra.mxu0 %v2069
      %2460 = vmatprep.subr.bf16.mxu0 0
      %2461 = vmatpush1.bf16.msra.mxu0 %v2070
      %2462 = vmatprep.subr.bf16.mxu0 0
      %2463 = vmatpush1.bf16.msra.mxu0 %v2071
      %2464 = vmatprep.subr.bf16.mxu0 0
      %2465 = vmatpush1.bf16.msra.mxu0 %v2072
      %2466 = vmatprep.subr.bf16.mxu0 0
      %2467 = vmatpush1.bf16.msra.mxu0 %v2073
      %2468 = vmatprep.subr.bf16.mxu0 0
      %2469 = vmatpush1.bf16.msra.mxu0 %v2074
      %2470 = vmatprep.subr.bf16.mxu0 0
      %2471 = vmatpush1.bf16.msra.mxu0 %v2075
      %2472 = vmatprep.subr.bf16.mxu0 0
      %2473 = vmatpush1.bf16.msra.mxu0 %v2076
      %2474 = vmatprep.subr.bf16.mxu0 0
      %2475 = vmatpush1.bf16.msra.mxu0 %v2077
      %2476 = vmatprep.subr.bf16.mxu0 0
      %2477 = vmatpush1.bf16.msra.mxu0 %v2078
      %2478 = vmatprep.subr.bf16.mxu0 0
      %2479 = vmatpush1.bf16.msra.mxu0 %v2079
      %2480 = vmatprep.subr.bf16.mxu0 0
      %2481 = vmatpush1.bf16.msra.mxu0 %v2080
      %2482 = vmatprep.subr.bf16.mxu0 0
      %2483 = vmatpush1.bf16.msra.mxu0 %v2081
      %2484 = vmatprep.subr.bf16.mxu0 0
      %2485 = vmatpush1.bf16.msra.mxu0 %v2082
      %2486 = vmatprep.mubr.bf16.mxu0 %v1515
      %2487 = vmatmul.mubr.bf16.gmra.mrb[0].mxu0 %v1514
      %v2488 = vpop.f32.mrb[0].mxu0
      %v2489 = vadd.f32 %v2392, %v2488
      %v2490 = vpop.f32.mrb[0].mxu0
      %v2491 = vpop.f32.mrb[0].mxu0
      %v2492 = vadd.f32 %v2395, %v2491
      %v2493 = vpop.f32.mrb[0].mxu0
      %2494 = vmatprep.mubr.bf16.mxu0 %v1524
      %2495 = vmatmul.mubr.bf16.gmra.mrb[0].mxu0 %v1523
      %v2496 = vpop.f32.mrb[0].mxu0
      %v2497 = vadd.f32 %v2400, %v2496
      %v2498 = vpop.f32.mrb[0].mxu0
      %v2499 = vpop.f32.mrb[0].mxu0
      %v2500 = vadd.f32 %v2403, %v2499
      %v2501 = vpop.f32.mrb[0].mxu0
      %2502 = vmatprep.mubr.bf16.mxu0 %v1533
      %2503 = vmatmul.mubr.bf16.gmra.mrb[0].mxu0 %v1532
      %v2504 = vpop.f32.mrb[0].mxu0
      %v2505 = vadd.f32 %v2408, %v2504
      %v2506 = vpop.f32.mrb[0].mxu0
      %v2507 = vpop.f32.mrb[0].mxu0
      %v2508 = vadd.f32 %v2411, %v2507
      %v2509 = vpop.f32.mrb[0].mxu0
      %2510 = vmatprep.mubr.bf16.mxu0 %v1542
      %2511 = vmatmul.mubr.bf16.gmra.mrb[0].mxu0 %v1541
      %v2512 = vpop.f32.mrb[0].mxu0
      %v2513 = vadd.f32 %v2416, %v2512
      %v2514 = vpop.f32.mrb[0].mxu0
      %v2515 = vpop.f32.mrb[0].mxu0
      %v2516 = vadd.f32 %v2419, %v2515
      %v2517 = vpop.f32.mrb[0].mxu0
      %2518 = vmatprep.mubr.bf16.mxu0 %v1551
      %2519 = vmatmul.mubr.bf16.gmra.mrb[0].mxu0 %v1550
      %v2520 = vpop.f32.mrb[0].mxu0
      %v2521 = vadd.f32 %v2424, %v2520
      %v2522 = vpop.f32.mrb[0].mxu0
      %v2523 = vpop.f32.mrb[0].mxu0
      %v2524 = vadd.f32 %v2427, %v2523
      %v2525 = vpop.f32.mrb[0].mxu0
      %2526 = vmatprep.mubr.bf16.mxu0 %v1560
      %2527 = vmatmul.mubr.bf16.gmra.mrb[0].mxu0 %v1559
      %v2528 = vpop.f32.mrb[0].mxu0
      %v2529 = vadd.f32 %v2432, %v2528
      %v2530 = vpop.f32.mrb[0].mxu0
      %v2531 = vpop.f32.mrb[0].mxu0
      %v2532 = vadd.f32 %v2435, %v2531
      %v2533 = vpop.f32.mrb[0].mxu0
      %2534 = vmatprep.mubr.bf16.mxu0 %v1569
      %2535 = vmatmul.mubr.bf16.gmra.mrb[0].mxu0 %v1568
      %v2536 = vpop.f32.mrb[0].mxu0
      %v2537 = vadd.f32 %v2440, %v2536
      %v2538 = vpop.f32.mrb[0].mxu0
      %v2539 = vpop.f32.mrb[0].mxu0
      %v2540 = vadd.f32 %v2443, %v2539
      %v2541 = vpop.f32.mrb[0].mxu0
      %2542 = vmatprep.mubr.bf16.mxu0 %v1578
      %2543 = vmatmul.mubr.bf16.gmra.mrb[0].mxu0 %v1577
      %v2544 = vpop.f32.mrb[0].mxu0
      %v2545 = vadd.f32 %v2448, %v2544
      %v2546 = vpop.f32.mrb[0].mxu0
      %v2547 = vpop.f32.mrb[0].mxu0
      %v2548 = vadd.f32 %v2451, %v2547
      %v2549 = vpop.f32.mrb[0].mxu0
      %2550 = vdwg.mxu0
      %2551 = vmatprep.subr.bf16.mxu0 0
      %2552 = vmatpush1.bf16.msra.mxu0 %v2083
      %2553 = vmatprep.subr.bf16.mxu0 0
      %2554 = vmatpush1.bf16.msra.mxu0 %v2084
      %2555 = vmatprep.subr.bf16.mxu0 0
      %2556 = vmatpush1.bf16.msra.mxu0 %v2085
      %2557 = vmatprep.subr.bf16.mxu0 0
      %2558 = vmatpush1.bf16.msra.mxu0 %v2086
      %2559 = vmatprep.subr.bf16.mxu0 0
      %2560 = vmatpush1.bf16.msra.mxu0 %v2087
      %2561 = vmatprep.subr.bf16.mxu0 0
      %2562 = vmatpush1.bf16.msra.mxu0 %v2088
      %2563 = vmatprep.subr.bf16.mxu0 0
      %2564 = vmatpush1.bf16.msra.mxu0 %v2089
      %2565 = vmatprep.subr.bf16.mxu0 0
      %2566 = vmatpush1.bf16.msra.mxu0 %v2090
      %2567 = vmatprep.subr.bf16.mxu0 0
      %2568 = vmatpush1.bf16.msra.mxu0 0
      %2569 = vmatprep.subr.bf16.mxu0 0
      %2570 = vmatpush1.bf16.msra.mxu0 0
      %2571 = vmatprep.subr.bf16.mxu0 0
      %2572 = vmatpush1.bf16.msra.mxu0 0
      %2573 = vmatprep.subr.bf16.mxu0 0
      %2574 = vmatpush1.bf16.msra.mxu0 0
      %2575 = vmatprep.subr.bf16.mxu0 0
      %2576 = vmatpush1.bf16.msra.mxu0 0
      %2577 = vmatprep.subr.bf16.mxu0 0
      %2578 = vmatpush1.bf16.msra.mxu0 0
      %2579 = vmatprep.subr.bf16.mxu0 0
      %2580 = vmatpush1.bf16.msra.mxu0 0
      %2581 = vmatprep.subr.bf16.mxu0 0
      %2582 = vmatpush1.bf16.msra.mxu0 0
      %2583 = vmatprep.mubr.bf16.mxu0 0
      %2584 = vmatmul.mubr.bf16.gmra.mrb[0].mxu0 %v1516
      %v2585 = vpop.f32.mrb[0].mxu0
      %v2586 = vadd.f32 %v2489, %v2585
      %v2587 = vpop.f32.mrb[0].mxu0
      %v2588 = vpop.f32.mrb[0].mxu0
      %v2589 = vadd.f32 %v2492, %v2588
      %v2590 = vpop.f32.mrb[0].mxu0
      %2591 = vmatprep.mubr.bf16.mxu0 0
      %2592 = vmatmul.mubr.bf16.gmra.mrb[0].mxu0 %v1525
      %v2593 = vpop.f32.mrb[0].mxu0
      %v2594 = vadd.f32 %v2497, %v2593
      %v2595 = vpop.f32.mrb[0].mxu0
      %v2596 = vpop.f32.mrb[0].mxu0
      %v2597 = vadd.f32 %v2500, %v2596
      %v2598 = vpop.f32.mrb[0].mxu0
      %2599 = vmatprep.mubr.bf16.mxu0 0
      %2600 = vmatmul.mubr.bf16.gmra.mrb[0].mxu0 %v1534
      %v2601 = vpop.f32.mrb[0].mxu0
      %v2602 = vadd.f32 %v2505, %v2601
      %v2603 = vpop.f32.mrb[0].mxu0
      %v2604 = vpop.f32.mrb[0].mxu0
      %v2605 = vadd.f32 %v2508, %v2604
      %v2606 = vpop.f32.mrb[0].mxu0
      %2607 = vmatprep.mubr.bf16.mxu0 0
      %2608 = vmatmul.mubr.bf16.gmra.mrb[0].mxu0 %v1543
      %v2609 = vpop.f32.mrb[0].mxu0
      %v2610 = vadd.f32 %v2513, %v2609
      %v2611 = vpop.f32.mrb[0].mxu0
      %v2612 = vpop.f32.mrb[0].mxu0
      %v2613 = vadd.f32 %v2516, %v2612
      %v2614 = vpop.f32.mrb[0].mxu0
      %2615 = vmatprep.mubr.bf16.mxu0 0
      %2616 = vmatmul.mubr.bf16.gmra.mrb[0].mxu0 %v1552
      %v2617 = vpop.f32.mrb[0].mxu0
      %v2618 = vadd.f32 %v2521, %v2617
      %v2619 = vpop.f32.mrb[0].mxu0
      %v2620 = vpop.f32.mrb[0].mxu0
      %v2621 = vadd.f32 %v2524, %v2620
      %v2622 = vpop.f32.mrb[0].mxu0
      %2623 = vmatprep.mubr.bf16.mxu0 0
      %2624 = vmatmul.mubr.bf16.gmra.mrb[0].mxu0 %v1561
      %v2625 = vpop.f32.mrb[0].mxu0
      %v2626 = vadd.f32 %v2529, %v2625
      %v2627 = vpop.f32.mrb[0].mxu0
      %v2628 = vpop.f32.mrb[0].mxu0
      %v2629 = vadd.f32 %v2532, %v2628
      %v2630 = vpop.f32.mrb[0].mxu0
      %2631 = vmatprep.mubr.bf16.mxu0 0
      %2632 = vmatmul.mubr.bf16.gmra.mrb[0].mxu0 %v1570
      %v2633 = vpop.f32.mrb[0].mxu0
      %v2634 = vadd.f32 %v2537, %v2633
      %v2635 = vpop.f32.mrb[0].mxu0
      %v2636 = vpop.f32.mrb[0].mxu0
      %v2637 = vadd.f32 %v2540, %v2636
      %v2638 = vpop.f32.mrb[0].mxu0
      %2639 = vmatprep.mubr.bf16.mxu0 0
      %2640 = vmatmul.mubr.bf16.gmra.mrb[0].mxu0 %v1579
      %v2641 = vpop.f32.mrb[0].mxu0
      %v2642 = vadd.f32 %v2545, %v2641
      %v2643 = vpop.f32.mrb[0].mxu0
      %v2644 = vpop.f32.mrb[0].mxu0
      %v2645 = vadd.f32 %v2548, %v2644
      %v2646 = vpop.f32.mrb[0].mxu0
      %2647 = vdwg.mxu0
      %v2648 = vmax.f32 %v2586, 0.0
      %v2649 = vmax.f32 %v2589, 0.0
      %v2650 = vmax.f32 %v2594, 0.0
      %v2651 = vmax.f32 %v2597, 0.0
      %v2652 = vmax.f32 %v2602, 0.0
      %v2653 = vmax.f32 %v2605, 0.0
      %v2654 = vmax.f32 %v2610, 0.0
      %v2655 = vmax.f32 %v2613, 0.0
      %v2656 = vmax.f32 %v2618, 0.0
      %v2657 = vmax.f32 %v2621, 0.0
      %v2658 = vmax.f32 %v2626, 0.0
      %v2659 = vmax.f32 %v2629, 0.0
      %v2660 = vmax.f32 %v2634, 0.0
      %v2661 = vmax.f32 %v2637, 0.0
      %v2662 = vmax.f32 %v2642, 0.0
      %v2663 = vmax.f32 %v2645, 0.0
      %v2664 = vpack.c.bf16 %v2649, %v2648
      %v2665 = vpack.c.bf16 %v2651, %v2650
      %v2666 = vpack.c.bf16 %v2653, %v2652
      %v2667 = vpack.c.bf16 %v2655, %v2654
      %v2668 = vpack.c.bf16 %v2657, %v2656
      %v2669 = vpack.c.bf16 %v2659, %v2658
      %v2670 = vpack.c.bf16 %v2661, %v2660
      %v2671 = vpack.c.bf16 %v2663, %v2662
      %v2680 = vunpack.c.l.b16 %v2664
      %v2681 = vunpack.c.h.b16 %v2664
      %v2682 = vunpack.c.l.b16 %v2665
      %v2683 = vunpack.c.h.b16 %v2665
      %v2684 = vunpack.c.l.b16 %v2666
      %v2685 = vunpack.c.h.b16 %v2666
      %v2686 = vunpack.c.l.b16 %v2667
      %v2687 = vunpack.c.h.b16 %v2667
      %v2688 = vunpack.c.l.b16 %v2668
      %v2689 = vunpack.c.h.b16 %v2668
      %v2690 = vunpack.c.l.b16 %v2669
      %v2691 = vunpack.c.h.b16 %v2669
      %v2692 = vunpack.c.l.b16 %v2670
      %v2693 = vunpack.c.h.b16 %v2670
      %v2694 = vunpack.c.l.b16 %v2671
      %v2695 = vunpack.c.h.b16 %v2671
      %v2696 = vpack.c.b16 %v2680, %v2680
      %v2697 = vpack.c.b16 %v2681, %v2681
      %v2698 = vpack.c.b16 %v2682, %v2682
      %v2699 = vpack.c.b16 %v2683, %v2683
      %v2700 = vpack.c.b16 %v2684, %v2684
      %v2701 = vpack.c.b16 %v2685, %v2685
      %v2702 = vpack.c.b16 %v2686, %v2686
      %v2703 = vpack.c.b16 %v2687, %v2687
      %v2704 = vpack.c.b16 %v2688, %v2688
      %v2705 = vpack.c.b16 %v2689, %v2689
      %v2706 = vpack.c.b16 %v2690, %v2690
      %v2707 = vpack.c.b16 %v2691, %v2691
      %v2708 = vpack.c.b16 %v2692, %v2692
      %v2709 = vpack.c.b16 %v2693, %v2693
      %v2710 = vpack.c.b16 %v2694, %v2694
      %v2711 = vpack.c.b16 %v2695, %v2695
      %vm2728 = vcmask 125952
      %2729 = vst.msk [vmem:[%s192] sm:$0xf] %vm2728, %v2696
      %2730 = vst.msk [vmem:[%s192 + $0x4] sm:$0xf] %vm2728, %v2697
      %2731 = vst.msk [vmem:[%s192 + $0x8] sm:$0xf] %vm2728, %v2698
      %2732 = vst.msk [vmem:[%s192 + $0xc] sm:$0xf] %vm2728, %v2699
      %2733 = vst.msk [vmem:[%s192 + $0x10] sm:$0xf] %vm2728, %v2700
      %2734 = vst.msk [vmem:[%s192 + $0x14] sm:$0xf] %vm2728, %v2701
      %2735 = vst.msk [vmem:[%s192 + $0x18] sm:$0xf] %vm2728, %v2702
      %2736 = vst.msk [vmem:[%s192 + $0x1c] sm:$0xf] %vm2728, %v2703
      %2737 = vst.msk [vmem:[%s192 + $0x20] sm:$0xf] %vm2728, %v2704
      %2738 = vst.msk [vmem:[%s192 + $0x24] sm:$0xf] %vm2728, %v2705
      %2739 = vst.msk [vmem:[%s192 + $0x28] sm:$0xf] %vm2728, %v2706
      %2740 = vst.msk [vmem:[%s192 + $0x2c] sm:$0xf] %vm2728, %v2707
      %2741 = vst.msk [vmem:[%s192 + $0x30] sm:$0xf] %vm2728, %v2708
      %2742 = vst.msk [vmem:[%s192 + $0x34] sm:$0xf] %vm2728, %v2709
      %2743 = vst.msk [vmem:[%s192 + $0x38] sm:$0xf] %vm2728, %v2710
      %2744 = vst.msk [vmem:[%s192 + $0x3c] sm:$0xf] %vm2728, %v2711
      %s2745 = smul.u32 16, %s19
      %p2746 = scmp.lt.s32.totalorder %s18, 1
      %s2747 = scalar_select %p2746, %s18, 1
      %p2748 = scmp.lt.s32.totalorder %s2745, 31
      %s2749 = scalar_select %p2748, %s2745, 31
      %s2750 = smul.addr %s2747, 32
      %s2751 = sadd.s32 %s2749, %s2750
      %s2752 = smul.addr %s2751, 4
      %s2753 = scalar_lea.vmem %s3, %s2752
      // Predicated region
      $region37: #{inception_forward.5} parent=31 // pred_check
        %p2754 = pneg %p114
      $region38: #{inception_forward.5} parent=31 // pred_check_branch
        %2756 = sbr.rel (%p2754) target = $region40
      $region39: #{inception_forward.5} parent=31 // pred_region
        %s2757 = smul.u32 16, %s19
      $region40: #{inception_forward.5} parent=31 // pred_fallthru
        _
    $region32: #{inception_forward.5} parent=5 // pred_fallthru
      _
    %p2758 = scmp.le.s32.totalorder 2, %s9
    // Predicated region
    $region41: #{inception_forward.5} parent=5 // pred_check
      %p2759 = pneg %p2758
    $region42: #{inception_forward.5} parent=5 // pred_check_branch
      %2761 = sbr.rel (%p2759) target = $region44
    $region43: #{inception_forward.5} parent=5 // pred_region
      %s2762 = ssub.s32 %s9, 2
      // Predicated region
      $region45: #{inception_forward.5} parent=43 // pred_check
        %p2763 = pneg %p120
      $region46: #{inception_forward.5} parent=43 // pred_check_branch
        %2765 = sbr.rel (%p2763) target = $region48
      $region47: #{inception_forward.5} parent=43 // pred_region
        %s2766 = smul.u32 16, %s21
        %p2767 = scmp.lt.s32.totalorder %s20, 1
        %s2768 = scalar_select %p2767, %s20, 1
        %p2769 = scmp.lt.s32.totalorder %s2766, 31
        %s2770 = scalar_select %p2769, %s2766, 31
        %s2771 = smul.addr %s2768, 32
        %s2772 = sadd.s32 %s2770, %s2771
        %s2773 = smul.addr %s2772, 4
        %s2774 = scalar_lea.vmem %s3, %s2773
      $region48: #{inception_forward.5} parent=43 // pred_fallthru
        _
    $region44: #{inception_forward.5} parent=5 // pred_fallthru
      _
  $region6: #{inception_forward.5} parent=0 // loop_footer
    %s13 = sadd.s32 1, %s9
  $region7: #{inception_forward.5} parent=0 // loop_footer_branch
    %8 = sbr.rel target = $region3
  $region8: #{inception_forward.5} parent=0 // loop_exit
    _

// kernel: inception_forward.6
$region0: #{inception_forward.6}
  #allocation0 [shape = 'u32[]', space=smem, size = 0x4, offset = 0x4, fixed_abs, tag = 'smem constant byte address 0x4 - core index']
  #allocation1 [shape = 'u32[144,128]{1,0:T(1,128)}', space=vmem, size = 0x12000, scoped, tag = 'internal scratch']
  #allocation2 [shape = 'bf16[20,20,128]{2,1,0:T(8,128)(2,1)}', space=vmem, size = 0x1e000, scoped, tag = 'scratch operand']
  #allocation3 [shape = 'bf16[8,16,3200]{2,1,0:T(16,128)(2,1)}', space=vmem, size = 0xc8000, scoped, tag = 'scratch operand']
  %s0 = inlined_call_operand.vmem [shape: bf16[2,16,16,128], index: 0, kind: input, shape index: {}]
  %s1 = inlined_call_operand.vmem [shape: bf16[3200,8], index: 1, kind: input, shape index: {}]
  %s2 = inlined_call_operand.vmem [shape: f32[1,8], index: 2, kind: input, shape index: {}]
  %s3 = inlined_call_operand.vmem [shape: bf16[2,256,8], index: 3, kind: output, shape index: {}]
  %s4 = sld [smem:[#allocation0]]
  $region49: #{inception_forward.6} parent=0
    _
  %s6 = ssub.s32 1, %s4
  %s7 = scalar_select 0, %s6, %s4
  loop: start=0, step=1, limit=6
  $region2: #{inception_forward.6} parent=0 // loop_pre_header
    _
  $region3: #{inception_forward.6} parent=0 // loop_header
    %s9 = sphi 0, %s13
    %p10 = scmp.ge.s32.totalorder %s9, 6
    %s16 = sphi 0, %s28
    %s17 = sphi 0, %s24
    %s18 = sphi 0, %s16
    %s19 = sphi 0, %s17
    %s20 = sphi 0, %s18
    %s21 = sphi 0, %s19
    %s31 = sphi 0, %s33
    %s34 = sphi 0, %s31
    %s35 = sphi 0, %s34
    %s51 = sphi 0, %s35
    %s55 = sphi 0, %s55
    %s57 = sphi 0, %s55
    %s58 = sphi 0, %s57
    %s72 = sphi 0, %s58
    %s76 = sphi 0, %s76
    %s78 = sphi 0, %s76
    %s79 = sphi 0, %s78
    %s93 = sphi 0, %s79
    %s101 = sphi 0, %s103
    %s104 = sphi 0, %s101
    %s105 = sphi 0, %s104
    %s121 = sphi 0, %s105
  $region4: #{inception_forward.6} parent=0 // loop_header_branch
    %12 = sbr.rel (%p10) target = $region8
  $region5: #{inception_forward.6} parent=0 // loop_body
    %s14 = ssub.s32 %s9, 1
    %s15 = ssub.s32 %s9, 2
    %s22 = sadd.s32 1, %s17
    %p23 = scmp.ge.s32.totalorder %s22, 2
    %s24 = scalar_select %p23, 0, %s22
    %s25 = sadd.s32 1, %s16
    %s26 = scalar_select %p23, %s25, %s16
    %p27 = scmp.ge.s32.totalorder %s26, 2
    %s28 = scalar_select %p27, 0, %s26
    %s29 = ssub.s32 %s16, %s28
    %p30 = scmp.eq.s32.totalorder %s29, 0
    %s32 = sadd.s32 %s31, 1
    %s33 = scalar_select %p30, %s31, %s32
    %p36 = pneg %p30
    %p37 = scmp.eq.s32.totalorder %s9, 3
    %p38 = por %p36, %p37
    %p39 = scmp.ne.s32.totalorder %s31, %s34
    %p40 = scmp.eq.s32.totalorder %s9, 0
    %p41 = por %p39, %p40
    %p42 = scmp.ne.s32.totalorder %s31, %s34
    %p43 = scmp.eq.s32.totalorder %s14, 3
    %p44 = por %p42, %p43
    %p45 = scmp.ne.s32.totalorder %s34, %s35
    %p46 = scmp.eq.s32.totalorder %s14, 0
    %p47 = por %p45, %p46
    %p48 = scmp.ne.s32.totalorder %s34, %s35
    %p49 = scmp.eq.s32.totalorder %s15, 3
    %p50 = por %p48, %p49
    %p52 = scmp.ne.s32.totalorder %s35, %s51
    %p53 = scmp.eq.s32.totalorder %s15, 0
    %p54 = por %p52, %p53
    %s56 = sadd.s32 %s55, 1
    %p59 = scmp.eq.s32.totalorder %s9, 3
    %p60 = scmp.ne.s32.totalorder %s55, %s57
    %p61 = scmp.eq.s32.totalorder %s9, 0
    %p62 = por %p60, %p61
    %p63 = scmp.ne.s32.totalorder %s55, %s57
    %p64 = scmp.eq.s32.totalorder %s14, 3
    %p65 = por %p63, %p64
    %p66 = scmp.ne.s32.totalorder %s57, %s58
    %p67 = scmp.eq.s32.totalorder %s14, 0
    %p68 = por %p66, %p67
    %p69 = scmp.ne.s32.totalorder %s57, %s58
    %p70 = scmp.eq.s32.totalorder %s15, 3
    %p71 = por %p69, %p70
    %p73 = scmp.ne.s32.totalorder %s58, %s72
    %p74 = scmp.eq.s32.totalorder %s15, 0
    %p75 = por %p73, %p74
    %s77 = sadd.s32 %s76, 1
    %p80 = scmp.eq.s32.totalorder %s9, 3
    %p81 = scmp.ne.s32.totalorder %s76, %s78
    %p82 = scmp.eq.s32.totalorder %s9, 0
    %p83 = por %p81, %p82
    %p84 = scmp.ne.s32.totalorder %s76, %s78
    %p85 = scmp.eq.s32.totalorder %s14, 3
    %p86 = por %p84, %p85
    %p87 = scmp.ne.s32.totalorder %s78, %s79
    %p88 = scmp.eq.s32.totalorder %s14, 0
    %p89 = por %p87, %p88
    %p90 = scmp.ne.s32.totalorder %s78, %s79
    %p91 = scmp.eq.s32.totalorder %s15, 3
    %p92 = por %p90, %p91
    %p94 = scmp.ne.s32.totalorder %s79, %s93
    %p95 = scmp.eq.s32.totalorder %s15, 0
    %p96 = por %p94, %p95
    %s97 = ssub.s32 %s16, %s28
    %s98 = ssub.s32 %s17, %s24
    %s99 = sor.u32 %s97, %s98
    %p100 = scmp.eq.s32.totalorder %s99, 0
    %s102 = sadd.s32 %s101, 1
    %s103 = scalar_select %p100, %s101, %s102
    %p106 = pneg %p100
    %p107 = scmp.eq.s32.totalorder %s9, 3
    %p108 = por %p106, %p107
    %p109 = scmp.ne.s32.totalorder %s101, %s104
    %p110 = scmp.eq.s32.totalorder %s9, 0
    %p111 = por %p109, %p110
    %p112 = scmp.ne.s32.totalorder %s101, %s104
    %p113 = scmp.eq.s32.totalorder %s14, 3
    %p114 = por %p112, %p113
    %p115 = scmp.ne.s32.totalorder %s104, %s105
    %p116 = scmp.eq.s32.totalorder %s14, 0
    %p117 = por %p115, %p116
    %p118 = scmp.ne.s32.totalorder %s104, %s105
    %p119 = scmp.eq.s32.totalorder %s15, 3
    %p120 = por %p118, %p119
    %p122 = scmp.ne.s32.totalorder %s105, %s121
    %p123 = scmp.eq.s32.totalorder %s15, 0
    %p124 = por %p122, %p123
    %p125 = scmp.le.s32.totalorder 1, %s9
    %p126 = scmp.lt.s32.totalorder %s9, 5
    %p127 = pnand %p125, %p126
    %p128 = pneg %p127
    // Predicated region
    $region9: #{inception_forward.6} parent=5 // pred_check
      _
    $region10: #{inception_forward.6} parent=5 // pred_check_branch
      %130 = sbr.rel (%p127) target = $region12
    $region11: #{inception_forward.6} parent=5 // pred_region
      %s131 = ssub.s32 %s9, 1
      // Predicated region
      $region13: #{inception_forward.6} parent=11 // pred_check
        %p132 = pneg %p68
      $region14: #{inception_forward.6} parent=11 // pred_check_branch
        %134 = sbr.rel (%p132) target = $region16
      $region15: #{inception_forward.6} parent=11 // pred_region
        _
      $region16: #{inception_forward.6} parent=11 // pred_fallthru
        _
      // Predicated region
      $region17: #{inception_forward.6} parent=11 // pred_check
        %p135 = pneg %p89
      $region18: #{inception_forward.6} parent=11 // pred_check_branch
        %137 = sbr.rel (%p135) target = $region20
      $region19: #{inception_forward.6} parent=11 // pred_region
        _
      $region20: #{inception_forward.6} parent=11 // pred_fallthru
        _
    $region12: #{inception_forward.6} parent=5 // pred_fallthru
      _
    %p138 = scmp.lt.s32.totalorder %s9, 4
    // Predicated region
    $region21: #{inception_forward.6} parent=5 // pred_check
      %p139 = pneg %p138
    $region22: #{inception_forward.6} parent=5 // pred_check_branch
      %141 = sbr.rel (%p139) target = $region24
    $region23: #{inception_forward.6} parent=5 // pred_region
      // Predicated region
      $region25: #{inception_forward.6} parent=23 // pred_check
        %p142 = pneg %p41
      $region26: #{inception_forward.6} parent=23 // pred_check_branch
        %144 = sbr.rel (%p142) target = $region28
      $region27: #{inception_forward.6} parent=23 // pred_region
        %p145 = scmp.lt.s32.totalorder %s16, 1
        %s146 = scalar_select %p145, %s16, 1
        %s147 = smul.addr %s146, 32
        %s148 = smul.addr %s147, 4
        %s149 = scalar_lea.vmem %s0, %s148
      $region28: #{inception_forward.6} parent=23 // pred_fallthru
        _
    $region24: #{inception_forward.6} parent=5 // pred_fallthru
      _
    %p150 = scmp.le.s32.totalorder 1, %s9
    %p151 = scmp.lt.s32.totalorder %s9, 5
    %p152 = pnand %p150, %p151
    %p153 = pneg %p152
    // Predicated region
    $region29: #{inception_forward.6} parent=5 // pred_check
      _
    $region30: #{inception_forward.6} parent=5 // pred_check_branch
      %155 = sbr.rel (%p152) target = $region32
    $region31: #{inception_forward.6} parent=5 // pred_region
      %s156 = ssub.s32 %s9, 1
      %p157 = scmp.lt.s32.totalorder %s18, 1
      %s158 = scalar_select %p157, %s18, 1
      %s159 = smul.addr %s158, 32
      %s160 = smul.addr %s159, 4
      %s161 = scalar_lea.vmem %s0, %s160
      %p162 = pneg %p47
      %p163 = pneg %p44
      %p164 = pneg %p68
      %p165 = pneg %p65
      %p166 = pneg %p89
      %p167 = pneg %p86
      %p168 = pneg %p117
      %p169 = pneg %p114
      %s170 = smul.u32 16, %s19
      %p171 = scmp.lt.s32.totalorder %s18, 1
      %s172 = scalar_select %p171, %s18, 1
      %p173 = scmp.lt.s32.totalorder %s170, 31
      %s174 = scalar_select %p173, %s170, 31
      %s175 = smul.addr %s172, 32
      %s176 = sadd.s32 %s174, %s175
      %s177 = smul.addr %s176, 4
      %s178 = scalar_lea.vmem %s3, %s177
      %p179 = scmp.lt.s32.totalorder %s18, 1
      %s180 = scalar_select %p179, %s18, 1
      %s181 = smul.addr %s180, 32
      %s182 = smul.addr %s181, 4
      %s183 = scalar_lea.vmem %s0, %s182
      %s184 = smul.u32 16, %s19
      %p185 = scmp.lt.s32.totalorder %s18, 1
      %s186 = scalar_select %p185, %s18, 1
      %p187 = scmp.lt.s32.totalorder %s184, 31
      %s188 = scalar_select %p187, %s184, 31
      %s189 = smul.addr %s186, 32
      %s190 = sadd.s32 %s188, %s189
      %s191 = smul.addr %s190, 4
      %s192 = scalar_lea.vmem %s3, %s191
      %s193 = smul.u32 16, %s19
      %p195 = scmp.eq.s32.totalorder %s19, 0
      // Predicated region
      $region33: #{inception_forward.6} parent=31 // pred_check
        %p196 = pneg %p195
      $region34: #{inception_forward.6} parent=31 // pred_check_branch
        %198 = sbr.rel (%p196) target = $region36
      $region35: #{inception_forward.6} parent=31 // pred_region
        %199 = vst [vmem:[#allocation2] sm:$0xf] 0
        %200 = vst [vmem:[#allocation2 + $0x4] sm:$0xf] 0
        %201 = vst [vmem:[#allocation2 + $0x8] sm:$0x3] 0
        %202 = vst [vmem:[#allocation2 + $0xc] sm:$0xf] 0
        %203 = vst [vmem:[#allocation2 + $0x10] sm:$0xf] 0
        %204 = vst [vmem:[#allocation2 + $0x14] sm:$0x3] 0
        %205 = vst [vmem:[#allocation2 + $0x18] sm:$0xf] 0
        %206 = vst [vmem:[#allocation2 + $0x1c] sm:$0xf] 0
        %207 = vst [vmem:[#allocation2 + $0x20] sm:$0x3] 0
        %208 = vst [vmem:[#allocation2 + $0x24] sm:$0xf] 0
        %209 = vst [vmem:[#allocation2 + $0x28] sm:$0xf] 0
        %210 = vst [vmem:[#allocation2 + $0x2c] sm:$0x3] 0
        %211 = vst [vmem:[#allocation2 + $0x30] sm:$0xf] 0
        %212 = vst [vmem:[#allocation2 + $0x34] sm:$0xf] 0
        %213 = vst [vmem:[#allocation2 + $0x38] sm:$0x3] 0
        %214 = vst [vmem:[#allocation2 + $0x3c] sm:$0xf] 0
        %215 = vst [vmem:[#allocation2 + $0x40] sm:$0xf] 0
        %216 = vst [vmem:[#allocation2 + $0x44] sm:$0x3] 0
        %217 = vst [vmem:[#allocation2 + $0x48] sm:$0xf] 0
        %218 = vst [vmem:[#allocation2 + $0x4c] sm:$0xf] 0
        %219 = vst [vmem:[#allocation2 + $0x50] sm:$0x3] 0
        %220 = vst [vmem:[#allocation2 + $0x54] sm:$0xf] 0
        %221 = vst [vmem:[#allocation2 + $0x58] sm:$0xf] 0
        %222 = vst [vmem:[#allocation2 + $0x5c] sm:$0x3] 0
        %223 = vst [vmem:[#allocation2 + $0x60] sm:$0xf] 0
        %224 = vst [vmem:[#allocation2 + $0x64] sm:$0xf] 0
        %225 = vst [vmem:[#allocation2 + $0x68] sm:$0x3] 0
        %226 = vst [vmem:[#allocation2 + $0x6c] sm:$0xf] 0
        %227 = vst [vmem:[#allocation2 + $0x70] sm:$0xf] 0
        %228 = vst [vmem:[#allocation2 + $0x74] sm:$0x3] 0
        %229 = vst [vmem:[#allocation2 + $0x78] sm:$0xf] 0
        %230 = vst [vmem:[#allocation2 + $0x7c] sm:$0xf] 0
        %231 = vst [vmem:[#allocation2 + $0x80] sm:$0x3] 0
        %232 = vst [vmem:[#allocation2 + $0x84] sm:$0xf] 0
        %233 = vst [vmem:[#allocation2 + $0x88] sm:$0xf] 0
        %234 = vst [vmem:[#allocation2 + $0x8c] sm:$0x3] 0
        %235 = vst [vmem:[#allocation2 + $0x90] sm:$0xf] 0
        %236 = vst [vmem:[#allocation2 + $0x94] sm:$0xf] 0
        %237 = vst [vmem:[#allocation2 + $0x98] sm:$0x3] 0
        %238 = vst [vmem:[#allocation2 + $0x9c] sm:$0xf] 0
        %239 = vst [vmem:[#allocation2 + $0xa0] sm:$0xf] 0
        %240 = vst [vmem:[#allocation2 + $0xa4] sm:$0x3] 0
        %241 = vst [vmem:[#allocation2 + $0xa8] sm:$0xf] 0
        %242 = vst [vmem:[#allocation2 + $0xac] sm:$0xf] 0
        %243 = vst [vmem:[#allocation2 + $0xb0] sm:$0x3] 0
        %244 = vst [vmem:[#allocation2 + $0xb4] sm:$0xf] 0
        %245 = vst [vmem:[#allocation2 + $0xb8] sm:$0xf] 0
        %246 = vst [vmem:[#allocation2 + $0xbc] sm:$0x3] 0
        %247 = vst [vmem:[#allocation2 + $0xc0] sm:$0xf] 0
        %248 = vst [vmem:[#allocation2 + $0xc4] sm:$0xf] 0
        %249 = vst [vmem:[#allocation2 + $0xc8] sm:$0x3] 0
        %250 = vst [vmem:[#allocation2 + $0xcc] sm:$0xf] 0
        %251 = vst [vmem:[#allocation2 + $0xd0] sm:$0xf] 0
        %252 = vst [vmem:[#allocation2 + $0xd4] sm:$0x3] 0
        %253 = vst [vmem:[#allocation2 + $0xd8] sm:$0xf] 0
        %254 = vst [vmem:[#allocation2 + $0xdc] sm:$0xf] 0
        %255 = vst [vmem:[#allocation2 + $0xe0] sm:$0x3] 0
        %256 = vst [vmem:[#allocation2 + $0xe4] sm:$0xf] 0
        %257 = vst [vmem:[#allocation2 + $0xe8] sm:$0xf] 0
        %258 = vst [vmem:[#allocation2 + $0xec] sm:$0x3] 0
        %v259 = vld [vmem:[%s183] sm:$0xf]
        %v260 = vld [vmem:[%s183 + $0x4] sm:$0xf]
        %v261 = vld [vmem:[%s183 + $0x8] sm:$0xf]
        %v262 = vld [vmem:[%s183 + $0xc] sm:$0xf]
        %v263 = vld [vmem:[%s183 + $0x10] sm:$0xf]
        %v264 = vld [vmem:[%s183 + $0x14] sm:$0xf]
        %v265 = vld [vmem:[%s183 + $0x18] sm:$0xf]
        %v266 = vld [vmem:[%s183 + $0x1c] sm:$0xf]
        %v267 = vld [vmem:[%s183 + $0x20] sm:$0xf]
        %v268 = vld [vmem:[%s183 + $0x24] sm:$0xf]
        %v269 = vld [vmem:[%s183 + $0x28] sm:$0xf]
        %v270 = vld [vmem:[%s183 + $0x2c] sm:$0xf]
        %v271 = vld [vmem:[%s183 + $0x30] sm:$0xf]
        %v272 = vld [vmem:[%s183 + $0x34] sm:$0xf]
        %v273 = vld [vmem:[%s183 + $0x38] sm:$0xf]
        %v274 = vld [vmem:[%s183 + $0x3c] sm:$0xf]
        %v275 = vld [vmem:[%s183 + $0x40] sm:$0xf]
        %v276 = vld [vmem:[%s183 + $0x44] sm:$0xf]
        %v277 = vld [vmem:[%s183 + $0x48] sm:$0xf]
        %v278 = vld [vmem:[%s183 + $0x4c] sm:$0xf]
        %v279 = vld [vmem:[%s183 + $0x50] sm:$0xf]
        %v280 = vld [vmem:[%s183 + $0x54] sm:$0xf]
        %v281 = vld [vmem:[%s183 + $0x58] sm:$0xf]
        %v282 = vld [vmem:[%s183 + $0x5c] sm:$0xf]
        %v283 = vld [vmem:[%s183 + $0x60] sm:$0xf]
        %v284 = vld [vmem:[%s183 + $0x64] sm:$0xf]
        %v285 = vld [vmem:[%s183 + $0x68] sm:$0xf]
        %v286 = vld [vmem:[%s183 + $0x6c] sm:$0xf]
        %v287 = vld [vmem:[%s183 + $0x70] sm:$0xf]
        %v288 = vld [vmem:[%s183 + $0x74] sm:$0xf]
        %v289 = vld [vmem:[%s183 + $0x78] sm:$0xf]
        %v290 = vld [vmem:[%s183 + $0x7c] sm:$0xf]
        %vm323 = vcmask 1040384
        %vm324 = vcmask 1044484
        %vm325 = vmor %vm323, %vm324
        %v326 = vrot.slane %v259, 7
        %v327 = vrot.slane %v326, 4
        %v328 = vrot.slane %v260, 7
        %v329 = vsel %vm325, %v327, %v328
        %v330 = vrot.slane %v328, 4
        %v331 = vrot.slane %v261, 7
        %v332 = vrot.slane %v331, 4
        %v333 = vrot.slane %v262, 7
        %v334 = vsel %vm325, %v332, %v333
        %v335 = vrot.slane %v333, 4
        %v336 = vrot.slane %v263, 7
        %v337 = vrot.slane %v336, 4
        %v338 = vrot.slane %v264, 7
        %v339 = vsel %vm325, %v337, %v338
        %v340 = vrot.slane %v338, 4
        %v341 = vrot.slane %v265, 7
        %v342 = vrot.slane %v341, 4
        %v343 = vrot.slane %v266, 7
        %v344 = vsel %vm325, %v342, %v343
        %v345 = vrot.slane %v343, 4
        %v346 = vrot.slane %v267, 7
        %v347 = vrot.slane %v346, 4
        %v348 = vrot.slane %v268, 7
        %v349 = vsel %vm325, %v347, %v348
        %v350 = vrot.slane %v348, 4
        %v351 = vrot.slane %v269, 7
        %v352 = vrot.slane %v351, 4
        %v353 = vrot.slane %v270, 7
        %v354 = vsel %vm325, %v352, %v353
        %v355 = vrot.slane %v353, 4
        %v356 = vrot.slane %v271, 7
        %v357 = vrot.slane %v356, 4
        %v358 = vrot.slane %v272, 7
        %v359 = vsel %vm325, %v357, %v358
        %v360 = vrot.slane %v358, 4
        %v361 = vrot.slane %v273, 7
        %v362 = vrot.slane %v361, 4
        %v363 = vrot.slane %v274, 7
        %v364 = vsel %vm325, %v362, %v363
        %v365 = vrot.slane %v363, 4
        %v366 = vrot.slane %v275, 7
        %v367 = vrot.slane %v366, 4
        %v368 = vrot.slane %v276, 7
        %v369 = vsel %vm325, %v367, %v368
        %v370 = vrot.slane %v368, 4
        %v371 = vrot.slane %v277, 7
        %v372 = vrot.slane %v371, 4
        %v373 = vrot.slane %v278, 7
        %v374 = vsel %vm325, %v372, %v373
        %v375 = vrot.slane %v373, 4
        %v376 = vrot.slane %v279, 7
        %v377 = vrot.slane %v376, 4
        %v378 = vrot.slane %v280, 7
        %v379 = vsel %vm325, %v377, %v378
        %v380 = vrot.slane %v378, 4
        %v381 = vrot.slane %v281, 7
        %v382 = vrot.slane %v381, 4
        %v383 = vrot.slane %v282, 7
        %v384 = vsel %vm325, %v382, %v383
        %v385 = vrot.slane %v383, 4
        %v386 = vrot.slane %v283, 7
        %v387 = vrot.slane %v386, 4
        %v388 = vrot.slane %v284, 7
        %v389 = vsel %vm325, %v387, %v388
        %v390 = vrot.slane %v388, 4
        %v391 = vrot.slane %v285, 7
        %v392 = vrot.slane %v391, 4
        %v393 = vrot.slane %v286, 7
        %v394 = vsel %vm325, %v392, %v393
        %v395 = vrot.slane %v393, 4
        %v396 = vrot.slane %v287, 7
        %v397 = vrot.slane %v396, 4
        %v398 = vrot.slane %v288, 7
        %v399 = vsel %vm325, %v397, %v398
        %v400 = vrot.slane %v398, 4
        %v401 = vrot.slane %v289, 7
        %v402 = vrot.slane %v401, 4
        %v403 = vrot.slane %v290, 7
        %v404 = vsel %vm325, %v402, %v403
        %v405 = vrot.slane %v403, 4
        %s454 = scalar_lea.vmem [#allocation2], 24
        %455 = vst [vmem:[%s454] sm:$0xe] %v326
        %456 = vst [vmem:[%s454 + $0x4] sm:$0xf] %v329
        %457 = vst [vmem:[%s454 + $0x8] sm:$0x1] %v330
        %458 = vst [vmem:[%s454 + $0xc] sm:$0xe] %v331
        %459 = vst [vmem:[%s454 + $0x10] sm:$0xf] %v334
        %460 = vst [vmem:[%s454 + $0x14] sm:$0x1] %v335
        %461 = vst [vmem:[%s454 + $0x18] sm:$0xe] %v336
        %462 = vst [vmem:[%s454 + $0x1c] sm:$0xf] %v339
        %463 = vst [vmem:[%s454 + $0x20] sm:$0x1] %v340
        %464 = vst [vmem:[%s454 + $0x24] sm:$0xe] %v341
        %465 = vst [vmem:[%s454 + $0x28] sm:$0xf] %v344
        %466 = vst [vmem:[%s454 + $0x2c] sm:$0x1] %v345
        %467 = vst [vmem:[%s454 + $0x30] sm:$0xe] %v346
        %468 = vst [vmem:[%s454 + $0x34] sm:$0xf] %v349
        %469 = vst [vmem:[%s454 + $0x38] sm:$0x1] %v350
        %470 = vst [vmem:[%s454 + $0x3c] sm:$0xe] %v351
        %471 = vst [vmem:[%s454 + $0x40] sm:$0xf] %v354
        %472 = vst [vmem:[%s454 + $0x44] sm:$0x1] %v355
        %473 = vst [vmem:[%s454 + $0x48] sm:$0xe] %v356
        %474 = vst [vmem:[%s454 + $0x4c] sm:$0xf] %v359
        %475 = vst [vmem:[%s454 + $0x50] sm:$0x1] %v360
        %476 = vst [vmem:[%s454 + $0x54] sm:$0xe] %v361
        %477 = vst [vmem:[%s454 + $0x58] sm:$0xf] %v364
        %478 = vst [vmem:[%s454 + $0x5c] sm:$0x1] %v365
        %479 = vst [vmem:[%s454 + $0x60] sm:$0xe] %v366
        %480 = vst [vmem:[%s454 + $0x64] sm:$0xf] %v369
        %481 = vst [vmem:[%s454 + $0x68] sm:$0x1] %v370
        %482 = vst [vmem:[%s454 + $0x6c] sm:$0xe] %v371
        %483 = vst [vmem:[%s454 + $0x70] sm:$0xf] %v374
        %484 = vst [vmem:[%s454 + $0x74] sm:$0x1] %v375
        %485 = vst [vmem:[%s454 + $0x78] sm:$0xe] %v376
        %486 = vst [vmem:[%s454 + $0x7c] sm:$0xf] %v379
        %487 = vst [vmem:[%s454 + $0x80] sm:$0x1] %v380
        %488 = vst [vmem:[%s454 + $0x84] sm:$0xe] %v381
        %489 = vst [vmem:[%s454 + $0x88] sm:$0xf] %v384
        %490 = vst [vmem:[%s454 + $0x8c] sm:$0x1] %v385
        %491 = vst [vmem:[%s454 + $0x90] sm:$0xe] %v386
        %492 = vst [vmem:[%s454 + $0x94] sm:$0xf] %v389
        %493 = vst [vmem:[%s454 + $0x98] sm:$0x1] %v390
        %494 = vst [vmem:[%s454 + $0x9c] sm:$0xe] %v391
        %495 = vst [vmem:[%s454 + $0xa0] sm:$0xf] %v394
        %496 = vst [vmem:[%s454 + $0xa4] sm:$0x1] %v395
        %497 = vst [vmem:[%s454 + $0xa8] sm:$0xe] %v396
        %498 = vst [vmem:[%s454 + $0xac] sm:$0xf] %v399
        %499 = vst [vmem:[%s454 + $0xb0] sm:$0x1] %v400
        %500 = vst [vmem:[%s454 + $0xb4] sm:$0xe] %v401
        %501 = vst [vmem:[%s454 + $0xb8] sm:$0xf] %v404
        %502 = vst [vmem:[%s454 + $0xbc] sm:$0x1] %v405
      $region36: #{inception_forward.6} parent=31 // pred_fallthru
        _
      %s503 = smul.u32 %s19, 8
      %s504 = smul.u32 %s503, 3
      %s505 = smul.addr %s504, 4
      %s506 = scalar_lea.vmem [#allocation2], %s505
      %v507 = vld [vmem:[%s506] sm:$0xf]
      %v508 = vld [vmem:[%s506 + $0x4] sm:$0xf]
      %v509 = vld [vmem:[%s506 + $0x8] sm:$0x3]
      %v510 = vld [vmem:[%s506 + $0xc] sm:$0xf]
      %v511 = vld [vmem:[%s506 + $0x10] sm:$0xf]
      %v512 = vld [vmem:[%s506 + $0x14] sm:$0x3]
      %v513 = vld [vmem:[%s506 + $0x18] sm:$0xf]
      %v514 = vld [vmem:[%s506 + $0x1c] sm:$0xf]
      %v515 = vld [vmem:[%s506 + $0x20] sm:$0x3]
      %v516 = vld [vmem:[%s506 + $0x24] sm:$0xf]
      %v517 = vld [vmem:[%s506 + $0x28] sm:$0xf]
      %v518 = vld [vmem:[%s506 + $0x2c] sm:$0x3]
      %v519 = vld [vmem:[%s506 + $0x30] sm:$0xf]
      %v520 = vld [vmem:[%s506 + $0x34] sm:$0xf]
      %v521 = vld [vmem:[%s506 + $0x38] sm:$0x3]
      %v522 = vld [vmem:[%s506 + $0x3c] sm:$0xf]
      %v523 = vld [vmem:[%s506 + $0x40] sm:$0xf]
      %v524 = vld [vmem:[%s506 + $0x44] sm:$0x3]
      %v525 = vld [vmem:[%s506 + $0x48] sm:$0xf]
      %v526 = vld [vmem:[%s506 + $0x4c] sm:$0xf]
      %v527 = vld [vmem:[%s506 + $0x50] sm:$0x3]
      %v528 = vld [vmem:[%s506 + $0x54] sm:$0xf]
      %v529 = vld [vmem:[%s506 + $0x58] sm:$0xf]
      %v530 = vld [vmem:[%s506 + $0x5c] sm:$0x3]
      %v547 = vunpack.c.l.b16 %v507
      %v548 = vunpack.c.l.b16 %v508
      %v549 = vunpack.c.l.b16 %v510
      %v550 = vunpack.c.l.b16 %v511
      %v551 = vunpack.c.l.b16 %v513
      %v552 = vunpack.c.l.b16 %v514
      %v553 = vunpack.c.l.b16 %v516
      %v554 = vunpack.c.l.b16 %v517
      %v555 = vunpack.c.l.b16 %v519
      %v556 = vunpack.c.l.b16 %v520
      %v557 = vunpack.c.l.b16 %v522
      %v558 = vunpack.c.l.b16 %v523
      %v559 = vunpack.c.l.b16 %v525
      %v560 = vunpack.c.l.b16 %v526
      %v561 = vunpack.c.l.b16 %v528
      %v562 = vunpack.c.l.b16 %v529
      %v563 = vpack.c.b16 %v548, %v547
      %v564 = vpack.c.b16 %v550, %v549
      %v565 = vpack.c.b16 %v552, %v551
      %v566 = vpack.c.b16 %v554, %v553
      %v567 = vpack.c.b16 %v556, %v555
      %v568 = vpack.c.b16 %v558, %v557
      %v569 = vpack.c.b16 %v560, %v559
      %v570 = vpack.c.b16 %v562, %v561
      %579 = vst [vmem:[#allocation3] sm:$0xff] %v563
      %580 = vst [vmem:[#allocation3 + $0xc8] sm:$0xff] %v564
      %581 = vst [vmem:[#allocation3 + $0x190] sm:$0xff] %v565
      %582 = vst [vmem:[#allocation3 + $0x258] sm:$0xff] %v566
      %583 = vst [vmem:[#allocation3 + $0x320] sm:$0xff] %v567
      %584 = vst [vmem:[#allocation3 + $0x3e8] sm:$0xff] %v568
      %585 = vst [vmem:[#allocation3 + $0x4b0] sm:$0xff] %v569
      %586 = vst [vmem:[#allocation3 + $0x578] sm:$0xff] %v570
      %v595 = vunpack.c.l.b16 %v509
      %v596 = vunpack.c.l.b16 %v512
      %v597 = vunpack.c.l.b16 %v515
      %v598 = vunpack.c.l.b16 %v518
      %v599 = vunpack.c.l.b16 %v521
      %v600 = vunpack.c.l.b16 %v524
      %v601 = vunpack.c.l.b16 %v527
      %v602 = vunpack.c.l.b16 %v530
      %v603 = vpack.c.b16 %v595, %v595
      %v604 = vpack.c.b16 %v596, %v596
      %v605 = vpack.c.b16 %v597, %v597
      %v606 = vpack.c.b16 %v598, %v598
      %v607 = vpack.c.b16 %v599, %v599
      %v608 = vpack.c.b16 %v600, %v600
      %v609 = vpack.c.b16 %v601, %v601
      %v610 = vpack.c.b16 %v602, %v602
      %vm611 = vsmask.f32 7424
      %v613 = vshrl.u32 %v563, 16
      %v615 = vshll.u32 %v563, 16
      %v617 = vrot.slane %v615, 1
      %v618 = vor.u32 %v613, %v617
      %v620 = vshll.u32 %v603, 16
      %v622 = vrot.slane %v620, 1
      %v623 = vsel %vm611, %v618, %v622
      %v625 = vshrl.u32 %v564, 16
      %v627 = vshll.u32 %v564, 16
      %v629 = vrot.slane %v627, 1
      %v630 = vor.u32 %v625, %v629
      %v632 = vshll.u32 %v604, 16
      %v634 = vrot.slane %v632, 1
      %v635 = vsel %vm611, %v630, %v634
      %v637 = vshrl.u32 %v565, 16
      %v639 = vshll.u32 %v565, 16
      %v641 = vrot.slane %v639, 1
      %v642 = vor.u32 %v637, %v641
      %v644 = vshll.u32 %v605, 16
      %v646 = vrot.slane %v644, 1
      %v647 = vsel %vm611, %v642, %v646
      %v649 = vshrl.u32 %v566, 16
      %v651 = vshll.u32 %v566, 16
      %v653 = vrot.slane %v651, 1
      %v654 = vor.u32 %v649, %v653
      %v656 = vshll.u32 %v606, 16
      %v658 = vrot.slane %v656, 1
      %v659 = vsel %vm611, %v654, %v658
      %v661 = vshrl.u32 %v567, 16
      %v663 = vshll.u32 %v567, 16
      %v665 = vrot.slane %v663, 1
      %v666 = vor.u32 %v661, %v665
      %v668 = vshll.u32 %v607, 16
      %v670 = vrot.slane %v668, 1
      %v671 = vsel %vm611, %v666, %v670
      %v673 = vshrl.u32 %v568, 16
      %v675 = vshll.u32 %v568, 16
      %v677 = vrot.slane %v675, 1
      %v678 = vor.u32 %v673, %v677
      %v680 = vshll.u32 %v608, 16
      %v682 = vrot.slane %v680, 1
      %v683 = vsel %vm611, %v678, %v682
      %v685 = vshrl.u32 %v569, 16
      %v687 = vshll.u32 %v569, 16
      %v689 = vrot.slane %v687, 1
      %v690 = vor.u32 %v685, %v689
      %v692 = vshll.u32 %v609, 16
      %v694 = vrot.slane %v692, 1
      %v695 = vsel %vm611, %v690, %v694
      %v697 = vshrl.u32 %v570, 16
      %v699 = vshll.u32 %v570, 16
      %v701 = vrot.slane %v699, 1
      %v702 = vor.u32 %v697, %v701
      %v704 = vshll.u32 %v610, 16
      %v706 = vrot.slane %v704, 1
      %v707 = vsel %vm611, %v702, %v706
      %716 = vst [vmem:[#allocation3 + $0x8] sm:$0xff] %v623
      %717 = vst [vmem:[#allocation3 + $0xd0] sm:$0xff] %v635
      %718 = vst [vmem:[#allocation3 + $0x198] sm:$0xff] %v647
      %719 = vst [vmem:[#allocation3 + $0x260] sm:$0xff] %v659
      %720 = vst [vmem:[#allocation3 + $0x328] sm:$0xff] %v671
      %721 = vst [vmem:[#allocation3 + $0x3f0] sm:$0xff] %v683
      %722 = vst [vmem:[#allocation3 + $0x4b8] sm:$0xff] %v695
      %723 = vst [vmem:[#allocation3 + $0x580] sm:$0xff] %v707
      %vm724 = vcmask 1046528
      %v725 = vrot.slane %v563, 1
      %v726 = vrot.slane %v603, 1
      %v727 = vsel %vm724, %v725, %v726
      %v728 = vrot.slane %v564, 1
      %v729 = vrot.slane %v604, 1
      %v730 = vsel %vm724, %v728, %v729
      %v731 = vrot.slane %v565, 1
      %v732 = vrot.slane %v605, 1
      %v733 = vsel %vm724, %v731, %v732
      %v734 = vrot.slane %v566, 1
      %v735 = vrot.slane %v606, 1
      %v736 = vsel %vm724, %v734, %v735
      %v737 = vrot.slane %v567, 1
      %v738 = vrot.slane %v607, 1
      %v739 = vsel %vm724, %v737, %v738
      %v740 = vrot.slane %v568, 1
      %v741 = vrot.slane %v608, 1
      %v742 = vsel %vm724, %v740, %v741
      %v743 = vrot.slane %v569, 1
      %v744 = vrot.slane %v609, 1
      %v745 = vsel %vm724, %v743, %v744
      %v746 = vrot.slane %v570, 1
      %v747 = vrot.slane %v610, 1
      %v748 = vsel %vm724, %v746, %v747
      %757 = vst [vmem:[#allocation3 + $0x10] sm:$0xff] %v727
      %758 = vst [vmem:[#allocation3 + $0xd8] sm:$0xff] %v730
      %759 = vst [vmem:[#allocation3 + $0x1a0] sm:$0xff] %v733
      %760 = vst [vmem:[#allocation3 + $0x268] sm:$0xff] %v736
      %761 = vst [vmem:[#allocation3 + $0x330] sm:$0xff] %v739
      %762 = vst [vmem:[#allocation3 + $0x3f8] sm:$0xff] %v742
      %763 = vst [vmem:[#allocation3 + $0x4c0] sm:$0xff] %v745
      %764 = vst [vmem:[#allocation3 + $0x588] sm:$0xff] %v748
      %vm765 = vsmask.f32 6400
      %v766 = vrot.slane %v613, 1
      %v767 = vrot.slane %v615, 2
      %v768 = vor.u32 %v766, %v767
      %v769 = vshrl.u32 %v603, 16
      %v771 = vrot.slane %v769, 1
      %v772 = vrot.slane %v620, 2
      %v773 = vor.u32 %v771, %v772
      %v774 = vsel %vm765, %v768, %v773
      %v775 = vrot.slane %v625, 1
      %v776 = vrot.slane %v627, 2
      %v777 = vor.u32 %v775, %v776
      %v778 = vshrl.u32 %v604, 16
      %v780 = vrot.slane %v778, 1
      %v781 = vrot.slane %v632, 2
      %v782 = vor.u32 %v780, %v781
      %v783 = vsel %vm765, %v777, %v782
      %v784 = vrot.slane %v637, 1
      %v785 = vrot.slane %v639, 2
      %v786 = vor.u32 %v784, %v785
      %v787 = vshrl.u32 %v605, 16
      %v789 = vrot.slane %v787, 1
      %v790 = vrot.slane %v644, 2
      %v791 = vor.u32 %v789, %v790
      %v792 = vsel %vm765, %v786, %v791
      %v793 = vrot.slane %v649, 1
      %v794 = vrot.slane %v651, 2
      %v795 = vor.u32 %v793, %v794
      %v796 = vshrl.u32 %v606, 16
      %v798 = vrot.slane %v796, 1
      %v799 = vrot.slane %v656, 2
      %v800 = vor.u32 %v798, %v799
      %v801 = vsel %vm765, %v795, %v800
      %v802 = vrot.slane %v661, 1
      %v803 = vrot.slane %v663, 2
      %v804 = vor.u32 %v802, %v803
      %v805 = vshrl.u32 %v607, 16
      %v807 = vrot.slane %v805, 1
      %v808 = vrot.slane %v668, 2
      %v809 = vor.u32 %v807, %v808
      %v810 = vsel %vm765, %v804, %v809
      %v811 = vrot.slane %v673, 1
      %v812 = vrot.slane %v675, 2
      %v813 = vor.u32 %v811, %v812
      %v814 = vshrl.u32 %v608, 16
      %v816 = vrot.slane %v814, 1
      %v817 = vrot.slane %v680, 2
      %v818 = vor.u32 %v816, %v817
      %v819 = vsel %vm765, %v813, %v818
      %v820 = vrot.slane %v685, 1
      %v821 = vrot.slane %v687, 2
      %v822 = vor.u32 %v820, %v821
      %v823 = vshrl.u32 %v609, 16
      %v825 = vrot.slane %v823, 1
      %v826 = vrot.slane %v692, 2
      %v827 = vor.u32 %v825, %v826
      %v828 = vsel %vm765, %v822, %v827
      %v829 = vrot.slane %v697, 1
      %v830 = vrot.slane %v699, 2
      %v831 = vor.u32 %v829, %v830
      %v832 = vshrl.u32 %v610, 16
      %v834 = vrot.slane %v832, 1
      %v835 = vrot.slane %v704, 2
      %v836 = vor.u32 %v834, %v835
      %v837 = vsel %vm765, %v831, %v836
      %846 = vst [vmem:[#allocation3 + $0x18] sm:$0xff] %v774
      %847 = vst [vmem:[#allocation3 + $0xe0] sm:$0xff] %v783
      %848 = vst [vmem:[#allocation3 + $0x1a8] sm:$0xff] %v792
      %849 = vst [vmem:[#allocation3 + $0x270] sm:$0xff] %v801
      %850 = vst [vmem:[#allocation3 + $0x338] sm:$0xff] %v810
      %851 = vst [vmem:[#allocation3 + $0x400] sm:$0xff] %v819
      %852 = vst [vmem:[#allocation3 + $0x4c8] sm:$0xff] %v828
      %853 = vst [vmem:[#allocation3 + $0x590] sm:$0xff] %v837
      %vm854 = vcmask 1045504
      %v855 = vrot.slane %v563, 2
      %v856 = vrot.slane %v603, 2
      %v857 = vsel %vm854, %v855, %v856
      %v858 = vrot.slane %v564, 2
      %v859 = vrot.slane %v604, 2
      %v860 = vsel %vm854, %v858, %v859
      %v861 = vrot.slane %v565, 2
      %v862 = vrot.slane %v605, 2
      %v863 = vsel %vm854, %v861, %v862
      %v864 = vrot.slane %v566, 2
      %v865 = vrot.slane %v606, 2
      %v866 = vsel %vm854, %v864, %v865
      %v867 = vrot.slane %v567, 2
      %v868 = vrot.slane %v607, 2
      %v869 = vsel %vm854, %v867, %v868
      %v870 = vrot.slane %v568, 2
      %v871 = vrot.slane %v608, 2
      %v872 = vsel %vm854, %v870, %v871
      %v873 = vrot.slane %v569, 2
      %v874 = vrot.slane %v609, 2
      %v875 = vsel %vm854, %v873, %v874
      %v876 = vrot.slane %v570, 2
      %v877 = vrot.slane %v610, 2
      %v878 = vsel %vm854, %v876, %v877
      %887 = vst [vmem:[#allocation3 + $0x20] sm:$0xff] %v857
      %888 = vst [vmem:[#allocation3 + $0xe8] sm:$0xff] %v860
      %889 = vst [vmem:[#allocation3 + $0x1b0] sm:$0xff] %v863
      %890 = vst [vmem:[#allocation3 + $0x278] sm:$0xff] %v866
      %891 = vst [vmem:[#allocation3 + $0x340] sm:$0xff] %v869
      %892 = vst [vmem:[#allocation3 + $0x408] sm:$0xff] %v872
      %893 = vst [vmem:[#allocation3 + $0x4d0] sm:$0xff] %v875
      %894 = vst [vmem:[#allocation3 + $0x598] sm:$0xff] %v878
      %s895 = sadd.s32 %s503, 1
      %s896 = smul.u32 %s895, 3
      %s897 = smul.addr %s896, 4
      %s898 = scalar_lea.vmem [#allocation2], %s897
      %v899 = vld [vmem:[%s898] sm:$0xf]
      %v900 = vld [vmem:[%s898 + $0x4] sm:$0xf]
      %v901 = vld [vmem:[%s898 + $0x8] sm:$0x3]
      %v902 = vld [vmem:[%s898 + $0xc] sm:$0xf]
      %v903 = vld [vmem:[%s898 + $0x10] sm:$0xf]
      %v904 = vld [vmem:[%s898 + $0x14] sm:$0x3]
      %v905 = vld [vmem:[%s898 + $0x18] sm:$0xf]
      %v906 = vld [vmem:[%s898 + $0x1c] sm:$0xf]
      %v907 = vld [vmem:[%s898 + $0x20] sm:$0x3]
      %v908 = vld [vmem:[%s898 + $0x24] sm:$0xf]
      %v909 = vld [vmem:[%s898 + $0x28] sm:$0xf]
      %v910 = vld [vmem:[%s898 + $0x2c] sm:$0x3]
      %v911 = vld [vmem:[%s898 + $0x30] sm:$0xf]
      %v912 = vld [vmem:[%s898 + $0x34] sm:$0xf]
      %v913 = vld [vmem:[%s898 + $0x38] sm:$0x3]
      %v914 = vld [vmem:[%s898 + $0x3c] sm:$0xf]
      %v915 = vld [vmem:[%s898 + $0x40] sm:$0xf]
      %v916 = vld [vmem:[%s898 + $0x44] sm:$0x3]
      %v917 = vld [vmem:[%s898 + $0x48] sm:$0xf]
      %v918 = vld [vmem:[%s898 + $0x4c] sm:$0xf]
      %v919 = vld [vmem:[%s898 + $0x50] sm:$0x3]
      %v920 = vld [vmem:[%s898 + $0x54] sm:$0xf]
      %v921 = vld [vmem:[%s898 + $0x58] sm:$0xf]
      %v922 = vld [vmem:[%s898 + $0x5c] sm:$0x3]
      %v939 = vunpack.c.l.b16 %v899
      %v940 = vunpack.c.l.b16 %v900
      %v941 = vunpack.c.l.b16 %v902
      %v942 = vunpack.c.l.b16 %v903
      %v943 = vunpack.c.l.b16 %v905
      %v944 = vunpack.c.l.b16 %v906
      %v945 = vunpack.c.l.b16 %v908
      %v946 = vunpack.c.l.b16 %v909
      %v947 = vunpack.c.l.b16 %v911
      %v948 = vunpack.c.l.b16 %v912
      %v949 = vunpack.c.l.b16 %v914
      %v950 = vunpack.c.l.b16 %v915
      %v951 = vunpack.c.l.b16 %v917
      %v952 = vunpack.c.l.b16 %v918
      %v953 = vunpack.c.l.b16 %v920
      %v954 = vunpack.c.l.b16 %v921
      %v955 = vpack.c.b16 %v940, %v939
      %v956 = vpack.c.b16 %v942, %v941
      %v957 = vpack.c.b16 %v944, %v943
      %v958 = vpack.c.b16 %v946, %v945
      %v959 = vpack.c.b16 %v948, %v947
      %v960 = vpack.c.b16 %v950, %v949
      %v961 = vpack.c.b16 %v952, %v951
      %v962 = vpack.c.b16 %v954, %v953
      %971 = vst [vmem:[#allocation3 + $0x28] sm:$0xff] %v955
      %972 = vst [vmem:[#allocation3 + $0xf0] sm:$0xff] %v956
      %973 = vst [vmem:[#allocation3 + $0x1b8] sm:$0xff] %v957
      %974 = vst [vmem:[#allocation3 + $0x280] sm:$0xff] %v958
      %975 = vst [vmem:[#allocation3 + $0x348] sm:$0xff] %v959
      %976 = vst [vmem:[#allocation3 + $0x410] sm:$0xff] %v960
      %977 = vst [vmem:[#allocation3 + $0x4d8] sm:$0xff] %v961
      %978 = vst [vmem:[#allocation3 + $0x5a0] sm:$0xff] %v962
      %v987 = vunpack.c.l.b16 %v901
      %v988 = vunpack.c.l.b16 %v904
      %v989 = vunpack.c.l.b16 %v907
      %v990 = vunpack.c.l.b16 %v910
      %v991 = vunpack.c.l.b16 %v913
      %v992 = vunpack.c.l.b16 %v916
      %v993 = vunpack.c.l.b16 %v919
      %v994 = vunpack.c.l.b16 %v922
      %v995 = vpack.c.b16 %v987, %v987
      %v996 = vpack.c.b16 %v988, %v988
      %v997 = vpack.c.b16 %v989, %v989
      %v998 = vpack.c.b16 %v990, %v990
      %v999 = vpack.c.b16 %v991, %v991
      %v1000 = vpack.c.b16 %v992, %v992
      %v1001 = vpack.c.b16 %v993, %v993
      %v1002 = vpack.c.b16 %v994, %v994
      %v1004 = vshrl.u32 %v955, 16
      %v1006 = vshll.u32 %v955, 16
      %v1008 = vrot.slane %v1006, 1
      %v1009 = vor.u32 %v1004, %v1008
      %v1011 = vshll.u32 %v995, 16
      %v1013 = vrot.slane %v1011, 1
      %v1014 = vsel %vm611, %v1009, %v1013
      %v1016 = vshrl.u32 %v956, 16
      %v1018 = vshll.u32 %v956, 16
      %v1020 = vrot.slane %v1018, 1
      %v1021 = vor.u32 %v1016, %v1020
      %v1023 = vshll.u32 %v996, 16
      %v1025 = vrot.slane %v1023, 1
      %v1026 = vsel %vm611, %v1021, %v1025
      %v1028 = vshrl.u32 %v957, 16
      %v1030 = vshll.u32 %v957, 16
      %v1032 = vrot.slane %v1030, 1
      %v1033 = vor.u32 %v1028, %v1032
      %v1035 = vshll.u32 %v997, 16
      %v1037 = vrot.slane %v1035, 1
      %v1038 = vsel %vm611, %v1033, %v1037
      %v1040 = vshrl.u32 %v958, 16
      %v1042 = vshll.u32 %v958, 16
      %v1044 = vrot.slane %v1042, 1
      %v1045 = vor.u32 %v1040, %v1044
      %v1047 = vshll.u32 %v998, 16
      %v1049 = vrot.slane %v1047, 1
      %v1050 = vsel %vm611, %v1045, %v1049
      %v1052 = vshrl.u32 %v959, 16
      %v1054 = vshll.u32 %v959, 16
      %v1056 = vrot.slane %v1054, 1
      %v1057 = vor.u32 %v1052, %v1056
      %v1059 = vshll.u32 %v999, 16
      %v1061 = vrot.slane %v1059, 1
      %v1062 = vsel %vm611, %v1057, %v1061
      %v1064 = vshrl.u32 %v960, 16
      %v1066 = vshll.u32 %v960, 16
      %v1068 = vrot.slane %v1066, 1
      %v1069 = vor.u32 %v1064, %v1068
      %v1071 = vshll.u32 %v1000, 16
      %v1073 = vrot.slane %v1071, 1
      %v1074 = vsel %vm611, %v1069, %v1073
      %v1076 = vshrl.u32 %v961, 16
      %v1078 = vshll.u32 %v961, 16
      %v1080 = vrot.slane %v1078, 1
      %v1081 = vor.u32 %v1076, %v1080
      %v1083 = vshll.u32 %v1001, 16
      %v1085 = vrot.slane %v1083, 1
      %v1086 = vsel %vm611, %v1081, %v1085
      %v1088 = vshrl.u32 %v962, 16
      %v1090 = vshll.u32 %v962, 16
      %v1092 = vrot.slane %v1090, 1
      %v1093 = vor.u32 %v1088, %v1092
      %v1095 = vshll.u32 %v1002, 16
      %v1097 = vrot.slane %v1095, 1
      %v1098 = vsel %vm611, %v1093, %v1097
      %1107 = vst [vmem:[#allocation3 + $0x30] sm:$0xff] %v1014
      %1108 = vst [vmem:[#allocation3 + $0xf8] sm:$0xff] %v1026
      %1109 = vst [vmem:[#allocation3 + $0x1c0] sm:$0xff] %v1038
      %1110 = vst [vmem:[#allocation3 + $0x288] sm:$0xff] %v1050
      %1111 = vst [vmem:[#allocation3 + $0x350] sm:$0xff] %v1062
      %1112 = vst [vmem:[#allocation3 + $0x418] sm:$0xff] %v1074
      %1113 = vst [vmem:[#allocation3 + $0x4e0] sm:$0xff] %v1086
      %1114 = vst [vmem:[#allocation3 + $0x5a8] sm:$0xff] %v1098
      %v1115 = vrot.slane %v955, 1
      %v1116 = vrot.slane %v995, 1
      %v1117 = vsel %vm724, %v1115, %v1116
      %v1118 = vrot.slane %v956, 1
      %v1119 = vrot.slane %v996, 1
      %v1120 = vsel %vm724, %v1118, %v1119
      %v1121 = vrot.slane %v957, 1
      %v1122 = vrot.slane %v997, 1
      %v1123 = vsel %vm724, %v1121, %v1122
      %v1124 = vrot.slane %v958, 1
      %v1125 = vrot.slane %v998, 1
      %v1126 = vsel %vm724, %v1124, %v1125
      %v1127 = vrot.slane %v959, 1
      %v1128 = vrot.slane %v999, 1
      %v1129 = vsel %vm724, %v1127, %v1128
      %v1130 = vrot.slane %v960, 1
      %v1131 = vrot.slane %v1000, 1
      %v1132 = vsel %vm724, %v1130, %v1131
      %v1133 = vrot.slane %v961, 1
      %v1134 = vrot.slane %v1001, 1
      %v1135 = vsel %vm724, %v1133, %v1134
      %v1136 = vrot.slane %v962, 1
      %v1137 = vrot.slane %v1002, 1
      %v1138 = vsel %vm724, %v1136, %v1137
      %1147 = vst [vmem:[#allocation3 + $0x38] sm:$0xff] %v1117
      %1148 = vst [vmem:[#allocation3 + $0x100] sm:$0xff] %v1120
      %1149 = vst [vmem:[#allocation3 + $0x1c8] sm:$0xff] %v1123
      %1150 = vst [vmem:[#allocation3 + $0x290] sm:$0xff] %v1126
      %1151 = vst [vmem:[#allocation3 + $0x358] sm:$0xff] %v1129
      %1152 = vst [vmem:[#allocation3 + $0x420] sm:$0xff] %v1132
      %1153 = vst [vmem:[#allocation3 + $0x4e8] sm:$0xff] %v1135
      %1154 = vst [vmem:[#allocation3 + $0x5b0] sm:$0xff] %v1138
      %v1155 = vrot.slane %v1004, 1
      %v1156 = vrot.slane %v1006, 2
      %v1157 = vor.u32 %v1155, %v1156
      %v1158 = vshrl.u32 %v995, 16
      %v1160 = vrot.slane %v1158, 1
      %v1161 = vrot.slane %v1011, 2
      %v1162 = vor.u32 %v1160, %v1161
      %v1163 = vsel %vm765, %v1157, %v1162
      %v1164 = vrot.slane %v1016, 1
      %v1165 = vrot.slane %v1018, 2
      %v1166 = vor.u32 %v1164, %v1165
      %v1167 = vshrl.u32 %v996, 16
      %v1169 = vrot.slane %v1167, 1
      %v1170 = vrot.slane %v1023, 2
      %v1171 = vor.u32 %v1169, %v1170
      %v1172 = vsel %vm765, %v1166, %v1171
      %v1173 = vrot.slane %v1028, 1
      %v1174 = vrot.slane %v1030, 2
      %v1175 = vor.u32 %v1173, %v1174
      %v1176 = vshrl.u32 %v997, 16
      %v1178 = vrot.slane %v1176, 1
      %v1179 = vrot.slane %v1035, 2
      %v1180 = vor.u32 %v1178, %v1179
      %v1181 = vsel %vm765, %v1175, %v1180
      %v1182 = vrot.slane %v1040, 1
      %v1183 = vrot.slane %v1042, 2
      %v1184 = vor.u32 %v1182, %v1183
      %v1185 = vshrl.u32 %v998, 16
      %v1187 = vrot.slane %v1185, 1
      %v1188 = vrot.slane %v1047, 2
      %v1189 = vor.u32 %v1187, %v1188
      %v1190 = vsel %vm765, %v1184, %v1189
      %v1191 = vrot.slane %v1052, 1
      %v1192 = vrot.slane %v1054, 2
      %v1193 = vor.u32 %v1191, %v1192
      %v1194 = vshrl.u32 %v999, 16
      %v1196 = vrot.slane %v1194, 1
      %v1197 = vrot.slane %v1059, 2
      %v1198 = vor.u32 %v1196, %v1197
      %v1199 = vsel %vm765, %v1193, %v1198
      %v1200 = vrot.slane %v1064, 1
      %v1201 = vrot.slane %v1066, 2
      %v1202 = vor.u32 %v1200, %v1201
      %v1203 = vshrl.u32 %v1000, 16
      %v1205 = vrot.slane %v1203, 1
      %v1206 = vrot.slane %v1071, 2
      %v1207 = vor.u32 %v1205, %v1206
      %v1208 = vsel %vm765, %v1202, %v1207
      %v1209 = vrot.slane %v1076, 1
      %v1210 = vrot.slane %v1078, 2
      %v1211 = vor.u32 %v1209, %v1210
      %v1212 = vshrl.u32 %v1001, 16
      %v1214 = vrot.slane %v1212, 1
      %v1215 = vrot.slane %v1083, 2
      %v1216 = vor.u32 %v1214, %v1215
      %v1217 = vsel %vm765, %v1211, %v1216
      %v1218 = vrot.slane %v1088, 1
      %v1219 = vrot.slane %v1090, 2
      %v1220 = vor.u32 %v1218, %v1219
      %v1221 = vshrl.u32 %v1002, 16
      %v1223 = vrot.slane %v1221, 1
      %v1224 = vrot.slane %v1095, 2
      %v1225 = vor.u32 %v1223, %v1224
      %v1226 = vsel %vm765, %v1220, %v1225
      %1235 = vst [vmem:[#allocation3 + $0x40] sm:$0xff] %v1163
      %1236 = vst [vmem:[#allocation3 + $0x108] sm:$0xff] %v1172
      %1237 = vst [vmem:[#allocation3 + $0x1d0] sm:$0xff] %v1181
      %1238 = vst [vmem:[#allocation3 + $0x298] sm:$0xff] %v1190
      %1239 = vst [vmem:[#allocation3 + $0x360] sm:$0xff] %v1199
      %1240 = vst [vmem:[#allocation3 + $0x428] sm:$0xff] %v1208
      %1241 = vst [vmem:[#allocation3 + $0x4f0] sm:$0xff] %v1217
      %1242 = vst [vmem:[#allocation3 + $0x5b8] sm:$0xff] %v1226
      %v1243 = vrot.slane %v955, 2
      %v1244 = vrot.slane %v995, 2
      %v1245 = vsel %vm854, %v1243, %v1244
      %v1246 = vrot.slane %v956, 2
      %v1247 = vrot.slane %v996, 2
      %v1248 = vsel %vm854, %v1246, %v1247
      %v1249 = vrot.slane %v957, 2
      %v1250 = vrot.slane %v997, 2
      %v1251 = vsel %vm854, %v1249, %v1250
      %v1252 = vrot.slane %v958, 2
      %v1253 = vrot.slane %v998, 2
      %v1254 = vsel %vm854, %v1252, %v1253
      %v1255 = vrot.slane %v959, 2
      %v1256 = vrot.slane %v999, 2
      %v1257 = vsel %vm854, %v1255, %v1256
      %v1258 = vrot.slane %v960, 2
      %v1259 = vrot.slane %v1000, 2
      %v1260 = vsel %vm854, %v1258, %v1259
      %v1261 = vrot.slane %v961, 2
      %v1262 = vrot.slane %v1001, 2
      %v1263 = vsel %vm854, %v1261, %v1262
      %v1264 = vrot.slane %v962, 2
      %v1265 = vrot.slane %v1002, 2
      %v1266 = vsel %vm854, %v1264, %v1265
      %1275 = vst [vmem:[#allocation3 + $0x48] sm:$0xff] %v1245
      %1276 = vst [vmem:[#allocation3 + $0x110] sm:$0xff] %v1248
      %1277 = vst [vmem:[#allocation3 + $0x1d8] sm:$0xff] %v1251
      %1278 = vst [vmem:[#allocation3 + $0x2a0] sm:$0xff] %v1254
      %1279 = vst [vmem:[#allocation3 + $0x368] sm:$0xff] %v1257
      %1280 = vst [vmem:[#allocation3 + $0x430] sm:$0xff] %v1260
      %1281 = vst [vmem:[#allocation3 + $0x4f8] sm:$0xff] %v1263
      %1282 = vst [vmem:[#allocation3 + $0x5c0] sm:$0xff] %v1266
      %s1283 = sadd.s32 %s503, 2
      %s1284 = smul.u32 %s1283, 3
      %s1285 = smul.addr %s1284, 4
      %s1286 = scalar_lea.vmem [#allocation2], %s1285
      %v1287 = vld [vmem:[%s1286] sm:$0xf]
      %v1288 = vld [vmem:[%s1286 + $0x4] sm:$0xf]
      %v1289 = vld [vmem:[%s1286 + $0x8] sm:$0x3]
      %v1290 = vld [vmem:[%s1286 + $0xc] sm:$0xf]
      %v1291 = vld [vmem:[%s1286 + $0x10] sm:$0xf]
      %v1292 = vld [vmem:[%s1286 + $0x14] sm:$0x3]
      %v1293 = vld [vmem:[%s1286 + $0x18] sm:$0xf]
      %v1294 = vld [vmem:[%s1286 + $0x1c] sm:$0xf]
      %v1295 = vld [vmem:[%s1286 + $0x20] sm:$0x3]
      %v1296 = vld [vmem:[%s1286 + $0x24] sm:$0xf]
      %v1297 = vld [vmem:[%s1286 + $0x28] sm:$0xf]
      %v1298 = vld [vmem:[%s1286 + $0x2c] sm:$0x3]
      %v1299 = vld [vmem:[%s1286 + $0x30] sm:$0xf]
      %v1300 = vld [vmem:[%s1286 + $0x34] sm:$0xf]
      %v1301 = vld [vmem:[%s1286 + $0x38] sm:$0x3]
      %v1302 = vld [vmem:[%s1286 + $0x3c] sm:$0xf]
      %v1303 = vld [vmem:[%s1286 + $0x40] sm:$0xf]
      %v1304 = vld [vmem:[%s1286 + $0x44] sm:$0x3]
      %v1305 = vld [vmem:[%s1286 + $0x48] sm:$0xf]
      %v1306 = vld [vmem:[%s1286 + $0x4c] sm:$0xf]
      %v1307 = vld [vmem:[%s1286 + $0x50] sm:$0x3]
      %v1308 = vld [vmem:[%s1286 + $0x54] sm:$0xf]
      %v1309 = vld [vmem:[%s1286 + $0x58] sm:$0xf]
      %v1310 = vld [vmem:[%s1286 + $0x5c] sm:$0x3]
      %v1327 = vunpack.c.l.b16 %v1287
      %v1328 = vunpack.c.l.b16 %v1288
      %v1329 = vunpack.c.l.b16 %v1290
      %v1330 = vunpack.c.l.b16 %v1291
      %v1331 = vunpack.c.l.b16 %v1293
      %v1332 = vunpack.c.l.b16 %v1294
      %v1333 = vunpack.c.l.b16 %v1296
      %v1334 = vunpack.c.l.b16 %v1297
      %v1335 = vunpack.c.l.b16 %v1299
      %v1336 = vunpack.c.l.b16 %v1300
      %v1337 = vunpack.c.l.b16 %v1302
      %v1338 = vunpack.c.l.b16 %v1303
      %v1339 = vunpack.c.l.b16 %v1305
      %v1340 = vunpack.c.l.b16 %v1306
      %v1341 = vunpack.c.l.b16 %v1308
      %v1342 = vunpack.c.l.b16 %v1309
      %v1343 = vpack.c.b16 %v1328, %v1327
      %v1344 = vpack.c.b16 %v1330, %v1329
      %v1345 = vpack.c.b16 %v1332, %v1331
      %v1346 = vpack.c.b16 %v1334, %v1333
      %v1347 = vpack.c.b16 %v1336, %v1335
      %v1348 = vpack.c.b16 %v1338, %v1337
      %v1349 = vpack.c.b16 %v1340, %v1339
      %v1350 = vpack.c.b16 %v1342, %v1341
      %1359 = vst [vmem:[#allocation3 + $0x50] sm:$0xff] %v1343
      %1360 = vst [vmem:[#allocation3 + $0x118] sm:$0xff] %v1344
      %1361 = vst [vmem:[#allocation3 + $0x1e0] sm:$0xff] %v1345
      %1362 = vst [vmem:[#allocation3 + $0x2a8] sm:$0xff] %v1346
      %1363 = vst [vmem:[#allocation3 + $0x370] sm:$0xff] %v1347
      %1364 = vst [vmem:[#allocation3 + $0x438] sm:$0xff] %v1348
      %1365 = vst [vmem:[#allocation3 + $0x500] sm:$0xff] %v1349
      %1366 = vst [vmem:[#allocation3 + $0x5c8] sm:$0xff] %v1350
      %v1375 = vunpack.c.l.b16 %v1289
      %v1376 = vunpack.c.l.b16 %v1292
      %v1377 = vunpack.c.l.b16 %v1295
      %v1378 = vunpack.c.l.b16 %v1298
      %v1379 = vunpack.c.l.b16 %v1301
      %v1380 = vunpack.c.l.b16 %v1304
      %v1381 = vunpack.c.l.b16 %v1307
      %v1382 = vunpack.c.l.b16 %v1310
      %v1383 = vpack.c.b16 %v1375, %v1375
      %v1384 = vpack.c.b16 %v1376, %v1376
      %v1385 = vpack.c.b16 %v1377, %v1377
      %v1386 = vpack.c.b16 %v1378, %v1378
      %v1387 = vpack.c.b16 %v1379, %v1379
      %v1388 = vpack.c.b16 %v1380, %v1380
      %v1389 = vpack.c.b16 %v1381, %v1381
      %v1390 = vpack.c.b16 %v1382, %v1382
      %v1392 = vshrl.u32 %v1343, 16
      %v1394 = vshll.u32 %v1343, 16
      %v1396 = vrot.slane %v1394, 1
      %v1397 = vor.u32 %v1392, %v1396
      %v1399 = vshll.u32 %v1383, 16
      %v1401 = vrot.slane %v1399, 1
      %v1402 = vsel %vm611, %v1397, %v1401
      %v1404 = vshrl.u32 %v1344, 16
      %v1406 = vshll.u32 %v1344, 16
      %v1408 = vrot.slane %v1406, 1
      %v1409 = vor.u32 %v1404, %v1408
      %v1411 = vshll.u32 %v1384, 16
      %v1413 = vrot.slane %v1411, 1
      %v1414 = vsel %vm611, %v1409, %v1413
      %v1416 = vshrl.u32 %v1345, 16
      %v1418 = vshll.u32 %v1345, 16
      %v1420 = vrot.slane %v1418, 1
      %v1421 = vor.u32 %v1416, %v1420
      %v1423 = vshll.u32 %v1385, 16
      %v1425 = vrot.slane %v1423, 1
      %v1426 = vsel %vm611, %v1421, %v1425
      %v1428 = vshrl.u32 %v1346, 16
      %v1430 = vshll.u32 %v1346, 16
      %v1432 = vrot.slane %v1430, 1
      %v1433 = vor.u32 %v1428, %v1432
      %v1435 = vshll.u32 %v1386, 16
      %v1437 = vrot.slane %v1435, 1
      %v1438 = vsel %vm611, %v1433, %v1437
      %v1440 = vshrl.u32 %v1347, 16
      %v1442 = vshll.u32 %v1347, 16
      %v1444 = vrot.slane %v1442, 1
      %v1445 = vor.u32 %v1440, %v1444
      %v1447 = vshll.u32 %v1387, 16
      %v1449 = vrot.slane %v1447, 1
      %v1450 = vsel %vm611, %v1445, %v1449
      %v1452 = vshrl.u32 %v1348, 16
      %v1454 = vshll.u32 %v1348, 16
      %v1456 = vrot.slane %v1454, 1
      %v1457 = vor.u32 %v1452, %v1456
      %v1459 = vshll.u32 %v1388, 16
      %v1461 = vrot.slane %v1459, 1
      %v1462 = vsel %vm611, %v1457, %v1461
      %v1464 = vshrl.u32 %v1349, 16
      %v1466 = vshll.u32 %v1349, 16
      %v1468 = vrot.slane %v1466, 1
      %v1469 = vor.u32 %v1464, %v1468
      %v1471 = vshll.u32 %v1389, 16
      %v1473 = vrot.slane %v1471, 1
      %v1474 = vsel %vm611, %v1469, %v1473
      %v1476 = vshrl.u32 %v1350, 16
      %v1478 = vshll.u32 %v1350, 16
      %v1480 = vrot.slane %v1478, 1
      %v1481 = vor.u32 %v1476, %v1480
      %v1483 = vshll.u32 %v1390, 16
      %v1485 = vrot.slane %v1483, 1
      %v1486 = vsel %vm611, %v1481, %v1485
      %1495 = vst [vmem:[#allocation3 + $0x58] sm:$0xff] %v1402
      %1496 = vst [vmem:[#allocation3 + $0x120] sm:$0xff] %v1414
      %1497 = vst [vmem:[#allocation3 + $0x1e8] sm:$0xff] %v1426
      %1498 = vst [vmem:[#allocation3 + $0x2b0] sm:$0xff] %v1438
      %1499 = vst [vmem:[#allocation3 + $0x378] sm:$0xff] %v1450
      %1500 = vst [vmem:[#allocation3 + $0x440] sm:$0xff] %v1462
      %1501 = vst [vmem:[#allocation3 + $0x508] sm:$0xff] %v1474
      %1502 = vst [vmem:[#allocation3 + $0x5d0] sm:$0xff] %v1486
      %v1503 = vrot.slane %v1343, 1
      %v1504 = vrot.slane %v1383, 1
      %v1505 = vsel %vm724, %v1503, %v1504
      %v1506 = vrot.slane %v1344, 1
      %v1507 = vrot.slane %v1384, 1
      %v1508 = vsel %vm724, %v1506, %v1507
      %v1509 = vrot.slane %v1345, 1
      %v1510 = vrot.slane %v1385, 1
      %v1511 = vsel %vm724, %v1509, %v1510
      %v1512 = vrot.slane %v1346, 1
      %v1513 = vrot.slane %v1386, 1
      %v1514 = vsel %vm724, %v1512, %v1513
      %v1515 = vrot.slane %v1347, 1
      %v1516 = vrot.slane %v1387, 1
      %v1517 = vsel %vm724, %v1515, %v1516
      %v1518 = vrot.slane %v1348, 1
      %v1519 = vrot.slane %v1388, 1
      %v1520 = vsel %vm724, %v1518, %v1519
      %v1521 = vrot.slane %v1349, 1
      %v1522 = vrot.slane %v1389, 1
      %v1523 = vsel %vm724, %v1521, %v1522
      %v1524 = vrot.slane %v1350, 1
      %v1525 = vrot.slane %v1390, 1
      %v1526 = vsel %vm724, %v1524, %v1525
      %1535 = vst [vmem:[#allocation3 + $0x60] sm:$0xff] %v1505
      %1536 = vst [vmem:[#allocation3 + $0x128] sm:$0xff] %v1508
      %1537 = vst [vmem:[#allocation3 + $0x1f0] sm:$0xff] %v1511
      %1538 = vst [vmem:[#allocation3 + $0x2b8] sm:$0xff] %v1514
      %1539 = vst [vmem:[#allocation3 + $0x380] sm:$0xff] %v1517
      %1540 = vst [vmem:[#allocation3 + $0x448] sm:$0xff] %v1520
      %1541 = vst [vmem:[#allocation3 + $0x510] sm:$0xff] %v1523
      %1542 = vst [vmem:[#allocation3 + $0x5d8] sm:$0xff] %v1526
      %v1543 = vrot.slane %v1392, 1
      %v1544 = vrot.slane %v1394, 2
      %v1545 = vor.u32 %v1543, %v1544
      %v1546 = vshrl.u32 %v1383, 16
      %v1548 = vrot.slane %v1546, 1
      %v1549 = vrot.slane %v1399, 2
      %v1550 = vor.u32 %v1548, %v1549
      %v1551 = vsel %vm765, %v1545, %v1550
      %v1552 = vrot.slane %v1404, 1
      %v1553 = vrot.slane %v1406, 2
      %v1554 = vor.u32 %v1552, %v1553
      %v1555 = vshrl.u32 %v1384, 16
      %v1557 = vrot.slane %v1555, 1
      %v1558 = vrot.slane %v1411, 2
      %v1559 = vor.u32 %v1557, %v1558
      %v1560 = vsel %vm765, %v1554, %v1559
      %v1561 = vrot.slane %v1416, 1
      %v1562 = vrot.slane %v1418, 2
      %v1563 = vor.u32 %v1561, %v1562
      %v1564 = vshrl.u32 %v1385, 16
      %v1566 = vrot.slane %v1564, 1
      %v1567 = vrot.slane %v1423, 2
      %v1568 = vor.u32 %v1566, %v1567
      %v1569 = vsel %vm765, %v1563, %v1568
      %v1570 = vrot.slane %v1428, 1
      %v1571 = vrot.slane %v1430, 2
      %v1572 = vor.u32 %v1570, %v1571
      %v1573 = vshrl.u32 %v1386, 16
      %v1575 = vrot.slane %v1573, 1
      %v1576 = vrot.slane %v1435, 2
      %v1577 = vor.u32 %v1575, %v1576
      %v1578 = vsel %vm765, %v1572, %v1577
      %v1579 = vrot.slane %v1440, 1
      %v1580 = vrot.slane %v1442, 2
      %v1581 = vor.u32 %v1579, %v1580
      %v1582 = vshrl.u32 %v1387, 16
      %v1584 = vrot.slane %v1582, 1
      %v1585 = vrot.slane %v1447, 2
      %v1586 = vor.u32 %v1584, %v1585
      %v1587 = vsel %vm765, %v1581, %v1586
      %v1588 = vrot.slane %v1452, 1
      %v1589 = vrot.slane %v1454, 2
      %v1590 = vor.u32 %v1588, %v1589
      %v1591 = vshrl.u32 %v1388, 16
      %v1593 = vrot.slane %v1591, 1
      %v1594 = vrot.slane %v1459, 2
      %v1595 = vor.u32 %v1593, %v1594
      %v1596 = vsel %vm765, %v1590, %v1595
      %v1597 = vrot.slane %v1464, 1
      %v1598 = vrot.slane %v1466, 2
      %v1599 = vor.u32 %v1597, %v1598
      %v1600 = vshrl.u32 %v1389, 16
      %v1602 = vrot.slane %v1600, 1
      %v1603 = vrot.slane %v1471, 2
      %v1604 = vor.u32 %v1602, %v1603
      %v1605 = vsel %vm765, %v1599, %v1604
      %v1606 = vrot.slane %v1476, 1
      %v1607 = vrot.slane %v1478, 2
      %v1608 = vor.u32 %v1606, %v1607
      %v1609 = vshrl.u32 %v1390, 16
      %v1611 = vrot.slane %v1609, 1
      %v1612 = vrot.slane %v1483, 2
      %v1613 = vor.u32 %v1611, %v1612
      %v1614 = vsel %vm765, %v1608, %v1613
      %1623 = vst [vmem:[#allocation3 + $0x68] sm:$0xff] %v1551
      %1624 = vst [vmem:[#allocation3 + $0x130] sm:$0xff] %v1560
      %1625 = vst [vmem:[#allocation3 + $0x1f8] sm:$0xff] %v1569
      %1626 = vst [vmem:[#allocation3 + $0x2c0] sm:$0xff] %v1578
      %1627 = vst [vmem:[#allocation3 + $0x388] sm:$0xff] %v1587
      %1628 = vst [vmem:[#allocation3 + $0x450] sm:$0xff] %v1596
      %1629 = vst [vmem:[#allocation3 + $0x518] sm:$0xff] %v1605
      %1630 = vst [vmem:[#allocation3 + $0x5e0] sm:$0xff] %v1614
      %v1631 = vrot.slane %v1343, 2
      %v1632 = vrot.slane %v1383, 2
      %v1633 = vsel %vm854, %v1631, %v1632
      %v1634 = vrot.slane %v1344, 2
      %v1635 = vrot.slane %v1384, 2
      %v1636 = vsel %vm854, %v1634, %v1635
      %v1637 = vrot.slane %v1345, 2
      %v1638 = vrot.slane %v1385, 2
      %v1639 = vsel %vm854, %v1637, %v1638
      %v1640 = vrot.slane %v1346, 2
      %v1641 = vrot.slane %v1386, 2
      %v1642 = vsel %vm854, %v1640, %v1641
      %v1643 = vrot.slane %v1347, 2
      %v1644 = vrot.slane %v1387, 2
      %v1645 = vsel %vm854, %v1643, %v1644
      %v1646 = vrot.slane %v1348, 2
      %v1647 = vrot.slane %v1388, 2
      %v1648 = vsel %vm854, %v1646, %v1647
      %v1649 = vrot.slane %v1349, 2
      %v1650 = vrot.slane %v1389, 2
      %v1651 = vsel %vm854, %v1649, %v1650
      %v1652 = vrot.slane %v1350, 2
      %v1653 = vrot.slane %v1390, 2
      %v1654 = vsel %vm854, %v1652, %v1653
      %1663 = vst [vmem:[#allocation3 + $0x70] sm:$0xff] %v1633
      %1664 = vst [vmem:[#allocation3 + $0x138] sm:$0xff] %v1636
      %1665 = vst [vmem:[#allocation3 + $0x200] sm:$0xff] %v1639
      %1666 = vst [vmem:[#allocation3 + $0x2c8] sm:$0xff] %v1642
      %1667 = vst [vmem:[#allocation3 + $0x390] sm:$0xff] %v1645
      %1668 = vst [vmem:[#allocation3 + $0x458] sm:$0xff] %v1648
      %1669 = vst [vmem:[#allocation3 + $0x520] sm:$0xff] %v1651
      %1670 = vst [vmem:[#allocation3 + $0x5e8] sm:$0xff] %v1654
      %s1671 = sadd.s32 %s503, 3
      %s1672 = smul.u32 %s1671, 3
      %s1673 = smul.addr %s1672, 4
      %s1674 = scalar_lea.vmem [#allocation2], %s1673
      %v1675 = vld [vmem:[%s1674] sm:$0xf]
      %v1676 = vld [vmem:[%s1674 + $0x4] sm:$0xf]
      %v1677 = vld [vmem:[%s1674 + $0x8] sm:$0x3]
      %v1678 = vld [vmem:[%s1674 + $0xc] sm:$0xf]
      %v1679 = vld [vmem:[%s1674 + $0x10] sm:$0xf]
      %v1680 = vld [vmem:[%s1674 + $0x14] sm:$0x3]
      %v1681 = vld [vmem:[%s1674 + $0x18] sm:$0xf]
      %v1682 = vld [vmem:[%s1674 + $0x1c] sm:$0xf]
      %v1683 = vld [vmem:[%s1674 + $0x20] sm:$0x3]
      %v1684 = vld [vmem:[%s1674 + $0x24] sm:$0xf]
      %v1685 = vld [vmem:[%s1674 + $0x28] sm:$0xf]
      %v1686 = vld [vmem:[%s1674 + $0x2c] sm:$0x3]
      %v1687 = vld [vmem:[%s1674 + $0x30] sm:$0xf]
      %v1688 = vld [vmem:[%s1674 + $0x34] sm:$0xf]
      %v1689 = vld [vmem:[%s1674 + $0x38] sm:$0x3]
      %v1690 = vld [vmem:[%s1674 + $0x3c] sm:$0xf]
      %v1691 = vld [vmem:[%s1674 + $0x40] sm:$0xf]
      %v1692 = vld [vmem:[%s1674 + $0x44] sm:$0x3]
      %v1693 = vld [vmem:[%s1674 + $0x48] sm:$0xf]
      %v1694 = vld [vmem:[%s1674 + $0x4c] sm:$0xf]
      %v1695 = vld [vmem:[%s1674 + $0x50] sm:$0x3]
      %v1696 = vld [vmem:[%s1674 + $0x54] sm:$0xf]
      %v1697 = vld [vmem:[%s1674 + $0x58] sm:$0xf]
      %v1698 = vld [vmem:[%s1674 + $0x5c] sm:$0x3]
      %v1715 = vunpack.c.l.b16 %v1675
      %v1716 = vunpack.c.l.b16 %v1676
      %v1717 = vunpack.c.l.b16 %v1678
      %v1718 = vunpack.c.l.b16 %v1679
      %v1719 = vunpack.c.l.b16 %v1681
      %v1720 = vunpack.c.l.b16 %v1682
      %v1721 = vunpack.c.l.b16 %v1684
      %v1722 = vunpack.c.l.b16 %v1685
      %v1723 = vunpack.c.l.b16 %v1687
      %v1724 = vunpack.c.l.b16 %v1688
      %v1725 = vunpack.c.l.b16 %v1690
      %v1726 = vunpack.c.l.b16 %v1691
      %v1727 = vunpack.c.l.b16 %v1693
      %v1728 = vunpack.c.l.b16 %v1694
      %v1729 = vunpack.c.l.b16 %v1696
      %v1730 = vunpack.c.l.b16 %v1697
      %v1731 = vpack.c.b16 %v1716, %v1715
      %v1732 = vpack.c.b16 %v1718, %v1717
      %v1733 = vpack.c.b16 %v1720, %v1719
      %v1734 = vpack.c.b16 %v1722, %v1721
      %v1735 = vpack.c.b16 %v1724, %v1723
      %v1736 = vpack.c.b16 %v1726, %v1725
      %v1737 = vpack.c.b16 %v1728, %v1727
      %v1738 = vpack.c.b16 %v1730, %v1729
      %1747 = vst [vmem:[#allocation3 + $0x78] sm:$0xff] %v1731
      %1748 = vst [vmem:[#allocation3 + $0x140] sm:$0xff] %v1732
      %1749 = vst [vmem:[#allocation3 + $0x208] sm:$0xff] %v1733
      %1750 = vst [vmem:[#allocation3 + $0x2d0] sm:$0xff] %v1734
      %1751 = vst [vmem:[#allocation3 + $0x398] sm:$0xff] %v1735
      %1752 = vst [vmem:[#allocation3 + $0x460] sm:$0xff] %v1736
      %1753 = vst [vmem:[#allocation3 + $0x528] sm:$0xff] %v1737
      %1754 = vst [vmem:[#allocation3 + $0x5f0] sm:$0xff] %v1738
      %v1763 = vunpack.c.l.b16 %v1677
      %v1764 = vunpack.c.l.b16 %v1680
      %v1765 = vunpack.c.l.b16 %v1683
      %v1766 = vunpack.c.l.b16 %v1686
      %v1767 = vunpack.c.l.b16 %v1689
      %v1768 = vunpack.c.l.b16 %v1692
      %v1769 = vunpack.c.l.b16 %v1695
      %v1770 = vunpack.c.l.b16 %v1698
      %v1771 = vpack.c.b16 %v1763, %v1763
      %v1772 = vpack.c.b16 %v1764, %v1764
      %v1773 = vpack.c.b16 %v1765, %v1765
      %v1774 = vpack.c.b16 %v1766, %v1766
      %v1775 = vpack.c.b16 %v1767, %v1767
      %v1776 = vpack.c.b16 %v1768, %v1768
      %v1777 = vpack.c.b16 %v1769, %v1769
      %v1778 = vpack.c.b16 %v1770, %v1770
      %v1780 = vshrl.u32 %v1731, 16
      %v1782 = vshll.u32 %v1731, 16
      %v1784 = vrot.slane %v1782, 1
      %v1785 = vor.u32 %v1780, %v1784
      %v1787 = vshll.u32 %v1771, 16
      %v1789 = vrot.slane %v1787, 1
      %v1790 = vsel %vm611, %v1785, %v1789
      %v1792 = vshrl.u32 %v1732, 16
      %v1794 = vshll.u32 %v1732, 16
      %v1796 = vrot.slane %v1794, 1
      %v1797 = vor.u32 %v1792, %v1796
      %v1799 = vshll.u32 %v1772, 16
      %v1801 = vrot.slane %v1799, 1
      %v1802 = vsel %vm611, %v1797, %v1801
      %v1804 = vshrl.u32 %v1733, 16
      %v1806 = vshll.u32 %v1733, 16
      %v1808 = vrot.slane %v1806, 1
      %v1809 = vor.u32 %v1804, %v1808
      %v1811 = vshll.u32 %v1773, 16
      %v1813 = vrot.slane %v1811, 1
      %v1814 = vsel %vm611, %v1809, %v1813
      %v1816 = vshrl.u32 %v1734, 16
      %v1818 = vshll.u32 %v1734, 16
      %v1820 = vrot.slane %v1818, 1
      %v1821 = vor.u32 %v1816, %v1820
      %v1823 = vshll.u32 %v1774, 16
      %v1825 = vrot.slane %v1823, 1
      %v1826 = vsel %vm611, %v1821, %v1825
      %v1828 = vshrl.u32 %v1735, 16
      %v1830 = vshll.u32 %v1735, 16
      %v1832 = vrot.slane %v1830, 1
      %v1833 = vor.u32 %v1828, %v1832
      %v1835 = vshll.u32 %v1775, 16
      %v1837 = vrot.slane %v1835, 1
      %v1838 = vsel %vm611, %v1833, %v1837
      %v1840 = vshrl.u32 %v1736, 16
      %v1842 = vshll.u32 %v1736, 16
      %v1844 = vrot.slane %v1842, 1
      %v1845 = vor.u32 %v1840, %v1844
      %v1847 = vshll.u32 %v1776, 16
      %v1849 = vrot.slane %v1847, 1
      %v1850 = vsel %vm611, %v1845, %v1849
      %v1852 = vshrl.u32 %v1737, 16
      %v1854 = vshll.u32 %v1737, 16
      %v1856 = vrot.slane %v1854, 1
      %v1857 = vor.u32 %v1852, %v1856
      %v1859 = vshll.u32 %v1777, 16
      %v1861 = vrot.slane %v1859, 1
      %v1862 = vsel %vm611, %v1857, %v1861
      %v1864 = vshrl.u32 %v1738, 16
      %v1866 = vshll.u32 %v1738, 16
      %v1868 = vrot.slane %v1866, 1
      %v1869 = vor.u32 %v1864, %v1868
      %v1871 = vshll.u32 %v1778, 16
      %v1873 = vrot.slane %v1871, 1
      %v1874 = vsel %vm611, %v1869, %v1873
      %1883 = vst [vmem:[#allocation3 + $0x80] sm:$0xff] %v1790
      %1884 = vst [vmem:[#allocation3 + $0x148] sm:$0xff] %v1802
      %1885 = vst [vmem:[#allocation3 + $0x210] sm:$0xff] %v1814
      %1886 = vst [vmem:[#allocation3 + $0x2d8] sm:$0xff] %v1826
      %1887 = vst [vmem:[#allocation3 + $0x3a0] sm:$0xff] %v1838
      %1888 = vst [vmem:[#allocation3 + $0x468] sm:$0xff] %v1850
      %1889 = vst [vmem:[#allocation3 + $0x530] sm:$0xff] %v1862
      %1890 = vst [vmem:[#allocation3 + $0x5f8] sm:$0xff] %v1874
      %v1891 = vrot.slane %v1731, 1
      %v1892 = vrot.slane %v1771, 1
      %v1893 = vsel %vm724, %v1891, %v1892
      %v1894 = vrot.slane %v1732, 1
      %v1895 = vrot.slane %v1772, 1
      %v1896 = vsel %vm724, %v1894, %v1895
      %v1897 = vrot.slane %v1733, 1
      %v1898 = vrot.slane %v1773, 1
      %v1899 = vsel %vm724, %v1897, %v1898
      %v1900 = vrot.slane %v1734, 1
      %v1901 = vrot.slane %v1774, 1
      %v1902 = vsel %vm724, %v1900, %v1901
      %v1903 = vrot.slane %v1735, 1
      %v1904 = vrot.slane %v1775, 1
      %v1905 = vsel %vm724, %v1903, %v1904
      %v1906 = vrot.slane %v1736, 1
      %v1907 = vrot.slane %v1776, 1
      %v1908 = vsel %vm724, %v1906, %v1907
      %v1909 = vrot.slane %v1737, 1
      %v1910 = vrot.slane %v1777, 1
      %v1911 = vsel %vm724, %v1909, %v1910
      %v1912 = vrot.slane %v1738, 1
      %v1913 = vrot.slane %v1778, 1
      %v1914 = vsel %vm724, %v1912, %v1913
      %1923 = vst [vmem:[#allocation3 + $0x88] sm:$0xff] %v1893
      %1924 = vst [vmem:[#allocation3 + $0x150] sm:$0xff] %v1896
      %1925 = vst [vmem:[#allocation3 + $0x218] sm:$0xff] %v1899
      %1926 = vst [vmem:[#allocation3 + $0x2e0] sm:$0xff] %v1902
      %1927 = vst [vmem:[#allocation3 + $0x3a8] sm:$0xff] %v1905
      %1928 = vst [vmem:[#allocation3 + $0x470] sm:$0xff] %v1908
      %1929 = vst [vmem:[#allocation3 + $0x538] sm:$0xff] %v1911
      %1930 = vst [vmem:[#allocation3 + $0x600] sm:$0xff] %v1914
      %v1931 = vrot.slane %v1780, 1
      %v1932 = vrot.slane %v1782, 2
      %v1933 = vor.u32 %v1931, %v1932
      %v1934 = vshrl.u32 %v1771, 16
      %v1936 = vrot.slane %v1934, 1
      %v1937 = vrot.slane %v1787, 2
      %v1938 = vor.u32 %v1936, %v1937
      %v1939 = vsel %vm765, %v1933, %v1938
      %v1940 = vrot.slane %v1792, 1
      %v1941 = vrot.slane %v1794, 2
      %v1942 = vor.u32 %v1940, %v1941
      %v1943 = vshrl.u32 %v1772, 16
      %v1945 = vrot.slane %v1943, 1
      %v1946 = vrot.slane %v1799, 2
      %v1947 = vor.u32 %v1945, %v1946
      %v1948 = vsel %vm765, %v1942, %v1947
      %v1949 = vrot.slane %v1804, 1
      %v1950 = vrot.slane %v1806, 2
      %v1951 = vor.u32 %v1949, %v1950
      %v1952 = vshrl.u32 %v1773, 16
      %v1954 = vrot.slane %v1952, 1
      %v1955 = vrot.slane %v1811, 2
      %v1956 = vor.u32 %v1954, %v1955
      %v1957 = vsel %vm765, %v1951, %v1956
      %v1958 = vrot.slane %v1816, 1
      %v1959 = vrot.slane %v1818, 2
      %v1960 = vor.u32 %v1958, %v1959
      %v1961 = vshrl.u32 %v1774, 16
      %v1963 = vrot.slane %v1961, 1
      %v1964 = vrot.slane %v1823, 2
      %v1965 = vor.u32 %v1963, %v1964
      %v1966 = vsel %vm765, %v1960, %v1965
      %v1967 = vrot.slane %v1828, 1
      %v1968 = vrot.slane %v1830, 2
      %v1969 = vor.u32 %v1967, %v1968
      %v1970 = vshrl.u32 %v1775, 16
      %v1972 = vrot.slane %v1970, 1
      %v1973 = vrot.slane %v1835, 2
      %v1974 = vor.u32 %v1972, %v1973
      %v1975 = vsel %vm765, %v1969, %v1974
      %v1976 = vrot.slane %v1840, 1
      %v1977 = vrot.slane %v1842, 2
      %v1978 = vor.u32 %v1976, %v1977
      %v1979 = vshrl.u32 %v1776, 16
      %v1981 = vrot.slane %v1979, 1
      %v1982 = vrot.slane %v1847, 2
      %v1983 = vor.u32 %v1981, %v1982
      %v1984 = vsel %vm765, %v1978, %v1983
      %v1985 = vrot.slane %v1852, 1
      %v1986 = vrot.slane %v1854, 2
      %v1987 = vor.u32 %v1985, %v1986
      %v1988 = vshrl.u32 %v1777, 16
      %v1990 = vrot.slane %v1988, 1
      %v1991 = vrot.slane %v1859, 2
      %v1992 = vor.u32 %v1990, %v1991
      %v1993 = vsel %vm765, %v1987, %v1992
      %v1994 = vrot.slane %v1864, 1
      %v1995 = vrot.slane %v1866, 2
      %v1996 = vor.u32 %v1994, %v1995
      %v1997 = vshrl.u32 %v1778, 16
      %v1999 = vrot.slane %v1997, 1
      %v2000 = vrot.slane %v1871, 2
      %v2001 = vor.u32 %v1999, %v2000
      %v2002 = vsel %vm765, %v1996, %v2001
      %2011 = vst [vmem:[#allocation3 + $0x90] sm:$0xff] %v1939
      %2012 = vst [vmem:[#allocation3 + $0x158] sm:$0xff] %v1948
      %2013 = vst [vmem:[#allocation3 + $0x220] sm:$0xff] %v1957
      %2014 = vst [vmem:[#allocation3 + $0x2e8] sm:$0xff] %v1966
      %2015 = vst [vmem:[#allocation3 + $0x3b0] sm:$0xff] %v1975
      %2016 = vst [vmem:[#allocation3 + $0x478] sm:$0xff] %v1984
      %2017 = vst [vmem:[#allocation3 + $0x540] sm:$0xff] %v1993
      %2018 = vst [vmem:[#allocation3 + $0x608] sm:$0xff] %v2002
      %v2019 = vrot.slane %v1731, 2
      %v2020 = vrot.slane %v1771, 2
      %v2021 = vsel %vm854, %v2019, %v2020
      %v2022 = vrot.slane %v1732, 2
      %v2023 = vrot.slane %v1772, 2
      %v2024 = vsel %vm854, %v2022, %v2023
      %v2025 = vrot.slane %v1733, 2
      %v2026 = vrot.slane %v1773, 2
      %v2027 = vsel %vm854, %v2025, %v2026
      %v2028 = vrot.slane %v1734, 2
      %v2029 = vrot.slane %v1774, 2
      %v2030 = vsel %vm854, %v2028, %v2029
      %v2031 = vrot.slane %v1735, 2
      %v2032 = vrot.slane %v1775, 2
      %v2033 = vsel %vm854, %v2031, %v2032
      %v2034 = vrot.slane %v1736, 2
      %v2035 = vrot.slane %v1776, 2
      %v2036 = vsel %vm854, %v2034, %v2035
      %v2037 = vrot.slane %v1737, 2
      %v2038 = vrot.slane %v1777, 2
      %v2039 = vsel %vm854, %v2037, %v2038
      %v2040 = vrot.slane %v1738, 2
      %v2041 = vrot.slane %v1778, 2
      %v2042 = vsel %vm854, %v2040, %v2041
      %2051 = vst [vmem:[#allocation3 + $0x98] sm:$0xff] %v2021
      %2052 = vst [vmem:[#allocation3 + $0x160] sm:$0xff] %v2024
      %2053 = vst [vmem:[#allocation3 + $0x228] sm:$0xff] %v2027
      %2054 = vst [vmem:[#allocation3 + $0x2f0] sm:$0xff] %v2030
      %2055 = vst [vmem:[#allocation3 + $0x3b8] sm:$0xff] %v2033
      %2056 = vst [vmem:[#allocation3 + $0x480] sm:$0xff] %v2036
      %2057 = vst [vmem:[#allocation3 + $0x548] sm:$0xff] %v2039
      %2058 = vst [vmem:[#allocation3 + $0x610] sm:$0xff] %v2042
      %s2059 = sadd.s32 %s503, 4
      %s2060 = smul.u32 %s2059, 3
      %s2061 = smul.addr %s2060, 4
      %s2062 = scalar_lea.vmem [#allocation2], %s2061
      %v2063 = vld [vmem:[%s2062] sm:$0xf]
      %v2064 = vld [vmem:[%s2062 + $0x4] sm:$0xf]
      %v2065 = vld [vmem:[%s2062 + $0x8] sm:$0x3]
      %v2066 = vld [vmem:[%s2062 + $0xc] sm:$0xf]
      %v2067 = vld [vmem:[%s2062 + $0x10] sm:$0xf]
      %v2068 = vld [vmem:[%s2062 + $0x14] sm:$0x3]
      %v2069 = vld [vmem:[%s2062 + $0x18] sm:$0xf]
      %v2070 = vld [vmem:[%s2062 + $0x1c] sm:$0xf]
      %v2071 = vld [vmem:[%s2062 + $0x20] sm:$0x3]
      %v2072 = vld [vmem:[%s2062 + $0x24] sm:$0xf]
      %v2073 = vld [vmem:[%s2062 + $0x28] sm:$0xf]
      %v2074 = vld [vmem:[%s2062 + $0x2c] sm:$0x3]
      %v2075 = vld [vmem:[%s2062 + $0x30] sm:$0xf]
      %v2076 = vld [vmem:[%s2062 + $0x34] sm:$0xf]
      %v2077 = vld [vmem:[%s2062 + $0x38] sm:$0x3]
      %v2078 = vld [vmem:[%s2062 + $0x3c] sm:$0xf]
      %v2079 = vld [vmem:[%s2062 + $0x40] sm:$0xf]
      %v2080 = vld [vmem:[%s2062 + $0x44] sm:$0x3]
      %v2081 = vld [vmem:[%s2062 + $0x48] sm:$0xf]
      %v2082 = vld [vmem:[%s2062 + $0x4c] sm:$0xf]
      %v2083 = vld [vmem:[%s2062 + $0x50] sm:$0x3]
      %v2084 = vld [vmem:[%s2062 + $0x54] sm:$0xf]
      %v2085 = vld [vmem:[%s2062 + $0x58] sm:$0xf]
      %v2086 = vld [vmem:[%s2062 + $0x5c] sm:$0x3]
      %v2103 = vunpack.c.l.b16 %v2063
      %v2104 = vunpack.c.l.b16 %v2064
      %v2105 = vunpack.c.l.b16 %v2066
      %v2106 = vunpack.c.l.b16 %v2067
      %v2107 = vunpack.c.l.b16 %v2069
      %v2108 = vunpack.c.l.b16 %v2070
      %v2109 = vunpack.c.l.b16 %v2072
      %v2110 = vunpack.c.l.b16 %v2073
      %v2111 = vunpack.c.l.b16 %v2075
      %v2112 = vunpack.c.l.b16 %v2076
      %v2113 = vunpack.c.l.b16 %v2078
      %v2114 = vunpack.c.l.b16 %v2079
      %v2115 = vunpack.c.l.b16 %v2081
      %v2116 = vunpack.c.l.b16 %v2082
      %v2117 = vunpack.c.l.b16 %v2084
      %v2118 = vunpack.c.l.b16 %v2085
      %v2119 = vpack.c.b16 %v2104, %v2103
      %v2120 = vpack.c.b16 %v2106, %v2105
      %v2121 = vpack.c.b16 %v2108, %v2107
      %v2122 = vpack.c.b16 %v2110, %v2109
      %v2123 = vpack.c.b16 %v2112, %v2111
      %v2124 = vpack.c.b16 %v2114, %v2113
      %v2125 = vpack.c.b16 %v2116, %v2115
      %v2126 = vpack.c.b16 %v2118, %v2117
      %2135 = vst [vmem:[#allocation3 + $0xa0] sm:$0xff] %v2119
      %2136 = vst [vmem:[#allocation3 + $0x168] sm:$0xff] %v2120
      %2137 = vst [vmem:[#allocation3 + $0x230] sm:$0xff] %v2121
      %2138 = vst [vmem:[#allocation3 + $0x2f8] sm:$0xff] %v2122
      %2139 = vst [vmem:[#allocation3 + $0x3c0] sm:$0xff] %v2123
      %2140 = vst [vmem:[#allocation3 + $0x488] sm:$0xff] %v2124
      %2141 = vst [vmem:[#allocation3 + $0x550] sm:$0xff] %v2125
      %2142 = vst [vmem:[#allocation3 + $0x618] sm:$0xff] %v2126
      %v2151 = vunpack.c.l.b16 %v2065
      %v2152 = vunpack.c.l.b16 %v2068
      %v2153 = vunpack.c.l.b16 %v2071
      %v2154 = vunpack.c.l.b16 %v2074
      %v2155 = vunpack.c.l.b16 %v2077
      %v2156 = vunpack.c.l.b16 %v2080
      %v2157 = vunpack.c.l.b16 %v2083
      %v2158 = vunpack.c.l.b16 %v2086
      %v2159 = vpack.c.b16 %v2151, %v2151
      %v2160 = vpack.c.b16 %v2152, %v2152
      %v2161 = vpack.c.b16 %v2153, %v2153
      %v2162 = vpack.c.b16 %v2154, %v2154
      %v2163 = vpack.c.b16 %v2155, %v2155
      %v2164 = vpack.c.b16 %v2156, %v2156
      %v2165 = vpack.c.b16 %v2157, %v2157
      %v2166 = vpack.c.b16 %v2158, %v2158
      %v2168 = vshrl.u32 %v2119, 16
      %v2170 = vshll.u32 %v2119, 16
      %v2172 = vrot.slane %v2170, 1
      %v2173 = vor.u32 %v2168, %v2172
      %v2175 = vshll.u32 %v2159, 16
      %v2177 = vrot.slane %v2175, 1
      %v2178 = vsel %vm611, %v2173, %v2177
      %v2180 = vshrl.u32 %v2120, 16
      %v2182 = vshll.u32 %v2120, 16
      %v2184 = vrot.slane %v2182, 1
      %v2185 = vor.u32 %v2180, %v2184
      %v2187 = vshll.u32 %v2160, 16
      %v2189 = vrot.slane %v2187, 1
      %v2190 = vsel %vm611, %v2185, %v2189
      %v2192 = vshrl.u32 %v2121, 16
      %v2194 = vshll.u32 %v2121, 16
      %v2196 = vrot.slane %v2194, 1
      %v2197 = vor.u32 %v2192, %v2196
      %v2199 = vshll.u32 %v2161, 16
      %v2201 = vrot.slane %v2199, 1
      %v2202 = vsel %vm611, %v2197, %v2201
      %v2204 = vshrl.u32 %v2122, 16
      %v2206 = vshll.u32 %v2122, 16
      %v2208 = vrot.slane %v2206, 1
      %v2209 = vor.u32 %v2204, %v2208
      %v2211 = vshll.u32 %v2162, 16
      %v2213 = vrot.slane %v2211, 1
      %v2214 = vsel %vm611, %v2209, %v2213
      %v2216 = vshrl.u32 %v2123, 16
      %v2218 = vshll.u32 %v2123, 16
      %v2220 = vrot.slane %v2218, 1
      %v2221 = vor.u32 %v2216, %v2220
      %v2223 = vshll.u32 %v2163, 16
      %v2225 = vrot.slane %v2223, 1
      %v2226 = vsel %vm611, %v2221, %v2225
      %v2228 = vshrl.u32 %v2124, 16
      %v2230 = vshll.u32 %v2124, 16
      %v2232 = vrot.slane %v2230, 1
      %v2233 = vor.u32 %v2228, %v2232
      %v2235 = vshll.u32 %v2164, 16
      %v2237 = vrot.slane %v2235, 1
      %v2238 = vsel %vm611, %v2233, %v2237
      %v2240 = vshrl.u32 %v2125, 16
      %v2242 = vshll.u32 %v2125, 16
      %v2244 = vrot.slane %v2242, 1
      %v2245 = vor.u32 %v2240, %v2244
      %v2247 = vshll.u32 %v2165, 16
      %v2249 = vrot.slane %v2247, 1
      %v2250 = vsel %vm611, %v2245, %v2249
      %v2252 = vshrl.u32 %v2126, 16
      %v2254 = vshll.u32 %v2126, 16
      %v2256 = vrot.slane %v2254, 1
      %v2257 = vor.u32 %v2252, %v2256
      %v2259 = vshll.u32 %v2166, 16
      %v2261 = vrot.slane %v2259, 1
      %v2262 = vsel %vm611, %v2257, %v2261
      %2271 = vst [vmem:[#allocation3 + $0xa8] sm:$0xff] %v2178
      %2272 = vst [vmem:[#allocation3 + $0x170] sm:$0xff] %v2190
      %2273 = vst [vmem:[#allocation3 + $0x238] sm:$0xff] %v2202
      %2274 = vst [vmem:[#allocation3 + $0x300] sm:$0xff] %v2214
      %2275 = vst [vmem:[#allocation3 + $0x3c8] sm:$0xff] %v2226
      %2276 = vst [vmem:[#allocation3 + $0x490] sm:$0xff] %v2238
      %2277 = vst [vmem:[#allocation3 + $0x558] sm:$0xff] %v2250
      %2278 = vst [vmem:[#allocation3 + $0x620] sm:$0xff] %v2262
      %v2279 = vrot.slane %v2119, 1
      %v2280 = vrot.slane %v2159, 1
      %v2281 = vsel %vm724, %v2279, %v2280
      %v2282 = vrot.slane %v2120, 1
      %v2283 = vrot.slane %v2160, 1
      %v2284 = vsel %vm724, %v2282, %v2283
      %v2285 = vrot.slane %v2121, 1
      %v2286 = vrot.slane %v2161, 1
      %v2287 = vsel %vm724, %v2285, %v2286
      %v2288 = vrot.slane %v2122, 1
      %v2289 = vrot.slane %v2162, 1
      %v2290 = vsel %vm724, %v2288, %v2289
      %v2291 = vrot.slane %v2123, 1
      %v2292 = vrot.slane %v2163, 1
      %v2293 = vsel %vm724, %v2291, %v2292
      %v2294 = vrot.slane %v2124, 1
      %v2295 = vrot.slane %v2164, 1
      %v2296 = vsel %vm724, %v2294, %v2295
      %v2297 = vrot.slane %v2125, 1
      %v2298 = vrot.slane %v2165, 1
      %v2299 = vsel %vm724, %v2297, %v2298
      %v2300 = vrot.slane %v2126, 1
      %v2301 = vrot.slane %v2166, 1
      %v2302 = vsel %vm724, %v2300, %v2301
      %2311 = vst [vmem:[#allocation3 + $0xb0] sm:$0xff] %v2281
      %2312 = vst [vmem:[#allocation3 + $0x178] sm:$0xff] %v2284
      %2313 = vst [vmem:[#allocation3 + $0x240] sm:$0xff] %v2287
      %2314 = vst [vmem:[#allocation3 + $0x308] sm:$0xff] %v2290
      %2315 = vst [vmem:[#allocation3 + $0x3d0] sm:$0xff] %v2293
      %2316 = vst [vmem:[#allocation3 + $0x498] sm:$0xff] %v2296
      %2317 = vst [vmem:[#allocation3 + $0x560] sm:$0xff] %v2299
      %2318 = vst [vmem:[#allocation3 + $0x628] sm:$0xff] %v2302
      %v2319 = vrot.slane %v2168, 1
      %v2320 = vrot.slane %v2170, 2
      %v2321 = vor.u32 %v2319, %v2320
      %v2322 = vshrl.u32 %v2159, 16
      %v2324 = vrot.slane %v2322, 1
      %v2325 = vrot.slane %v2175, 2
      %v2326 = vor.u32 %v2324, %v2325
      %v2327 = vsel %vm765, %v2321, %v2326
      %v2328 = vrot.slane %v2180, 1
      %v2329 = vrot.slane %v2182, 2
      %v2330 = vor.u32 %v2328, %v2329
      %v2331 = vshrl.u32 %v2160, 16
      %v2333 = vrot.slane %v2331, 1
      %v2334 = vrot.slane %v2187, 2
      %v2335 = vor.u32 %v2333, %v2334
      %v2336 = vsel %vm765, %v2330, %v2335
      %v2337 = vrot.slane %v2192, 1
      %v2338 = vrot.slane %v2194, 2
      %v2339 = vor.u32 %v2337, %v2338
      %v2340 = vshrl.u32 %v2161, 16
      %v2342 = vrot.slane %v2340, 1
      %v2343 = vrot.slane %v2199, 2
      %v2344 = vor.u32 %v2342, %v2343
      %v2345 = vsel %vm765, %v2339, %v2344
      %v2346 = vrot.slane %v2204, 1
      %v2347 = vrot.slane %v2206, 2
      %v2348 = vor.u32 %v2346, %v2347
      %v2349 = vshrl.u32 %v2162, 16
      %v2351 = vrot.slane %v2349, 1
      %v2352 = vrot.slane %v2211, 2
      %v2353 = vor.u32 %v2351, %v2352
      %v2354 = vsel %vm765, %v2348, %v2353
      %v2355 = vrot.slane %v2216, 1
      %v2356 = vrot.slane %v2218, 2
      %v2357 = vor.u32 %v2355, %v2356
      %v2358 = vshrl.u32 %v2163, 16
      %v2360 = vrot.slane %v2358, 1
      %v2361 = vrot.slane %v2223, 2
      %v2362 = vor.u32 %v2360, %v2361
      %v2363 = vsel %vm765, %v2357, %v2362
      %v2364 = vrot.slane %v2228, 1
      %v2365 = vrot.slane %v2230, 2
      %v2366 = vor.u32 %v2364, %v2365
      %v2367 = vshrl.u32 %v2164, 16
      %v2369 = vrot.slane %v2367, 1
      %v2370 = vrot.slane %v2235, 2
      %v2371 = vor.u32 %v2369, %v2370
      %v2372 = vsel %vm765, %v2366, %v2371
      %v2373 = vrot.slane %v2240, 1
      %v2374 = vrot.slane %v2242, 2
      %v2375 = vor.u32 %v2373, %v2374
      %v2376 = vshrl.u32 %v2165, 16
      %v2378 = vrot.slane %v2376, 1
      %v2379 = vrot.slane %v2247, 2
      %v2380 = vor.u32 %v2378, %v2379
      %v2381 = vsel %vm765, %v2375, %v2380
      %v2382 = vrot.slane %v2252, 1
      %v2383 = vrot.slane %v2254, 2
      %v2384 = vor.u32 %v2382, %v2383
      %v2385 = vshrl.u32 %v2166, 16
      %v2387 = vrot.slane %v2385, 1
      %v2388 = vrot.slane %v2259, 2
      %v2389 = vor.u32 %v2387, %v2388
      %v2390 = vsel %vm765, %v2384, %v2389
      %2399 = vst [vmem:[#allocation3 + $0xb8] sm:$0xff] %v2327
      %2400 = vst [vmem:[#allocation3 + $0x180] sm:$0xff] %v2336
      %2401 = vst [vmem:[#allocation3 + $0x248] sm:$0xff] %v2345
      %2402 = vst [vmem:[#allocation3 + $0x310] sm:$0xff] %v2354
      %2403 = vst [vmem:[#allocation3 + $0x3d8] sm:$0xff] %v2363
      %2404 = vst [vmem:[#allocation3 + $0x4a0] sm:$0xff] %v2372
      %2405 = vst [vmem:[#allocation3 + $0x568] sm:$0xff] %v2381
      %2406 = vst [vmem:[#allocation3 + $0x630] sm:$0xff] %v2390
      %v2407 = vrot.slane %v2119, 2
      %v2408 = vrot.slane %v2159, 2
      %v2409 = vsel %vm854, %v2407, %v2408
      %v2410 = vrot.slane %v2120, 2
      %v2411 = vrot.slane %v2160, 2
      %v2412 = vsel %vm854, %v2410, %v2411
      %v2413 = vrot.slane %v2121, 2
      %v2414 = vrot.slane %v2161, 2
      %v2415 = vsel %vm854, %v2413, %v2414
      %v2416 = vrot.slane %v2122, 2
      %v2417 = vrot.slane %v2162, 2
      %v2418 = vsel %vm854, %v2416, %v2417
      %v2419 = vrot.slane %v2123, 2
      %v2420 = vrot.slane %v2163, 2
      %v2421 = vsel %vm854, %v2419, %v2420
      %v2422 = vrot.slane %v2124, 2
      %v2423 = vrot.slane %v2164, 2
      %v2424 = vsel %vm854, %v2422, %v2423
      %v2425 = vrot.slane %v2125, 2
      %v2426 = vrot.slane %v2165, 2
      %v2427 = vsel %vm854, %v2425, %v2426
      %v2428 = vrot.slane %v2126, 2
      %v2429 = vrot.slane %v2166, 2
      %v2430 = vsel %vm854, %v2428, %v2429
      %2439 = vst [vmem:[#allocation3 + $0xc0] sm:$0xff] %v2409
      %2440 = vst [vmem:[#allocation3 + $0x188] sm:$0xff] %v2412
      %2441 = vst [vmem:[#allocation3 + $0x250] sm:$0xff] %v2415
      %2442 = vst [vmem:[#allocation3 + $0x318] sm:$0xff] %v2418
      %2443 = vst [vmem:[#allocation3 + $0x3e0] sm:$0xff] %v2421
      %2444 = vst [vmem:[#allocation3 + $0x4a8] sm:$0xff] %v2424
      %2445 = vst [vmem:[#allocation3 + $0x570] sm:$0xff] %v2427
      %2446 = vst [vmem:[#allocation3 + $0x638] sm:$0xff] %v2430
      %v2447 = vld [vmem:[#allocation3] sm:$0xff]
      %v2448 = vld [vmem:[#allocation3 + $0x8] sm:$0xff]
      %v2449 = vld [vmem:[#allocation3 + $0x10] sm:$0xff]
      %v2450 = vld [vmem:[#allocation3 + $0x18] sm:$0xff]
      %v2451 = vld [vmem:[#allocation3 + $0x20] sm:$0xff]
      %v2452 = vld [vmem:[#allocation3 + $0x28] sm:$0xff]
      %v2453 = vld [vmem:[#allocation3 + $0x30] sm:$0xff]
      %v2454 = vld [vmem:[#allocation3 + $0x38] sm:$0xff]
      %v2455 = vld [vmem:[#allocation3 + $0x40] sm:$0xff]
      %v2456 = vld [vmem:[#allocation3 + $0x48] sm:$0xff]
      %v2457 = vld [vmem:[#allocation3 + $0x50] sm:$0xff]
      %v2458 = vld [vmem:[#allocation3 + $0x58] sm:$0xff]
      %v2459 = vld [vmem:[#allocation3 + $0x60] sm:$0xff]
      %v2460 = vld [vmem:[#allocation3 + $0x68] sm:$0xff]
      %v2461 = vld [vmem:[#allocation3 + $0x70] sm:$0xff]
      %v2462 = vld [vmem:[#allocation3 + $0x78] sm:$0xff]
      %v2463 = vld [vmem:[#allocation3 + $0x80] sm:$0xff]
      %v2464 = vld [vmem:[#allocation3 + $0x88] sm:$0xff]
      %v2465 = vld [vmem:[#allocation3 + $0x90] sm:$0xff]
      %v2466 = vld [vmem:[#allocation3 + $0x98] sm:$0xff]
      %v2467 = vld [vmem:[#allocation3 + $0xa0] sm:$0xff]
      %v2468 = vld [vmem:[#allocation3 + $0xa8] sm:$0xff]
      %v2469 = vld [vmem:[#allocation3 + $0xb0] sm:$0xff]
      %v2470 = vld [vmem:[#allocation3 + $0xb8] sm:$0xff]
      %v2471 = vld [vmem:[#allocation3 + $0xc0] sm:$0xff]
      %v2472 = vld [vmem:[#allocation3 + $0xc8] sm:$0xff]
      %v2473 = vld [vmem:[#allocation3 + $0xd0] sm:$0xff]
      %v2474 = vld [vmem:[#allocation3 + $0xd8] sm:$0xff]
      %v2475 = vld [vmem:[#allocation3 + $0xe0] sm:$0xff]
      %v2476 = vld [vmem:[#allocation3 + $0xe8] sm:$0xff]
      %v2477 = vld [vmem:[#allocation3 + $0xf0] sm:$0xff]
      %v2478 = vld [vmem:[#allocation3 + $0xf8] sm:$0xff]
      %v2479 = vld [vmem:[#allocation3 + $0x100] sm:$0xff]
      %v2480 = vld [vmem:[#allocation3 + $0x108] sm:$0xff]
      %v2481 = vld [vmem:[#allocation3 + $0x110] sm:$0xff]
      %v2482 = vld [vmem:[#allocation3 + $0x118] sm:$0xff]
      %v2483 = vld [vmem:[#allocation3 + $0x120] sm:$0xff]
      %v2484 = vld [vmem:[#allocation3 + $0x128] sm:$0xff]
      %v2485 = vld [vmem:[#allocation3 + $0x130] sm:$0xff]
      %v2486 = vld [vmem:[#allocation3 + $0x138] sm:$0xff]
      %v2487 = vld [vmem:[#allocation3 + $0x140] sm:$0xff]
      %v2488 = vld [vmem:[#allocation3 + $0x148] sm:$0xff]
      %v2489 = vld [vmem:[#allocation3 + $0x150] sm:$0xff]
      %v2490 = vld [vmem:[#allocation3 + $0x158] sm:$0xff]
      %v2491 = vld [vmem:[#allocation3 + $0x160] sm:$0xff]
      %v2492 = vld [vmem:[#allocation3 + $0x168] sm:$0xff]
      %v2493 = vld [vmem:[#allocation3 + $0x170] sm:$0xff]
      %v2494 = vld [vmem:[#allocation3 + $0x178] sm:$0xff]
      %v2495 = vld [vmem:[#allocation3 + $0x180] sm:$0xff]
      %v2496 = vld [vmem:[#allocation3 + $0x188] sm:$0xff]
      %v2497 = vld [vmem:[#allocation3 + $0x190] sm:$0xff]
      %v2498 = vld [vmem:[#allocation3 + $0x198] sm:$0xff]
      %v2499 = vld [vmem:[#allocation3 + $0x1a0] sm:$0xff]
      %v2500 = vld [vmem:[#allocation3 + $0x1a8] sm:$0xff]
      %v2501 = vld [vmem:[#allocation3 + $0x1b0] sm:$0xff]
      %v2502 = vld [vmem:[#allocation3 + $0x1b8] sm:$0xff]
      %v2503 = vld [vmem:[#allocation3 + $0x1c0] sm:$0xff]
      %v2504 = vld [vmem:[#allocation3 + $0x1c8] sm:$0xff]
      %v2505 = vld [vmem:[#allocation3 + $0x1d0] sm:$0xff]
      %v2506 = vld [vmem:[#allocation3 + $0x1d8] sm:$0xff]
      %v2507 = vld [vmem:[#allocation3 + $0x1e0] sm:$0xff]
      %v2508 = vld [vmem:[#allocation3 + $0x1e8] sm:$0xff]
      %v2509 = vld [vmem:[#allocation3 + $0x1f0] sm:$0xff]
      %v2510 = vld [vmem:[#allocation3 + $0x1f8] sm:$0xff]
      %v2511 = vld [vmem:[#allocation3 + $0x200] sm:$0xff]
      %v2512 = vld [vmem:[#allocation3 + $0x208] sm:$0xff]
      %v2513 = vld [vmem:[#allocation3 + $0x210] sm:$0xff]
      %v2514 = vld [vmem:[#allocation3 + $0x218] sm:$0xff]
      %v2515 = vld [vmem:[#allocation3 + $0x220] sm:$0xff]
      %v2516 = vld [vmem:[#allocation3 + $0x228] sm:$0xff]
      %v2517 = vld [vmem:[#allocation3 + $0x230] sm:$0xff]
      %v2518 = vld [vmem:[#allocation3 + $0x238] sm:$0xff]
      %v2519 = vld [vmem:[#allocation3 + $0x240] sm:$0xff]
      %v2520 = vld [vmem:[#allocation3 + $0x248] sm:$0xff]
      %v2521 = vld [vmem:[#allocation3 + $0x250] sm:$0xff]
      %v2522 = vld [vmem:[#allocation3 + $0x258] sm:$0xff]
      %v2523 = vld [vmem:[#allocation3 + $0x260] sm:$0xff]
      %v2524 = vld [vmem:[#allocation3 + $0x268] sm:$0xff]
      %v2525 = vld [vmem:[#allocation3 + $0x270] sm:$0xff]
      %v2526 = vld [vmem:[#allocation3 + $0x278] sm:$0xff]
      %v2527 = vld [vmem:[#allocation3 + $0x280] sm:$0xff]
      %v2528 = vld [vmem:[#allocation3 + $0x288] sm:$0xff]
      %v2529 = vld [vmem:[#allocation3 + $0x290] sm:$0xff]
      %v2530 = vld [vmem:[#allocation3 + $0x298] sm:$0xff]
      %v2531 = vld [vmem:[#allocation3 + $0x2a0] sm:$0xff]
      %v2532 = vld [vmem:[#allocation3 + $0x2a8] sm:$0xff]
      %v2533 = vld [vmem:[#allocation3 + $0x2b0] sm:$0xff]
      %v2534 = vld [vmem:[#allocation3 + $0x2b8] sm:$0xff]
      %v2535 = vld [vmem:[#allocation3 + $0x2c0] sm:$0xff]
      %v2536 = vld [vmem:[#allocation3 + $0x2c8] sm:$0xff]
      %v2537 = vld [vmem:[#allocation3 + $0x2d0] sm:$0xff]
      %v2538 = vld [vmem:[#allocation3 + $0x2d8] sm:$0xff]
      %v2539 = vld [vmem:[#allocation3 + $0x2e0] sm:$0xff]
      %v2540 = vld [vmem:[#allocation3 + $0x2e8] sm:$0xff]
      %v2541 = vld [vmem:[#allocation3 + $0x2f0] sm:$0xff]
      %v2542 = vld [vmem:[#allocation3 + $0x2f8] sm:$0xff]
      %v2543 = vld [vmem:[#allocation3 + $0x300] sm:$0xff]
      %v2544 = vld [vmem:[#allocation3 + $0x308] sm:$0xff]
      %v2545 = vld [vmem:[#allocation3 + $0x310] sm:$0xff]
      %v2546 = vld [vmem:[#allocation3 + $0x318] sm:$0xff]
      %v2547 = vld [vmem:[#allocation3 + $0x320] sm:$0xff]
      %v2548 = vld [vmem:[#allocation3 + $0x328] sm:$0xff]
      %v2549 = vld [vmem:[#allocation3 + $0x330] sm:$0xff]
      %v2550 = vld [vmem:[#allocation3 + $0x338] sm:$0xff]
      %v2551 = vld [vmem:[#allocation3 + $0x340] sm:$0xff]
      %v2552 = vld [vmem:[#allocation3 + $0x348] sm:$0xff]
      %v2553 = vld [vmem:[#allocation3 + $0x350] sm:$0xff]
      %v2554 = vld [vmem:[#allocation3 + $0x358] sm:$0xff]
      %v2555 = vld [vmem:[#allocation3 + $0x360] sm:$0xff]
      %v2556 = vld [vmem:[#allocation3 + $0x368] sm:$0xff]
      %v2557 = vld [vmem:[#allocation3 + $0x370] sm:$0xff]
      %v2558 = vld [vmem:[#allocation3 + $0x378] sm:$0xff]
      %v2559 = vld [vmem:[#allocation3 + $0x380] sm:$0xff]
      %v2560 = vld [vmem:[#allocation3 + $0x388] sm:$0xff]
      %v2561 = vld [vmem:[#allocation3 + $0x390] sm:$0xff]
      %v2562 = vld [vmem:[#allocation3 + $0x398] sm:$0xff]
      %v2563 = vld [vmem:[#allocation3 + $0x3a0] sm:$0xff]
      %v2564 = vld [vmem:[#allocation3 + $0x3a8] sm:$0xff]
      %v2565 = vld [vmem:[#allocation3 + $0x3b0] sm:$0xff]
      %v2566 = vld [vmem:[#allocation3 + $0x3b8] sm:$0xff]
      %v2567 = vld [vmem:[#allocation3 + $0x3c0] sm:$0xff]
      %v2568 = vld [vmem:[#allocation3 + $0x3c8] sm:$0xff]
      %v2569 = vld [vmem:[#allocation3 + $0x3d0] sm:$0xff]
      %v2570 = vld [vmem:[#allocation3 + $0x3d8] sm:$0xff]
      %v2571 = vld [vmem:[#allocation3 + $0x3e0] sm:$0xff]
      %v2572 = vld [vmem:[#allocation3 + $0x3e8] sm:$0xff]
      %v2573 = vld [vmem:[#allocation3 + $0x3f0] sm:$0xff]
      %v2574 = vld [vmem:[#allocation3 + $0x3f8] sm:$0xff]
      %v2575 = vld [vmem:[#allocation3 + $0x400] sm:$0xff]
      %v2576 = vld [vmem:[#allocation3 + $0x408] sm:$0xff]
      %v2577 = vld [vmem:[#allocation3 + $0x410] sm:$0xff]
      %v2578 = vld [vmem:[#allocation3 + $0x418] sm:$0xff]
      %v2579 = vld [vmem:[#allocation3 + $0x420] sm:$0xff]
      %v2580 = vld [vmem:[#allocation3 + $0x428] sm:$0xff]
      %v2581 = vld [vmem:[#allocation3 + $0x430] sm:$0xff]
      %v2582 = vld [vmem:[#allocation3 + $0x438] sm:$0xff]
      %v2583 = vld [vmem:[#allocation3 + $0x440] sm:$0xff]
      %v2584 = vld [vmem:[#allocation3 + $0x448] sm:$0xff]
      %v2585 = vld [vmem:[#allocation3 + $0x450] sm:$0xff]
      %v2586 = vld [vmem:[#allocation3 + $0x458] sm:$0xff]
      %v2587 = vld [vmem:[#allocation3 + $0x460] sm:$0xff]
      %v2588 = vld [vmem:[#allocation3 + $0x468] sm:$0xff]
      %v2589 = vld [vmem:[#allocation3 + $0x470] sm:$0xff]
      %v2590 = vld [vmem:[#allocation3 + $0x478] sm:$0xff]
      %v2591 = vld [vmem:[#allocation3 + $0x480] sm:$0xff]
      %v2592 = vld [vmem:[#allocation3 + $0x488] sm:$0xff]
      %v2593 = vld [vmem:[#allocation3 + $0x490] sm:$0xff]
      %v2594 = vld [vmem:[#allocation3 + $0x498] sm:$0xff]
      %v2595 = vld [vmem:[#allocation3 + $0x4a0] sm:$0xff]
      %v2596 = vld [vmem:[#allocation3 + $0x4a8] sm:$0xff]
      %v2597 = vld [vmem:[#allocation3 + $0x4b0] sm:$0xff]
      %v2598 = vld [vmem:[#allocation3 + $0x4b8] sm:$0xff]
      %v2599 = vld [vmem:[#allocation3 + $0x4c0] sm:$0xff]
      %v2600 = vld [vmem:[#allocation3 + $0x4c8] sm:$0xff]
      %v2601 = vld [vmem:[#allocation3 + $0x4d0] sm:$0xff]
      %v2602 = vld [vmem:[#allocation3 + $0x4d8] sm:$0xff]
      %v2603 = vld [vmem:[#allocation3 + $0x4e0] sm:$0xff]
      %v2604 = vld [vmem:[#allocation3 + $0x4e8] sm:$0xff]
      %v2605 = vld [vmem:[#allocation3 + $0x4f0] sm:$0xff]
      %v2606 = vld [vmem:[#allocation3 + $0x4f8] sm:$0xff]
      %v2607 = vld [vmem:[#allocation3 + $0x500] sm:$0xff]
      %v2608 = vld [vmem:[#allocation3 + $0x508] sm:$0xff]
      %v2609 = vld [vmem:[#allocation3 + $0x510] sm:$0xff]
      %v2610 = vld [vmem:[#allocation3 + $0x518] sm:$0xff]
      %v2611 = vld [vmem:[#allocation3 + $0x520] sm:$0xff]
      %v2612 = vld [vmem:[#allocation3 + $0x528] sm:$0xff]
      %v2613 = vld [vmem:[#allocation3 + $0x530] sm:$0xff]
      %v2614 = vld [vmem:[#allocation3 + $0x538] sm:$0xff]
      %v2615 = vld [vmem:[#allocation3 + $0x540] sm:$0xff]
      %v2616 = vld [vmem:[#allocation3 + $0x548] sm:$0xff]
      %v2617 = vld [vmem:[#allocation3 + $0x550] sm:$0xff]
      %v2618 = vld [vmem:[#allocation3 + $0x558] sm:$0xff]
      %v2619 = vld [vmem:[#allocation3 + $0x560] sm:$0xff]
      %v2620 = vld [vmem:[#allocation3 + $0x568] sm:$0xff]
      %v2621 = vld [vmem:[#allocation3 + $0x570] sm:$0xff]
      %v2622 = vld [vmem:[#allocation3 + $0x578] sm:$0xff]
      %v2623 = vld [vmem:[#allocation3 + $0x580] sm:$0xff]
      %v2624 = vld [vmem:[#allocation3 + $0x588] sm:$0xff]
      %v2625 = vld [vmem:[#allocation3 + $0x590] sm:$0xff]
      %v2626 = vld [vmem:[#allocation3 + $0x598] sm:$0xff]
      %v2627 = vld [vmem:[#allocation3 + $0x5a0] sm:$0xff]
      %v2628 = vld [vmem:[#allocation3 + $0x5a8] sm:$0xff]
      %v2629 = vld [vmem:[#allocation3 + $0x5b0] sm:$0xff]
      %v2630 = vld [vmem:[#allocation3 + $0x5b8] sm:$0xff]
      %v2631 = vld [vmem:[#allocation3 + $0x5c0] sm:$0xff]
      %v2632 = vld [vmem:[#allocation3 + $0x5c8] sm:$0xff]
      %v2633 = vld [vmem:[#allocation3 + $0x5d0] sm:$0xff]
      %v2634 = vld [vmem:[#allocation3 + $0x5d8] sm:$0xff]
      %v2635 = vld [vmem:[#allocation3 + $0x5e0] sm:$0xff]
      %v2636 = vld [vmem:[#allocation3 + $0x5e8] sm:$0xff]
      %v2637 = vld [vmem:[#allocation3 + $0x5f0] sm:$0xff]
      %v2638 = vld [vmem:[#allocation3 + $0x5f8] sm:$0xff]
      %v2639 = vld [vmem:[#allocation3 + $0x600] sm:$0xff]
      %v2640 = vld [vmem:[#allocation3 + $0x608] sm:$0xff]
      %v2641 = vld [vmem:[#allocation3 + $0x610] sm:$0xff]
      %v2642 = vld [vmem:[#allocation3 + $0x618] sm:$0xff]
      %v2643 = vld [vmem:[#allocation3 + $0x620] sm:$0xff]
      %v2644 = vld [vmem:[#allocation3 + $0x628] sm:$0xff]
      %v2645 = vld [vmem:[#allocation3 + $0x630] sm:$0xff]
      %v2646 = vld [vmem:[#allocation3 + $0x638] sm:$0xff]
      %v2647 = vld [vmem:[%s1] sm:$0xf]
      %v2648 = vld [vmem:[%s1 + $0x4] sm:$0xf]
      %v2649 = vld [vmem:[%s1 + $0x8] sm:$0xf]
      %v2650 = vld [vmem:[%s1 + $0xc] sm:$0xf]
      %v2651 = vld [vmem:[%s1 + $0x10] sm:$0xf]
      %v2652 = vld [vmem:[%s1 + $0x14] sm:$0xf]
      %v2653 = vld [vmem:[%s1 + $0x18] sm:$0xf]
      %v2654 = vld [vmem:[%s1 + $0x1c] sm:$0xf]
      %v2655 = vld [vmem:[%s1 + $0x20] sm:$0xf]
      %v2656 = vld [vmem:[%s1 + $0x24] sm:$0xf]
      %v2657 = vld [vmem:[%s1 + $0x28] sm:$0xf]
      %v2658 = vld [vmem:[%s1 + $0x2c] sm:$0xf]
      %v2659 = vld [vmem:[%s1 + $0x30] sm:$0xf]
      %v2660 = vld [vmem:[%s1 + $0x34] sm:$0xf]
      %v2661 = vld [vmem:[%s1 + $0x38] sm:$0xf]
      %v2662 = vld [vmem:[%s1 + $0x3c] sm:$0xf]
      %v2663 = vld [vmem:[%s1 + $0x40] sm:$0xf]
      %v2664 = vld [vmem:[%s1 + $0x44] sm:$0xf]
      %v2665 = vld [vmem:[%s1 + $0x48] sm:$0xf]
      %v2666 = vld [vmem:[%s1 + $0x4c] sm:$0xf]
      %v2667 = vld [vmem:[%s1 + $0x50] sm:$0xf]
      %v2668 = vld [vmem:[%s1 + $0x54] sm:$0xf]
      %v2669 = vld [vmem:[%s1 + $0x58] sm:$0xf]
      %v2670 = vld [vmem:[%s1 + $0x5c] sm:$0xf]
      %v2671 = vld [vmem:[%s1 + $0x60] sm:$0xf]
      %v2672 = vld [vmem:[%s1 + $0x64] sm:$0xf]
      %v2673 = vld [vmem:[%s1 + $0x68] sm:$0xf]
      %v2674 = vld [vmem:[%s1 + $0x6c] sm:$0xf]
      %v2675 = vld [vmem:[%s1 + $0x70] sm:$0xf]
      %v2676 = vld [vmem:[%s1 + $0x74] sm:$0xf]
      %v2677 = vld [vmem:[%s1 + $0x78] sm:$0xf]
      %v2678 = vld [vmem:[%s1 + $0x7c] sm:$0xf]
      %v2679 = vld [vmem:[%s1 + $0x80] sm:$0xf]
      %v2680 = vld [vmem:[%s1 + $0x84] sm:$0xf]
      %v2681 = vld [vmem:[%s1 + $0x88] sm:$0xf]
      %v2682 = vld [vmem:[%s1 + $0x8c] sm:$0xf]
      %v2683 = vld [vmem:[%s1 + $0x90] sm:$0xf]
      %v2684 = vld [vmem:[%s1 + $0x94] sm:$0xf]
      %v2685 = vld [vmem:[%s1 + $0x98] sm:$0xf]
      %v2686 = vld [vmem:[%s1 + $0x9c] sm:$0xf]
      %v2687 = vld [vmem:[%s1 + $0xa0] sm:$0xf]
      %v2688 = vld [vmem:[%s1 + $0xa4] sm:$0xf]
      %v2689 = vld [vmem:[%s1 + $0xa8] sm:$0xf]
      %v2690 = vld [vmem:[%s1 + $0xac] sm:$0xf]
      %v2691 = vld [vmem:[%s1 + $0xb0] sm:$0xf]
      %v2692 = vld [vmem:[%s1 + $0xb4] sm:$0xf]
      %v2693 = vld [vmem:[%s1 + $0xb8] sm:$0xf]
      %v2694 = vld [vmem:[%s1 + $0xbc] sm:$0xf]
      %v2695 = vld [vmem:[%s1 + $0xc0] sm:$0xf]
      %v2696 = vld [vmem:[%s1 + $0xc4] sm:$0xf]
      %v2697 = vld [vmem:[%s1 + $0xc8] sm:$0xf]
      %v2698 = vld [vmem:[%s1 + $0xcc] sm:$0xf]
      %v2699 = vld [vmem:[%s1 + $0xd0] sm:$0xf]
      %v2700 = vld [vmem:[%s1 + $0xd4] sm:$0xf]
      %v2701 = vld [vmem:[%s1 + $0xd8] sm:$0xf]
      %v2702 = vld [vmem:[%s1 + $0xdc] sm:$0xf]
      %v2703 = vld [vmem:[%s1 + $0xe0] sm:$0xf]
      %v2704 = vld [vmem:[%s1 + $0xe4] sm:$0xf]
      %v2705 = vld [vmem:[%s1 + $0xe8] sm:$0xf]
      %v2706 = vld [vmem:[%s1 + $0xec] sm:$0xf]
      %v2707 = vld [vmem:[%s1 + $0xf0] sm:$0xf]
      %v2708 = vld [vmem:[%s1 + $0xf4] sm:$0xf]
      %v2709 = vld [vmem:[%s1 + $0xf8] sm:$0xf]
      %v2710 = vld [vmem:[%s1 + $0xfc] sm:$0xf]
      %v2711 = vld [vmem:[%s1 + $0x100] sm:$0xf]
      %v2712 = vld [vmem:[%s1 + $0x104] sm:$0xf]
      %v2713 = vld [vmem:[%s1 + $0x108] sm:$0xf]
      %v2714 = vld [vmem:[%s1 + $0x10c] sm:$0xf]
      %v2715 = vld [vmem:[%s1 + $0x110] sm:$0xf]
      %v2716 = vld [vmem:[%s1 + $0x114] sm:$0xf]
      %v2717 = vld [vmem:[%s1 + $0x118] sm:$0xf]
      %v2718 = vld [vmem:[%s1 + $0x11c] sm:$0xf]
      %v2719 = vld [vmem:[%s1 + $0x120] sm:$0xf]
      %v2720 = vld [vmem:[%s1 + $0x124] sm:$0xf]
      %v2721 = vld [vmem:[%s1 + $0x128] sm:$0xf]
      %v2722 = vld [vmem:[%s1 + $0x12c] sm:$0xf]
      %v2723 = vld [vmem:[%s1 + $0x130] sm:$0xf]
      %v2724 = vld [vmem:[%s1 + $0x134] sm:$0xf]
      %v2725 = vld [vmem:[%s1 + $0x138] sm:$0xf]
      %v2726 = vld [vmem:[%s1 + $0x13c] sm:$0xf]
      %v2727 = vld [vmem:[%s1 + $0x140] sm:$0xf]
      %v2728 = vld [vmem:[%s1 + $0x144] sm:$0xf]
      %v2729 = vld [vmem:[%s1 + $0x148] sm:$0xf]
      %v2730 = vld [vmem:[%s1 + $0x14c] sm:$0xf]
      %v2731 = vld [vmem:[%s1 + $0x150] sm:$0xf]
      %v2732 = vld [vmem:[%s1 + $0x154] sm:$0xf]
      %v2733 = vld [vmem:[%s1 + $0x158] sm:$0xf]
      %v2734 = vld [vmem:[%s1 + $0x15c] sm:$0xf]
      %v2735 = vld [vmem:[%s1 + $0x160] sm:$0xf]
      %v2736 = vld [vmem:[%s1 + $0x164] sm:$0xf]
      %v2737 = vld [vmem:[%s1 + $0x168] sm:$0xf]
      %v2738 = vld [vmem:[%s1 + $0x16c] sm:$0xf]
      %v2739 = vld [vmem:[%s1 + $0x170] sm:$0xf]
      %v2740 = vld [vmem:[%s1 + $0x174] sm:$0xf]
      %v2741 = vld [vmem:[%s1 + $0x178] sm:$0xf]
      %v2742 = vld [vmem:[%s1 + $0x17c] sm:$0xf]
      %v2743 = vld [vmem:[%s1 + $0x180] sm:$0xf]
      %v2744 = vld [vmem:[%s1 + $0x184] sm:$0xf]
      %v2745 = vld [vmem:[%s1 + $0x188] sm:$0xf]
      %v2746 = vld [vmem:[%s1 + $0x18c] sm:$0xf]
      %v2747 = vld [vmem:[%s1 + $0x190] sm:$0xf]
      %v2748 = vld [vmem:[%s1 + $0x194] sm:$0xf]
      %v2749 = vld [vmem:[%s1 + $0x198] sm:$0xf]
      %v2750 = vld [vmem:[%s1 + $0x19c] sm:$0xf]
      %v2751 = vld [vmem:[%s1 + $0x1a0] sm:$0xf]
      %v2752 = vld [vmem:[%s1 + $0x1a4] sm:$0xf]
      %v2753 = vld [vmem:[%s1 + $0x1a8] sm:$0xf]
      %v2754 = vld [vmem:[%s1 + $0x1ac] sm:$0xf]
      %v2755 = vld [vmem:[%s1 + $0x1b0] sm:$0xf]
      %v2756 = vld [vmem:[%s1 + $0x1b4] sm:$0xf]
      %v2757 = vld [vmem:[%s1 + $0x1b8] sm:$0xf]
      %v2758 = vld [vmem:[%s1 + $0x1bc] sm:$0xf]
      %v2759 = vld [vmem:[%s1 + $0x1c0] sm:$0xf]
      %v2760 = vld [vmem:[%s1 + $0x1c4] sm:$0xf]
      %v2761 = vld [vmem:[%s1 + $0x1c8] sm:$0xf]
      %v2762 = vld [vmem:[%s1 + $0x1cc] sm:$0xf]
      %v2763 = vld [vmem:[%s1 + $0x1d0] sm:$0xf]
      %v2764 = vld [vmem:[%s1 + $0x1d4] sm:$0xf]
      %v2765 = vld [vmem:[%s1 + $0x1d8] sm:$0xf]
      %v2766 = vld [vmem:[%s1 + $0x1dc] sm:$0xf]
      %v2767 = vld [vmem:[%s1 + $0x1e0] sm:$0xf]
      %v2768 = vld [vmem:[%s1 + $0x1e4] sm:$0xf]
      %v2769 = vld [vmem:[%s1 + $0x1e8] sm:$0xf]
      %v2770 = vld [vmem:[%s1 + $0x1ec] sm:$0xf]
      %v2771 = vld [vmem:[%s1 + $0x1f0] sm:$0xf]
      %v2772 = vld [vmem:[%s1 + $0x1f4] sm:$0xf]
      %v2773 = vld [vmem:[%s1 + $0x1f8] sm:$0xf]
      %v2774 = vld [vmem:[%s1 + $0x1fc] sm:$0xf]
      %v2775 = vld [vmem:[%s1 + $0x200] sm:$0xf]
      %v2776 = vld [vmem:[%s1 + $0x204] sm:$0xf]
      %v2777 = vld [vmem:[%s1 + $0x208] sm:$0xf]
      %v2778 = vld [vmem:[%s1 + $0x20c] sm:$0xf]
      %v2779 = vld [vmem:[%s1 + $0x210] sm:$0xf]
      %v2780 = vld [vmem:[%s1 + $0x214] sm:$0xf]
      %v2781 = vld [vmem:[%s1 + $0x218] sm:$0xf]
      %v2782 = vld [vmem:[%s1 + $0x21c] sm:$0xf]
      %v2783 = vld [vmem:[%s1 + $0x220] sm:$0xf]
      %v2784 = vld [vmem:[%s1 + $0x224] sm:$0xf]
      %v2785 = vld [vmem:[%s1 + $0x228] sm:$0xf]
      %v2786 = vld [vmem:[%s1 + $0x22c] sm:$0xf]
      %v2787 = vld [vmem:[%s1 + $0x230] sm:$0xf]
      %v2788 = vld [vmem:[%s1 + $0x234] sm:$0xf]
      %v2789 = vld [vmem:[%s1 + $0x238] sm:$0xf]
      %v2790 = vld [vmem:[%s1 + $0x23c] sm:$0xf]
      %v2791 = vld [vmem:[%s1 + $0x240] sm:$0xf]
      %v2792 = vld [vmem:[%s1 + $0x244] sm:$0xf]
      %v2793 = vld [vmem:[%s1 + $0x248] sm:$0xf]
      %v2794 = vld [vmem:[%s1 + $0x24c] sm:$0xf]
      %v2795 = vld [vmem:[%s1 + $0x250] sm:$0xf]
      %v2796 = vld [vmem:[%s1 + $0x254] sm:$0xf]
      %v2797 = vld [vmem:[%s1 + $0x258] sm:$0xf]
      %v2798 = vld [vmem:[%s1 + $0x25c] sm:$0xf]
      %v2799 = vld [vmem:[%s1 + $0x260] sm:$0xf]
      %v2800 = vld [vmem:[%s1 + $0x264] sm:$0xf]
      %v2801 = vld [vmem:[%s1 + $0x268] sm:$0xf]
      %v2802 = vld [vmem:[%s1 + $0x26c] sm:$0xf]
      %v2803 = vld [vmem:[%s1 + $0x270] sm:$0xf]
      %v2804 = vld [vmem:[%s1 + $0x274] sm:$0xf]
      %v2805 = vld [vmem:[%s1 + $0x278] sm:$0xf]
      %v2806 = vld [vmem:[%s1 + $0x27c] sm:$0xf]
      %v2807 = vld [vmem:[%s1 + $0x280] sm:$0xf]
      %v2808 = vld [vmem:[%s1 + $0x284] sm:$0xf]
      %v2809 = vld [vmem:[%s1 + $0x288] sm:$0xf]
      %v2810 = vld [vmem:[%s1 + $0x28c] sm:$0xf]
      %v2811 = vld [vmem:[%s1 + $0x290] sm:$0xf]
      %v2812 = vld [vmem:[%s1 + $0x294] sm:$0xf]
      %v2813 = vld [vmem:[%s1 + $0x298] sm:$0xf]
      %v2814 = vld [vmem:[%s1 + $0x29c] sm:$0xf]
      %v2815 = vld [vmem:[%s1 + $0x2a0] sm:$0xf]
      %v2816 = vld [vmem:[%s1 + $0x2a4] sm:$0xf]
      %v2817 = vld [vmem:[%s1 + $0x2a8] sm:$0xf]
      %v2818 = vld [vmem:[%s1 + $0x2ac] sm:$0xf]
      %v2819 = vld [vmem:[%s1 + $0x2b0] sm:$0xf]
      %v2820 = vld [vmem:[%s1 + $0x2b4] sm:$0xf]
      %v2821 = vld [vmem:[%s1 + $0x2b8] sm:$0xf]
      %v2822 = vld [vmem:[%s1 + $0x2bc] sm:$0xf]
      %v2823 = vld [vmem:[%s1 + $0x2c0] sm:$0xf]
      %v2824 = vld [vmem:[%s1 + $0x2c4] sm:$0xf]
      %v2825 = vld [vmem:[%s1 + $0x2c8] sm:$0xf]
      %v2826 = vld [vmem:[%s1 + $0x2cc] sm:$0xf]
      %v2827 = vld [vmem:[%s1 + $0x2d0] sm:$0xf]
      %v2828 = vld [vmem:[%s1 + $0x2d4] sm:$0xf]
      %v2829 = vld [vmem:[%s1 + $0x2d8] sm:$0xf]
      %v2830 = vld [vmem:[%s1 + $0x2dc] sm:$0xf]
      %v2831 = vld [vmem:[%s1 + $0x2e0] sm:$0xf]
      %v2832 = vld [vmem:[%s1 + $0x2e4] sm:$0xf]
      %v2833 = vld [vmem:[%s1 + $0x2e8] sm:$0xf]
      %v2834 = vld [vmem:[%s1 + $0x2ec] sm:$0xf]
      %v2835 = vld [vmem:[%s1 + $0x2f0] sm:$0xf]
      %v2836 = vld [vmem:[%s1 + $0x2f4] sm:$0xf]
      %v2837 = vld [vmem:[%s1 + $0x2f8] sm:$0xf]
      %v2838 = vld [vmem:[%s1 + $0x2fc] sm:$0xf]
      %v2839 = vld [vmem:[%s1 + $0x300] sm:$0xf]
      %v2840 = vld [vmem:[%s1 + $0x304] sm:$0xf]
      %v2841 = vld [vmem:[%s1 + $0x308] sm:$0xf]
      %v2842 = vld [vmem:[%s1 + $0x30c] sm:$0xf]
      %v2843 = vld [vmem:[%s1 + $0x310] sm:$0xf]
      %v2844 = vld [vmem:[%s1 + $0x314] sm:$0xf]
      %v2845 = vld [vmem:[%s1 + $0x318] sm:$0xf]
      %v2846 = vld [vmem:[%s1 + $0x31c] sm:$0xf]
      %v2847 = vld [vmem:[%s1 + $0x320] sm:$0xf]
      %v2848 = vld [vmem:[%s1 + $0x324] sm:$0xf]
      %v2849 = vld [vmem:[%s1 + $0x328] sm:$0xf]
      %v2850 = vld [vmem:[%s1 + $0x32c] sm:$0xf]
      %v2851 = vld [vmem:[%s1 + $0x330] sm:$0xf]
      %v2852 = vld [vmem:[%s1 + $0x334] sm:$0xf]
      %v2853 = vld [vmem:[%s1 + $0x338] sm:$0xf]
      %v2854 = vld [vmem:[%s1 + $0x33c] sm:$0xf]
      %v2855 = vld [vmem:[%s1 + $0x340] sm:$0xf]
      %v2856 = vld [vmem:[%s1 + $0x344] sm:$0xf]
      %v2857 = vld [vmem:[%s1 + $0x348] sm:$0xf]
      %v2858 = vld [vmem:[%s1 + $0x34c] sm:$0xf]
      %v2859 = vld [vmem:[%s1 + $0x350] sm:$0xf]
      %v2860 = vld [vmem:[%s1 + $0x354] sm:$0xf]
      %v2861 = vld [vmem:[%s1 + $0x358] sm:$0xf]
      %v2862 = vld [vmem:[%s1 + $0x35c] sm:$0xf]
      %v2863 = vld [vmem:[%s1 + $0x360] sm:$0xf]
      %v2864 = vld [vmem:[%s1 + $0x364] sm:$0xf]
      %v2865 = vld [vmem:[%s1 + $0x368] sm:$0xf]
      %v2866 = vld [vmem:[%s1 + $0x36c] sm:$0xf]
      %v2867 = vld [vmem:[%s1 + $0x370] sm:$0xf]
      %v2868 = vld [vmem:[%s1 + $0x374] sm:$0xf]
      %v2869 = vld [vmem:[%s1 + $0x378] sm:$0xf]
      %v2870 = vld [vmem:[%s1 + $0x37c] sm:$0xf]
      %v2871 = vld [vmem:[%s1 + $0x380] sm:$0xf]
      %v2872 = vld [vmem:[%s1 + $0x384] sm:$0xf]
      %v2873 = vld [vmem:[%s1 + $0x388] sm:$0xf]
      %v2874 = vld [vmem:[%s1 + $0x38c] sm:$0xf]
      %v2875 = vld [vmem:[%s1 + $0x390] sm:$0xf]
      %v2876 = vld [vmem:[%s1 + $0x394] sm:$0xf]
      %v2877 = vld [vmem:[%s1 + $0x398] sm:$0xf]
      %v2878 = vld [vmem:[%s1 + $0x39c] sm:$0xf]
      %v2879 = vld [vmem:[%s1 + $0x3a0] sm:$0xf]
      %v2880 = vld [vmem:[%s1 + $0x3a4] sm:$0xf]
      %v2881 = vld [vmem:[%s1 + $0x3a8] sm:$0xf]
      %v2882 = vld [vmem:[%s1 + $0x3ac] sm:$0xf]
      %v2883 = vld [vmem:[%s1 + $0x3b0] sm:$0xf]
      %v2884 = vld [vmem:[%s1 + $0x3b4] sm:$0xf]
      %v2885 = vld [vmem:[%s1 + $0x3b8] sm:$0xf]
      %v2886 = vld [vmem:[%s1 + $0x3bc] sm:$0xf]
      %v2887 = vld [vmem:[%s1 + $0x3c0] sm:$0xf]
      %v2888 = vld [vmem:[%s1 + $0x3c4] sm:$0xf]
      %v2889 = vld [vmem:[%s1 + $0x3c8] sm:$0xf]
      %v2890 = vld [vmem:[%s1 + $0x3cc] sm:$0xf]
      %v2891 = vld [vmem:[%s1 + $0x3d0] sm:$0xf]
      %v2892 = vld [vmem:[%s1 + $0x3d4] sm:$0xf]
      %v2893 = vld [vmem:[%s1 + $0x3d8] sm:$0xf]
      %v2894 = vld [vmem:[%s1 + $0x3dc] sm:$0xf]
      %v2895 = vld [vmem:[%s1 + $0x3e0] sm:$0xf]
      %v2896 = vld [vmem:[%s1 + $0x3e4] sm:$0xf]
      %v2897 = vld [vmem:[%s1 + $0x3e8] sm:$0xf]
      %v2898 = vld [vmem:[%s1 + $0x3ec] sm:$0xf]
      %v2899 = vld [vmem:[%s1 + $0x3f0] sm:$0xf]
      %v2900 = vld [vmem:[%s1 + $0x3f4] sm:$0xf]
      %v2901 = vld [vmem:[%s1 + $0x3f8] sm:$0xf]
      %v2902 = vld [vmem:[%s1 + $0x3fc] sm:$0xf]
      %v2903 = vld [vmem:[%s1 + $0x400] sm:$0xf]
      %v2904 = vld [vmem:[%s1 + $0x404] sm:$0xf]
      %v2905 = vld [vmem:[%s1 + $0x408] sm:$0xf]
      %v2906 = vld [vmem:[%s1 + $0x40c] sm:$0xf]
      %v2907 = vld [vmem:[%s1 + $0x410] sm:$0xf]
      %v2908 = vld [vmem:[%s1 + $0x414] sm:$0xf]
      %v2909 = vld [vmem:[%s1 + $0x418] sm:$0xf]
      %v2910 = vld [vmem:[%s1 + $0x41c] sm:$0xf]
      %v2911 = vld [vmem:[%s1 + $0x420] sm:$0xf]
      %v2912 = vld [vmem:[%s1 + $0x424] sm:$0xf]
      %v2913 = vld [vmem:[%s1 + $0x428] sm:$0xf]
      %v2914 = vld [vmem:[%s1 + $0x42c] sm:$0xf]
      %v2915 = vld [vmem:[%s1 + $0x430] sm:$0xf]
      %v2916 = vld [vmem:[%s1 + $0x434] sm:$0xf]
      %v2917 = vld [vmem:[%s1 + $0x438] sm:$0xf]
      %v2918 = vld [vmem:[%s1 + $0x43c] sm:$0xf]
      %v2919 = vld [vmem:[%s1 + $0x440] sm:$0xf]
      %v2920 = vld [vmem:[%s1 + $0x444] sm:$0xf]
      %v2921 = vld [vmem:[%s1 + $0x448] sm:$0xf]
      %v2922 = vld [vmem:[%s1 + $0x44c] sm:$0xf]
      %v2923 = vld [vmem:[%s1 + $0x450] sm:$0xf]
      %v2924 = vld [vmem:[%s1 + $0x454] sm:$0xf]
      %v2925 = vld [vmem:[%s1 + $0x458] sm:$0xf]
      %v2926 = vld [vmem:[%s1 + $0x45c] sm:$0xf]
      %v2927 = vld [vmem:[%s1 + $0x460] sm:$0xf]
      %v2928 = vld [vmem:[%s1 + $0x464] sm:$0xf]
      %v2929 = vld [vmem:[%s1 + $0x468] sm:$0xf]
      %v2930 = vld [vmem:[%s1 + $0x46c] sm:$0xf]
      %v2931 = vld [vmem:[%s1 + $0x470] sm:$0xf]
      %v2932 = vld [vmem:[%s1 + $0x474] sm:$0xf]
      %v2933 = vld [vmem:[%s1 + $0x478] sm:$0xf]
      %v2934 = vld [vmem:[%s1 + $0x47c] sm:$0xf]
      %v2935 = vld [vmem:[%s1 + $0x480] sm:$0xf]
      %v2936 = vld [vmem:[%s1 + $0x484] sm:$0xf]
      %v2937 = vld [vmem:[%s1 + $0x488] sm:$0xf]
      %v2938 = vld [vmem:[%s1 + $0x48c] sm:$0xf]
      %v2939 = vld [vmem:[%s1 + $0x490] sm:$0xf]
      %v2940 = vld [vmem:[%s1 + $0x494] sm:$0xf]
      %v2941 = vld [vmem:[%s1 + $0x498] sm:$0xf]
      %v2942 = vld [vmem:[%s1 + $0x49c] sm:$0xf]
      %v2943 = vld [vmem:[%s1 + $0x4a0] sm:$0xf]
      %v2944 = vld [vmem:[%s1 + $0x4a4] sm:$0xf]
      %v2945 = vld [vmem:[%s1 + $0x4a8] sm:$0xf]
      %v2946 = vld [vmem:[%s1 + $0x4ac] sm:$0xf]
      %v2947 = vld [vmem:[%s1 + $0x4b0] sm:$0xf]
      %v2948 = vld [vmem:[%s1 + $0x4b4] sm:$0xf]
      %v2949 = vld [vmem:[%s1 + $0x4b8] sm:$0xf]
      %v2950 = vld [vmem:[%s1 + $0x4bc] sm:$0xf]
      %v2951 = vld [vmem:[%s1 + $0x4c0] sm:$0xf]
      %v2952 = vld [vmem:[%s1 + $0x4c4] sm:$0xf]
      %v2953 = vld [vmem:[%s1 + $0x4c8] sm:$0xf]
      %v2954 = vld [vmem:[%s1 + $0x4cc] sm:$0xf]
      %v2955 = vld [vmem:[%s1 + $0x4d0] sm:$0xf]
      %v2956 = vld [vmem:[%s1 + $0x4d4] sm:$0xf]
      %v2957 = vld [vmem:[%s1 + $0x4d8] sm:$0xf]
      %v2958 = vld [vmem:[%s1 + $0x4dc] sm:$0xf]
      %v2959 = vld [vmem:[%s1 + $0x4e0] sm:$0xf]
      %v2960 = vld [vmem:[%s1 + $0x4e4] sm:$0xf]
      %v2961 = vld [vmem:[%s1 + $0x4e8] sm:$0xf]
      %v2962 = vld [vmem:[%s1 + $0x4ec] sm:$0xf]
      %v2963 = vld [vmem:[%s1 + $0x4f0] sm:$0xf]
      %v2964 = vld [vmem:[%s1 + $0x4f4] sm:$0xf]
      %v2965 = vld [vmem:[%s1 + $0x4f8] sm:$0xf]
      %v2966 = vld [vmem:[%s1 + $0x4fc] sm:$0xf]
      %v2967 = vld [vmem:[%s1 + $0x500] sm:$0xf]
      %v2968 = vld [vmem:[%s1 + $0x504] sm:$0xf]
      %v2969 = vld [vmem:[%s1 + $0x508] sm:$0xf]
      %v2970 = vld [vmem:[%s1 + $0x50c] sm:$0xf]
      %v2971 = vld [vmem:[%s1 + $0x510] sm:$0xf]
      %v2972 = vld [vmem:[%s1 + $0x514] sm:$0xf]
      %v2973 = vld [vmem:[%s1 + $0x518] sm:$0xf]
      %v2974 = vld [vmem:[%s1 + $0x51c] sm:$0xf]
      %v2975 = vld [vmem:[%s1 + $0x520] sm:$0xf]
      %v2976 = vld [vmem:[%s1 + $0x524] sm:$0xf]
      %v2977 = vld [vmem:[%s1 + $0x528] sm:$0xf]
      %v2978 = vld [vmem:[%s1 + $0x52c] sm:$0xf]
      %v2979 = vld [vmem:[%s1 + $0x530] sm:$0xf]
      %v2980 = vld [vmem:[%s1 + $0x534] sm:$0xf]
      %v2981 = vld [vmem:[%s1 + $0x538] sm:$0xf]
      %v2982 = vld [vmem:[%s1 + $0x53c] sm:$0xf]
      %v2983 = vld [vmem:[%s1 + $0x540] sm:$0xf]
      %v2984 = vld [vmem:[%s1 + $0x544] sm:$0xf]
      %v2985 = vld [vmem:[%s1 + $0x548] sm:$0xf]
      %v2986 = vld [vmem:[%s1 + $0x54c] sm:$0xf]
      %v2987 = vld [vmem:[%s1 + $0x550] sm:$0xf]
      %v2988 = vld [vmem:[%s1 + $0x554] sm:$0xf]
      %v2989 = vld [vmem:[%s1 + $0x558] sm:$0xf]
      %v2990 = vld [vmem:[%s1 + $0x55c] sm:$0xf]
      %v2991 = vld [vmem:[%s1 + $0x560] sm:$0xf]
      %v2992 = vld [vmem:[%s1 + $0x564] sm:$0xf]
      %v2993 = vld [vmem:[%s1 + $0x568] sm:$0xf]
      %v2994 = vld [vmem:[%s1 + $0x56c] sm:$0xf]
      %v2995 = vld [vmem:[%s1 + $0x570] sm:$0xf]
      %v2996 = vld [vmem:[%s1 + $0x574] sm:$0xf]
      %v2997 = vld [vmem:[%s1 + $0x578] sm:$0xf]
      %v2998 = vld [vmem:[%s1 + $0x57c] sm:$0xf]
      %v2999 = vld [vmem:[%s1 + $0x580] sm:$0xf]
      %v3000 = vld [vmem:[%s1 + $0x584] sm:$0xf]
      %v3001 = vld [vmem:[%s1 + $0x588] sm:$0xf]
      %v3002 = vld [vmem:[%s1 + $0x58c] sm:$0xf]
      %v3003 = vld [vmem:[%s1 + $0x590] sm:$0xf]
      %v3004 = vld [vmem:[%s1 + $0x594] sm:$0xf]
      %v3005 = vld [vmem:[%s1 + $0x598] sm:$0xf]
      %v3006 = vld [vmem:[%s1 + $0x59c] sm:$0xf]
      %v3007 = vld [vmem:[%s1 + $0x5a0] sm:$0xf]
      %v3008 = vld [vmem:[%s1 + $0x5a4] sm:$0xf]
      %v3009 = vld [vmem:[%s1 + $0x5a8] sm:$0xf]
      %v3010 = vld [vmem:[%s1 + $0x5ac] sm:$0xf]
      %v3011 = vld [vmem:[%s1 + $0x5b0] sm:$0xf]
      %v3012 = vld [vmem:[%s1 + $0x5b4] sm:$0xf]
      %v3013 = vld [vmem:[%s1 + $0x5b8] sm:$0xf]
      %v3014 = vld [vmem:[%s1 + $0x5bc] sm:$0xf]
      %v3015 = vld [vmem:[%s1 + $0x5c0] sm:$0xf]
      %v3016 = vld [vmem:[%s1 + $0x5c4] sm:$0xf]
      %v3017 = vld [vmem:[%s1 + $0x5c8] sm:$0xf]
      %v3018 = vld [vmem:[%s1 + $0x5cc] sm:$0xf]
      %v3019 = vld [vmem:[%s1 + $0x5d0] sm:$0xf]
      %v3020 = vld [vmem:[%s1 + $0x5d4] sm:$0xf]
      %v3021 = vld [vmem:[%s1 + $0x5d8] sm:$0xf]
      %v3022 = vld [vmem:[%s1 + $0x5dc] sm:$0xf]
      %v3023 = vld [vmem:[%s1 + $0x5e0] sm:$0xf]
      %v3024 = vld [vmem:[%s1 + $0x5e4] sm:$0xf]
      %v3025 = vld [vmem:[%s1 + $0x5e8] sm:$0xf]
      %v3026 = vld [vmem:[%s1 + $0x5ec] sm:$0xf]
      %v3027 = vld [vmem:[%s1 + $0x5f0] sm:$0xf]
      %v3028 = vld [vmem:[%s1 + $0x5f4] sm:$0xf]
      %v3029 = vld [vmem:[%s1 + $0x5f8] sm:$0xf]
      %v3030 = vld [vmem:[%s1 + $0x5fc] sm:$0xf]
      %v3031 = vld [vmem:[%s1 + $0x600] sm:$0xf]
      %v3032 = vld [vmem:[%s1 + $0x604] sm:$0xf]
      %v3033 = vld [vmem:[%s1 + $0x608] sm:$0xf]
      %v3034 = vld [vmem:[%s1 + $0x60c] sm:$0xf]
      %v3035 = vld [vmem:[%s1 + $0x610] sm:$0xf]
      %v3036 = vld [vmem:[%s1 + $0x614] sm:$0xf]
      %v3037 = vld [vmem:[%s1 + $0x618] sm:$0xf]
      %v3038 = vld [vmem:[%s1 + $0x61c] sm:$0xf]
      %v3039 = vld [vmem:[%s1 + $0x620] sm:$0xf]
      %v3040 = vld [vmem:[%s1 + $0x624] sm:$0xf]
      %v3041 = vld [vmem:[%s1 + $0x628] sm:$0xf]
      %v3042 = vld [vmem:[%s1 + $0x62c] sm:$0xf]
      %v3043 = vld [vmem:[%s1 + $0x630] sm:$0xf]
      %v3044 = vld [vmem:[%s1 + $0x634] sm:$0xf]
      %v3045 = vld [vmem:[%s1 + $0x638] sm:$0xf]
      %v3046 = vld [vmem:[%s1 + $0x63c] sm:$0xf]
      %v3047 = vld [vmem:[%s2] sm:$0x1]
      %v3049 = vlaneseq
      %v3050 = vshrl.u32 %v3049, 7
      %v3051 = vsub.s32 0, %v3050
      %v3052 = vrot.slane %v3047, %v3051
      %v3454 = vunpack.c.l.b16 %v2647
      %v3455 = vunpack.c.l.b16 %v2648
      %v3456 = vunpack.c.l.b16 %v2649
      %v3457 = vunpack.c.l.b16 %v2650
      %v3458 = vunpack.c.l.b16 %v2651
      %v3459 = vunpack.c.l.b16 %v2652
      %v3460 = vunpack.c.l.b16 %v2653
      %v3461 = vunpack.c.l.b16 %v2654
      %v3462 = vunpack.c.l.b16 %v2655
      %v3463 = vunpack.c.l.b16 %v2656
      %v3464 = vunpack.c.l.b16 %v2657
      %v3465 = vunpack.c.l.b16 %v2658
      %v3466 = vunpack.c.l.b16 %v2659
      %v3467 = vunpack.c.l.b16 %v2660
      %v3468 = vunpack.c.l.b16 %v2661
      %v3469 = vunpack.c.l.b16 %v2662
      %v3470 = vunpack.c.l.b16 %v2663
      %v3471 = vunpack.c.l.b16 %v2664
      %v3472 = vunpack.c.l.b16 %v2665
      %v3473 = vunpack.c.l.b16 %v2666
      %v3474 = vunpack.c.l.b16 %v2667
      %v3475 = vunpack.c.l.b16 %v2668
      %v3476 = vunpack.c.l.b16 %v2669
      %v3477 = vunpack.c.l.b16 %v2670
      %v3478 = vunpack.c.l.b16 %v2671
      %v3479 = vunpack.c.l.b16 %v2672
      %v3480 = vunpack.c.l.b16 %v2673
      %v3481 = vunpack.c.l.b16 %v2674
      %v3482 = vunpack.c.l.b16 %v2675
      %v3483 = vunpack.c.l.b16 %v2676
      %v3484 = vunpack.c.l.b16 %v2677
      %v3485 = vunpack.c.l.b16 %v2678
      %v3486 = vunpack.c.l.b16 %v2679
      %v3487 = vunpack.c.l.b16 %v2680
      %v3488 = vunpack.c.l.b16 %v2681
      %v3489 = vunpack.c.l.b16 %v2682
      %v3490 = vunpack.c.l.b16 %v2683
      %v3491 = vunpack.c.l.b16 %v2684
      %v3492 = vunpack.c.l.b16 %v2685
      %v3493 = vunpack.c.l.b16 %v2686
      %v3494 = vunpack.c.l.b16 %v2687
      %v3495 = vunpack.c.l.b16 %v2688
      %v3496 = vunpack.c.l.b16 %v2689
      %v3497 = vunpack.c.l.b16 %v2690
      %v3498 = vunpack.c.l.b16 %v2691
      %v3499 = vunpack.c.l.b16 %v2692
      %v3500 = vunpack.c.l.b16 %v2693
      %v3501 = vunpack.c.l.b16 %v2694
      %v3502 = vunpack.c.l.b16 %v2695
      %v3503 = vunpack.c.l.b16 %v2696
      %v3504 = vunpack.c.l.b16 %v2697
      %v3505 = vunpack.c.l.b16 %v2698
      %v3506 = vunpack.c.l.b16 %v2699
      %v3507 = vunpack.c.l.b16 %v2700
      %v3508 = vunpack.c.l.b16 %v2701
      %v3509 = vunpack.c.l.b16 %v2702
      %v3510 = vunpack.c.l.b16 %v2703
      %v3511 = vunpack.c.l.b16 %v2704
      %v3512 = vunpack.c.l.b16 %v2705
      %v3513 = vunpack.c.l.b16 %v2706
      %v3514 = vunpack.c.l.b16 %v2707
      %v3515 = vunpack.c.l.b16 %v2708
      %v3516 = vunpack.c.l.b16 %v2709
      %v3517 = vunpack.c.l.b16 %v2710
      %v3518 = vunpack.c.l.b16 %v2711
      %v3519 = vunpack.c.l.b16 %v2712
      %v3520 = vunpack.c.l.b16 %v2713
      %v3521 = vunpack.c.l.b16 %v2714
      %v3522 = vunpack.c.l.b16 %v2715
      %v3523 = vunpack.c.l.b16 %v2716
      %v3524 = vunpack.c.l.b16 %v2717
      %v3525 = vunpack.c.l.b16 %v2718
      %v3526 = vunpack.c.l.b16 %v2719
      %v3527 = vunpack.c.l.b16 %v2720
      %v3528 = vunpack.c.l.b16 %v2721
      %v3529 = vunpack.c.l.b16 %v2722
      %v3530 = vunpack.c.l.b16 %v2723
      %v3531 = vunpack.c.l.b16 %v2724
      %v3532 = vunpack.c.l.b16 %v2725
      %v3533 = vunpack.c.l.b16 %v2726
      %v3534 = vunpack.c.l.b16 %v2727
      %v3535 = vunpack.c.l.b16 %v2728
      %v3536 = vunpack.c.l.b16 %v2729
      %v3537 = vunpack.c.l.b16 %v2730
      %v3538 = vunpack.c.l.b16 %v2731
      %v3539 = vunpack.c.l.b16 %v2732
      %v3540 = vunpack.c.l.b16 %v2733
      %v3541 = vunpack.c.l.b16 %v2734
      %v3542 = vunpack.c.l.b16 %v2735
      %v3543 = vunpack.c.l.b16 %v2736
      %v3544 = vunpack.c.l.b16 %v2737
      %v3545 = vunpack.c.l.b16 %v2738
      %v3546 = vunpack.c.l.b16 %v2739
      %v3547 = vunpack.c.l.b16 %v2740
      %v3548 = vunpack.c.l.b16 %v2741
      %v3549 = vunpack.c.l.b16 %v2742
      %v3550 = vunpack.c.l.b16 %v2743
      %v3551 = vunpack.c.l.b16 %v2744
      %v3552 = vunpack.c.l.b16 %v2745
      %v3553 = vunpack.c.l.b16 %v2746
      %v3554 = vunpack.c.l.b16 %v2747
      %v3555 = vunpack.c.l.b16 %v2748
      %v3556 = vunpack.c.l.b16 %v2749
      %v3557 = vunpack.c.l.b16 %v2750
      %v3558 = vunpack.c.l.b16 %v2751
      %v3559 = vunpack.c.l.b16 %v2752
      %v3560 = vunpack.c.l.b16 %v2753
      %v3561 = vunpack.c.l.b16 %v2754
      %v3562 = vunpack.c.l.b16 %v2755
      %v3563 = vunpack.c.l.b16 %v2756
      %v3564 = vunpack.c.l.b16 %v2757
      %v3565 = vunpack.c.l.b16 %v2758
      %v3566 = vunpack.c.l.b16 %v2759
      %v3567 = vunpack.c.l.b16 %v2760
      %v3568 = vunpack.c.l.b16 %v2761
      %v3569 = vunpack.c.l.b16 %v2762
      %v3570 = vunpack.c.l.b16 %v2763
      %v3571 = vunpack.c.l.b16 %v2764
      %v3572 = vunpack.c.l.b16 %v2765
      %v3573 = vunpack.c.l.b16 %v2766
      %v3574 = vunpack.c.l.b16 %v2767
      %v3575 = vunpack.c.l.b16 %v2768
      %v3576 = vunpack.c.l.b16 %v2769
      %v3577 = vunpack.c.l.b16 %v2770
      %v3578 = vunpack.c.l.b16 %v2771
      %v3579 = vunpack.c.l.b16 %v2772
      %v3580 = vunpack.c.l.b16 %v2773
      %v3581 = vunpack.c.l.b16 %v2774
      %v3582 = vunpack.c.l.b16 %v2775
      %v3583 = vunpack.c.l.b16 %v2776
      %v3584 = vunpack.c.l.b16 %v2777
      %v3585 = vunpack.c.l.b16 %v2778
      %v3586 = vunpack.c.l.b16 %v2779
      %v3587 = vunpack.c.l.b16 %v2780
      %v3588 = vunpack.c.l.b16 %v2781
      %v3589 = vunpack.c.l.b16 %v2782
      %v3590 = vunpack.c.l.b16 %v2783
      %v3591 = vunpack.c.l.b16 %v2784
      %v3592 = vunpack.c.l.b16 %v2785
      %v3593 = vunpack.c.l.b16 %v2786
      %v3594 = vunpack.c.l.b16 %v2787
      %v3595 = vunpack.c.l.b16 %v2788
      %v3596 = vunpack.c.l.b16 %v2789
      %v3597 = vunpack.c.l.b16 %v2790
      %v3598 = vunpack.c.l.b16 %v2791
      %v3599 = vunpack.c.l.b16 %v2792
      %v3600 = vunpack.c.l.b16 %v2793
      %v3601 = vunpack.c.l.b16 %v2794
      %v3602 = vunpack.c.l.b16 %v2795
      %v3603 = vunpack.c.l.b16 %v2796
      %v3604 = vunpack.c.l.b16 %v2797
      %v3605 = vunpack.c.l.b16 %v2798
      %v3606 = vunpack.c.l.b16 %v2799
      %v3607 = vunpack.c.l.b16 %v2800
      %v3608 = vunpack.c.l.b16 %v2801
      %v3609 = vunpack.c.l.b16 %v2802
      %v3610 = vunpack.c.l.b16 %v2803
      %v3611 = vunpack.c.l.b16 %v2804
      %v3612 = vunpack.c.l.b16 %v2805
      %v3613 = vunpack.c.l.b16 %v2806
      %v3614 = vunpack.c.l.b16 %v2807
      %v3615 = vunpack.c.l.b16 %v2808
      %v3616 = vunpack.c.l.b16 %v2809
      %v3617 = vunpack.c.l.b16 %v2810
      %v3618 = vunpack.c.l.b16 %v2811
      %v3619 = vunpack.c.l.b16 %v2812
      %v3620 = vunpack.c.l.b16 %v2813
      %v3621 = vunpack.c.l.b16 %v2814
      %v3622 = vunpack.c.l.b16 %v2815
      %v3623 = vunpack.c.l.b16 %v2816
      %v3624 = vunpack.c.l.b16 %v2817
      %v3625 = vunpack.c.l.b16 %v2818
      %v3626 = vunpack.c.l.b16 %v2819
      %v3627 = vunpack.c.l.b16 %v2820
      %v3628 = vunpack.c.l.b16 %v2821
      %v3629 = vunpack.c.l.b16 %v2822
      %v3630 = vunpack.c.l.b16 %v2823
      %v3631 = vunpack.c.l.b16 %v2824
      %v3632 = vunpack.c.l.b16 %v2825
      %v3633 = vunpack.c.l.b16 %v2826
      %v3634 = vunpack.c.l.b16 %v2827
      %v3635 = vunpack.c.l.b16 %v2828
      %v3636 = vunpack.c.l.b16 %v2829
      %v3637 = vunpack.c.l.b16 %v2830
      %v3638 = vunpack.c.l.b16 %v2831
      %v3639 = vunpack.c.l.b16 %v2832
      %v3640 = vunpack.c.l.b16 %v2833
      %v3641 = vunpack.c.l.b16 %v2834
      %v3642 = vunpack.c.l.b16 %v2835
      %v3643 = vunpack.c.l.b16 %v2836
      %v3644 = vunpack.c.l.b16 %v2837
      %v3645 = vunpack.c.l.b16 %v2838
      %v3646 = vunpack.c.l.b16 %v2839
      %v3647 = vunpack.c.l.b16 %v2840
      %v3648 = vunpack.c.l.b16 %v2841
      %v3649 = vunpack.c.l.b16 %v2842
      %v3650 = vunpack.c.l.b16 %v2843
      %v3651 = vunpack.c.l.b16 %v2844
      %v3652 = vunpack.c.l.b16 %v2845
      %v3653 = vunpack.c.l.b16 %v2846
      %v3654 = vunpack.c.l.b16 %v2847
      %v3655 = vunpack.c.l.b16 %v2848
      %v3656 = vunpack.c.l.b16 %v2849
      %v3657 = vunpack.c.l.b16 %v2850
      %v3658 = vunpack.c.l.b16 %v2851
      %v3659 = vunpack.c.l.b16 %v2852
      %v3660 = vunpack.c.l.b16 %v2853
      %v3661 = vunpack.c.l.b16 %v2854
      %v3662 = vunpack.c.l.b16 %v2855
      %v3663 = vunpack.c.l.b16 %v2856
      %v3664 = vunpack.c.l.b16 %v2857
      %v3665 = vunpack.c.l.b16 %v2858
      %v3666 = vunpack.c.l.b16 %v2859
      %v3667 = vunpack.c.l.b16 %v2860
      %v3668 = vunpack.c.l.b16 %v2861
      %v3669 = vunpack.c.l.b16 %v2862
      %v3670 = vunpack.c.l.b16 %v2863
      %v3671 = vunpack.c.l.b16 %v2864
      %v3672 = vunpack.c.l.b16 %v2865
      %v3673 = vunpack.c.l.b16 %v2866
      %v3674 = vunpack.c.l.b16 %v2867
      %v3675 = vunpack.c.l.b16 %v2868
      %v3676 = vunpack.c.l.b16 %v2869
      %v3677 = vunpack.c.l.b16 %v2870
      %v3678 = vunpack.c.l.b16 %v2871
      %v3679 = vunpack.c.l.b16 %v2872
      %v3680 = vunpack.c.l.b16 %v2873
      %v3681 = vunpack.c.l.b16 %v2874
      %v3682 = vunpack.c.l.b16 %v2875
      %v3683 = vunpack.c.l.b16 %v2876
      %v3684 = vunpack.c.l.b16 %v2877
      %v3685 = vunpack.c.l.b16 %v2878
      %v3686 = vunpack.c.l.b16 %v2879
      %v3687 = vunpack.c.l.b16 %v2880
      %v3688 = vunpack.c.l.b16 %v2881
      %v3689 = vunpack.c.l.b16 %v2882
      %v3690 = vunpack.c.l.b16 %v2883
      %v3691 = vunpack.c.l.b16 %v2884
      %v3692 = vunpack.c.l.b16 %v2885
      %v3693 = vunpack.c.l.b16 %v2886
      %v3694 = vunpack.c.l.b16 %v2887
      %v3695 = vunpack.c.l.b16 %v2888
      %v3696 = vunpack.c.l.b16 %v2889
      %v3697 = vunpack.c.l.b16 %v2890
      %v3698 = vunpack.c.l.b16 %v2891
      %v3699 = vunpack.c.l.b16 %v2892
      %v3700 = vunpack.c.l.b16 %v2893
      %v3701 = vunpack.c.l.b16 %v2894
      %v3702 = vunpack.c.l.b16 %v2895
      %v3703 = vunpack.c.l.b16 %v2896
      %v3704 = vunpack.c.l.b16 %v2897
      %v3705 = vunpack.c.l.b16 %v2898
      %v3706 = vunpack.c.l.b16 %v2899
      %v3707 = vunpack.c.l.b16 %v2900
      %v3708 = vunpack.c.l.b16 %v2901
      %v3709 = vunpack.c.l.b16 %v2902
      %v3710 = vunpack.c.l.b16 %v2903
      %v3711 = vunpack.c.l.b16 %v2904
      %v3712 = vunpack.c.l.b16 %v2905
      %v3713 = vunpack.c.l.b16 %v2906
      %v3714 = vunpack.c.l.b16 %v2907
      %v3715 = vunpack.c.l.b16 %v2908
      %v3716 = vunpack.c.l.b16 %v2909
      %v3717 = vunpack.c.l.b16 %v2910
      %v3718 = vunpack.c.l.b16 %v2911
      %v3719 = vunpack.c.l.b16 %v2912
      %v3720 = vunpack.c.l.b16 %v2913
      %v3721 = vunpack.c.l.b16 %v2914
      %v3722 = vunpack.c.l.b16 %v2915
      %v3723 = vunpack.c.l.b16 %v2916
      %v3724 = vunpack.c.l.b16 %v2917
      %v3725 = vunpack.c.l.b16 %v2918
      %v3726 = vunpack.c.l.b16 %v2919
      %v3727 = vunpack.c.l.b16 %v2920
      %v3728 = vunpack.c.l.b16 %v2921
      %v3729 = vunpack.c.l.b16 %v2922
      %v3730 = vunpack.c.l.b16 %v2923
      %v3731 = vunpack.c.l.b16 %v2924
      %v3732 = vunpack.c.l.b16 %v2925
      %v3733 = vunpack.c.l.b16 %v2926
      %v3734 = vunpack.c.l.b16 %v2927
      %v3735 = vunpack.c.l.b16 %v2928
      %v3736 = vunpack.c.l.b16 %v2929
      %v3737 = vunpack.c.l.b16 %v2930
      %v3738 = vunpack.c.l.b16 %v2931
      %v3739 = vunpack.c.l.b16 %v2932
      %v3740 = vunpack.c.l.b16 %v2933
      %v3741 = vunpack.c.l.b16 %v2934
      %v3742 = vunpack.c.l.b16 %v2935
      %v3743 = vunpack.c.l.b16 %v2936
      %v3744 = vunpack.c.l.b16 %v2937
      %v3745 = vunpack.c.l.b16 %v2938
      %v3746 = vunpack.c.l.b16 %v2939
      %v3747 = vunpack.c.l.b16 %v2940
      %v3748 = vunpack.c.l.b16 %v2941
      %v3749 = vunpack.c.l.b16 %v2942
      %v3750 = vunpack.c.l.b16 %v2943
      %v3751 = vunpack.c.l.b16 %v2944
      %v3752 = vunpack.c.l.b16 %v2945
      %v3753 = vunpack.c.l.b16 %v2946
      %v3754 = vunpack.c.l.b16 %v2947
      %v3755 = vunpack.c.l.b16 %v2948
      %v3756 = vunpack.c.l.b16 %v2949
      %v3757 = vunpack.c.l.b16 %v2950
      %v3758 = vunpack.c.l.b16 %v2951
      %v3759 = vunpack.c.l.b16 %v2952
      %v3760 = vunpack.c.l.b16 %v2953
      %v3761 = vunpack.c.l.b16 %v2954
      %v3762 = vunpack.c.l.b16 %v2955
      %v3763 = vunpack.c.l.b16 %v2956
      %v3764 = vunpack.c.l.b16 %v2957
      %v3765 = vunpack.c.l.b16 %v2958
      %v3766 = vunpack.c.l.b16 %v2959
      %v3767 = vunpack.c.l.b16 %v2960
      %v3768 = vunpack.c.l.b16 %v2961
      %v3769 = vunpack.c.l.b16 %v2962
      %v3770 = vunpack.c.l.b16 %v2963
      %v3771 = vunpack.c.l.b16 %v2964
      %v3772 = vunpack.c.l.b16 %v2965
      %v3773 = vunpack.c.l.b16 %v2966
      %v3774 = vunpack.c.l.b16 %v2967
      %v3775 = vunpack.c.l.b16 %v2968
      %v3776 = vunpack.c.l.b16 %v2969
      %v3777 = vunpack.c.l.b16 %v2970
      %v3778 = vunpack.c.l.b16 %v2971
      %v3779 = vunpack.c.l.b16 %v2972
      %v3780 = vunpack.c.l.b16 %v2973
      %v3781 = vunpack.c.l.b16 %v2974
      %v3782 = vunpack.c.l.b16 %v2975
      %v3783 = vunpack.c.l.b16 %v2976
      %v3784 = vunpack.c.l.b16 %v2977
      %v3785 = vunpack.c.l.b16 %v2978
      %v3786 = vunpack.c.l.b16 %v2979
      %v3787 = vunpack.c.l.b16 %v2980
      %v3788 = vunpack.c.l.b16 %v2981
      %v3789 = vunpack.c.l.b16 %v2982
      %v3790 = vunpack.c.l.b16 %v2983
      %v3791 = vunpack.c.l.b16 %v2984
      %v3792 = vunpack.c.l.b16 %v2985
      %v3793 = vunpack.c.l.b16 %v2986
      %v3794 = vunpack.c.l.b16 %v2987
      %v3795 = vunpack.c.l.b16 %v2988
      %v3796 = vunpack.c.l.b16 %v2989
      %v3797 = vunpack.c.l.b16 %v2990
      %v3798 = vunpack.c.l.b16 %v2991
      %v3799 = vunpack.c.l.b16 %v2992
      %v3800 = vunpack.c.l.b16 %v2993
      %v3801 = vunpack.c.l.b16 %v2994
      %v3802 = vunpack.c.l.b16 %v2995
      %v3803 = vunpack.c.l.b16 %v2996
      %v3804 = vunpack.c.l.b16 %v2997
      %v3805 = vunpack.c.l.b16 %v2998
      %v3806 = vunpack.c.l.b16 %v2999
      %v3807 = vunpack.c.l.b16 %v3000
      %v3808 = vunpack.c.l.b16 %v3001
      %v3809 = vunpack.c.l.b16 %v3002
      %v3810 = vunpack.c.l.b16 %v3003
      %v3811 = vunpack.c.l.b16 %v3004
      %v3812 = vunpack.c.l.b16 %v3005
      %v3813 = vunpack.c.l.b16 %v3006
      %v3814 = vunpack.c.l.b16 %v3007
      %v3815 = vunpack.c.l.b16 %v3008
      %v3816 = vunpack.c.l.b16 %v3009
      %v3817 = vunpack.c.l.b16 %v3010
      %v3818 = vunpack.c.l.b16 %v3011
      %v3819 = vunpack.c.l.b16 %v3012
      %v3820 = vunpack.c.l.b16 %v3013
      %v3821 = vunpack.c.l.b16 %v3014
      %v3822 = vunpack.c.l.b16 %v3015
      %v3823 = vunpack.c.l.b16 %v3016
      %v3824 = vunpack.c.l.b16 %v3017
      %v3825 = vunpack.c.l.b16 %v3018
      %v3826 = vunpack.c.l.b16 %v3019
      %v3827 = vunpack.c.l.b16 %v3020
      %v3828 = vunpack.c.l.b16 %v3021
      %v3829 = vunpack.c.l.b16 %v3022
      %v3830 = vunpack.c.l.b16 %v3023
      %v3831 = vunpack.c.l.b16 %v3024
      %v3832 = vunpack.c.l.b16 %v3025
      %v3833 = vunpack.c.l.b16 %v3026
      %v3834 = vunpack.c.l.b16 %v3027
      %v3835 = vunpack.c.l.b16 %v3028
      %v3836 = vunpack.c.l.b16 %v3029
      %v3837 = vunpack.c.l.b16 %v3030
      %v3838 = vunpack.c.l.b16 %v3031
      %v3839 = vunpack.c.l.b16 %v3032
      %v3840 = vunpack.c.l.b16 %v3033
      %v3841 = vunpack.c.l.b16 %v3034
      %v3842 = vunpack.c.l.b16 %v3035
      %v3843 = vunpack.c.l.b16 %v3036
      %v3844 = vunpack.c.l.b16 %v3037
      %v3845 = vunpack.c.l.b16 %v3038
      %v3846 = vunpack.c.l.b16 %v3039
      %v3847 = vunpack.c.l.b16 %v3040
      %v3848 = vunpack.c.l.b16 %v3041
      %v3849 = vunpack.c.l.b16 %v3042
      %v3850 = vunpack.c.l.b16 %v3043
      %v3851 = vunpack.c.l.b16 %v3044
      %v3852 = vunpack.c.l.b16 %v3045
      %v3853 = vunpack.c.l.b16 %v3046
      %v3854 = vpack.c.b16 %v3455, %v3454
      %v3855 = vpack.c.b16 %v3457, %v3456
      %v3856 = vpack.c.b16 %v3459, %v3458
      %v3857 = vpack.c.b16 %v3461, %v3460
      %v3858 = vpack.c.b16 %v3463, %v3462
      %v3859 = vpack.c.b16 %v3465, %v3464
      %v3860 = vpack.c.b16 %v3467, %v3466
      %v3861 = vpack.c.b16 %v3469, %v3468
      %v3862 = vpack.c.b16 %v3471, %v3470
      %v3863 = vpack.c.b16 %v3473, %v3472
      %v3864 = vpack.c.b16 %v3475, %v3474
      %v3865 = vpack.c.b16 %v3477, %v3476
      %v3866 = vpack.c.b16 %v3479, %v3478
      %v3867 = vpack.c.b16 %v3481, %v3480
      %v3868 = vpack.c.b16 %v3483, %v3482
      %v3869 = vpack.c.b16 %v3485, %v3484
      %v3870 = vpack.c.b16 %v3487, %v3486
      %v3871 = vpack.c.b16 %v3489, %v3488
      %v3872 = vpack.c.b16 %v3491, %v3490
      %v3873 = vpack.c.b16 %v3493, %v3492
      %v3874 = vpack.c.b16 %v3495, %v3494
      %v3875 = vpack.c.b16 %v3497, %v3496
      %v3876 = vpack.c.b16 %v3499, %v3498
      %v3877 = vpack.c.b16 %v3501, %v3500
      %v3878 = vpack.c.b16 %v3503, %v3502
      %v3879 = vpack.c.b16 %v3505, %v3504
      %v3880 = vpack.c.b16 %v3507, %v3506
      %v3881 = vpack.c.b16 %v3509, %v3508
      %v3882 = vpack.c.b16 %v3511, %v3510
      %v3883 = vpack.c.b16 %v3513, %v3512
      %v3884 = vpack.c.b16 %v3515, %v3514
      %v3885 = vpack.c.b16 %v3517, %v3516
      %v3886 = vpack.c.b16 %v3519, %v3518
      %v3887 = vpack.c.b16 %v3521, %v3520
      %v3888 = vpack.c.b16 %v3523, %v3522
      %v3889 = vpack.c.b16 %v3525, %v3524
      %v3890 = vpack.c.b16 %v3527, %v3526
      %v3891 = vpack.c.b16 %v3529, %v3528
      %v3892 = vpack.c.b16 %v3531, %v3530
      %v3893 = vpack.c.b16 %v3533, %v3532
      %v3894 = vpack.c.b16 %v3535, %v3534
      %v3895 = vpack.c.b16 %v3537, %v3536
      %v3896 = vpack.c.b16 %v3539, %v3538
      %v3897 = vpack.c.b16 %v3541, %v3540
      %v3898 = vpack.c.b16 %v3543, %v3542
      %v3899 = vpack.c.b16 %v3545, %v3544
      %v3900 = vpack.c.b16 %v3547, %v3546
      %v3901 = vpack.c.b16 %v3549, %v3548
      %v3902 = vpack.c.b16 %v3551, %v3550
      %v3903 = vpack.c.b16 %v3553, %v3552
      %v3904 = vpack.c.b16 %v3555, %v3554
      %v3905 = vpack.c.b16 %v3557, %v3556
      %v3906 = vpack.c.b16 %v3559, %v3558
      %v3907 = vpack.c.b16 %v3561, %v3560
      %v3908 = vpack.c.b16 %v3563, %v3562
      %v3909 = vpack.c.b16 %v3565, %v3564
      %v3910 = vpack.c.b16 %v3567, %v3566
      %v3911 = vpack.c.b16 %v3569, %v3568
      %v3912 = vpack.c.b16 %v3571, %v3570
      %v3913 = vpack.c.b16 %v3573, %v3572
      %v3914 = vpack.c.b16 %v3575, %v3574
      %v3915 = vpack.c.b16 %v3577, %v3576
      %v3916 = vpack.c.b16 %v3579, %v3578
      %v3917 = vpack.c.b16 %v3581, %v3580
      %v3918 = vpack.c.b16 %v3583, %v3582
      %v3919 = vpack.c.b16 %v3585, %v3584
      %v3920 = vpack.c.b16 %v3587, %v3586
      %v3921 = vpack.c.b16 %v3589, %v3588
      %v3922 = vpack.c.b16 %v3591, %v3590
      %v3923 = vpack.c.b16 %v3593, %v3592
      %v3924 = vpack.c.b16 %v3595, %v3594
      %v3925 = vpack.c.b16 %v3597, %v3596
      %v3926 = vpack.c.b16 %v3599, %v3598
      %v3927 = vpack.c.b16 %v3601, %v3600
      %v3928 = vpack.c.b16 %v3603, %v3602
      %v3929 = vpack.c.b16 %v3605, %v3604
      %v3930 = vpack.c.b16 %v3607, %v3606
      %v3931 = vpack.c.b16 %v3609, %v3608
      %v3932 = vpack.c.b16 %v3611, %v3610
      %v3933 = vpack.c.b16 %v3613, %v3612
      %v3934 = vpack.c.b16 %v3615, %v3614
      %v3935 = vpack.c.b16 %v3617, %v3616
      %v3936 = vpack.c.b16 %v3619, %v3618
      %v3937 = vpack.c.b16 %v3621, %v3620
      %v3938 = vpack.c.b16 %v3623, %v3622
      %v3939 = vpack.c.b16 %v3625, %v3624
      %v3940 = vpack.c.b16 %v3627, %v3626
      %v3941 = vpack.c.b16 %v3629, %v3628
      %v3942 = vpack.c.b16 %v3631, %v3630
      %v3943 = vpack.c.b16 %v3633, %v3632
      %v3944 = vpack.c.b16 %v3635, %v3634
      %v3945 = vpack.c.b16 %v3637, %v3636
      %v3946 = vpack.c.b16 %v3639, %v3638
      %v3947 = vpack.c.b16 %v3641, %v3640
      %v3948 = vpack.c.b16 %v3643, %v3642
      %v3949 = vpack.c.b16 %v3645, %v3644
      %v3950 = vpack.c.b16 %v3647, %v3646
      %v3951 = vpack.c.b16 %v3649, %v3648
      %v3952 = vpack.c.b16 %v3651, %v3650
      %v3953 = vpack.c.b16 %v3653, %v3652
      %v3954 = vpack.c.b16 %v3655, %v3654
      %v3955 = vpack.c.b16 %v3657, %v3656
      %v3956 = vpack.c.b16 %v3659, %v3658
      %v3957 = vpack.c.b16 %v3661, %v3660
      %v3958 = vpack.c.b16 %v3663, %v3662
      %v3959 = vpack.c.b16 %v3665, %v3664
      %v3960 = vpack.c.b16 %v3667, %v3666
      %v3961 = vpack.c.b16 %v3669, %v3668
      %v3962 = vpack.c.b16 %v3671, %v3670
      %v3963 = vpack.c.b16 %v3673, %v3672
      %v3964 = vpack.c.b16 %v3675, %v3674
      %v3965 = vpack.c.b16 %v3677, %v3676
      %v3966 = vpack.c.b16 %v3679, %v3678
      %v3967 = vpack.c.b16 %v3681, %v3680
      %v3968 = vpack.c.b16 %v3683, %v3682
      %v3969 = vpack.c.b16 %v3685, %v3684
      %v3970 = vpack.c.b16 %v3687, %v3686
      %v3971 = vpack.c.b16 %v3689, %v3688
      %v3972 = vpack.c.b16 %v3691, %v3690
      %v3973 = vpack.c.b16 %v3693, %v3692
      %v3974 = vpack.c.b16 %v3695, %v3694
      %v3975 = vpack.c.b16 %v3697, %v3696
      %v3976 = vpack.c.b16 %v3699, %v3698
      %v3977 = vpack.c.b16 %v3701, %v3700
      %v3978 = vpack.c.b16 %v3703, %v3702
      %v3979 = vpack.c.b16 %v3705, %v3704
      %v3980 = vpack.c.b16 %v3707, %v3706
      %v3981 = vpack.c.b16 %v3709, %v3708
      %v3982 = vpack.c.b16 %v3711, %v3710
      %v3983 = vpack.c.b16 %v3713, %v3712
      %v3984 = vpack.c.b16 %v3715, %v3714
      %v3985 = vpack.c.b16 %v3717, %v3716
      %v3986 = vpack.c.b16 %v3719, %v3718
      %v3987 = vpack.c.b16 %v3721, %v3720
      %v3988 = vpack.c.b16 %v3723, %v3722
      %v3989 = vpack.c.b16 %v3725, %v3724
      %v3990 = vpack.c.b16 %v3727, %v3726
      %v3991 = vpack.c.b16 %v3729, %v3728
      %v3992 = vpack.c.b16 %v3731, %v3730
      %v3993 = vpack.c.b16 %v3733, %v3732
      %v3994 = vpack.c.b16 %v3735, %v3734
      %v3995 = vpack.c.b16 %v3737, %v3736
      %v3996 = vpack.c.b16 %v3739, %v3738
      %v3997 = vpack.c.b16 %v3741, %v3740
      %v3998 = vpack.c.b16 %v3743, %v3742
      %v3999 = vpack.c.b16 %v3745, %v3744
      %v4000 = vpack.c.b16 %v3747, %v3746
      %v4001 = vpack.c.b16 %v3749, %v3748
      %v4002 = vpack.c.b16 %v3751, %v3750
      %v4003 = vpack.c.b16 %v3753, %v3752
      %v4004 = vpack.c.b16 %v3755, %v3754
      %v4005 = vpack.c.b16 %v3757, %v3756
      %v4006 = vpack.c.b16 %v3759, %v3758
      %v4007 = vpack.c.b16 %v3761, %v3760
      %v4008 = vpack.c.b16 %v3763, %v3762
      %v4009 = vpack.c.b16 %v3765, %v3764
      %v4010 = vpack.c.b16 %v3767, %v3766
      %v4011 = vpack.c.b16 %v3769, %v3768
      %v4012 = vpack.c.b16 %v3771, %v3770
      %v4013 = vpack.c.b16 %v3773, %v3772
      %v4014 = vpack.c.b16 %v3775, %v3774
      %v4015 = vpack.c.b16 %v3777, %v3776
      %v4016 = vpack.c.b16 %v3779, %v3778
      %v4017 = vpack.c.b16 %v3781, %v3780
      %v4018 = vpack.c.b16 %v3783, %v3782
      %v4019 = vpack.c.b16 %v3785, %v3784
      %v4020 = vpack.c.b16 %v3787, %v3786
      %v4021 = vpack.c.b16 %v3789, %v3788
      %v4022 = vpack.c.b16 %v3791, %v3790
      %v4023 = vpack.c.b16 %v3793, %v3792
      %v4024 = vpack.c.b16 %v3795, %v3794
      %v4025 = vpack.c.b16 %v3797, %v3796
      %v4026 = vpack.c.b16 %v3799, %v3798
      %v4027 = vpack.c.b16 %v3801, %v3800
      %v4028 = vpack.c.b16 %v3803, %v3802
      %v4029 = vpack.c.b16 %v3805, %v3804
      %v4030 = vpack.c.b16 %v3807, %v3806
      %v4031 = vpack.c.b16 %v3809, %v3808
      %v4032 = vpack.c.b16 %v3811, %v3810
      %v4033 = vpack.c.b16 %v3813, %v3812
      %v4034 = vpack.c.b16 %v3815, %v3814
      %v4035 = vpack.c.b16 %v3817, %v3816
      %v4036 = vpack.c.b16 %v3819, %v3818
      %v4037 = vpack.c.b16 %v3821, %v3820
      %v4038 = vpack.c.b16 %v3823, %v3822
      %v4039 = vpack.c.b16 %v3825, %v3824
      %v4040 = vpack.c.b16 %v3827, %v3826
      %v4041 = vpack.c.b16 %v3829, %v3828
      %v4042 = vpack.c.b16 %v3831, %v3830
      %v4043 = vpack.c.b16 %v3833, %v3832
      %v4044 = vpack.c.b16 %v3835, %v3834
      %v4045 = vpack.c.b16 %v3837, %v3836
      %v4046 = vpack.c.b16 %v3839, %v3838
      %v4047 = vpack.c.b16 %v3841, %v3840
      %v4048 = vpack.c.b16 %v3843, %v3842
      %v4049 = vpack.c.b16 %v3845, %v3844
      %v4050 = vpack.c.b16 %v3847, %v3846
      %v4051 = vpack.c.b16 %v3849, %v3848
      %v4052 = vpack.c.b16 %v3851, %v3850
      %v4053 = vpack.c.b16 %v3853, %v3852
      %4254 = vmatprep.subr.bf16.mxu0 0
      %4255 = vmatpush1.bf16.msra.mxu0 %v3854
      %4256 = vmatprep.subr.bf16.mxu0 0
      %4257 = vmatpush1.bf16.msra.mxu0 %v3855
      %4258 = vmatprep.subr.bf16.mxu0 0
      %4259 = vmatpush1.bf16.msra.mxu0 %v3856
      %4260 = vmatprep.subr.bf16.mxu0 0
      %4261 = vmatpush1.bf16.msra.mxu0 %v3857
      %4262 = vmatprep.subr.bf16.mxu0 0
      %4263 = vmatpush1.bf16.msra.mxu0 %v3858
      %4264 = vmatprep.subr.bf16.mxu0 0
      %4265 = vmatpush1.bf16.msra.mxu0 %v3859
      %4266 = vmatprep.subr.bf16.mxu0 0
      %4267 = vmatpush1.bf16.msra.mxu0 %v3860
      %4268 = vmatprep.subr.bf16.mxu0 0
      %4269 = vmatpush1.bf16.msra.mxu0 %v3861
      %4270 = vmatprep.subr.bf16.mxu0 0
      %4271 = vmatpush1.bf16.msra.mxu0 %v3862
      %4272 = vmatprep.subr.bf16.mxu0 0
      %4273 = vmatpush1.bf16.msra.mxu0 %v3863
      %4274 = vmatprep.subr.bf16.mxu0 0
      %4275 = vmatpush1.bf16.msra.mxu0 %v3864
      %4276 = vmatprep.subr.bf16.mxu0 0
      %4277 = vmatpush1.bf16.msra.mxu0 %v3865
      %4278 = vmatprep.subr.bf16.mxu0 0
      %4279 = vmatpush1.bf16.msra.mxu0 %v3866
      %4280 = vmatprep.subr.bf16.mxu0 0
      %4281 = vmatpush1.bf16.msra.mxu0 %v3867
      %4282 = vmatprep.subr.bf16.mxu0 0
      %4283 = vmatpush1.bf16.msra.mxu0 %v3868
      %4284 = vmatprep.subr.bf16.mxu0 0
      %4285 = vmatpush1.bf16.msra.mxu0 %v3869
      %4286 = vmatprep.mubr.bf16.mxu0 %v2448
      %4287 = vmatmul.mubr.bf16.gmra.mrb[0].mxu0 %v2447
      %v4288 = vpop.f32.mrb[0].mxu0
      %v4289 = vadd.f32 %v3052, %v4288
      %v4290 = vpop.f32.mrb[0].mxu0
      %v4291 = vpop.f32.mrb[0].mxu0
      %v4292 = vadd.f32 %v3052, %v4291
      %v4293 = vpop.f32.mrb[0].mxu0
      %4294 = vmatprep.mubr.bf16.mxu0 %v2473
      %4295 = vmatmul.mubr.bf16.gmra.mrb[0].mxu0 %v2472
      %v4296 = vpop.f32.mrb[0].mxu0
      %v4297 = vadd.f32 %v3052, %v4296
      %v4298 = vpop.f32.mrb[0].mxu0
      %v4299 = vpop.f32.mrb[0].mxu0
      %v4300 = vadd.f32 %v3052, %v4299
      %v4301 = vpop.f32.mrb[0].mxu0
      %4302 = vmatprep.mubr.bf16.mxu0 %v2498
      %4303 = vmatmul.mubr.bf16.gmra.mrb[0].mxu0 %v2497
      %v4304 = vpop.f32.mrb[0].mxu0
      %v4305 = vadd.f32 %v3052, %v4304
      %v4306 = vpop.f32.mrb[0].mxu0
      %v4307 = vpop.f32.mrb[0].mxu0
      %v4308 = vadd.f32 %v3052, %v4307
      %v4309 = vpop.f32.mrb[0].mxu0
      %4310 = vmatprep.mubr.bf16.mxu0 %v2523
      %4311 = vmatmul.mubr.bf16.gmra.mrb[0].mxu0 %v2522
      %v4312 = vpop.f32.mrb[0].mxu0
      %v4313 = vadd.f32 %v3052, %v4312
      %v4314 = vpop.f32.mrb[0].mxu0
      %v4315 = vpop.f32.mrb[0].mxu0
      %v4316 = vadd.f32 %v3052, %v4315
      %v4317 = vpop.f32.mrb[0].mxu0
      %4318 = vmatprep.mubr.bf16.mxu0 %v2548
      %4319 = vmatmul.mubr.bf16.gmra.mrb[0].mxu0 %v2547
      %v4320 = vpop.f32.mrb[0].mxu0
      %v4321 = vadd.f32 %v3052, %v4320
      %v4322 = vpop.f32.mrb[0].mxu0
      %v4323 = vpop.f32.mrb[0].mxu0
      %v4324 = vadd.f32 %v3052, %v4323
      %v4325 = vpop.f32.mrb[0].mxu0
      %4326 = vmatprep.mubr.bf16.mxu0 %v2573
      %4327 = vmatmul.mubr.bf16.gmra.mrb[0].mxu0 %v2572
      %v4328 = vpop.f32.mrb[0].mxu0
      %v4329 = vadd.f32 %v3052, %v4328
      %v4330 = vpop.f32.mrb[0].mxu0
      %v4331 = vpop.f32.mrb[0].mxu0
      %v4332 = vadd.f32 %v3052, %v4331
      %v4333 = vpop.f32.mrb[0].mxu0
      %4334 = vmatprep.mubr.bf16.mxu0 %v2598
      %4335 = vmatmul.mubr.bf16.gmra.mrb[0].mxu0 %v2597
      %v4336 = vpop.f32.mrb[0].mxu0
      %v4337 = vadd.f32 %v3052, %v4336
      %v4338 = vpop.f32.mrb[0].mxu0
      %v4339 = vpop.f32.mrb[0].mxu0
      %v4340 = vadd.f32 %v3052, %v4339
      %v4341 = vpop.f32.mrb[0].mxu0
      %4342 = vmatprep.mubr.bf16.mxu0 %v2623
      %4343 = vmatmul.mubr.bf16.gmra.mrb[0].mxu0 %v2622
      %v4344 = vpop.f32.mrb[0].mxu0
      %v4345 = vadd.f32 %v3052, %v4344
      %v4346 = vpop.f32.mrb[0].mxu0
      %v4347 = vpop.f32.mrb[0].mxu0
      %v4348 = vadd.f32 %v3052, %v4347
      %v4349 = vpop.f32.mrb[0].mxu0
      %4350 = vdwg.mxu0
      %4351 = vmatprep.subr.bf16.mxu0 0
      %4352 = vmatpush1.bf16.msra.mxu0 %v3870
      %4353 = vmatprep.subr.bf16.mxu0 0
      %4354 = vmatpush1.bf16.msra.mxu0 %v3871
      %4355 = vmatprep.subr.bf16.mxu0 0
      %4356 = vmatpush1.bf16.msra.mxu0 %v3872
      %4357 = vmatprep.subr.bf16.mxu0 0
      %4358 = vmatpush1.bf16.msra.mxu0 %v3873
      %4359 = vmatprep.subr.bf16.mxu0 0
      %4360 = vmatpush1.bf16.msra.mxu0 %v3874
      %4361 = vmatprep.subr.bf16.mxu0 0
      %4362 = vmatpush1.bf16.msra.mxu0 %v3875
      %4363 = vmatprep.subr.bf16.mxu0 0
      %4364 = vmatpush1.bf16.msra.mxu0 %v3876
      %4365 = vmatprep.subr.bf16.mxu0 0
      %4366 = vmatpush1.bf16.msra.mxu0 %v3877
      %4367 = vmatprep.subr.bf16.mxu0 0
      %4368 = vmatpush1.bf16.msra.mxu0 %v3878
      %4369 = vmatprep.subr.bf16.mxu0 0
      %4370 = vmatpush1.bf16.msra.mxu0 %v3879
      %4371 = vmatprep.subr.bf16.mxu0 0
      %4372 = vmatpush1.bf16.msra.mxu0 %v3880
      %4373 = vmatprep.subr.bf16.mxu0 0
      %4374 = vmatpush1.bf16.msra.mxu0 %v3881
      %4375 = vmatprep.subr.bf16.mxu0 0
      %4376 = vmatpush1.bf16.msra.mxu0 %v3882
      %4377 = vmatprep.subr.bf16.mxu0 0
      %4378 = vmatpush1.bf16.msra.mxu0 %v3883
      %4379 = vmatprep.subr.bf16.mxu0 0
      %4380 = vmatpush1.bf16.msra.mxu0 %v3884
      %4381 = vmatprep.subr.bf16.mxu0 0
      %4382 = vmatpush1.bf16.msra.mxu0 %v3885
      %4383 = vmatprep.mubr.bf16.mxu0 %v2450
      %4384 = vmatmul.mubr.bf16.gmra.mrb[0].mxu0 %v2449
      %v4385 = vpop.f32.mrb[0].mxu0
      %v4386 = vadd.f32 %v4289, %v4385
      %v4387 = vpop.f32.mrb[0].mxu0
      %v4388 = vpop.f32.mrb[0].mxu0
      %v4389 = vadd.f32 %v4292, %v4388
      %v4390 = vpop.f32.mrb[0].mxu0
      %4391 = vmatprep.mubr.bf16.mxu0 %v2475
      %4392 = vmatmul.mubr.bf16.gmra.mrb[0].mxu0 %v2474
      %v4393 = vpop.f32.mrb[0].mxu0
      %v4394 = vadd.f32 %v4297, %v4393
      %v4395 = vpop.f32.mrb[0].mxu0
      %v4396 = vpop.f32.mrb[0].mxu0
      %v4397 = vadd.f32 %v4300, %v4396
      %v4398 = vpop.f32.mrb[0].mxu0
      %4399 = vmatprep.mubr.bf16.mxu0 %v2500
      %4400 = vmatmul.mubr.bf16.gmra.mrb[0].mxu0 %v2499
      %v4401 = vpop.f32.mrb[0].mxu0
      %v4402 = vadd.f32 %v4305, %v4401
      %v4403 = vpop.f32.mrb[0].mxu0
      %v4404 = vpop.f32.mrb[0].mxu0
      %v4405 = vadd.f32 %v4308, %v4404
      %v4406 = vpop.f32.mrb[0].mxu0
      %4407 = vmatprep.mubr.bf16.mxu0 %v2525
      %4408 = vmatmul.mubr.bf16.gmra.mrb[0].mxu0 %v2524
      %v4409 = vpop.f32.mrb[0].mxu0
      %v4410 = vadd.f32 %v4313, %v4409
      %v4411 = vpop.f32.mrb[0].mxu0
      %v4412 = vpop.f32.mrb[0].mxu0
      %v4413 = vadd.f32 %v4316, %v4412
      %v4414 = vpop.f32.mrb[0].mxu0
      %4415 = vmatprep.mubr.bf16.mxu0 %v2550
      %4416 = vmatmul.mubr.bf16.gmra.mrb[0].mxu0 %v2549
      %v4417 = vpop.f32.mrb[0].mxu0
      %v4418 = vadd.f32 %v4321, %v4417
      %v4419 = vpop.f32.mrb[0].mxu0
      %v4420 = vpop.f32.mrb[0].mxu0
      %v4421 = vadd.f32 %v4324, %v4420
      %v4422 = vpop.f32.mrb[0].mxu0
      %4423 = vmatprep.mubr.bf16.mxu0 %v2575
      %4424 = vmatmul.mubr.bf16.gmra.mrb[0].mxu0 %v2574
      %v4425 = vpop.f32.mrb[0].mxu0
      %v4426 = vadd.f32 %v4329, %v4425
      %v4427 = vpop.f32.mrb[0].mxu0
      %v4428 = vpop.f32.mrb[0].mxu0
      %v4429 = vadd.f32 %v4332, %v4428
      %v4430 = vpop.f32.mrb[0].mxu0
      %4431 = vmatprep.mubr.bf16.mxu0 %v2600
      %4432 = vmatmul.mubr.bf16.gmra.mrb[0].mxu0 %v2599
      %v4433 = vpop.f32.mrb[0].mxu0
      %v4434 = vadd.f32 %v4337, %v4433
      %v4435 = vpop.f32.mrb[0].mxu0
      %v4436 = vpop.f32.mrb[0].mxu0
      %v4437 = vadd.f32 %v4340, %v4436
      %v4438 = vpop.f32.mrb[0].mxu0
      %4439 = vmatprep.mubr.bf16.mxu0 %v2625
      %4440 = vmatmul.mubr.bf16.gmra.mrb[0].mxu0 %v2624
      %v4441 = vpop.f32.mrb[0].mxu0
      %v4442 = vadd.f32 %v4345, %v4441
      %v4443 = vpop.f32.mrb[0].mxu0
      %v4444 = vpop.f32.mrb[0].mxu0
      %v4445 = vadd.f32 %v4348, %v4444
      %v4446 = vpop.f32.mrb[0].mxu0
      %4447 = vdwg.mxu0
      %4448 = vmatprep.subr.bf16.mxu0 0
      %4449 = vmatpush1.bf16.msra.mxu0 %v3886
      %4450 = vmatprep.subr.bf16.mxu0 0
      %4451 = vmatpush1.bf16.msra.mxu0 %v3887
      %4452 = vmatprep.subr.bf16.mxu0 0
      %4453 = vmatpush1.bf16.msra.mxu0 %v3888
      %4454 = vmatprep.subr.bf16.mxu0 0
      %4455 = vmatpush1.bf16.msra.mxu0 %v3889
      %4456 = vmatprep.subr.bf16.mxu0 0
      %4457 = vmatpush1.bf16.msra.mxu0 %v3890
      %4458 = vmatprep.subr.bf16.mxu0 0
      %4459 = vmatpush1.bf16.msra.mxu0 %v3891
      %4460 = vmatprep.subr.bf16.mxu0 0
      %4461 = vmatpush1.bf16.msra.mxu0 %v3892
      %4462 = vmatprep.subr.bf16.mxu0 0
      %4463 = vmatpush1.bf16.msra.mxu0 %v3893
      %4464 = vmatprep.subr.bf16.mxu0 0
      %4465 = vmatpush1.bf16.msra.mxu0 %v3894
      %4466 = vmatprep.subr.bf16.mxu0 0
      %4467 = vmatpush1.bf16.msra.mxu0 %v3895
      %4468 = vmatprep.subr.bf16.mxu0 0
      %4469 = vmatpush1.bf16.msra.mxu0 %v3896
      %4470 = vmatprep.subr.bf16.mxu0 0
      %4471 = vmatpush1.bf16.msra.mxu0 %v3897
      %4472 = vmatprep.subr.bf16.mxu0 0
      %4473 = vmatpush1.bf16.msra.mxu0 %v3898
      %4474 = vmatprep.subr.bf16.mxu0 0
      %4475 = vmatpush1.bf16.msra.mxu0 %v3899
      %4476 = vmatprep.subr.bf16.mxu0 0
      %4477 = vmatpush1.bf16.msra.mxu0 %v3900
      %4478 = vmatprep.subr.bf16.mxu0 0
      %4479 = vmatpush1.bf16.msra.mxu0 %v3901
      %4480 = vmatprep.mubr.bf16.mxu0 %v2452
      %4481 = vmatmul.mubr.bf16.gmra.mrb[0].mxu0 %v2451
      %v4482 = vpop.f32.mrb[0].mxu0
      %v4483 = vadd.f32 %v4386, %v4482
      %v4484 = vpop.f32.mrb[0].mxu0
      %v4485 = vpop.f32.mrb[0].mxu0
      %v4486 = vadd.f32 %v4389, %v4485
      %v4487 = vpop.f32.mrb[0].mxu0
      %4488 = vmatprep.mubr.bf16.mxu0 %v2477
      %4489 = vmatmul.mubr.bf16.gmra.mrb[0].mxu0 %v2476
      %v4490 = vpop.f32.mrb[0].mxu0
      %v4491 = vadd.f32 %v4394, %v4490
      %v4492 = vpop.f32.mrb[0].mxu0
      %v4493 = vpop.f32.mrb[0].mxu0
      %v4494 = vadd.f32 %v4397, %v4493
      %v4495 = vpop.f32.mrb[0].mxu0
      %4496 = vmatprep.mubr.bf16.mxu0 %v2502
      %4497 = vmatmul.mubr.bf16.gmra.mrb[0].mxu0 %v2501
      %v4498 = vpop.f32.mrb[0].mxu0
      %v4499 = vadd.f32 %v4402, %v4498
      %v4500 = vpop.f32.mrb[0].mxu0
      %v4501 = vpop.f32.mrb[0].mxu0
      %v4502 = vadd.f32 %v4405, %v4501
      %v4503 = vpop.f32.mrb[0].mxu0
      %4504 = vmatprep.mubr.bf16.mxu0 %v2527
      %4505 = vmatmul.mubr.bf16.gmra.mrb[0].mxu0 %v2526
      %v4506 = vpop.f32.mrb[0].mxu0
      %v4507 = vadd.f32 %v4410, %v4506
      %v4508 = vpop.f32.mrb[0].mxu0
      %v4509 = vpop.f32.mrb[0].mxu0
      %v4510 = vadd.f32 %v4413, %v4509
      %v4511 = vpop.f32.mrb[0].mxu0
      %4512 = vmatprep.mubr.bf16.mxu0 %v2552
      %4513 = vmatmul.mubr.bf16.gmra.mrb[0].mxu0 %v2551
      %v4514 = vpop.f32.mrb[0].mxu0
      %v4515 = vadd.f32 %v4418, %v4514
      %v4516 = vpop.f32.mrb[0].mxu0
      %v4517 = vpop.f32.mrb[0].mxu0
      %v4518 = vadd.f32 %v4421, %v4517
      %v4519 = vpop.f32.mrb[0].mxu0
      %4520 = vmatprep.mubr.bf16.mxu0 %v2577
      %4521 = vmatmul.mubr.bf16.gmra.mrb[0].mxu0 %v2576
      %v4522 = vpop.f32.mrb[0].mxu0
      %v4523 = vadd.f32 %v4426, %v4522
      %v4524 = vpop.f32.mrb[0].mxu0
      %v4525 = vpop.f32.mrb[0].mxu0
      %v4526 = vadd.f32 %v4429, %v4525
      %v4527 = vpop.f32.mrb[0].mxu0
      %4528 = vmatprep.mubr.bf16.mxu0 %v2602
      %4529 = vmatmul.mubr.bf16.gmra.mrb[0].mxu0 %v2601
      %v4530 = vpop.f32.mrb[0].mxu0
      %v4531 = vadd.f32 %v4434, %v4530
      %v4532 = vpop.f32.mrb[0].mxu0
      %v4533 = vpop.f32.mrb[0].mxu0
      %v4534 = vadd.f32 %v4437, %v4533
      %v4535 = vpop.f32.mrb[0].mxu0
      %4536 = vmatprep.mubr.bf16.mxu0 %v2627
      %4537 = vmatmul.mubr.bf16.gmra.mrb[0].mxu0 %v2626
      %v4538 = vpop.f32.mrb[0].mxu0
      %v4539 = vadd.f32 %v4442, %v4538
      %v4540 = vpop.f32.mrb[0].mxu0
      %v4541 = vpop.f32.mrb[0].mxu0
      %v4542 = vadd.f32 %v4445, %v4541
      %v4543 = vpop.f32.mrb[0].mxu0
      %4544 = vdwg.mxu0
      %4545 = vmatprep.subr.bf16.mxu0 0
      %4546 = vmatpush1.bf16.msra.mxu0 %v3902
      %4547 = vmatprep.subr.bf16.mxu0 0
      %4548 = vmatpush1.bf16.msra.mxu0 %v3903
      %4549 = vmatprep.subr.bf16.mxu0 0
      %4550 = vmatpush1.bf16.msra.mxu0 %v3904
      %4551 = vmatprep.subr.bf16.mxu0 0
      %4552 = vmatpush1.bf16.msra.mxu0 %v3905
      %4553 = vmatprep.subr.bf16.mxu0 0
      %4554 = vmatpush1.bf16.msra.mxu0 %v3906
      %4555 = vmatprep.subr.bf16.mxu0 0
      %4556 = vmatpush1.bf16.msra.mxu0 %v3907
      %4557 = vmatprep.subr.bf16.mxu0 0
      %4558 = vmatpush1.bf16.msra.mxu0 %v3908
      %4559 = vmatprep.subr.bf16.mxu0 0
      %4560 = vmatpush1.bf16.msra.mxu0 %v3909
      %4561 = vmatprep.subr.bf16.mxu0 0
      %4562 = vmatpush1.bf16.msra.mxu0 %v3910
      %4563 = vmatprep.subr.bf16.mxu0 0
      %4564 = vmatpush1.bf16.msra.mxu0 %v3911
      %4565 = vmatprep.subr.bf16.mxu0 0
      %4566 = vmatpush1.bf16.msra.mxu0 %v3912
      %4567 = vmatprep.subr.bf16.mxu0 0
      %4568 = vmatpush1.bf16.msra.mxu0 %v3913
      %4569 = vmatprep.subr.bf16.mxu0 0
      %4570 = vmatpush1.bf16.msra.mxu0 %v3914
      %4571 = vmatprep.subr.bf16.mxu0 0
      %4572 = vmatpush1.bf16.msra.mxu0 %v3915
      %4573 = vmatprep.subr.bf16.mxu0 0
      %4574 = vmatpush1.bf16.msra.mxu0 %v3916
      %4575 = vmatprep.subr.bf16.mxu0 0
      %4576 = vmatpush1.bf16.msra.mxu0 %v3917
      %4577 = vmatprep.mubr.bf16.mxu0 %v2454
      %4578 = vmatmul.mubr.bf16.gmra.mrb[0].mxu0 %v2453
      %v4579 = vpop.f32.mrb[0].mxu0
      %v4580 = vadd.f32 %v4483, %v4579
      %v4581 = vpop.f32.mrb[0].mxu0
      %v4582 = vpop.f32.mrb[0].mxu0
      %v4583 = vadd.f32 %v4486, %v4582
      %v4584 = vpop.f32.mrb[0].mxu0
      %4585 = vmatprep.mubr.bf16.mxu0 %v2479
      %4586 = vmatmul.mubr.bf16.gmra.mrb[0].mxu0 %v2478
      %v4587 = vpop.f32.mrb[0].mxu0
      %v4588 = vadd.f32 %v4491, %v4587
      %v4589 = vpop.f32.mrb[0].mxu0
      %v4590 = vpop.f32.mrb[0].mxu0
      %v4591 = vadd.f32 %v4494, %v4590
      %v4592 = vpop.f32.mrb[0].mxu0
      %4593 = vmatprep.mubr.bf16.mxu0 %v2504
      %4594 = vmatmul.mubr.bf16.gmra.mrb[0].mxu0 %v2503
      %v4595 = vpop.f32.mrb[0].mxu0
      %v4596 = vadd.f32 %v4499, %v4595
      %v4597 = vpop.f32.mrb[0].mxu0
      %v4598 = vpop.f32.mrb[0].mxu0
      %v4599 = vadd.f32 %v4502, %v4598
      %v4600 = vpop.f32.mrb[0].mxu0
      %4601 = vmatprep.mubr.bf16.mxu0 %v2529
      %4602 = vmatmul.mubr.bf16.gmra.mrb[0].mxu0 %v2528
      %v4603 = vpop.f32.mrb[0].mxu0
      %v4604 = vadd.f32 %v4507, %v4603
      %v4605 = vpop.f32.mrb[0].mxu0
      %v4606 = vpop.f32.mrb[0].mxu0
      %v4607 = vadd.f32 %v4510, %v4606
      %v4608 = vpop.f32.mrb[0].mxu0
      %4609 = vmatprep.mubr.bf16.mxu0 %v2554
      %4610 = vmatmul.mubr.bf16.gmra.mrb[0].mxu0 %v2553
      %v4611 = vpop.f32.mrb[0].mxu0
      %v4612 = vadd.f32 %v4515, %v4611
      %v4613 = vpop.f32.mrb[0].mxu0
      %v4614 = vpop.f32.mrb[0].mxu0
      %v4615 = vadd.f32 %v4518, %v4614
      %v4616 = vpop.f32.mrb[0].mxu0
      %4617 = vmatprep.mubr.bf16.mxu0 %v2579
      %4618 = vmatmul.mubr.bf16.gmra.mrb[0].mxu0 %v2578
      %v4619 = vpop.f32.mrb[0].mxu0
      %v4620 = vadd.f32 %v4523, %v4619
      %v4621 = vpop.f32.mrb[0].mxu0
      %v4622 = vpop.f32.mrb[0].mxu0
      %v4623 = vadd.f32 %v4526, %v4622
      %v4624 = vpop.f32.mrb[0].mxu0
      %4625 = vmatprep.mubr.bf16.mxu0 %v2604
      %4626 = vmatmul.mubr.bf16.gmra.mrb[0].mxu0 %v2603
      %v4627 = vpop.f32.mrb[0].mxu0
      %v4628 = vadd.f32 %v4531, %v4627
      %v4629 = vpop.f32.mrb[0].mxu0
      %v4630 = vpop.f32.mrb[0].mxu0
      %v4631 = vadd.f32 %v4534, %v4630
      %v4632 = vpop.f32.mrb[0].mxu0
      %4633 = vmatprep.mubr.bf16.mxu0 %v2629
      %4634 = vmatmul.mubr.bf16.gmra.mrb[0].mxu0 %v2628
      %v4635 = vpop.f32.mrb[0].mxu0
      %v4636 = vadd.f32 %v4539, %v4635
      %v4637 = vpop.f32.mrb[0].mxu0
      %v4638 = vpop.f32.mrb[0].mxu0
      %v4639 = vadd.f32 %v4542, %v4638
      %v4640 = vpop.f32.mrb[0].mxu0
      %4641 = vdwg.mxu0
      %4642 = vmatprep.subr.bf16.mxu0 0
      %4643 = vmatpush1.bf16.msra.mxu0 %v3918
      %4644 = vmatprep.subr.bf16.mxu0 0
      %4645 = vmatpush1.bf16.msra.mxu0 %v3919
      %4646 = vmatprep.subr.bf16.mxu0 0
      %4647 = vmatpush1.bf16.msra.mxu0 %v3920
      %4648 = vmatprep.subr.bf16.mxu0 0
      %4649 = vmatpush1.bf16.msra.mxu0 %v3921
      %4650 = vmatprep.subr.bf16.mxu0 0
      %4651 = vmatpush1.bf16.msra.mxu0 %v3922
      %4652 = vmatprep.subr.bf16.mxu0 0
      %4653 = vmatpush1.bf16.msra.mxu0 %v3923
      %4654 = vmatprep.subr.bf16.mxu0 0
      %4655 = vmatpush1.bf16.msra.mxu0 %v3924
      %4656 = vmatprep.subr.bf16.mxu0 0
      %4657 = vmatpush1.bf16.msra.mxu0 %v3925
      %4658 = vmatprep.subr.bf16.mxu0 0
      %4659 = vmatpush1.bf16.msra.mxu0 %v3926
      %4660 = vmatprep.subr.bf16.mxu0 0
      %4661 = vmatpush1.bf16.msra.mxu0 %v3927
      %4662 = vmatprep.subr.bf16.mxu0 0
      %4663 = vmatpush1.bf16.msra.mxu0 %v3928
      %4664 = vmatprep.subr.bf16.mxu0 0
      %4665 = vmatpush1.bf16.msra.mxu0 %v3929
      %4666 = vmatprep.subr.bf16.mxu0 0
      %4667 = vmatpush1.bf16.msra.mxu0 %v3930
      %4668 = vmatprep.subr.bf16.mxu0 0
      %4669 = vmatpush1.bf16.msra.mxu0 %v3931
      %4670 = vmatprep.subr.bf16.mxu0 0
      %4671 = vmatpush1.bf16.msra.mxu0 %v3932
      %4672 = vmatprep.subr.bf16.mxu0 0
      %4673 = vmatpush1.bf16.msra.mxu0 %v3933
      %4674 = vmatprep.mubr.bf16.mxu0 %v2456
      %4675 = vmatmul.mubr.bf16.gmra.mrb[0].mxu0 %v2455
      %v4676 = vpop.f32.mrb[0].mxu0
      %v4677 = vadd.f32 %v4580, %v4676
      %v4678 = vpop.f32.mrb[0].mxu0
      %v4679 = vpop.f32.mrb[0].mxu0
      %v4680 = vadd.f32 %v4583, %v4679
      %v4681 = vpop.f32.mrb[0].mxu0
      %4682 = vmatprep.mubr.bf16.mxu0 %v2481
      %4683 = vmatmul.mubr.bf16.gmra.mrb[0].mxu0 %v2480
      %v4684 = vpop.f32.mrb[0].mxu0
      %v4685 = vadd.f32 %v4588, %v4684
      %v4686 = vpop.f32.mrb[0].mxu0
      %v4687 = vpop.f32.mrb[0].mxu0
      %v4688 = vadd.f32 %v4591, %v4687
      %v4689 = vpop.f32.mrb[0].mxu0
      %4690 = vmatprep.mubr.bf16.mxu0 %v2506
      %4691 = vmatmul.mubr.bf16.gmra.mrb[0].mxu0 %v2505
      %v4692 = vpop.f32.mrb[0].mxu0
      %v4693 = vadd.f32 %v4596, %v4692
      %v4694 = vpop.f32.mrb[0].mxu0
      %v4695 = vpop.f32.mrb[0].mxu0
      %v4696 = vadd.f32 %v4599, %v4695
      %v4697 = vpop.f32.mrb[0].mxu0
      %4698 = vmatprep.mubr.bf16.mxu0 %v2531
      %4699 = vmatmul.mubr.bf16.gmra.mrb[0].mxu0 %v2530
      %v4700 = vpop.f32.mrb[0].mxu0
      %v4701 = vadd.f32 %v4604, %v4700
      %v4702 = vpop.f32.mrb[0].mxu0
      %v4703 = vpop.f32.mrb[0].mxu0
      %v4704 = vadd.f32 %v4607, %v4703
      %v4705 = vpop.f32.mrb[0].mxu0
      %4706 = vmatprep.mubr.bf16.mxu0 %v2556
      %4707 = vmatmul.mubr.bf16.gmra.mrb[0].mxu0 %v2555
      %v4708 = vpop.f32.mrb[0].mxu0
      %v4709 = vadd.f32 %v4612, %v4708
      %v4710 = vpop.f32.mrb[0].mxu0
      %v4711 = vpop.f32.mrb[0].mxu0
      %v4712 = vadd.f32 %v4615, %v4711
      %v4713 = vpop.f32.mrb[0].mxu0
      %4714 = vmatprep.mubr.bf16.mxu0 %v2581
      %4715 = vmatmul.mubr.bf16.gmra.mrb[0].mxu0 %v2580
      %v4716 = vpop.f32.mrb[0].mxu0
      %v4717 = vadd.f32 %v4620, %v4716
      %v4718 = vpop.f32.mrb[0].mxu0
      %v4719 = vpop.f32.mrb[0].mxu0
      %v4720 = vadd.f32 %v4623, %v4719
      %v4721 = vpop.f32.mrb[0].mxu0
      %4722 = vmatprep.mubr.bf16.mxu0 %v2606
      %4723 = vmatmul.mubr.bf16.gmra.mrb[0].mxu0 %v2605
      %v4724 = vpop.f32.mrb[0].mxu0
      %v4725 = vadd.f32 %v4628, %v4724
      %v4726 = vpop.f32.mrb[0].mxu0
      %v4727 = vpop.f32.mrb[0].mxu0
      %v4728 = vadd.f32 %v4631, %v4727
      %v4729 = vpop.f32.mrb[0].mxu0
      %4730 = vmatprep.mubr.bf16.mxu0 %v2631
      %4731 = vmatmul.mubr.bf16.gmra.mrb[0].mxu0 %v2630
      %v4732 = vpop.f32.mrb[0].mxu0
      %v4733 = vadd.f32 %v4636, %v4732
      %v4734 = vpop.f32.mrb[0].mxu0
      %v4735 = vpop.f32.mrb[0].mxu0
      %v4736 = vadd.f32 %v4639, %v4735
      %v4737 = vpop.f32.mrb[0].mxu0
      %4738 = vdwg.mxu0
      %4739 = vmatprep.subr.bf16.mxu0 0
      %4740 = vmatpush1.bf16.msra.mxu0 %v3934
      %4741 = vmatprep.subr.bf16.mxu0 0
      %4742 = vmatpush1.bf16.msra.mxu0 %v3935
      %4743 = vmatprep.subr.bf16.mxu0 0
      %4744 = vmatpush1.bf16.msra.mxu0 %v3936
      %4745 = vmatprep.subr.bf16.mxu0 0
      %4746 = vmatpush1.bf16.msra.mxu0 %v3937
      %4747 = vmatprep.subr.bf16.mxu0 0
      %4748 = vmatpush1.bf16.msra.mxu0 %v3938
      %4749 = vmatprep.subr.bf16.mxu0 0
      %4750 = vmatpush1.bf16.msra.mxu0 %v3939
      %4751 = vmatprep.subr.bf16.mxu0 0
      %4752 = vmatpush1.bf16.msra.mxu0 %v3940
      %4753 = vmatprep.subr.bf16.mxu0 0
      %4754 = vmatpush1.bf16.msra.mxu0 %v3941
      %4755 = vmatprep.subr.bf16.mxu0 0
      %4756 = vmatpush1.bf16.msra.mxu0 %v3942
      %4757 = vmatprep.subr.bf16.mxu0 0
      %4758 = vmatpush1.bf16.msra.mxu0 %v3943
      %4759 = vmatprep.subr.bf16.mxu0 0
      %4760 = vmatpush1.bf16.msra.mxu0 %v3944
      %4761 = vmatprep.subr.bf16.mxu0 0
      %4762 = vmatpush1.bf16.msra.mxu0 %v3945
      %4763 = vmatprep.subr.bf16.mxu0 0
      %4764 = vmatpush1.bf16.msra.mxu0 %v3946
      %4765 = vmatprep.subr.bf16.mxu0 0
      %4766 = vmatpush1.bf16.msra.mxu0 %v3947
      %4767 = vmatprep.subr.bf16.mxu0 0
      %4768 = vmatpush1.bf16.msra.mxu0 %v3948
      %4769 = vmatprep.subr.bf16.mxu0 0
      %4770 = vmatpush1.bf16.msra.mxu0 %v3949
      %4771 = vmatprep.mubr.bf16.mxu0 %v2458
      %4772 = vmatmul.mubr.bf16.gmra.mrb[0].mxu0 %v2457
      %v4773 = vpop.f32.mrb[0].mxu0
      %v4774 = vadd.f32 %v4677, %v4773
      %v4775 = vpop.f32.mrb[0].mxu0
      %v4776 = vpop.f32.mrb[0].mxu0
      %v4777 = vadd.f32 %v4680, %v4776
      %v4778 = vpop.f32.mrb[0].mxu0
      %4779 = vmatprep.mubr.bf16.mxu0 %v2483
      %4780 = vmatmul.mubr.bf16.gmra.mrb[0].mxu0 %v2482
      %v4781 = vpop.f32.mrb[0].mxu0
      %v4782 = vadd.f32 %v4685, %v4781
      %v4783 = vpop.f32.mrb[0].mxu0
      %v4784 = vpop.f32.mrb[0].mxu0
      %v4785 = vadd.f32 %v4688, %v4784
      %v4786 = vpop.f32.mrb[0].mxu0
      %4787 = vmatprep.mubr.bf16.mxu0 %v2508
      %4788 = vmatmul.mubr.bf16.gmra.mrb[0].mxu0 %v2507
      %v4789 = vpop.f32.mrb[0].mxu0
      %v4790 = vadd.f32 %v4693, %v4789
      %v4791 = vpop.f32.mrb[0].mxu0
      %v4792 = vpop.f32.mrb[0].mxu0
      %v4793 = vadd.f32 %v4696, %v4792
      %v4794 = vpop.f32.mrb[0].mxu0
      %4795 = vmatprep.mubr.bf16.mxu0 %v2533
      %4796 = vmatmul.mubr.bf16.gmra.mrb[0].mxu0 %v2532
      %v4797 = vpop.f32.mrb[0].mxu0
      %v4798 = vadd.f32 %v4701, %v4797
      %v4799 = vpop.f32.mrb[0].mxu0
      %v4800 = vpop.f32.mrb[0].mxu0
      %v4801 = vadd.f32 %v4704, %v4800
      %v4802 = vpop.f32.mrb[0].mxu0
      %4803 = vmatprep.mubr.bf16.mxu0 %v2558
      %4804 = vmatmul.mubr.bf16.gmra.mrb[0].mxu0 %v2557
      %v4805 = vpop.f32.mrb[0].mxu0
      %v4806 = vadd.f32 %v4709, %v4805
      %v4807 = vpop.f32.mrb[0].mxu0
      %v4808 = vpop.f32.mrb[0].mxu0
      %v4809 = vadd.f32 %v4712, %v4808
      %v4810 = vpop.f32.mrb[0].mxu0
      %4811 = vmatprep.mubr.bf16.mxu0 %v2583
      %4812 = vmatmul.mubr.bf16.gmra.mrb[0].mxu0 %v2582
      %v4813 = vpop.f32.mrb[0].mxu0
      %v4814 = vadd.f32 %v4717, %v4813
      %v4815 = vpop.f32.mrb[0].mxu0
      %v4816 = vpop.f32.mrb[0].mxu0
      %v4817 = vadd.f32 %v4720, %v4816
      %v4818 = vpop.f32.mrb[0].mxu0
      %4819 = vmatprep.mubr.bf16.mxu0 %v2608
      %4820 = vmatmul.mubr.bf16.gmra.mrb[0].mxu0 %v2607
      %v4821 = vpop.f32.mrb[0].mxu0
      %v4822 = vadd.f32 %v4725, %v4821
      %v4823 = vpop.f32.mrb[0].mxu0
      %v4824 = vpop.f32.mrb[0].mxu0
      %v4825 = vadd.f32 %v4728, %v4824
      %v4826 = vpop.f32.mrb[0].mxu0
      %4827 = vmatprep.mubr.bf16.mxu0 %v2633
      %4828 = vmatmul.mubr.bf16.gmra.mrb[0].mxu0 %v2632
      %v4829 = vpop.f32.mrb[0].mxu0
      %v4830 = vadd.f32 %v4733, %v4829
      %v4831 = vpop.f32.mrb[0].mxu0
      %v4832 = vpop.f32.mrb[0].mxu0
      %v4833 = vadd.f32 %v4736, %v4832
      %v4834 = vpop.f32.mrb[0].mxu0
      %4835 = vdwg.mxu0
      %4836 = vmatprep.subr.bf16.mxu0 0
      %4837 = vmatpush1.bf16.msra.mxu0 %v3950
      %4838 = vmatprep.subr.bf16.mxu0 0
      %4839 = vmatpush1.bf16.msra.mxu0 %v3951
      %4840 = vmatprep.subr.bf16.mxu0 0
      %4841 = vmatpush1.bf16.msra.mxu0 %v3952
      %4842 = vmatprep.subr.bf16.mxu0 0
      %4843 = vmatpush1.bf16.msra.mxu0 %v3953
      %4844 = vmatprep.subr.bf16.mxu0 0
      %4845 = vmatpush1.bf16.msra.mxu0 %v3954
      %4846 = vmatprep.subr.bf16.mxu0 0
      %4847 = vmatpush1.bf16.msra.mxu0 %v3955
      %4848 = vmatprep.subr.bf16.mxu0 0
      %4849 = vmatpush1.bf16.msra.mxu0 %v3956
      %4850 = vmatprep.subr.bf16.mxu0 0
      %4851 = vmatpush1.bf16.msra.mxu0 %v3957
      %4852 = vmatprep.subr.bf16.mxu0 0
      %4853 = vmatpush1.bf16.msra.mxu0 %v3958
      %4854 = vmatprep.subr.bf16.mxu0 0
      %4855 = vmatpush1.bf16.msra.mxu0 %v3959
      %4856 = vmatprep.subr.bf16.mxu0 0
      %4857 = vmatpush1.bf16.msra.mxu0 %v3960
      %4858 = vmatprep.subr.bf16.mxu0 0
      %4859 = vmatpush1.bf16.msra.mxu0 %v3961
      %4860 = vmatprep.subr.bf16.mxu0 0
      %4861 = vmatpush1.bf16.msra.mxu0 %v3962
      %4862 = vmatprep.subr.bf16.mxu0 0
      %4863 = vmatpush1.bf16.msra.mxu0 %v3963
      %4864 = vmatprep.subr.bf16.mxu0 0
      %4865 = vmatpush1.bf16.msra.mxu0 %v3964
      %4866 = vmatprep.subr.bf16.mxu0 0
      %4867 = vmatpush1.bf16.msra.mxu0 %v3965
      %4868 = vmatprep.mubr.bf16.mxu0 %v2460
      %4869 = vmatmul.mubr.bf16.gmra.mrb[0].mxu0 %v2459
      %v4870 = vpop.f32.mrb[0].mxu0
      %v4871 = vadd.f32 %v4774, %v4870
      %v4872 = vpop.f32.mrb[0].mxu0
      %v4873 = vpop.f32.mrb[0].mxu0
      %v4874 = vadd.f32 %v4777, %v4873
      %v4875 = vpop.f32.mrb[0].mxu0
      %4876 = vmatprep.mubr.bf16.mxu0 %v2485
      %4877 = vmatmul.mubr.bf16.gmra.mrb[0].mxu0 %v2484
      %v4878 = vpop.f32.mrb[0].mxu0
      %v4879 = vadd.f32 %v4782, %v4878
      %v4880 = vpop.f32.mrb[0].mxu0
      %v4881 = vpop.f32.mrb[0].mxu0
      %v4882 = vadd.f32 %v4785, %v4881
      %v4883 = vpop.f32.mrb[0].mxu0
      %4884 = vmatprep.mubr.bf16.mxu0 %v2510
      %4885 = vmatmul.mubr.bf16.gmra.mrb[0].mxu0 %v2509
      %v4886 = vpop.f32.mrb[0].mxu0
      %v4887 = vadd.f32 %v4790, %v4886
      %v4888 = vpop.f32.mrb[0].mxu0
      %v4889 = vpop.f32.mrb[0].mxu0
      %v4890 = vadd.f32 %v4793, %v4889
      %v4891 = vpop.f32.mrb[0].mxu0
      %4892 = vmatprep.mubr.bf16.mxu0 %v2535
      %4893 = vmatmul.mubr.bf16.gmra.mrb[0].mxu0 %v2534
      %v4894 = vpop.f32.mrb[0].mxu0
      %v4895 = vadd.f32 %v4798, %v4894
      %v4896 = vpop.f32.mrb[0].mxu0
      %v4897 = vpop.f32.mrb[0].mxu0
      %v4898 = vadd.f32 %v4801, %v4897
      %v4899 = vpop.f32.mrb[0].mxu0
      %4900 = vmatprep.mubr.bf16.mxu0 %v2560
      %4901 = vmatmul.mubr.bf16.gmra.mrb[0].mxu0 %v2559
      %v4902 = vpop.f32.mrb[0].mxu0
      %v4903 = vadd.f32 %v4806, %v4902
      %v4904 = vpop.f32.mrb[0].mxu0
      %v4905 = vpop.f32.mrb[0].mxu0
      %v4906 = vadd.f32 %v4809, %v4905
      %v4907 = vpop.f32.mrb[0].mxu0
      %4908 = vmatprep.mubr.bf16.mxu0 %v2585
      %4909 = vmatmul.mubr.bf16.gmra.mrb[0].mxu0 %v2584
      %v4910 = vpop.f32.mrb[0].mxu0
      %v4911 = vadd.f32 %v4814, %v4910
      %v4912 = vpop.f32.mrb[0].mxu0
      %v4913 = vpop.f32.mrb[0].mxu0
      %v4914 = vadd.f32 %v4817, %v4913
      %v4915 = vpop.f32.mrb[0].mxu0
      %4916 = vmatprep.mubr.bf16.mxu0 %v2610
      %4917 = vmatmul.mubr.bf16.gmra.mrb[0].mxu0 %v2609
      %v4918 = vpop.f32.mrb[0].mxu0
      %v4919 = vadd.f32 %v4822, %v4918
      %v4920 = vpop.f32.mrb[0].mxu0
      %v4921 = vpop.f32.mrb[0].mxu0
      %v4922 = vadd.f32 %v4825, %v4921
      %v4923 = vpop.f32.mrb[0].mxu0
      %4924 = vmatprep.mubr.bf16.mxu0 %v2635
      %4925 = vmatmul.mubr.bf16.gmra.mrb[0].mxu0 %v2634
      %v4926 = vpop.f32.mrb[0].mxu0
      %v4927 = vadd.f32 %v4830, %v4926
      %v4928 = vpop.f32.mrb[0].mxu0
      %v4929 = vpop.f32.mrb[0].mxu0
      %v4930 = vadd.f32 %v4833, %v4929
      %v4931 = vpop.f32.mrb[0].mxu0
      %4932 = vdwg.mxu0
      %4933 = vmatprep.subr.bf16.mxu0 0
      %4934 = vmatpush1.bf16.msra.mxu0 %v3966
      %4935 = vmatprep.subr.bf16.mxu0 0
      %4936 = vmatpush1.bf16.msra.mxu0 %v3967
      %4937 = vmatprep.subr.bf16.mxu0 0
      %4938 = vmatpush1.bf16.msra.mxu0 %v3968
      %4939 = vmatprep.subr.bf16.mxu0 0
      %4940 = vmatpush1.bf16.msra.mxu0 %v3969
      %4941 = vmatprep.subr.bf16.mxu0 0
      %4942 = vmatpush1.bf16.msra.mxu0 %v3970
      %4943 = vmatprep.subr.bf16.mxu0 0
      %4944 = vmatpush1.bf16.msra.mxu0 %v3971
      %4945 = vmatprep.subr.bf16.mxu0 0
      %4946 = vmatpush1.bf16.msra.mxu0 %v3972
      %4947 = vmatprep.subr.bf16.mxu0 0
      %4948 = vmatpush1.bf16.msra.mxu0 %v3973
      %4949 = vmatprep.subr.bf16.mxu0 0
      %4950 = vmatpush1.bf16.msra.mxu0 %v3974
      %4951 = vmatprep.subr.bf16.mxu0 0
      %4952 = vmatpush1.bf16.msra.mxu0 %v3975
      %4953 = vmatprep.subr.bf16.mxu0 0
      %4954 = vmatpush1.bf16.msra.mxu0 %v3976
      %4955 = vmatprep.subr.bf16.mxu0 0
      %4956 = vmatpush1.bf16.msra.mxu0 %v3977
      %4957 = vmatprep.subr.bf16.mxu0 0
      %4958 = vmatpush1.bf16.msra.mxu0 %v3978
      %4959 = vmatprep.subr.bf16.mxu0 0
      %4960 = vmatpush1.bf16.msra.mxu0 %v3979
      %4961 = vmatprep.subr.bf16.mxu0 0
      %4962 = vmatpush1.bf16.msra.mxu0 %v3980
      %4963 = vmatprep.subr.bf16.mxu0 0
      %4964 = vmatpush1.bf16.msra.mxu0 %v3981
      %4965 = vmatprep.mubr.bf16.mxu0 %v2462
      %4966 = vmatmul.mubr.bf16.gmra.mrb[0].mxu0 %v2461
      %v4967 = vpop.f32.mrb[0].mxu0
      %v4968 = vadd.f32 %v4871, %v4967
      %v4969 = vpop.f32.mrb[0].mxu0
      %v4970 = vpop.f32.mrb[0].mxu0
      %v4971 = vadd.f32 %v4874, %v4970
      %v4972 = vpop.f32.mrb[0].mxu0
      %4973 = vmatprep.mubr.bf16.mxu0 %v2487
      %4974 = vmatmul.mubr.bf16.gmra.mrb[0].mxu0 %v2486
      %v4975 = vpop.f32.mrb[0].mxu0
      %v4976 = vadd.f32 %v4879, %v4975
      %v4977 = vpop.f32.mrb[0].mxu0
      %v4978 = vpop.f32.mrb[0].mxu0
      %v4979 = vadd.f32 %v4882, %v4978
      %v4980 = vpop.f32.mrb[0].mxu0
      %4981 = vmatprep.mubr.bf16.mxu0 %v2512
      %4982 = vmatmul.mubr.bf16.gmra.mrb[0].mxu0 %v2511
      %v4983 = vpop.f32.mrb[0].mxu0
      %v4984 = vadd.f32 %v4887, %v4983
      %v4985 = vpop.f32.mrb[0].mxu0
      %v4986 = vpop.f32.mrb[0].mxu0
      %v4987 = vadd.f32 %v4890, %v4986
      %v4988 = vpop.f32.mrb[0].mxu0
      %4989 = vmatprep.mubr.bf16.mxu0 %v2537
      %4990 = vmatmul.mubr.bf16.gmra.mrb[0].mxu0 %v2536
      %v4991 = vpop.f32.mrb[0].mxu0
      %v4992 = vadd.f32 %v4895, %v4991
      %v4993 = vpop.f32.mrb[0].mxu0
      %v4994 = vpop.f32.mrb[0].mxu0
      %v4995 = vadd.f32 %v4898, %v4994
      %v4996 = vpop.f32.mrb[0].mxu0
      %4997 = vmatprep.mubr.bf16.mxu0 %v2562
      %4998 = vmatmul.mubr.bf16.gmra.mrb[0].mxu0 %v2561
      %v4999 = vpop.f32.mrb[0].mxu0
      %v5000 = vadd.f32 %v4903, %v4999
      %v5001 = vpop.f32.mrb[0].mxu0
      %v5002 = vpop.f32.mrb[0].mxu0
      %v5003 = vadd.f32 %v4906, %v5002
      %v5004 = vpop.f32.mrb[0].mxu0
      %5005 = vmatprep.mubr.bf16.mxu0 %v2587
      %5006 = vmatmul.mubr.bf16.gmra.mrb[0].mxu0 %v2586
      %v5007 = vpop.f32.mrb[0].mxu0
      %v5008 = vadd.f32 %v4911, %v5007
      %v5009 = vpop.f32.mrb[0].mxu0
      %v5010 = vpop.f32.mrb[0].mxu0
      %v5011 = vadd.f32 %v4914, %v5010
      %v5012 = vpop.f32.mrb[0].mxu0
      %5013 = vmatprep.mubr.bf16.mxu0 %v2612
      %5014 = vmatmul.mubr.bf16.gmra.mrb[0].mxu0 %v2611
      %v5015 = vpop.f32.mrb[0].mxu0
      %v5016 = vadd.f32 %v4919, %v5015
      %v5017 = vpop.f32.mrb[0].mxu0
      %v5018 = vpop.f32.mrb[0].mxu0
      %v5019 = vadd.f32 %v4922, %v5018
      %v5020 = vpop.f32.mrb[0].mxu0
      %5021 = vmatprep.mubr.bf16.mxu0 %v2637
      %5022 = vmatmul.mubr.bf16.gmra.mrb[0].mxu0 %v2636
      %v5023 = vpop.f32.mrb[0].mxu0
      %v5024 = vadd.f32 %v4927, %v5023
      %v5025 = vpop.f32.mrb[0].mxu0
      %v5026 = vpop.f32.mrb[0].mxu0
      %v5027 = vadd.f32 %v4930, %v5026
      %v5028 = vpop.f32.mrb[0].mxu0
      %5029 = vdwg.mxu0
      %5030 = vmatprep.subr.bf16.mxu0 0
      %5031 = vmatpush1.bf16.msra.mxu0 %v3982
      %5032 = vmatprep.subr.bf16.mxu0 0
      %5033 = vmatpush1.bf16.msra.mxu0 %v3983
      %5034 = vmatprep.subr.bf16.mxu0 0
      %5035 = vmatpush1.bf16.msra.mxu0 %v3984
      %5036 = vmatprep.subr.bf16.mxu0 0
      %5037 = vmatpush1.bf16.msra.mxu0 %v3985
      %5038 = vmatprep.subr.bf16.mxu0 0
      %5039 = vmatpush1.bf16.msra.mxu0 %v3986
      %5040 = vmatprep.subr.bf16.mxu0 0
      %5041 = vmatpush1.bf16.msra.mxu0 %v3987
      %5042 = vmatprep.subr.bf16.mxu0 0
      %5043 = vmatpush1.bf16.msra.mxu0 %v3988
      %5044 = vmatprep.subr.bf16.mxu0 0
      %5045 = vmatpush1.bf16.msra.mxu0 %v3989
      %5046 = vmatprep.subr.bf16.mxu0 0
      %5047 = vmatpush1.bf16.msra.mxu0 %v3990
      %5048 = vmatprep.subr.bf16.mxu0 0
      %5049 = vmatpush1.bf16.msra.mxu0 %v3991
      %5050 = vmatprep.subr.bf16.mxu0 0
      %5051 = vmatpush1.bf16.msra.mxu0 %v3992
      %5052 = vmatprep.subr.bf16.mxu0 0
      %5053 = vmatpush1.bf16.msra.mxu0 %v3993
      %5054 = vmatprep.subr.bf16.mxu0 0
      %5055 = vmatpush1.bf16.msra.mxu0 %v3994
      %5056 = vmatprep.subr.bf16.mxu0 0
      %5057 = vmatpush1.bf16.msra.mxu0 %v3995
      %5058 = vmatprep.subr.bf16.mxu0 0
      %5059 = vmatpush1.bf16.msra.mxu0 %v3996
      %5060 = vmatprep.subr.bf16.mxu0 0
      %5061 = vmatpush1.bf16.msra.mxu0 %v3997
      %5062 = vmatprep.mubr.bf16.mxu0 %v2464
      %5063 = vmatmul.mubr.bf16.gmra.mrb[0].mxu0 %v2463
      %v5064 = vpop.f32.mrb[0].mxu0
      %v5065 = vadd.f32 %v4968, %v5064
      %v5066 = vpop.f32.mrb[0].mxu0
      %v5067 = vpop.f32.mrb[0].mxu0
      %v5068 = vadd.f32 %v4971, %v5067
      %v5069 = vpop.f32.mrb[0].mxu0
      %5070 = vmatprep.mubr.bf16.mxu0 %v2489
      %5071 = vmatmul.mubr.bf16.gmra.mrb[0].mxu0 %v2488
      %v5072 = vpop.f32.mrb[0].mxu0
      %v5073 = vadd.f32 %v4976, %v5072
      %v5074 = vpop.f32.mrb[0].mxu0
      %v5075 = vpop.f32.mrb[0].mxu0
      %v5076 = vadd.f32 %v4979, %v5075
      %v5077 = vpop.f32.mrb[0].mxu0
      %5078 = vmatprep.mubr.bf16.mxu0 %v2514
      %5079 = vmatmul.mubr.bf16.gmra.mrb[0].mxu0 %v2513
      %v5080 = vpop.f32.mrb[0].mxu0
      %v5081 = vadd.f32 %v4984, %v5080
      %v5082 = vpop.f32.mrb[0].mxu0
      %v5083 = vpop.f32.mrb[0].mxu0
      %v5084 = vadd.f32 %v4987, %v5083
      %v5085 = vpop.f32.mrb[0].mxu0
      %5086 = vmatprep.mubr.bf16.mxu0 %v2539
      %5087 = vmatmul.mubr.bf16.gmra.mrb[0].mxu0 %v2538
      %v5088 = vpop.f32.mrb[0].mxu0
      %v5089 = vadd.f32 %v4992, %v5088
      %v5090 = vpop.f32.mrb[0].mxu0
      %v5091 = vpop.f32.mrb[0].mxu0
      %v5092 = vadd.f32 %v4995, %v5091
      %v5093 = vpop.f32.mrb[0].mxu0
      %5094 = vmatprep.mubr.bf16.mxu0 %v2564
      %5095 = vmatmul.mubr.bf16.gmra.mrb[0].mxu0 %v2563
      %v5096 = vpop.f32.mrb[0].mxu0
      %v5097 = vadd.f32 %v5000, %v5096
      %v5098 = vpop.f32.mrb[0].mxu0
      %v5099 = vpop.f32.mrb[0].mxu0
      %v5100 = vadd.f32 %v5003, %v5099
      %v5101 = vpop.f32.mrb[0].mxu0
      %5102 = vmatprep.mubr.bf16.mxu0 %v2589
      %5103 = vmatmul.mubr.bf16.gmra.mrb[0].mxu0 %v2588
      %v5104 = vpop.f32.mrb[0].mxu0
      %v5105 = vadd.f32 %v5008, %v5104
      %v5106 = vpop.f32.mrb[0].mxu0
      %v5107 = vpop.f32.mrb[0].mxu0
      %v5108 = vadd.f32 %v5011, %v5107
      %v5109 = vpop.f32.mrb[0].mxu0
      %5110 = vmatprep.mubr.bf16.mxu0 %v2614
      %5111 = vmatmul.mubr.bf16.gmra.mrb[0].mxu0 %v2613
      %v5112 = vpop.f32.mrb[0].mxu0
      %v5113 = vadd.f32 %v5016, %v5112
      %v5114 = vpop.f32.mrb[0].mxu0
      %v5115 = vpop.f32.mrb[0].mxu0
      %v5116 = vadd.f32 %v5019, %v5115
      %v5117 = vpop.f32.mrb[0].mxu0
      %5118 = vmatprep.mubr.bf16.mxu0 %v2639
      %5119 = vmatmul.mubr.bf16.gmra.mrb[0].mxu0 %v2638
      %v5120 = vpop.f32.mrb[0].mxu0
      %v5121 = vadd.f32 %v5024, %v5120
      %v5122 = vpop.f32.mrb[0].mxu0
      %v5123 = vpop.f32.mrb[0].mxu0
      %v5124 = vadd.f32 %v5027, %v5123
      %v5125 = vpop.f32.mrb[0].mxu0
      %5126 = vdwg.mxu0
      %5127 = vmatprep.subr.bf16.mxu0 0
      %5128 = vmatpush1.bf16.msra.mxu0 %v3998
      %5129 = vmatprep.subr.bf16.mxu0 0
      %5130 = vmatpush1.bf16.msra.mxu0 %v3999
      %5131 = vmatprep.subr.bf16.mxu0 0
      %5132 = vmatpush1.bf16.msra.mxu0 %v4000
      %5133 = vmatprep.subr.bf16.mxu0 0
      %5134 = vmatpush1.bf16.msra.mxu0 %v4001
      %5135 = vmatprep.subr.bf16.mxu0 0
      %5136 = vmatpush1.bf16.msra.mxu0 %v4002
      %5137 = vmatprep.subr.bf16.mxu0 0
      %5138 = vmatpush1.bf16.msra.mxu0 %v4003
      %5139 = vmatprep.subr.bf16.mxu0 0
      %5140 = vmatpush1.bf16.msra.mxu0 %v4004
      %5141 = vmatprep.subr.bf16.mxu0 0
      %5142 = vmatpush1.bf16.msra.mxu0 %v4005
      %5143 = vmatprep.subr.bf16.mxu0 0
      %5144 = vmatpush1.bf16.msra.mxu0 %v4006
      %5145 = vmatprep.subr.bf16.mxu0 0
      %5146 = vmatpush1.bf16.msra.mxu0 %v4007
      %5147 = vmatprep.subr.bf16.mxu0 0
      %5148 = vmatpush1.bf16.msra.mxu0 %v4008
      %5149 = vmatprep.subr.bf16.mxu0 0
      %5150 = vmatpush1.bf16.msra.mxu0 %v4009
      %5151 = vmatprep.subr.bf16.mxu0 0
      %5152 = vmatpush1.bf16.msra.mxu0 %v4010
      %5153 = vmatprep.subr.bf16.mxu0 0
      %5154 = vmatpush1.bf16.msra.mxu0 %v4011
      %5155 = vmatprep.subr.bf16.mxu0 0
      %5156 = vmatpush1.bf16.msra.mxu0 %v4012
      %5157 = vmatprep.subr.bf16.mxu0 0
      %5158 = vmatpush1.bf16.msra.mxu0 %v4013
      %5159 = vmatprep.mubr.bf16.mxu0 %v2466
      %5160 = vmatmul.mubr.bf16.gmra.mrb[0].mxu0 %v2465
      %v5161 = vpop.f32.mrb[0].mxu0
      %v5162 = vadd.f32 %v5065, %v5161
      %v5163 = vpop.f32.mrb[0].mxu0
      %v5164 = vpop.f32.mrb[0].mxu0
      %v5165 = vadd.f32 %v5068, %v5164
      %v5166 = vpop.f32.mrb[0].mxu0
      %5167 = vmatprep.mubr.bf16.mxu0 %v2491
      %5168 = vmatmul.mubr.bf16.gmra.mrb[0].mxu0 %v2490
      %v5169 = vpop.f32.mrb[0].mxu0
      %v5170 = vadd.f32 %v5073, %v5169
      %v5171 = vpop.f32.mrb[0].mxu0
      %v5172 = vpop.f32.mrb[0].mxu0
      %v5173 = vadd.f32 %v5076, %v5172
      %v5174 = vpop.f32.mrb[0].mxu0
      %5175 = vmatprep.mubr.bf16.mxu0 %v2516
      %5176 = vmatmul.mubr.bf16.gmra.mrb[0].mxu0 %v2515
      %v5177 = vpop.f32.mrb[0].mxu0
      %v5178 = vadd.f32 %v5081, %v5177
      %v5179 = vpop.f32.mrb[0].mxu0
      %v5180 = vpop.f32.mrb[0].mxu0
      %v5181 = vadd.f32 %v5084, %v5180
      %v5182 = vpop.f32.mrb[0].mxu0
      %5183 = vmatprep.mubr.bf16.mxu0 %v2541
      %5184 = vmatmul.mubr.bf16.gmra.mrb[0].mxu0 %v2540
      %v5185 = vpop.f32.mrb[0].mxu0
      %v5186 = vadd.f32 %v5089, %v5185
      %v5187 = vpop.f32.mrb[0].mxu0
      %v5188 = vpop.f32.mrb[0].mxu0
      %v5189 = vadd.f32 %v5092, %v5188
      %v5190 = vpop.f32.mrb[0].mxu0
      %5191 = vmatprep.mubr.bf16.mxu0 %v2566
      %5192 = vmatmul.mubr.bf16.gmra.mrb[0].mxu0 %v2565
      %v5193 = vpop.f32.mrb[0].mxu0
      %v5194 = vadd.f32 %v5097, %v5193
      %v5195 = vpop.f32.mrb[0].mxu0
      %v5196 = vpop.f32.mrb[0].mxu0
      %v5197 = vadd.f32 %v5100, %v5196
      %v5198 = vpop.f32.mrb[0].mxu0
      %5199 = vmatprep.mubr.bf16.mxu0 %v2591
      %5200 = vmatmul.mubr.bf16.gmra.mrb[0].mxu0 %v2590
      %v5201 = vpop.f32.mrb[0].mxu0
      %v5202 = vadd.f32 %v5105, %v5201
      %v5203 = vpop.f32.mrb[0].mxu0
      %v5204 = vpop.f32.mrb[0].mxu0
      %v5205 = vadd.f32 %v5108, %v5204
      %v5206 = vpop.f32.mrb[0].mxu0
      %5207 = vmatprep.mubr.bf16.mxu0 %v2616
      %5208 = vmatmul.mubr.bf16.gmra.mrb[0].mxu0 %v2615
      %v5209 = vpop.f32.mrb[0].mxu0
      %v5210 = vadd.f32 %v5113, %v5209
      %v5211 = vpop.f32.mrb[0].mxu0
      %v5212 = vpop.f32.mrb[0].mxu0
      %v5213 = vadd.f32 %v5116, %v5212
      %v5214 = vpop.f32.mrb[0].mxu0
      %5215 = vmatprep.mubr.bf16.mxu0 %v2641
      %5216 = vmatmul.mubr.bf16.gmra.mrb[0].mxu0 %v2640
      %v5217 = vpop.f32.mrb[0].mxu0
      %v5218 = vadd.f32 %v5121, %v5217
      %v5219 = vpop.f32.mrb[0].mxu0
      %v5220 = vpop.f32.mrb[0].mxu0
      %v5221 = vadd.f32 %v5124, %v5220
      %v5222 = vpop.f32.mrb[0].mxu0
      %5223 = vdwg.mxu0
      %5224 = vmatprep.subr.bf16.mxu0 0
      %5225 = vmatpush1.bf16.msra.mxu0 %v4014
      %5226 = vmatprep.subr.bf16.mxu0 0
      %5227 = vmatpush1.bf16.msra.mxu0 %v4015
      %5228 = vmatprep.subr.bf16.mxu0 0
      %5229 = vmatpush1.bf16.msra.mxu0 %v4016
      %5230 = vmatprep.subr.bf16.mxu0 0
      %5231 = vmatpush1.bf16.msra.mxu0 %v4017
      %5232 = vmatprep.subr.bf16.mxu0 0
      %5233 = vmatpush1.bf16.msra.mxu0 %v4018
      %5234 = vmatprep.subr.bf16.mxu0 0
      %5235 = vmatpush1.bf16.msra.mxu0 %v4019
      %5236 = vmatprep.subr.bf16.mxu0 0
      %5237 = vmatpush1.bf16.msra.mxu0 %v4020
      %5238 = vmatprep.subr.bf16.mxu0 0
      %5239 = vmatpush1.bf16.msra.mxu0 %v4021
      %5240 = vmatprep.subr.bf16.mxu0 0
      %5241 = vmatpush1.bf16.msra.mxu0 %v4022
      %5242 = vmatprep.subr.bf16.mxu0 0
      %5243 = vmatpush1.bf16.msra.mxu0 %v4023
      %5244 = vmatprep.subr.bf16.mxu0 0
      %5245 = vmatpush1.bf16.msra.mxu0 %v4024
      %5246 = vmatprep.subr.bf16.mxu0 0
      %5247 = vmatpush1.bf16.msra.mxu0 %v4025
      %5248 = vmatprep.subr.bf16.mxu0 0
      %5249 = vmatpush1.bf16.msra.mxu0 %v4026
      %5250 = vmatprep.subr.bf16.mxu0 0
      %5251 = vmatpush1.bf16.msra.mxu0 %v4027
      %5252 = vmatprep.subr.bf16.mxu0 0
      %5253 = vmatpush1.bf16.msra.mxu0 %v4028
      %5254 = vmatprep.subr.bf16.mxu0 0
      %5255 = vmatpush1.bf16.msra.mxu0 %v4029
      %5256 = vmatprep.mubr.bf16.mxu0 %v2468
      %5257 = vmatmul.mubr.bf16.gmra.mrb[0].mxu0 %v2467
      %v5258 = vpop.f32.mrb[0].mxu0
      %v5259 = vadd.f32 %v5162, %v5258
      %v5260 = vpop.f32.mrb[0].mxu0
      %v5261 = vpop.f32.mrb[0].mxu0
      %v5262 = vadd.f32 %v5165, %v5261
      %v5263 = vpop.f32.mrb[0].mxu0
      %5264 = vmatprep.mubr.bf16.mxu0 %v2493
      %5265 = vmatmul.mubr.bf16.gmra.mrb[0].mxu0 %v2492
      %v5266 = vpop.f32.mrb[0].mxu0
      %v5267 = vadd.f32 %v5170, %v5266
      %v5268 = vpop.f32.mrb[0].mxu0
      %v5269 = vpop.f32.mrb[0].mxu0
      %v5270 = vadd.f32 %v5173, %v5269
      %v5271 = vpop.f32.mrb[0].mxu0
      %5272 = vmatprep.mubr.bf16.mxu0 %v2518
      %5273 = vmatmul.mubr.bf16.gmra.mrb[0].mxu0 %v2517
      %v5274 = vpop.f32.mrb[0].mxu0
      %v5275 = vadd.f32 %v5178, %v5274
      %v5276 = vpop.f32.mrb[0].mxu0
      %v5277 = vpop.f32.mrb[0].mxu0
      %v5278 = vadd.f32 %v5181, %v5277
      %v5279 = vpop.f32.mrb[0].mxu0
      %5280 = vmatprep.mubr.bf16.mxu0 %v2543
      %5281 = vmatmul.mubr.bf16.gmra.mrb[0].mxu0 %v2542
      %v5282 = vpop.f32.mrb[0].mxu0
      %v5283 = vadd.f32 %v5186, %v5282
      %v5284 = vpop.f32.mrb[0].mxu0
      %v5285 = vpop.f32.mrb[0].mxu0
      %v5286 = vadd.f32 %v5189, %v5285
      %v5287 = vpop.f32.mrb[0].mxu0
      %5288 = vmatprep.mubr.bf16.mxu0 %v2568
      %5289 = vmatmul.mubr.bf16.gmra.mrb[0].mxu0 %v2567
      %v5290 = vpop.f32.mrb[0].mxu0
      %v5291 = vadd.f32 %v5194, %v5290
      %v5292 = vpop.f32.mrb[0].mxu0
      %v5293 = vpop.f32.mrb[0].mxu0
      %v5294 = vadd.f32 %v5197, %v5293
      %v5295 = vpop.f32.mrb[0].mxu0
      %5296 = vmatprep.mubr.bf16.mxu0 %v2593
      %5297 = vmatmul.mubr.bf16.gmra.mrb[0].mxu0 %v2592
      %v5298 = vpop.f32.mrb[0].mxu0
      %v5299 = vadd.f32 %v5202, %v5298
      %v5300 = vpop.f32.mrb[0].mxu0
      %v5301 = vpop.f32.mrb[0].mxu0
      %v5302 = vadd.f32 %v5205, %v5301
      %v5303 = vpop.f32.mrb[0].mxu0
      %5304 = vmatprep.mubr.bf16.mxu0 %v2618
      %5305 = vmatmul.mubr.bf16.gmra.mrb[0].mxu0 %v2617
      %v5306 = vpop.f32.mrb[0].mxu0
      %v5307 = vadd.f32 %v5210, %v5306
      %v5308 = vpop.f32.mrb[0].mxu0
      %v5309 = vpop.f32.mrb[0].mxu0
      %v5310 = vadd.f32 %v5213, %v5309
      %v5311 = vpop.f32.mrb[0].mxu0
      %5312 = vmatprep.mubr.bf16.mxu0 %v2643
      %5313 = vmatmul.mubr.bf16.gmra.mrb[0].mxu0 %v2642
      %v5314 = vpop.f32.mrb[0].mxu0
      %v5315 = vadd.f32 %v5218, %v5314
      %v5316 = vpop.f32.mrb[0].mxu0
      %v5317 = vpop.f32.mrb[0].mxu0
      %v5318 = vadd.f32 %v5221, %v5317
      %v5319 = vpop.f32.mrb[0].mxu0
      %5320 = vdwg.mxu0
      %5321 = vmatprep.subr.bf16.mxu0 0
      %5322 = vmatpush1.bf16.msra.mxu0 %v4030
      %5323 = vmatprep.subr.bf16.mxu0 0
      %5324 = vmatpush1.bf16.msra.mxu0 %v4031
      %5325 = vmatprep.subr.bf16.mxu0 0
      %5326 = vmatpush1.bf16.msra.mxu0 %v4032
      %5327 = vmatprep.subr.bf16.mxu0 0
      %5328 = vmatpush1.bf16.msra.mxu0 %v4033
      %5329 = vmatprep.subr.bf16.mxu0 0
      %5330 = vmatpush1.bf16.msra.mxu0 %v4034
      %5331 = vmatprep.subr.bf16.mxu0 0
      %5332 = vmatpush1.bf16.msra.mxu0 %v4035
      %5333 = vmatprep.subr.bf16.mxu0 0
      %5334 = vmatpush1.bf16.msra.mxu0 %v4036
      %5335 = vmatprep.subr.bf16.mxu0 0
      %5336 = vmatpush1.bf16.msra.mxu0 %v4037
      %5337 = vmatprep.subr.bf16.mxu0 0
      %5338 = vmatpush1.bf16.msra.mxu0 %v4038
      %5339 = vmatprep.subr.bf16.mxu0 0
      %5340 = vmatpush1.bf16.msra.mxu0 %v4039
      %5341 = vmatprep.subr.bf16.mxu0 0
      %5342 = vmatpush1.bf16.msra.mxu0 %v4040
      %5343 = vmatprep.subr.bf16.mxu0 0
      %5344 = vmatpush1.bf16.msra.mxu0 %v4041
      %5345 = vmatprep.subr.bf16.mxu0 0
      %5346 = vmatpush1.bf16.msra.mxu0 %v4042
      %5347 = vmatprep.subr.bf16.mxu0 0
      %5348 = vmatpush1.bf16.msra.mxu0 %v4043
      %5349 = vmatprep.subr.bf16.mxu0 0
      %5350 = vmatpush1.bf16.msra.mxu0 %v4044
      %5351 = vmatprep.subr.bf16.mxu0 0
      %5352 = vmatpush1.bf16.msra.mxu0 %v4045
      %5353 = vmatprep.mubr.bf16.mxu0 %v2470
      %5354 = vmatmul.mubr.bf16.gmra.mrb[0].mxu0 %v2469
      %v5355 = vpop.f32.mrb[0].mxu0
      %v5356 = vadd.f32 %v5259, %v5355
      %v5357 = vpop.f32.mrb[0].mxu0
      %v5358 = vpop.f32.mrb[0].mxu0
      %v5359 = vadd.f32 %v5262, %v5358
      %v5360 = vpop.f32.mrb[0].mxu0
      %5361 = vmatprep.mubr.bf16.mxu0 %v2495
      %5362 = vmatmul.mubr.bf16.gmra.mrb[0].mxu0 %v2494
      %v5363 = vpop.f32.mrb[0].mxu0
      %v5364 = vadd.f32 %v5267, %v5363
      %v5365 = vpop.f32.mrb[0].mxu0
      %v5366 = vpop.f32.mrb[0].mxu0
      %v5367 = vadd.f32 %v5270, %v5366
      %v5368 = vpop.f32.mrb[0].mxu0
      %5369 = vmatprep.mubr.bf16.mxu0 %v2520
      %5370 = vmatmul.mubr.bf16.gmra.mrb[0].mxu0 %v2519
      %v5371 = vpop.f32.mrb[0].mxu0
      %v5372 = vadd.f32 %v5275, %v5371
      %v5373 = vpop.f32.mrb[0].mxu0
      %v5374 = vpop.f32.mrb[0].mxu0
      %v5375 = vadd.f32 %v5278, %v5374
      %v5376 = vpop.f32.mrb[0].mxu0
      %5377 = vmatprep.mubr.bf16.mxu0 %v2545
      %5378 = vmatmul.mubr.bf16.gmra.mrb[0].mxu0 %v2544
      %v5379 = vpop.f32.mrb[0].mxu0
      %v5380 = vadd.f32 %v5283, %v5379
      %v5381 = vpop.f32.mrb[0].mxu0
      %v5382 = vpop.f32.mrb[0].mxu0
      %v5383 = vadd.f32 %v5286, %v5382
      %v5384 = vpop.f32.mrb[0].mxu0
      %5385 = vmatprep.mubr.bf16.mxu0 %v2570
      %5386 = vmatmul.mubr.bf16.gmra.mrb[0].mxu0 %v2569
      %v5387 = vpop.f32.mrb[0].mxu0
      %v5388 = vadd.f32 %v5291, %v5387
      %v5389 = vpop.f32.mrb[0].mxu0
      %v5390 = vpop.f32.mrb[0].mxu0
      %v5391 = vadd.f32 %v5294, %v5390
      %v5392 = vpop.f32.mrb[0].mxu0
      %5393 = vmatprep.mubr.bf16.mxu0 %v2595
      %5394 = vmatmul.mubr.bf16.gmra.mrb[0].mxu0 %v2594
      %v5395 = vpop.f32.mrb[0].mxu0
      %v5396 = vadd.f32 %v5299, %v5395
      %v5397 = vpop.f32.mrb[0].mxu0
      %v5398 = vpop.f32.mrb[0].mxu0
      %v5399 = vadd.f32 %v5302, %v5398
      %v5400 = vpop.f32.mrb[0].mxu0
      %5401 = vmatprep.mubr.bf16.mxu0 %v2620
      %5402 = vmatmul.mubr.bf16.gmra.mrb[0].mxu0 %v2619
      %v5403 = vpop.f32.mrb[0].mxu0
      %v5404 = vadd.f32 %v5307, %v5403
      %v5405 = vpop.f32.mrb[0].mxu0
      %v5406 = vpop.f32.mrb[0].mxu0
      %v5407 = vadd.f32 %v5310, %v5406
      %v5408 = vpop.f32.mrb[0].mxu0
      %5409 = vmatprep.mubr.bf16.mxu0 %v2645
      %5410 = vmatmul.mubr.bf16.gmra.mrb[0].mxu0 %v2644
      %v5411 = vpop.f32.mrb[0].mxu0
      %v5412 = vadd.f32 %v5315, %v5411
      %v5413 = vpop.f32.mrb[0].mxu0
      %v5414 = vpop.f32.mrb[0].mxu0
      %v5415 = vadd.f32 %v5318, %v5414
      %v5416 = vpop.f32.mrb[0].mxu0
      %5417 = vdwg.mxu0
      %5418 = vmatprep.subr.bf16.mxu0 0
      %5419 = vmatpush1.bf16.msra.mxu0 %v4046
      %5420 = vmatprep.subr.bf16.mxu0 0
      %5421 = vmatpush1.bf16.msra.mxu0 %v4047
      %5422 = vmatprep.subr.bf16.mxu0 0
      %5423 = vmatpush1.bf16.msra.mxu0 %v4048
      %5424 = vmatprep.subr.bf16.mxu0 0
      %5425 = vmatpush1.bf16.msra.mxu0 %v4049
      %5426 = vmatprep.subr.bf16.mxu0 0
      %5427 = vmatpush1.bf16.msra.mxu0 %v4050
      %5428 = vmatprep.subr.bf16.mxu0 0
      %5429 = vmatpush1.bf16.msra.mxu0 %v4051
      %5430 = vmatprep.subr.bf16.mxu0 0
      %5431 = vmatpush1.bf16.msra.mxu0 %v4052
      %5432 = vmatprep.subr.bf16.mxu0 0
      %5433 = vmatpush1.bf16.msra.mxu0 %v4053
      %5434 = vmatprep.subr.bf16.mxu0 0
      %5435 = vmatpush1.bf16.msra.mxu0 0
      %5436 = vmatprep.subr.bf16.mxu0 0
      %5437 = vmatpush1.bf16.msra.mxu0 0
      %5438 = vmatprep.subr.bf16.mxu0 0
      %5439 = vmatpush1.bf16.msra.mxu0 0
      %5440 = vmatprep.subr.bf16.mxu0 0
      %5441 = vmatpush1.bf16.msra.mxu0 0
      %5442 = vmatprep.subr.bf16.mxu0 0
      %5443 = vmatpush1.bf16.msra.mxu0 0
      %5444 = vmatprep.subr.bf16.mxu0 0
      %5445 = vmatpush1.bf16.msra.mxu0 0
      %5446 = vmatprep.subr.bf16.mxu0 0
      %5447 = vmatpush1.bf16.msra.mxu0 0
      %5448 = vmatprep.subr.bf16.mxu0 0
      %5449 = vmatpush1.bf16.msra.mxu0 0
      %5450 = vmatprep.mubr.bf16.mxu0 0
      %5451 = vmatmul.mubr.bf16.gmra.mrb[0].mxu0 %v2471
      %v5452 = vpop.f32.mrb[0].mxu0
      %v5453 = vadd.f32 %v5356, %v5452
      %v5454 = vpop.f32.mrb[0].mxu0
      %v5455 = vpop.f32.mrb[0].mxu0
      %v5456 = vadd.f32 %v5359, %v5455
      %v5457 = vpop.f32.mrb[0].mxu0
      %5458 = vmatprep.mubr.bf16.mxu0 0
      %5459 = vmatmul.mubr.bf16.gmra.mrb[0].mxu0 %v2496
      %v5460 = vpop.f32.mrb[0].mxu0
      %v5461 = vadd.f32 %v5364, %v5460
      %v5462 = vpop.f32.mrb[0].mxu0
      %v5463 = vpop.f32.mrb[0].mxu0
      %v5464 = vadd.f32 %v5367, %v5463
      %v5465 = vpop.f32.mrb[0].mxu0
      %5466 = vmatprep.mubr.bf16.mxu0 0
      %5467 = vmatmul.mubr.bf16.gmra.mrb[0].mxu0 %v2521
      %v5468 = vpop.f32.mrb[0].mxu0
      %v5469 = vadd.f32 %v5372, %v5468
      %v5470 = vpop.f32.mrb[0].mxu0
      %v5471 = vpop.f32.mrb[0].mxu0
      %v5472 = vadd.f32 %v5375, %v5471
      %v5473 = vpop.f32.mrb[0].mxu0
      %5474 = vmatprep.mubr.bf16.mxu0 0
      %5475 = vmatmul.mubr.bf16.gmra.mrb[0].mxu0 %v2546
      %v5476 = vpop.f32.mrb[0].mxu0
      %v5477 = vadd.f32 %v5380, %v5476
      %v5478 = vpop.f32.mrb[0].mxu0
      %v5479 = vpop.f32.mrb[0].mxu0
      %v5480 = vadd.f32 %v5383, %v5479
      %v5481 = vpop.f32.mrb[0].mxu0
      %5482 = vmatprep.mubr.bf16.mxu0 0
      %5483 = vmatmul.mubr.bf16.gmra.mrb[0].mxu0 %v2571
      %v5484 = vpop.f32.mrb[0].mxu0
      %v5485 = vadd.f32 %v5388, %v5484
      %v5486 = vpop.f32.mrb[0].mxu0
      %v5487 = vpop.f32.mrb[0].mxu0
      %v5488 = vadd.f32 %v5391, %v5487
      %v5489 = vpop.f32.mrb[0].mxu0
      %5490 = vmatprep.mubr.bf16.mxu0 0
      %5491 = vmatmul.mubr.bf16.gmra.mrb[0].mxu0 %v2596
      %v5492 = vpop.f32.mrb[0].mxu0
      %v5493 = vadd.f32 %v5396, %v5492
      %v5494 = vpop.f32.mrb[0].mxu0
      %v5495 = vpop.f32.mrb[0].mxu0
      %v5496 = vadd.f32 %v5399, %v5495
      %v5497 = vpop.f32.mrb[0].mxu0
      %5498 = vmatprep.mubr.bf16.mxu0 0
      %5499 = vmatmul.mubr.bf16.gmra.mrb[0].mxu0 %v2621
      %v5500 = vpop.f32.mrb[0].mxu0
      %v5501 = vadd.f32 %v5404, %v5500
      %v5502 = vpop.f32.mrb[0].mxu0
      %v5503 = vpop.f32.mrb[0].mxu0
      %v5504 = vadd.f32 %v5407, %v5503
      %v5505 = vpop.f32.mrb[0].mxu0
      %5506 = vmatprep.mubr.bf16.mxu0 0
      %5507 = vmatmul.mubr.bf16.gmra.mrb[0].mxu0 %v2646
      %v5508 = vpop.f32.mrb[0].mxu0
      %v5509 = vadd.f32 %v5412, %v5508
      %v5510 = vpop.f32.mrb[0].mxu0
      %v5511 = vpop.f32.mrb[0].mxu0
      %v5512 = vadd.f32 %v5415, %v5511
      %v5513 = vpop.f32.mrb[0].mxu0
      %5514 = vdwg.mxu0
      %v5515 = vmax.f32 %v5453, 0.0
      %v5516 = vmax.f32 %v5456, 0.0
      %v5517 = vmax.f32 %v5461, 0.0
      %v5518 = vmax.f32 %v5464, 0.0
      %v5519 = vmax.f32 %v5469, 0.0
      %v5520 = vmax.f32 %v5472, 0.0
      %v5521 = vmax.f32 %v5477, 0.0
      %v5522 = vmax.f32 %v5480, 0.0
      %v5523 = vmax.f32 %v5485, 0.0
      %v5524 = vmax.f32 %v5488, 0.0
      %v5525 = vmax.f32 %v5493, 0.0
      %v5526 = vmax.f32 %v5496, 0.0
      %v5527 = vmax.f32 %v5501, 0.0
      %v5528 = vmax.f32 %v5504, 0.0
      %v5529 = vmax.f32 %v5509, 0.0
      %v5530 = vmax.f32 %v5512, 0.0
      %v5531 = vpack.c.bf16 %v5516, %v5515
      %v5532 = vpack.c.bf16 %v5518, %v5517
      %v5533 = vpack.c.bf16 %v5520, %v5519
      %v5534 = vpack.c.bf16 %v5522, %v5521
      %v5535 = vpack.c.bf16 %v5524, %v5523
      %v5536 = vpack.c.bf16 %v5526, %v5525
      %v5537 = vpack.c.bf16 %v5528, %v5527
      %v5538 = vpack.c.bf16 %v5530, %v5529
      %v5547 = vunpack.c.l.b16 %v5531
      %v5548 = vunpack.c.h.b16 %v5531
      %v5549 = vunpack.c.l.b16 %v5532
      %v5550 = vunpack.c.h.b16 %v5532
      %v5551 = vunpack.c.l.b16 %v5533
      %v5552 = vunpack.c.h.b16 %v5533
      %v5553 = vunpack.c.l.b16 %v5534
      %v5554 = vunpack.c.h.b16 %v5534
      %v5555 = vunpack.c.l.b16 %v5535
      %v5556 = vunpack.c.h.b16 %v5535
      %v5557 = vunpack.c.l.b16 %v5536
      %v5558 = vunpack.c.h.b16 %v5536
      %v5559 = vunpack.c.l.b16 %v5537
      %v5560 = vunpack.c.h.b16 %v5537
      %v5561 = vunpack.c.l.b16 %v5538
      %v5562 = vunpack.c.h.b16 %v5538
      %v5563 = vpack.c.b16 %v5547, %v5547
      %v5564 = vpack.c.b16 %v5548, %v5548
      %v5565 = vpack.c.b16 %v5549, %v5549
      %v5566 = vpack.c.b16 %v5550, %v5550
      %v5567 = vpack.c.b16 %v5551, %v5551
      %v5568 = vpack.c.b16 %v5552, %v5552
      %v5569 = vpack.c.b16 %v5553, %v5553
      %v5570 = vpack.c.b16 %v5554, %v5554
      %v5571 = vpack.c.b16 %v5555, %v5555
      %v5572 = vpack.c.b16 %v5556, %v5556
      %v5573 = vpack.c.b16 %v5557, %v5557
      %v5574 = vpack.c.b16 %v5558, %v5558
      %v5575 = vpack.c.b16 %v5559, %v5559
      %v5576 = vpack.c.b16 %v5560, %v5560
      %v5577 = vpack.c.b16 %v5561, %v5561
      %v5578 = vpack.c.b16 %v5562, %v5562
      %vm5595 = vcmask 60416
      %5596 = vst.msk [vmem:[%s192] sm:$0xf] %vm5595, %v5563
      %5597 = vst.msk [vmem:[%s192 + $0x4] sm:$0xf] %vm5595, %v5564
      %5598 = vst.msk [vmem:[%s192 + $0x8] sm:$0xf] %vm5595, %v5565
      %5599 = vst.msk [vmem:[%s192 + $0xc] sm:$0xf] %vm5595, %v5566
      %5600 = vst.msk [vmem:[%s192 + $0x10] sm:$0xf] %vm5595, %v5567
      %5601 = vst.msk [vmem:[%s192 + $0x14] sm:$0xf] %vm5595, %v5568
      %5602 = vst.msk [vmem:[%s192 + $0x18] sm:$0xf] %vm5595, %v5569
      %5603 = vst.msk [vmem:[%s192 + $0x1c] sm:$0xf] %vm5595, %v5570
      %5604 = vst.msk [vmem:[%s192 + $0x20] sm:$0xf] %vm5595, %v5571
      %5605 = vst.msk [vmem:[%s192 + $0x24] sm:$0xf] %vm5595, %v5572
      %5606 = vst.msk [vmem:[%s192 + $0x28] sm:$0xf] %vm5595, %v5573
      %5607 = vst.msk [vmem:[%s192 + $0x2c] sm:$0xf] %vm5595, %v5574
      %5608 = vst.msk [vmem:[%s192 + $0x30] sm:$0xf] %vm5595, %v5575
      %5609 = vst.msk [vmem:[%s192 + $0x34] sm:$0xf] %vm5595, %v5576
      %5610 = vst.msk [vmem:[%s192 + $0x38] sm:$0xf] %vm5595, %v5577
      %5611 = vst.msk [vmem:[%s192 + $0x3c] sm:$0xf] %vm5595, %v5578
      %s5612 = smul.u32 16, %s19
      %p5613 = scmp.lt.s32.totalorder %s18, 1
      %s5614 = scalar_select %p5613, %s18, 1
      %p5615 = scmp.lt.s32.totalorder %s5612, 31
      %s5616 = scalar_select %p5615, %s5612, 31
      %s5617 = smul.addr %s5614, 32
      %s5618 = sadd.s32 %s5616, %s5617
      %s5619 = smul.addr %s5618, 4
      %s5620 = scalar_lea.vmem %s3, %s5619
      // Predicated region
      $region37: #{inception_forward.6} parent=31 // pred_check
        %p5621 = pneg %p114
      $region38: #{inception_forward.6} parent=31 // pred_check_branch
        %5623 = sbr.rel (%p5621) target = $region40
      $region39: #{inception_forward.6} parent=31 // pred_region
        %s5624 = smul.u32 16, %s19
      $region40: #{inception_forward.6} parent=31 // pred_fallthru
        _
    $region32: #{inception_forward.6} parent=5 // pred_fallthru
      _
    %p5625 = scmp.le.s32.totalorder 2, %s9
    // Predicated region
    $region41: #{inception_forward.6} parent=5 // pred_check
      %p5626 = pneg %p5625
    $region42: #{inception_forward.6} parent=5 // pred_check_branch
      %5628 = sbr.rel (%p5626) target = $region44
    $region43: #{inception_forward.6} parent=5 // pred_region
      %s5629 = ssub.s32 %s9, 2
      // Predicated region
      $region45: #{inception_forward.6} parent=43 // pred_check
        %p5630 = pneg %p120
      $region46: #{inception_forward.6} parent=43 // pred_check_branch
        %5632 = sbr.rel (%p5630) target = $region48
      $region47: #{inception_forward.6} parent=43 // pred_region
        %s5633 = smul.u32 16, %s21
        %p5634 = scmp.lt.s32.totalorder %s20, 1
        %s5635 = scalar_select %p5634, %s20, 1
        %p5636 = scmp.lt.s32.totalorder %s5633, 31
        %s5637 = scalar_select %p5636, %s5633, 31
        %s5638 = smul.addr %s5635, 32
        %s5639 = sadd.s32 %s5637, %s5638
        %s5640 = smul.addr %s5639, 4
        %s5641 = scalar_lea.vmem %s3, %s5640
      $region48: #{inception_forward.6} parent=43 // pred_fallthru
        _
    $region44: #{inception_forward.6} parent=5 // pred_fallthru
      _
  $region6: #{inception_forward.6} parent=0 // loop_footer
    %s13 = sadd.s32 1, %s9
  $region7: #{inception_forward.6} parent=0 // loop_footer_branch
    %8 = sbr.rel target = $region3
  $region8: #{inception_forward.6} parent=0 // loop_exit
    _

</llo_original>
